<compile_context>
chip_gen: v7x
topology: tpu7x:2x2x1
jax: 0.10.0
libtpu: 0.0.40
codegen_flags: <defaults>
</compile_context>

<pallas_src>
import jax
import jax.numpy as jnp
from jax.experimental import pallas as pl
from jax.experimental.pallas import tpu as pltpu


_VMEM = pl.BlockSpec(memory_space=pltpu.MemorySpace.VMEM)


# ---------------------------------------------------------------------------
# Pallas kernels
# ---------------------------------------------------------------------------
def _conv_relu_pool_kernel(p00_ref, p01_ref, p10_ref, p11_ref, w_ref, b_ref, o_ref):
    """Fused 3x3 conv (+bias, ReLU) and 2x2/stride-2 maxpool.

    Each p??_ref is the im2col patch matrix for one phase of the 2x2 pooling
    window, shape (B*Ho*Wo, 9*Cin).  max(conv_phase_i + b) == max(conv_phase_i) + b
    and relu(max(.)) == max(relu(.)), so bias/ReLU are applied once after the max.
    """
    w = w_ref[...]
    a = jnp.dot(p00_ref[...], w, preferred_element_type=jnp.float32)
    a = jnp.maximum(a, jnp.dot(p01_ref[...], w, preferred_element_type=jnp.float32))
    a = jnp.maximum(a, jnp.dot(p10_ref[...], w, preferred_element_type=jnp.float32))
    a = jnp.maximum(a, jnp.dot(p11_ref[...], w, preferred_element_type=jnp.float32))
    o_ref[...] = jnp.maximum(a + b_ref[...], 0.0).astype(o_ref.dtype)


def _conv_relu_kernel(p_ref, w_ref, b_ref, o_ref):
    """3x3 conv as a single im2col matmul + bias + ReLU."""
    acc = jnp.dot(p_ref[...], w_ref[...], preferred_element_type=jnp.float32)
    o_ref[...] = jnp.maximum(acc + b_ref[...], 0.0).astype(o_ref.dtype)


def _pool_mlp_kernel(c00_ref, c01_ref, c10_ref, c11_ref,
                     fc0_w, fc0_b, e1w, e1b, e2w, e2b, e3w, e3b,
                     k1w, k1b, k2w, k2b, emb_ref, cls_ref):
    """Fused: padded 2x2 maxpool (as elementwise max of 4 flattened phase maps)
    -> Linear(5184,256)+ReLU -> fc_embedding -> fc_classifier, all VMEM-resident."""
    feat = jnp.maximum(jnp.maximum(c00_ref[...], c01_ref[...]),
                       jnp.maximum(c10_ref[...], c11_ref[...]))          # (B, 5184)

    h = jnp.dot(feat, fc0_w[...], preferred_element_type=jnp.float32) + fc0_b[...]
    h = jnp.maximum(h, 0.0)                                              # (B, 256)

    e = jnp.dot(h, e1w[...], preferred_element_type=jnp.float32) + e1b[...]
    e = jnp.maximum(e, 0.0)                                              # (B, 128)
    e = jnp.dot(e, e2w[...], preferred_element_type=jnp.float32) + e2b[...]
    e = jnp.maximum(e, 0.0)                                              # (B, 64)
    z = jnp.dot(e, e3w[...], preferred_element_type=jnp.float32) + e3b[...]
    emb = pl.reciprocal(1.0 + jnp.exp(-z), approx=True)                  # sigmoid, (B, 128)

    c = jnp.dot(emb, k1w[...], preferred_element_type=jnp.float32) + k1b[...]
    c = jnp.maximum(c, 0.0)                                              # (B, 42)
    cls = jnp.dot(c, k2w[...], preferred_element_type=jnp.float32) + k2b[...]  # (B, 10)

    emb_ref[...] = emb.astype(emb_ref.dtype)
    cls_ref[...] = cls.astype(cls_ref.dtype)


# ---------------------------------------------------------------------------
# Wrappers (layout plumbing only; all math runs in the Pallas kernels)
# ---------------------------------------------------------------------------
def conv_relu_pool(x, w, b, cout):
    """x: (B, H, W, Cin) NHWC. Conv 3x3 pad=1 + ReLU + maxpool 2x2 stride 2."""
    B, H, W, cin = x.shape
    Ho, Wo = H // 2, W // 2
    xp = jnp.pad(x, ((0, 0), (1, 1), (1, 1), (0, 0)))
    mats = []
    for py in range(2):
        for px in range(2):
            cols = []
            for i in range(3):
                for j in range(3):
                    cols.append(xp[:, py + i: py + i + 2 * Ho: 2,
                                      px + j: px + j + 2 * Wo: 2, :])
            pm = jnp.concatenate(cols, axis=-1)            # (B, Ho, Wo, 9*Cin)
            mats.append(pm.reshape(B * Ho * Wo, 9 * cin))
    out = pl.pallas_call(
        _conv_relu_pool_kernel,
        out_shape=jax.ShapeDtypeStruct((B * Ho * Wo, cout), jnp.float32),
        in_specs=[_VMEM] * 6,
        out_specs=_VMEM,
    )(*mats, w, b.reshape(1, -1))
    return out.reshape(B, Ho, Wo, cout)


def conv_relu(x, w, b, cout):
    """x: (B, H, W, Cin) NHWC. Conv 3x3 pad=1 + ReLU (no pool)."""
    B, H, W, cin = x.shape
    xp = jnp.pad(x, ((0, 0), (1, 1), (1, 1), (0, 0)))
    cols = [xp[:, i:i + H, j:j + W, :] for i in range(3) for j in range(3)]
    patches = jnp.concatenate(cols, axis=-1).reshape(B * H * W, 9 * cin)
    out = pl.pallas_call(
        _conv_relu_kernel,
        out_shape=jax.ShapeDtypeStruct((B * H * W, cout), jnp.float32),
        in_specs=[_VMEM] * 3,
        out_specs=_VMEM,
    )(patches, w, b.reshape(1, -1))
    return out.reshape(B, H, W, cout)


def pool_flatten_mlp(h, params):
    """h: (B, 16, 16, 64) post-conv2 ReLU. MaxPool2d(2,2,pad=1) -> flatten (HWC order,
    fc0_w rows are stored in matching order) -> the whole MLP head in one kernel."""
    B = h.shape[0]
    # Pool pad=1: values are post-ReLU (>= 0), so zero padding is equivalent to -inf.
    hp = jnp.pad(h, ((0, 0), (1, 1), (1, 1), (0, 0)))      # (B, 18, 18, 64)
    cands = [hp[:, py:py + 18:2, px:px + 18:2, :].reshape(B, 9 * 9 * 64)
             for py in range(2) for px in range(2)]        # 4 x (B, 5184)
    emb, cls = pl.pallas_call(
        _pool_mlp_kernel,
        out_shape=(jax.ShapeDtypeStruct((B, 128), jnp.float32),
                   jax.ShapeDtypeStruct((B, 10), jnp.float32)),
        in_specs=[_VMEM] * 16,
        out_specs=(_VMEM, _VMEM),
        compiler_params=pltpu.CompilerParams(vmem_limit_bytes=32 * 1024 * 1024),
    )(*cands,
      params["fc0_w"], params["fc0_b"].reshape(1, -1),
      params["emb1_w"], params["emb1_b"].reshape(1, -1),
      params["emb2_w"], params["emb2_b"].reshape(1, -1),
      params["emb3_w"], params["emb3_b"].reshape(1, -1),
      params["cls1_w"], params["cls1_b"].reshape(1, -1),
      params["cls2_w"], params["cls2_b"].reshape(1, -1))
    return emb, cls


# ---------------------------------------------------------------------------
# Parameters (deterministic, synthetic; Kaiming-normal style)
# ---------------------------------------------------------------------------
def init_params(key):
    def kaiming(k, shape, fan_in):
        return jax.random.normal(k, shape, jnp.float32) * jnp.sqrt(2.0 / fan_in)

    keys = jax.random.split(key, 9)
    p = {}
    # conv weights flattened (Kh*Kw*Cin, Cout) in (kh, kw, cin) row order (HWIO).
    p["conv1_w"] = kaiming(keys[0], (9 * 3, 32), 9 * 3)
    p["conv1_b"] = jnp.zeros((32,), jnp.float32)
    p["conv2_w"] = kaiming(keys[1], (9 * 32, 64), 9 * 32)
    p["conv2_b"] = jnp.zeros((64,), jnp.float32)
    # fc0 rows are in HWC flatten order (the CHW->HWC permutation is folded in here).
    p["fc0_w"] = kaiming(keys[2], (5184, 256), 5184)
    p["fc0_b"] = jnp.zeros((256,), jnp.float32)
    # fc_embedding: 256 -> 128 -> 64 -> 128
    p["emb1_w"] = kaiming(keys[3], (256, 128), 256)
    p["emb1_b"] = jnp.zeros((128,), jnp.float32)
    p["emb2_w"] = kaiming(keys[4], (128, 64), 128)
    p["emb2_b"] = jnp.zeros((64,), jnp.float32)
    p["emb3_w"] = kaiming(keys[5], (64, 128), 64)
    p["emb3_b"] = jnp.zeros((128,), jnp.float32)
    # fc_classifier: 128 -> 42 -> 10   (middle1 = int(128/3) = 42)
    p["cls1_w"] = kaiming(keys[6], (128, 42), 128)
    p["cls1_b"] = jnp.zeros((42,), jnp.float32)
    p["cls2_w"] = kaiming(keys[7], (42, 10), 42)
    p["cls2_b"] = jnp.zeros((10,), jnp.float32)
    return p


# ---------------------------------------------------------------------------
# Forward pass (both siamese branches fused into one batch)
# ---------------------------------------------------------------------------
def forward_batch(params, x_nchw):
    x = jnp.transpose(x_nchw, (0, 2, 3, 1))                      # NCHW -> NHWC
    h = conv_relu_pool(x, params["conv1_w"], params["conv1_b"], 32)   # (B,16,16,32)
    h = conv_relu(h, params["conv2_w"], params["conv2_b"], 64)        # (B,16,16,64)
    emb, cls = pool_flatten_mlp(h, params)                            # (B,128),(B,10)
    return emb, cls


@jax.jit
def siamese_forward(params, x1, x2):
    B = x1.shape[0]
    x = jnp.concatenate([x1, x2], axis=0)        # one pass over both branches
    emb, cls = forward_batch(params, x)
    return emb[:B], emb[B:], cls[:B], cls[B:]


# ---------------------------------------------------------------------------
# Pure-JAX reference (XLA conv / reduce_window) for a correctness sanity check
# ---------------------------------------------------------------------------
def _reference_forward(params, x_nchw):
    x = jnp.transpose(x_nchw, (0, 2, 3, 1))
    w1 = params["conv1_w"].reshape(3, 3, 3, 32)
    h = jax.lax.conv_general_dilated(x, w1, (1, 1), ((1, 1), (1, 1)),
                                     dimension_numbers=("NHWC", "HWIO", "NHWC"))
    h = jnp.maximum(h + params["conv1_b"], 0.0)
    h = jax.lax.reduce_window(h, -jnp.inf, jax.lax.max,
                              (1, 2, 2, 1), (1, 2, 2, 1), "VALID")
    w2 = params["conv2_w"].reshape(3, 3, 32, 64)
    h = jax.lax.conv_general_dilated(h, w2, (1, 1), ((1, 1), (1, 1)),
                                     dimension_numbers=("NHWC", "HWIO", "NHWC"))
    h = jnp.maximum(h + params["conv2_b"], 0.0)
    h = jax.lax.reduce_window(h, -jnp.inf, jax.lax.max,
                              (1, 2, 2, 1), (1, 2, 2, 1),
                              ((0, 0), (1, 1), (1, 1), (0, 0)))
    feat = h.reshape(h.shape[0], -1)                     # HWC flatten (matches fc0_w)
    feat = jnp.maximum(feat @ params["fc0_w"] + params["fc0_b"], 0.0)
    e = jnp.maximum(feat @ params["emb1_w"] + params["emb1_b"], 0.0)
    e = jnp.maximum(e @ params["emb2_w"] + params["emb2_b"], 0.0)
    emb = jax.nn.sigmoid(e @ params["emb3_w"] + params["emb3_b"])
    c = jnp.maximum(emb @ params["cls1_w"] + params["cls1_b"], 0.0)
    cls = c @ params["cls2_w"] + params["cls2_b"]
    return emb, cls


# ---------------------------------------------------------------------------
if __name__ == "__main__":
    key = jax.random.PRNGKey(0)
    kp, k1, k2 = jax.random.split(key, 3)
    params = init_params(kp)

    # Linear(5184, 256) implies 32x32 RGB inputs; batch = 2 per branch.
    x1 = jax.random.normal(k1, (2, 3, 32, 32), jnp.float32)
    x2 = jax.random.normal(k2, (2, 3, 32, 32), jnp.float32)

    emb1, emb2, cls1, cls2 = siamese_forward(params, x1, x2)
    jax.block_until_ready((emb1, emb2, cls1, cls2))

    assert emb1.shape == (2, 128) and emb2.shape == (2, 128)
    assert cls1.shape == (2, 10) and cls2.shape == (2, 10)
    assert bool(jnp.all(jnp.isfinite(emb1))) and bool(jnp.all(jnp.isfinite(cls1)))

    # Correctness check against the pure-XLA reference.  Tolerance is loose
    # because the kernel's sigmoid uses the approximate EUP reciprocal; real
    # indexing/semantics bugs would produce O(1) differences.
    ref_emb1, ref_cls1 = _reference_forward(params, x1)
    ref_emb2, ref_cls2 = _reference_forward(params, x2)
    assert bool(jnp.allclose(emb1, ref_emb1, rtol=1e-1, atol=1e-1))
    assert bool(jnp.allclose(emb2, ref_emb2, rtol=1e-1, atol=1e-1))
    assert bool(jnp.allclose(cls1, ref_cls1, rtol=1e-1, atol=1e-1))
    assert bool(jnp.allclose(cls2, ref_cls2, rtol=1e-1, atol=1e-1))

    print("KERNEL_OK")
</pallas_src>

<mosaic_0001>
module attributes {stable_mosaic.version = 11 : i64} {
  func.func @_conv_relu_pool_kernel(%arg0: memref<1024x27xf32, #tpu.memory_space<vmem>>, %arg1: memref<1024x27xf32, #tpu.memory_space<vmem>>, %arg2: memref<1024x27xf32, #tpu.memory_space<vmem>>, %arg3: memref<1024x27xf32, #tpu.memory_space<vmem>>, %arg4: memref<27x32xf32, #tpu.memory_space<vmem>>, %arg5: memref<1x32xf32, #tpu.memory_space<vmem>>, %arg6: memref<1024x32xf32, #tpu.memory_space<vmem>>) attributes {dimension_semantics = [], scalar_prefetch = 0 : i64, scratch_operands = 0 : i64, tpu.core_type = #tpu.core_type<tc>} {
    %c0 = arith.constant 0 : index
    %c0_0 = arith.constant 0 : index
    %0 = vector.load %arg4[%c0, %c0_0] : memref<27x32xf32, #tpu.memory_space<vmem>>, vector<27x32xf32>
    %c0_1 = arith.constant 0 : index
    %c0_2 = arith.constant 0 : index
    %1 = vector.load %arg0[%c0_1, %c0_2] : memref<1024x27xf32, #tpu.memory_space<vmem>>, vector<1024x27xf32>
    %cst = arith.constant dense<0.000000e+00> : vector<1024x32xf32>
    %2 = tpu.matmul %1, %0, %cst {dimension_numbers = #tpu.dot_dimension_numbers<[1], [0], [0], [1], [0, 0, 1, 1], [], []>} : vector<1024x27xf32>, vector<27x32xf32>, vector<1024x32xf32> -> vector<1024x32xf32>
    %c0_3 = arith.constant 0 : index
    %c0_4 = arith.constant 0 : index
    %3 = vector.load %arg1[%c0_3, %c0_4] : memref<1024x27xf32, #tpu.memory_space<vmem>>, vector<1024x27xf32>
    %cst_5 = arith.constant dense<0.000000e+00> : vector<1024x32xf32>
    %4 = tpu.matmul %3, %0, %cst_5 {dimension_numbers = #tpu.dot_dimension_numbers<[1], [0], [0], [1], [0, 0, 1, 1], [], []>} : vector<1024x27xf32>, vector<27x32xf32>, vector<1024x32xf32> -> vector<1024x32xf32>
    %5 = arith.maximumf %2, %4 : vector<1024x32xf32>
    %c0_6 = arith.constant 0 : index
    %c0_7 = arith.constant 0 : index
    %6 = vector.load %arg2[%c0_6, %c0_7] : memref<1024x27xf32, #tpu.memory_space<vmem>>, vector<1024x27xf32>
    %cst_8 = arith.constant dense<0.000000e+00> : vector<1024x32xf32>
    %7 = tpu.matmul %6, %0, %cst_8 {dimension_numbers = #tpu.dot_dimension_numbers<[1], [0], [0], [1], [0, 0, 1, 1], [], []>} : vector<1024x27xf32>, vector<27x32xf32>, vector<1024x32xf32> -> vector<1024x32xf32>
    %8 = arith.maximumf %5, %7 : vector<1024x32xf32>
    %c0_9 = arith.constant 0 : index
    %c0_10 = arith.constant 0 : index
    %9 = vector.load %arg3[%c0_9, %c0_10] : memref<1024x27xf32, #tpu.memory_space<vmem>>, vector<1024x27xf32>
    %cst_11 = arith.constant dense<0.000000e+00> : vector<1024x32xf32>
    %10 = tpu.matmul %9, %0, %cst_11 {dimension_numbers = #tpu.dot_dimension_numbers<[1], [0], [0], [1], [0, 0, 1, 1], [], []>} : vector<1024x27xf32>, vector<27x32xf32>, vector<1024x32xf32> -> vector<1024x32xf32>
    %11 = arith.maximumf %8, %10 : vector<1024x32xf32>
    %c0_12 = arith.constant 0 : index
    %c0_13 = arith.constant 0 : index
    %12 = vector.load %arg5[%c0_12, %c0_13] : memref<1x32xf32, #tpu.memory_space<vmem>>, vector<1x32xf32>
    %13 = vector.broadcast %12 : vector<1x32xf32> to vector<1024x32xf32>
    %14 = arith.addf %11, %13 : vector<1024x32xf32>
    %cst_14 = arith.constant 0.000000e+00 : f32
    %15 = vector.broadcast %cst_14 : f32 to vector<1024x32xf32>
    %16 = arith.maximumf %14, %15 : vector<1024x32xf32>
    %c0_15 = arith.constant 0 : index
    %c0_16 = arith.constant 0 : index
    %17 = vector.load %arg6[%c0_15, %c0_16] : memref<1024x32xf32, #tpu.memory_space<vmem>>, vector<1024x32xf32>
    tpu.vector_store %arg6[%c0_15, %c0_16], %16 {strides = array<i32>} : memref<1024x32xf32, #tpu.memory_space<vmem>>, vector<1024x32xf32>,
    return
  }
}

module attributes {stable_mosaic.version = 11 : i64} {
  func.func @_conv_relu_kernel(%arg0: memref<1024x288xf32, #tpu.memory_space<vmem>>, %arg1: memref<288x64xf32, #tpu.memory_space<vmem>>, %arg2: memref<1x64xf32, #tpu.memory_space<vmem>>, %arg3: memref<1024x64xf32, #tpu.memory_space<vmem>>) attributes {dimension_semantics = [], scalar_prefetch = 0 : i64, scratch_operands = 0 : i64, tpu.core_type = #tpu.core_type<tc>} {
    %c0 = arith.constant 0 : index
    %c0_0 = arith.constant 0 : index
    %0 = vector.load %arg0[%c0, %c0_0] : memref<1024x288xf32, #tpu.memory_space<vmem>>, vector<1024x288xf32>
    %c0_1 = arith.constant 0 : index
    %c0_2 = arith.constant 0 : index
    %1 = vector.load %arg1[%c0_1, %c0_2] : memref<288x64xf32, #tpu.memory_space<vmem>>, vector<288x64xf32>
    %cst = arith.constant dense<0.000000e+00> : vector<1024x64xf32>
    %2 = tpu.matmul %0, %1, %cst {dimension_numbers = #tpu.dot_dimension_numbers<[1], [0], [0], [1], [0, 0, 1, 1], [], []>} : vector<1024x288xf32>, vector<288x64xf32>, vector<1024x64xf32> -> vector<1024x64xf32>
    %c0_3 = arith.constant 0 : index
    %c0_4 = arith.constant 0 : index
    %3 = vector.load %arg2[%c0_3, %c0_4] : memref<1x64xf32, #tpu.memory_space<vmem>>, vector<1x64xf32>
    %4 = vector.broadcast %3 : vector<1x64xf32> to vector<1024x64xf32>
    %5 = arith.addf %2, %4 : vector<1024x64xf32>
    %cst_5 = arith.constant 0.000000e+00 : f32
    %6 = vector.broadcast %cst_5 : f32 to vector<1024x64xf32>
    %7 = arith.maximumf %5, %6 : vector<1024x64xf32>
    %c0_6 = arith.constant 0 : index
    %c0_7 = arith.constant 0 : index
    %8 = vector.load %arg3[%c0_6, %c0_7] : memref<1024x64xf32, #tpu.memory_space<vmem>>, vector<1024x64xf32>
    tpu.vector_store %arg3[%c0_6, %c0_7], %7 {strides = array<i32>} : memref<1024x64xf32, #tpu.memory_space<vmem>>, vector<1024x64xf32>,
    return
  }
}

module attributes {stable_mosaic.version = 11 : i64} {
  func.func @_pool_mlp_kernel(%arg0: memref<4x5184xf32, #tpu.memory_space<vmem>>, %arg1: memref<4x5184xf32, #tpu.memory_space<vmem>>, %arg2: memref<4x5184xf32, #tpu.memory_space<vmem>>, %arg3: memref<4x5184xf32, #tpu.memory_space<vmem>>, %arg4: memref<5184x256xf32, #tpu.memory_space<vmem>>, %arg5: memref<1x256xf32, #tpu.memory_space<vmem>>, %arg6: memref<256x128xf32, #tpu.memory_space<vmem>>, %arg7: memref<1x128xf32, #tpu.memory_space<vmem>>, %arg8: memref<128x64xf32, #tpu.memory_space<vmem>>, %arg9: memref<1x64xf32, #tpu.memory_space<vmem>>, %arg10: memref<64x128xf32, #tpu.memory_space<vmem>>, %arg11: memref<1x128xf32, #tpu.memory_space<vmem>>, %arg12: memref<128x42xf32, #tpu.memory_space<vmem>>, %arg13: memref<1x42xf32, #tpu.memory_space<vmem>>, %arg14: memref<42x10xf32, #tpu.memory_space<vmem>>, %arg15: memref<1x10xf32, #tpu.memory_space<vmem>>, %arg16: memref<4x128xf32, #tpu.memory_space<vmem>>, %arg17: memref<4x10xf32, #tpu.memory_space<vmem>>) attributes {dimension_semantics = [], scalar_prefetch = 0 : i64, scratch_operands = 0 : i64, tpu.core_type = #tpu.core_type<tc>} {
    %c0 = arith.constant 0 : index
    %c0_0 = arith.constant 0 : index
    %0 = vector.load %arg0[%c0, %c0_0] : memref<4x5184xf32, #tpu.memory_space<vmem>>, vector<4x5184xf32>
    %c0_1 = arith.constant 0 : index
    %c0_2 = arith.constant 0 : index
    %1 = vector.load %arg1[%c0_1, %c0_2] : memref<4x5184xf32, #tpu.memory_space<vmem>>, vector<4x5184xf32>
    %2 = arith.maximumf %0, %1 : vector<4x5184xf32>
    %c0_3 = arith.constant 0 : index
    %c0_4 = arith.constant 0 : index
    %3 = vector.load %arg2[%c0_3, %c0_4] : memref<4x5184xf32, #tpu.memory_space<vmem>>, vector<4x5184xf32>
    %c0_5 = arith.constant 0 : index
    %c0_6 = arith.constant 0 : index
    %4 = vector.load %arg3[%c0_5, %c0_6] : memref<4x5184xf32, #tpu.memory_space<vmem>>, vector<4x5184xf32>
    %5 = arith.maximumf %3, %4 : vector<4x5184xf32>
    %6 = arith.maximumf %2, %5 : vector<4x5184xf32>
    %c0_7 = arith.constant 0 : index
    %c0_8 = arith.constant 0 : index
    %7 = vector.load %arg4[%c0_7, %c0_8] : memref<5184x256xf32, #tpu.memory_space<vmem>>, vector<5184x256xf32>
    %cst = arith.constant dense<0.000000e+00> : vector<4x256xf32>
    %8 = tpu.matmul %6, %7, %cst {dimension_numbers = #tpu.dot_dimension_numbers<[1], [0], [0], [1], [0, 0, 1, 1], [], []>} : vector<4x5184xf32>, vector<5184x256xf32>, vector<4x256xf32> -> vector<4x256xf32>
    %c0_9 = arith.constant 0 : index
    %c0_10 = arith.constant 0 : index
    %9 = vector.load %arg5[%c0_9, %c0_10] : memref<1x256xf32, #tpu.memory_space<vmem>>, vector<1x256xf32>
    %10 = vector.broadcast %9 : vector<1x256xf32> to vector<4x256xf32>
    %11 = arith.addf %8, %10 : vector<4x256xf32>
    %cst_11 = arith.constant 0.000000e+00 : f32
    %12 = vector.broadcast %cst_11 : f32 to vector<4x256xf32>
    %13 = arith.maximumf %11, %12 : vector<4x256xf32>
    %c0_12 = arith.constant 0 : index
    %c0_13 = arith.constant 0 : index
    %14 = vector.load %arg6[%c0_12, %c0_13] : memref<256x128xf32, #tpu.memory_space<vmem>>, vector<256x128xf32>
    %cst_14 = arith.constant dense<0.000000e+00> : vector<4x128xf32>
    %15 = tpu.matmul %13, %14, %cst_14 {dimension_numbers = #tpu.dot_dimension_numbers<[1], [0], [0], [1], [0, 0, 1, 1], [], []>} : vector<4x256xf32>, vector<256x128xf32>, vector<4x128xf32> -> vector<4x128xf32>
    %c0_15 = arith.constant 0 : index
    %c0_16 = arith.constant 0 : index
    %16 = vector.load %arg7[%c0_15, %c0_16] : memref<1x128xf32, #tpu.memory_space<vmem>>, vector<1x128xf32>
    %17 = vector.broadcast %16 : vector<1x128xf32> to vector<4x128xf32>
    %18 = arith.addf %15, %17 : vector<4x128xf32>
    %cst_17 = arith.constant 0.000000e+00 : f32
    %19 = vector.broadcast %cst_17 : f32 to vector<4x128xf32>
    %20 = arith.maximumf %18, %19 : vector<4x128xf32>
    %c0_18 = arith.constant 0 : index
    %c0_19 = arith.constant 0 : index
    %21 = vector.load %arg8[%c0_18, %c0_19] : memref<128x64xf32, #tpu.memory_space<vmem>>, vector<128x64xf32>
    %cst_20 = arith.constant dense<0.000000e+00> : vector<4x64xf32>
    %22 = tpu.matmul %20, %21, %cst_20 {dimension_numbers = #tpu.dot_dimension_numbers<[1], [0], [0], [1], [0, 0, 1, 1], [], []>} : vector<4x128xf32>, vector<128x64xf32>, vector<4x64xf32> -> vector<4x64xf32>
    %c0_21 = arith.constant 0 : index
    %c0_22 = arith.constant 0 : index
    %23 = vector.load %arg9[%c0_21, %c0_22] : memref<1x64xf32, #tpu.memory_space<vmem>>, vector<1x64xf32>
    %24 = vector.broadcast %23 : vector<1x64xf32> to vector<4x64xf32>
    %25 = arith.addf %22, %24 : vector<4x64xf32>
    %cst_23 = arith.constant 0.000000e+00 : f32
    %26 = vector.broadcast %cst_23 : f32 to vector<4x64xf32>
    %27 = arith.maximumf %25, %26 : vector<4x64xf32>
    %c0_24 = arith.constant 0 : index
    %c0_25 = arith.constant 0 : index
    %28 = vector.load %arg10[%c0_24, %c0_25] : memref<64x128xf32, #tpu.memory_space<vmem>>, vector<64x128xf32>
    %cst_26 = arith.constant dense<0.000000e+00> : vector<4x128xf32>
    %29 = tpu.matmul %27, %28, %cst_26 {dimension_numbers = #tpu.dot_dimension_numbers<[1], [0], [0], [1], [0, 0, 1, 1], [], []>} : vector<4x64xf32>, vector<64x128xf32>, vector<4x128xf32> -> vector<4x128xf32>
    %c0_27 = arith.constant 0 : index
    %c0_28 = arith.constant 0 : index
    %30 = vector.load %arg11[%c0_27, %c0_28] : memref<1x128xf32, #tpu.memory_space<vmem>>, vector<1x128xf32>
    %31 = vector.broadcast %30 : vector<1x128xf32> to vector<4x128xf32>
    %32 = arith.addf %29, %31 : vector<4x128xf32>
    %cst_29 = arith.constant 0.000000e+00 : f32
    %33 = vector.broadcast %cst_29 : f32 to vector<4x128xf32>
    %34 = arith.subf %33, %32 : vector<4x128xf32>
    %35 = math.exp %34 : vector<4x128xf32>
    %cst_30 = arith.constant 1.000000e+00 : f32
    %36 = vector.broadcast %cst_30 : f32 to vector<4x128xf32>
    %37 = arith.addf %36, %35 : vector<4x128xf32>
    %38 = tpu.reciprocal %37 {approx = true} : vector<4x128xf32> -> vector<4x128xf32>
    %c0_31 = arith.constant 0 : index
    %c0_32 = arith.constant 0 : index
    %39 = vector.load %arg12[%c0_31, %c0_32] : memref<128x42xf32, #tpu.memory_space<vmem>>, vector<128x42xf32>
    %cst_33 = arith.constant dense<0.000000e+00> : vector<4x42xf32>
    %40 = tpu.matmul %38, %39, %cst_33 {dimension_numbers = #tpu.dot_dimension_numbers<[1], [0], [0], [1], [0, 0, 1, 1], [], []>} : vector<4x128xf32>, vector<128x42xf32>, vector<4x42xf32> -> vector<4x42xf32>
    %c0_34 = arith.constant 0 : index
    %c0_35 = arith.constant 0 : index
    %41 = vector.load %arg13[%c0_34, %c0_35] : memref<1x42xf32, #tpu.memory_space<vmem>>, vector<1x42xf32>
    %42 = vector.broadcast %41 : vector<1x42xf32> to vector<4x42xf32>
    %43 = arith.addf %40, %42 : vector<4x42xf32>
    %cst_36 = arith.constant 0.000000e+00 : f32
    %44 = vector.broadcast %cst_36 : f32 to vector<4x42xf32>
    %45 = arith.maximumf %43, %44 : vector<4x42xf32>
    %c0_37 = arith.constant 0 : index
    %c0_38 = arith.constant 0 : index
    %46 = vector.load %arg14[%c0_37, %c0_38] : memref<42x10xf32, #tpu.memory_space<vmem>>, vector<42x10xf32>
    %cst_39 = arith.constant dense<0.000000e+00> : vector<4x10xf32>
    %47 = tpu.matmul %45, %46, %cst_39 {dimension_numbers = #tpu.dot_dimension_numbers<[1], [0], [0], [1], [0, 0, 1, 1], [], []>} : vector<4x42xf32>, vector<42x10xf32>, vector<4x10xf32> -> vector<4x10xf32>
    %c0_40 = arith.constant 0 : index
    %c0_41 = arith.constant 0 : index
    %48 = vector.load %arg15[%c0_40, %c0_41] : memref<1x10xf32, #tpu.memory_space<vmem>>, vector<1x10xf32>
    %49 = vector.broadcast %48 : vector<1x10xf32> to vector<4x10xf32>
    %50 = arith.addf %47, %49 : vector<4x10xf32>
    %c0_42 = arith.constant 0 : index
    %c0_43 = arith.constant 0 : index
    %51 = vector.load %arg16[%c0_42, %c0_43] : memref<4x128xf32, #tpu.memory_space<vmem>>, vector<4x128xf32>
    tpu.vector_store %arg16[%c0_42, %c0_43], %38 {strides = array<i32>} : memref<4x128xf32, #tpu.memory_space<vmem>>, vector<4x128xf32>,
    %c0_44 = arith.constant 0 : index
    %c0_45 = arith.constant 0 : index
    %52 = vector.load %arg17[%c0_44, %c0_45] : memref<4x10xf32, #tpu.memory_space<vmem>>, vector<4x10xf32>
    tpu.vector_store %arg17[%c0_44, %c0_45], %50 {strides = array<i32>} : memref<4x10xf32, #tpu.memory_space<vmem>>, vector<4x10xf32>,
    return
  }
}

</mosaic_0001>

<llo_original>
// kernel: siamese_forward.3
$region0: #{siamese_forward.3}
  #allocation0 [shape = 'u32[]', space=smem, size = 0x4, offset = 0x4, fixed_abs, tag = 'smem constant byte address 0x4 - core index']
  #allocation1 [shape = 'u32[144,128]{1,0:T(1,128)}', space=vmem, size = 0x12000, scoped, tag = 'internal scratch']
  %s0 = inlined_call_operand.vmem [shape: f32[1024,27], index: 0, kind: input, shape index: {}]
  %s1 = inlined_call_operand.vmem [shape: f32[1024,27], index: 1, kind: input, shape index: {}]
  %s2 = inlined_call_operand.vmem [shape: f32[1024,27], index: 2, kind: input, shape index: {}]
  %s3 = inlined_call_operand.vmem [shape: f32[1024,27], index: 3, kind: input, shape index: {}]
  %s4 = inlined_call_operand.vmem [shape: f32[27,32], index: 4, kind: input, shape index: {}]
  %s5 = inlined_call_operand.vmem [shape: f32[1,32], index: 5, kind: input, shape index: {}]
  %s6 = inlined_call_operand.vmem [shape: f32[1024,32], index: 6, kind: output, shape index: {}]
  %s7 = sld [smem:[#allocation0]]
  $region34: #{siamese_forward.3} parent=0
    _
  %s9 = ssub.s32 1, %s7
  %s10 = scalar_select 0, %s9, %s7
  // Predicated region
  $region2: #{siamese_forward.3} parent=0 // pred_check
    _
  $region3: #{siamese_forward.3} parent=0 // pred_check_branch
    %12 = sbr.rel (0) target = $region5
  $region4: #{siamese_forward.3} parent=0 // pred_region
    _
  $region5: #{siamese_forward.3} parent=0 // pred_fallthru
    _
  // Predicated region
  $region6: #{siamese_forward.3} parent=0 // pred_check
    _
  $region7: #{siamese_forward.3} parent=0 // pred_check_branch
    %14 = sbr.rel (0) target = $region9
  $region8: #{siamese_forward.3} parent=0 // pred_region
    _
  $region9: #{siamese_forward.3} parent=0 // pred_fallthru
    _
  // Predicated region
  $region10: #{siamese_forward.3} parent=0 // pred_check
    _
  $region11: #{siamese_forward.3} parent=0 // pred_check_branch
    %16 = sbr.rel (0) target = $region13
  $region12: #{siamese_forward.3} parent=0 // pred_region
    _
  $region13: #{siamese_forward.3} parent=0 // pred_fallthru
    _
  // Predicated region
  $region14: #{siamese_forward.3} parent=0 // pred_check
    _
  $region15: #{siamese_forward.3} parent=0 // pred_check_branch
    %18 = sbr.rel (0) target = $region17
  $region16: #{siamese_forward.3} parent=0 // pred_region
    _
  $region17: #{siamese_forward.3} parent=0 // pred_fallthru
    _
  // Predicated region
  $region18: #{siamese_forward.3} parent=0 // pred_check
    _
  $region19: #{siamese_forward.3} parent=0 // pred_check_branch
    %20 = sbr.rel (0) target = $region21
  $region20: #{siamese_forward.3} parent=0 // pred_region
    _
  $region21: #{siamese_forward.3} parent=0 // pred_fallthru
    _
  // Predicated region
  $region22: #{siamese_forward.3} parent=0 // pred_check
    _
  $region23: #{siamese_forward.3} parent=0 // pred_check_branch
    %22 = sbr.rel (0) target = $region25
  $region24: #{siamese_forward.3} parent=0 // pred_region
    _
  $region25: #{siamese_forward.3} parent=0 // pred_fallthru
    _
  %v23 = vld [vmem:[%s4] sm:$0xff]
  %v24 = vld [vmem:[%s4 + $0x8] sm:$0xff]
  %v25 = vld [vmem:[%s4 + $0x10] sm:$0xff]
  %v26 = vld [vmem:[%s4 + $0x18] sm:$0x7]
  %v27 = vld [vmem:[%s0] sm:$0xff]
  %v28 = vld [vmem:[%s0 + $0x8] sm:$0xff]
  %v29 = vld [vmem:[%s0 + $0x10] sm:$0xff]
  %v30 = vld [vmem:[%s0 + $0x18] sm:$0xff]
  %v31 = vld [vmem:[%s0 + $0x20] sm:$0xff]
  %v32 = vld [vmem:[%s0 + $0x28] sm:$0xff]
  %v33 = vld [vmem:[%s0 + $0x30] sm:$0xff]
  %v34 = vld [vmem:[%s0 + $0x38] sm:$0xff]
  %v35 = vld [vmem:[%s0 + $0x40] sm:$0xff]
  %v36 = vld [vmem:[%s0 + $0x48] sm:$0xff]
  %v37 = vld [vmem:[%s0 + $0x50] sm:$0xff]
  %v38 = vld [vmem:[%s0 + $0x58] sm:$0xff]
  %v39 = vld [vmem:[%s0 + $0x60] sm:$0xff]
  %v40 = vld [vmem:[%s0 + $0x68] sm:$0xff]
  %v41 = vld [vmem:[%s0 + $0x70] sm:$0xff]
  %v42 = vld [vmem:[%s0 + $0x78] sm:$0xff]
  %v43 = vld [vmem:[%s0 + $0x80] sm:$0xff]
  %v44 = vld [vmem:[%s0 + $0x88] sm:$0xff]
  %v45 = vld [vmem:[%s0 + $0x90] sm:$0xff]
  %v46 = vld [vmem:[%s0 + $0x98] sm:$0xff]
  %v47 = vld [vmem:[%s0 + $0xa0] sm:$0xff]
  %v48 = vld [vmem:[%s0 + $0xa8] sm:$0xff]
  %v49 = vld [vmem:[%s0 + $0xb0] sm:$0xff]
  %v50 = vld [vmem:[%s0 + $0xb8] sm:$0xff]
  %v51 = vld [vmem:[%s0 + $0xc0] sm:$0xff]
  %v52 = vld [vmem:[%s0 + $0xc8] sm:$0xff]
  %v53 = vld [vmem:[%s0 + $0xd0] sm:$0xff]
  %v54 = vld [vmem:[%s0 + $0xd8] sm:$0xff]
  %v55 = vld [vmem:[%s0 + $0xe0] sm:$0xff]
  %v56 = vld [vmem:[%s0 + $0xe8] sm:$0xff]
  %v57 = vld [vmem:[%s0 + $0xf0] sm:$0xff]
  %v58 = vld [vmem:[%s0 + $0xf8] sm:$0xff]
  %v59 = vld [vmem:[%s0 + $0x100] sm:$0xff]
  %v60 = vld [vmem:[%s0 + $0x108] sm:$0xff]
  %v61 = vld [vmem:[%s0 + $0x110] sm:$0xff]
  %v62 = vld [vmem:[%s0 + $0x118] sm:$0xff]
  %v63 = vld [vmem:[%s0 + $0x120] sm:$0xff]
  %v64 = vld [vmem:[%s0 + $0x128] sm:$0xff]
  %v65 = vld [vmem:[%s0 + $0x130] sm:$0xff]
  %v66 = vld [vmem:[%s0 + $0x138] sm:$0xff]
  %v67 = vld [vmem:[%s0 + $0x140] sm:$0xff]
  %v68 = vld [vmem:[%s0 + $0x148] sm:$0xff]
  %v69 = vld [vmem:[%s0 + $0x150] sm:$0xff]
  %v70 = vld [vmem:[%s0 + $0x158] sm:$0xff]
  %v71 = vld [vmem:[%s0 + $0x160] sm:$0xff]
  %v72 = vld [vmem:[%s0 + $0x168] sm:$0xff]
  %v73 = vld [vmem:[%s0 + $0x170] sm:$0xff]
  %v74 = vld [vmem:[%s0 + $0x178] sm:$0xff]
  %v75 = vld [vmem:[%s0 + $0x180] sm:$0xff]
  %v76 = vld [vmem:[%s0 + $0x188] sm:$0xff]
  %v77 = vld [vmem:[%s0 + $0x190] sm:$0xff]
  %v78 = vld [vmem:[%s0 + $0x198] sm:$0xff]
  %v79 = vld [vmem:[%s0 + $0x1a0] sm:$0xff]
  %v80 = vld [vmem:[%s0 + $0x1a8] sm:$0xff]
  %v81 = vld [vmem:[%s0 + $0x1b0] sm:$0xff]
  %v82 = vld [vmem:[%s0 + $0x1b8] sm:$0xff]
  %v83 = vld [vmem:[%s0 + $0x1c0] sm:$0xff]
  %v84 = vld [vmem:[%s0 + $0x1c8] sm:$0xff]
  %v85 = vld [vmem:[%s0 + $0x1d0] sm:$0xff]
  %v86 = vld [vmem:[%s0 + $0x1d8] sm:$0xff]
  %v87 = vld [vmem:[%s0 + $0x1e0] sm:$0xff]
  %v88 = vld [vmem:[%s0 + $0x1e8] sm:$0xff]
  %v89 = vld [vmem:[%s0 + $0x1f0] sm:$0xff]
  %v90 = vld [vmem:[%s0 + $0x1f8] sm:$0xff]
  %v91 = vld [vmem:[%s0 + $0x200] sm:$0xff]
  %v92 = vld [vmem:[%s0 + $0x208] sm:$0xff]
  %v93 = vld [vmem:[%s0 + $0x210] sm:$0xff]
  %v94 = vld [vmem:[%s0 + $0x218] sm:$0xff]
  %v95 = vld [vmem:[%s0 + $0x220] sm:$0xff]
  %v96 = vld [vmem:[%s0 + $0x228] sm:$0xff]
  %v97 = vld [vmem:[%s0 + $0x230] sm:$0xff]
  %v98 = vld [vmem:[%s0 + $0x238] sm:$0xff]
  %v99 = vld [vmem:[%s0 + $0x240] sm:$0xff]
  %v100 = vld [vmem:[%s0 + $0x248] sm:$0xff]
  %v101 = vld [vmem:[%s0 + $0x250] sm:$0xff]
  %v102 = vld [vmem:[%s0 + $0x258] sm:$0xff]
  %v103 = vld [vmem:[%s0 + $0x260] sm:$0xff]
  %v104 = vld [vmem:[%s0 + $0x268] sm:$0xff]
  %v105 = vld [vmem:[%s0 + $0x270] sm:$0xff]
  %v106 = vld [vmem:[%s0 + $0x278] sm:$0xff]
  %v107 = vld [vmem:[%s0 + $0x280] sm:$0xff]
  %v108 = vld [vmem:[%s0 + $0x288] sm:$0xff]
  %v109 = vld [vmem:[%s0 + $0x290] sm:$0xff]
  %v110 = vld [vmem:[%s0 + $0x298] sm:$0xff]
  %v111 = vld [vmem:[%s0 + $0x2a0] sm:$0xff]
  %v112 = vld [vmem:[%s0 + $0x2a8] sm:$0xff]
  %v113 = vld [vmem:[%s0 + $0x2b0] sm:$0xff]
  %v114 = vld [vmem:[%s0 + $0x2b8] sm:$0xff]
  %v115 = vld [vmem:[%s0 + $0x2c0] sm:$0xff]
  %v116 = vld [vmem:[%s0 + $0x2c8] sm:$0xff]
  %v117 = vld [vmem:[%s0 + $0x2d0] sm:$0xff]
  %v118 = vld [vmem:[%s0 + $0x2d8] sm:$0xff]
  %v119 = vld [vmem:[%s0 + $0x2e0] sm:$0xff]
  %v120 = vld [vmem:[%s0 + $0x2e8] sm:$0xff]
  %v121 = vld [vmem:[%s0 + $0x2f0] sm:$0xff]
  %v122 = vld [vmem:[%s0 + $0x2f8] sm:$0xff]
  %v123 = vld [vmem:[%s0 + $0x300] sm:$0xff]
  %v124 = vld [vmem:[%s0 + $0x308] sm:$0xff]
  %v125 = vld [vmem:[%s0 + $0x310] sm:$0xff]
  %v126 = vld [vmem:[%s0 + $0x318] sm:$0xff]
  %v127 = vld [vmem:[%s0 + $0x320] sm:$0xff]
  %v128 = vld [vmem:[%s0 + $0x328] sm:$0xff]
  %v129 = vld [vmem:[%s0 + $0x330] sm:$0xff]
  %v130 = vld [vmem:[%s0 + $0x338] sm:$0xff]
  %v131 = vld [vmem:[%s0 + $0x340] sm:$0xff]
  %v132 = vld [vmem:[%s0 + $0x348] sm:$0xff]
  %v133 = vld [vmem:[%s0 + $0x350] sm:$0xff]
  %v134 = vld [vmem:[%s0 + $0x358] sm:$0xff]
  %v135 = vld [vmem:[%s0 + $0x360] sm:$0xff]
  %v136 = vld [vmem:[%s0 + $0x368] sm:$0xff]
  %v137 = vld [vmem:[%s0 + $0x370] sm:$0xff]
  %v138 = vld [vmem:[%s0 + $0x378] sm:$0xff]
  %v139 = vld [vmem:[%s0 + $0x380] sm:$0xff]
  %v140 = vld [vmem:[%s0 + $0x388] sm:$0xff]
  %v141 = vld [vmem:[%s0 + $0x390] sm:$0xff]
  %v142 = vld [vmem:[%s0 + $0x398] sm:$0xff]
  %v143 = vld [vmem:[%s0 + $0x3a0] sm:$0xff]
  %v144 = vld [vmem:[%s0 + $0x3a8] sm:$0xff]
  %v145 = vld [vmem:[%s0 + $0x3b0] sm:$0xff]
  %v146 = vld [vmem:[%s0 + $0x3b8] sm:$0xff]
  %v147 = vld [vmem:[%s0 + $0x3c0] sm:$0xff]
  %v148 = vld [vmem:[%s0 + $0x3c8] sm:$0xff]
  %v149 = vld [vmem:[%s0 + $0x3d0] sm:$0xff]
  %v150 = vld [vmem:[%s0 + $0x3d8] sm:$0xff]
  %v151 = vld [vmem:[%s0 + $0x3e0] sm:$0xff]
  %v152 = vld [vmem:[%s0 + $0x3e8] sm:$0xff]
  %v153 = vld [vmem:[%s0 + $0x3f0] sm:$0xff]
  %v154 = vld [vmem:[%s0 + $0x3f8] sm:$0xff]
  %vm155 = vcmask 220160
  %v157 = vsel %vm155, %v27, 0
  %v160 = vsel %vm155, %v28, 0
  %v163 = vsel %vm155, %v29, 0
  %v166 = vsel %vm155, %v30, 0
  %v169 = vsel %vm155, %v31, 0
  %v172 = vsel %vm155, %v32, 0
  %v175 = vsel %vm155, %v33, 0
  %v178 = vsel %vm155, %v34, 0
  %v181 = vsel %vm155, %v35, 0
  %v184 = vsel %vm155, %v36, 0
  %v187 = vsel %vm155, %v37, 0
  %v190 = vsel %vm155, %v38, 0
  %v193 = vsel %vm155, %v39, 0
  %v196 = vsel %vm155, %v40, 0
  %v199 = vsel %vm155, %v41, 0
  %v202 = vsel %vm155, %v42, 0
  %v205 = vsel %vm155, %v43, 0
  %v208 = vsel %vm155, %v44, 0
  %v211 = vsel %vm155, %v45, 0
  %v214 = vsel %vm155, %v46, 0
  %v217 = vsel %vm155, %v47, 0
  %v220 = vsel %vm155, %v48, 0
  %v223 = vsel %vm155, %v49, 0
  %v226 = vsel %vm155, %v50, 0
  %v229 = vsel %vm155, %v51, 0
  %v232 = vsel %vm155, %v52, 0
  %v235 = vsel %vm155, %v53, 0
  %v238 = vsel %vm155, %v54, 0
  %v241 = vsel %vm155, %v55, 0
  %v244 = vsel %vm155, %v56, 0
  %v247 = vsel %vm155, %v57, 0
  %v250 = vsel %vm155, %v58, 0
  %v253 = vsel %vm155, %v59, 0
  %v256 = vsel %vm155, %v60, 0
  %v259 = vsel %vm155, %v61, 0
  %v262 = vsel %vm155, %v62, 0
  %v265 = vsel %vm155, %v63, 0
  %v268 = vsel %vm155, %v64, 0
  %v271 = vsel %vm155, %v65, 0
  %v274 = vsel %vm155, %v66, 0
  %v277 = vsel %vm155, %v67, 0
  %v280 = vsel %vm155, %v68, 0
  %v283 = vsel %vm155, %v69, 0
  %v286 = vsel %vm155, %v70, 0
  %v289 = vsel %vm155, %v71, 0
  %v292 = vsel %vm155, %v72, 0
  %v295 = vsel %vm155, %v73, 0
  %v298 = vsel %vm155, %v74, 0
  %v301 = vsel %vm155, %v75, 0
  %v304 = vsel %vm155, %v76, 0
  %v307 = vsel %vm155, %v77, 0
  %v310 = vsel %vm155, %v78, 0
  %v313 = vsel %vm155, %v79, 0
  %v316 = vsel %vm155, %v80, 0
  %v319 = vsel %vm155, %v81, 0
  %v322 = vsel %vm155, %v82, 0
  %v325 = vsel %vm155, %v83, 0
  %v328 = vsel %vm155, %v84, 0
  %v331 = vsel %vm155, %v85, 0
  %v334 = vsel %vm155, %v86, 0
  %v337 = vsel %vm155, %v87, 0
  %v340 = vsel %vm155, %v88, 0
  %v343 = vsel %vm155, %v89, 0
  %v346 = vsel %vm155, %v90, 0
  %v349 = vsel %vm155, %v91, 0
  %v352 = vsel %vm155, %v92, 0
  %v355 = vsel %vm155, %v93, 0
  %v358 = vsel %vm155, %v94, 0
  %v361 = vsel %vm155, %v95, 0
  %v364 = vsel %vm155, %v96, 0
  %v367 = vsel %vm155, %v97, 0
  %v370 = vsel %vm155, %v98, 0
  %v373 = vsel %vm155, %v99, 0
  %v376 = vsel %vm155, %v100, 0
  %v379 = vsel %vm155, %v101, 0
  %v382 = vsel %vm155, %v102, 0
  %v385 = vsel %vm155, %v103, 0
  %v388 = vsel %vm155, %v104, 0
  %v391 = vsel %vm155, %v105, 0
  %v394 = vsel %vm155, %v106, 0
  %v397 = vsel %vm155, %v107, 0
  %v400 = vsel %vm155, %v108, 0
  %v403 = vsel %vm155, %v109, 0
  %v406 = vsel %vm155, %v110, 0
  %v409 = vsel %vm155, %v111, 0
  %v412 = vsel %vm155, %v112, 0
  %v415 = vsel %vm155, %v113, 0
  %v418 = vsel %vm155, %v114, 0
  %v421 = vsel %vm155, %v115, 0
  %v424 = vsel %vm155, %v116, 0
  %v427 = vsel %vm155, %v117, 0
  %v430 = vsel %vm155, %v118, 0
  %v433 = vsel %vm155, %v119, 0
  %v436 = vsel %vm155, %v120, 0
  %v439 = vsel %vm155, %v121, 0
  %v442 = vsel %vm155, %v122, 0
  %v445 = vsel %vm155, %v123, 0
  %v448 = vsel %vm155, %v124, 0
  %v451 = vsel %vm155, %v125, 0
  %v454 = vsel %vm155, %v126, 0
  %v457 = vsel %vm155, %v127, 0
  %v460 = vsel %vm155, %v128, 0
  %v463 = vsel %vm155, %v129, 0
  %v466 = vsel %vm155, %v130, 0
  %v469 = vsel %vm155, %v131, 0
  %v472 = vsel %vm155, %v132, 0
  %v475 = vsel %vm155, %v133, 0
  %v478 = vsel %vm155, %v134, 0
  %v481 = vsel %vm155, %v135, 0
  %v484 = vsel %vm155, %v136, 0
  %v487 = vsel %vm155, %v137, 0
  %v490 = vsel %vm155, %v138, 0
  %v493 = vsel %vm155, %v139, 0
  %v496 = vsel %vm155, %v140, 0
  %v499 = vsel %vm155, %v141, 0
  %v502 = vsel %vm155, %v142, 0
  %v505 = vsel %vm155, %v143, 0
  %v508 = vsel %vm155, %v144, 0
  %v511 = vsel %vm155, %v145, 0
  %v514 = vsel %vm155, %v146, 0
  %v517 = vsel %vm155, %v147, 0
  %v520 = vsel %vm155, %v148, 0
  %v523 = vsel %vm155, %v149, 0
  %v526 = vsel %vm155, %v150, 0
  %v529 = vsel %vm155, %v151, 0
  %v532 = vsel %vm155, %v152, 0
  %v535 = vsel %vm155, %v153, 0
  %v538 = vsel %vm155, %v154, 0
  %vm540 = vcmask 1042432
  %v542 = vsel %vm540, %v26, 0
  %544 = vmatprep.subr.mxu0 0.0
  %545 = vmatpush1.msra.mxu0 %v23
  %546 = vmatprep.subr.mxu0 0.0
  %547 = vmatpush1.msra.mxu0 %v24
  %548 = vmatprep.subr.mxu0 0.0
  %549 = vmatpush1.msra.mxu0 %v25
  %550 = vmatprep.subr.mxu0 0.0
  %551 = vmatpush1.msra.mxu0 %v542
  %552 = vmatprep.subr.mxu0 0.0
  %553 = vmatpush1.msra.mxu0 0.0
  %554 = vmatprep.subr.mxu0 0.0
  %555 = vmatpush1.msra.mxu0 0.0
  %556 = vmatprep.subr.mxu0 0.0
  %557 = vmatpush1.msra.mxu0 0.0
  %558 = vmatprep.subr.mxu0 0.0
  %559 = vmatpush1.msra.mxu0 0.0
  %560 = vmatprep.subr.mxu0 0.0
  %561 = vmatpush1.msra.mxu0 0.0
  %562 = vmatprep.subr.mxu0 0.0
  %563 = vmatpush1.msra.mxu0 0.0
  %564 = vmatprep.subr.mxu0 0.0
  %565 = vmatpush1.msra.mxu0 0.0
  %566 = vmatprep.subr.mxu0 0.0
  %567 = vmatpush1.msra.mxu0 0.0
  %568 = vmatprep.subr.mxu0 0.0
  %569 = vmatpush1.msra.mxu0 0.0
  %570 = vmatprep.subr.mxu0 0.0
  %571 = vmatpush1.msra.mxu0 0.0
  %572 = vmatprep.subr.mxu0 0.0
  %573 = vmatpush1.msra.mxu0 0.0
  %574 = vmatprep.subr.mxu0 0.0
  %575 = vmatpush1.msra.mxu0 0.0
  %576 = vmatprep.subr.mxu0 0.0
  %577 = vmatpush1.msra.mxu0 0.0
  %578 = vmatprep.subr.mxu0 0.0
  %579 = vmatpush1.msra.mxu0 0.0
  %580 = vmatprep.subr.mxu0 0.0
  %581 = vmatpush1.msra.mxu0 0.0
  %582 = vmatprep.subr.mxu0 0.0
  %583 = vmatpush1.msra.mxu0 0.0
  %584 = vmatprep.subr.mxu0 0.0
  %585 = vmatpush1.msra.mxu0 0.0
  %586 = vmatprep.subr.mxu0 0.0
  %587 = vmatpush1.msra.mxu0 0.0
  %588 = vmatprep.subr.mxu0 0.0
  %589 = vmatpush1.msra.mxu0 0.0
  %590 = vmatprep.subr.mxu0 0.0
  %591 = vmatpush1.msra.mxu0 0.0
  %592 = vmatprep.subr.mxu0 0.0
  %593 = vmatpush1.msra.mxu0 0.0
  %594 = vmatprep.subr.mxu0 0.0
  %595 = vmatpush1.msra.mxu0 0.0
  %596 = vmatprep.subr.mxu0 0.0
  %597 = vmatpush1.msra.mxu0 0.0
  %598 = vmatprep.subr.mxu0 0.0
  %599 = vmatpush1.msra.mxu0 0.0
  %600 = vmatprep.subr.mxu0 0.0
  %601 = vmatpush1.msra.mxu0 0.0
  %602 = vmatprep.subr.mxu0 0.0
  %603 = vmatpush1.msra.mxu0 0.0
  %604 = vmatprep.subr.mxu0 0.0
  %605 = vmatpush1.msra.mxu0 0.0
  %606 = vmatprep.subr.mxu0 0.0
  %607 = vmatpush1.msra.mxu0 0.0
  %608 = vmatprep.mubr.f32.mxu0 0.0
  %609 = vmatmul.mubr.f32.gmra.mrb[0].mxu0 %v157
  %v610 = vpop.f32.mrb[0].mxu0
  %v611 = vadd.f32 0.0, %v610
  %v612 = vpop.f32.mrb[0].mxu0
  %613 = vmatprep.mubr.f32.mxu0 0.0
  %614 = vmatmul.mubr.f32.gmra.mrb[0].mxu0 %v160
  %v615 = vpop.f32.mrb[0].mxu0
  %v616 = vadd.f32 0.0, %v615
  %v617 = vpop.f32.mrb[0].mxu0
  %618 = vmatprep.mubr.f32.mxu0 0.0
  %619 = vmatmul.mubr.f32.gmra.mrb[0].mxu0 %v163
  %v620 = vpop.f32.mrb[0].mxu0
  %v621 = vadd.f32 0.0, %v620
  %v622 = vpop.f32.mrb[0].mxu0
  %623 = vmatprep.mubr.f32.mxu0 0.0
  %624 = vmatmul.mubr.f32.gmra.mrb[0].mxu0 %v166
  %v625 = vpop.f32.mrb[0].mxu0
  %v626 = vadd.f32 0.0, %v625
  %v627 = vpop.f32.mrb[0].mxu0
  %628 = vmatprep.mubr.f32.mxu0 0.0
  %629 = vmatmul.mubr.f32.gmra.mrb[0].mxu0 %v169
  %v630 = vpop.f32.mrb[0].mxu0
  %v631 = vadd.f32 0.0, %v630
  %v632 = vpop.f32.mrb[0].mxu0
  %633 = vmatprep.mubr.f32.mxu0 0.0
  %634 = vmatmul.mubr.f32.gmra.mrb[0].mxu0 %v172
  %v635 = vpop.f32.mrb[0].mxu0
  %v636 = vadd.f32 0.0, %v635
  %v637 = vpop.f32.mrb[0].mxu0
  %638 = vmatprep.mubr.f32.mxu0 0.0
  %639 = vmatmul.mubr.f32.gmra.mrb[0].mxu0 %v175
  %v640 = vpop.f32.mrb[0].mxu0
  %v641 = vadd.f32 0.0, %v640
  %v642 = vpop.f32.mrb[0].mxu0
  %643 = vmatprep.mubr.f32.mxu0 0.0
  %644 = vmatmul.mubr.f32.gmra.mrb[0].mxu0 %v178
  %v645 = vpop.f32.mrb[0].mxu0
  %v646 = vadd.f32 0.0, %v645
  %v647 = vpop.f32.mrb[0].mxu0
  %648 = vmatprep.mubr.f32.mxu0 0.0
  %649 = vmatmul.mubr.f32.gmra.mrb[0].mxu0 %v181
  %v650 = vpop.f32.mrb[0].mxu0
  %v651 = vadd.f32 0.0, %v650
  %v652 = vpop.f32.mrb[0].mxu0
  %653 = vmatprep.mubr.f32.mxu0 0.0
  %654 = vmatmul.mubr.f32.gmra.mrb[0].mxu0 %v184
  %v655 = vpop.f32.mrb[0].mxu0
  %v656 = vadd.f32 0.0, %v655
  %v657 = vpop.f32.mrb[0].mxu0
  %658 = vmatprep.mubr.f32.mxu0 0.0
  %659 = vmatmul.mubr.f32.gmra.mrb[0].mxu0 %v187
  %v660 = vpop.f32.mrb[0].mxu0
  %v661 = vadd.f32 0.0, %v660
  %v662 = vpop.f32.mrb[0].mxu0
  %663 = vmatprep.mubr.f32.mxu0 0.0
  %664 = vmatmul.mubr.f32.gmra.mrb[0].mxu0 %v190
  %v665 = vpop.f32.mrb[0].mxu0
  %v666 = vadd.f32 0.0, %v665
  %v667 = vpop.f32.mrb[0].mxu0
  %668 = vmatprep.mubr.f32.mxu0 0.0
  %669 = vmatmul.mubr.f32.gmra.mrb[0].mxu0 %v193
  %v670 = vpop.f32.mrb[0].mxu0
  %v671 = vadd.f32 0.0, %v670
  %v672 = vpop.f32.mrb[0].mxu0
  %673 = vmatprep.mubr.f32.mxu0 0.0
  %674 = vmatmul.mubr.f32.gmra.mrb[0].mxu0 %v196
  %v675 = vpop.f32.mrb[0].mxu0
  %v676 = vadd.f32 0.0, %v675
  %v677 = vpop.f32.mrb[0].mxu0
  %678 = vmatprep.mubr.f32.mxu0 0.0
  %679 = vmatmul.mubr.f32.gmra.mrb[0].mxu0 %v199
  %v680 = vpop.f32.mrb[0].mxu0
  %v681 = vadd.f32 0.0, %v680
  %v682 = vpop.f32.mrb[0].mxu0
  %683 = vmatprep.mubr.f32.mxu0 0.0
  %684 = vmatmul.mubr.f32.gmra.mrb[0].mxu0 %v202
  %v685 = vpop.f32.mrb[0].mxu0
  %v686 = vadd.f32 0.0, %v685
  %v687 = vpop.f32.mrb[0].mxu0
  %688 = vmatprep.mubr.f32.mxu0 0.0
  %689 = vmatmul.mubr.f32.gmra.mrb[0].mxu0 %v205
  %v690 = vpop.f32.mrb[0].mxu0
  %v691 = vadd.f32 0.0, %v690
  %v692 = vpop.f32.mrb[0].mxu0
  %693 = vmatprep.mubr.f32.mxu0 0.0
  %694 = vmatmul.mubr.f32.gmra.mrb[0].mxu0 %v208
  %v695 = vpop.f32.mrb[0].mxu0
  %v696 = vadd.f32 0.0, %v695
  %v697 = vpop.f32.mrb[0].mxu0
  %698 = vmatprep.mubr.f32.mxu0 0.0
  %699 = vmatmul.mubr.f32.gmra.mrb[0].mxu0 %v211
  %v700 = vpop.f32.mrb[0].mxu0
  %v701 = vadd.f32 0.0, %v700
  %v702 = vpop.f32.mrb[0].mxu0
  %703 = vmatprep.mubr.f32.mxu0 0.0
  %704 = vmatmul.mubr.f32.gmra.mrb[0].mxu0 %v214
  %v705 = vpop.f32.mrb[0].mxu0
  %v706 = vadd.f32 0.0, %v705
  %v707 = vpop.f32.mrb[0].mxu0
  %708 = vmatprep.mubr.f32.mxu0 0.0
  %709 = vmatmul.mubr.f32.gmra.mrb[0].mxu0 %v217
  %v710 = vpop.f32.mrb[0].mxu0
  %v711 = vadd.f32 0.0, %v710
  %v712 = vpop.f32.mrb[0].mxu0
  %713 = vmatprep.mubr.f32.mxu0 0.0
  %714 = vmatmul.mubr.f32.gmra.mrb[0].mxu0 %v220
  %v715 = vpop.f32.mrb[0].mxu0
  %v716 = vadd.f32 0.0, %v715
  %v717 = vpop.f32.mrb[0].mxu0
  %718 = vmatprep.mubr.f32.mxu0 0.0
  %719 = vmatmul.mubr.f32.gmra.mrb[0].mxu0 %v223
  %v720 = vpop.f32.mrb[0].mxu0
  %v721 = vadd.f32 0.0, %v720
  %v722 = vpop.f32.mrb[0].mxu0
  %723 = vmatprep.mubr.f32.mxu0 0.0
  %724 = vmatmul.mubr.f32.gmra.mrb[0].mxu0 %v226
  %v725 = vpop.f32.mrb[0].mxu0
  %v726 = vadd.f32 0.0, %v725
  %v727 = vpop.f32.mrb[0].mxu0
  %728 = vmatprep.mubr.f32.mxu0 0.0
  %729 = vmatmul.mubr.f32.gmra.mrb[0].mxu0 %v229
  %v730 = vpop.f32.mrb[0].mxu0
  %v731 = vadd.f32 0.0, %v730
  %v732 = vpop.f32.mrb[0].mxu0
  %733 = vmatprep.mubr.f32.mxu0 0.0
  %734 = vmatmul.mubr.f32.gmra.mrb[0].mxu0 %v232
  %v735 = vpop.f32.mrb[0].mxu0
  %v736 = vadd.f32 0.0, %v735
  %v737 = vpop.f32.mrb[0].mxu0
  %738 = vmatprep.mubr.f32.mxu0 0.0
  %739 = vmatmul.mubr.f32.gmra.mrb[0].mxu0 %v235
  %v740 = vpop.f32.mrb[0].mxu0
  %v741 = vadd.f32 0.0, %v740
  %v742 = vpop.f32.mrb[0].mxu0
  %743 = vmatprep.mubr.f32.mxu0 0.0
  %744 = vmatmul.mubr.f32.gmra.mrb[0].mxu0 %v238
  %v745 = vpop.f32.mrb[0].mxu0
  %v746 = vadd.f32 0.0, %v745
  %v747 = vpop.f32.mrb[0].mxu0
  %748 = vmatprep.mubr.f32.mxu0 0.0
  %749 = vmatmul.mubr.f32.gmra.mrb[0].mxu0 %v241
  %v750 = vpop.f32.mrb[0].mxu0
  %v751 = vadd.f32 0.0, %v750
  %v752 = vpop.f32.mrb[0].mxu0
  %753 = vmatprep.mubr.f32.mxu0 0.0
  %754 = vmatmul.mubr.f32.gmra.mrb[0].mxu0 %v244
  %v755 = vpop.f32.mrb[0].mxu0
  %v756 = vadd.f32 0.0, %v755
  %v757 = vpop.f32.mrb[0].mxu0
  %758 = vmatprep.mubr.f32.mxu0 0.0
  %759 = vmatmul.mubr.f32.gmra.mrb[0].mxu0 %v247
  %v760 = vpop.f32.mrb[0].mxu0
  %v761 = vadd.f32 0.0, %v760
  %v762 = vpop.f32.mrb[0].mxu0
  %763 = vmatprep.mubr.f32.mxu0 0.0
  %764 = vmatmul.mubr.f32.gmra.mrb[0].mxu0 %v250
  %v765 = vpop.f32.mrb[0].mxu0
  %v766 = vadd.f32 0.0, %v765
  %v767 = vpop.f32.mrb[0].mxu0
  %768 = vmatprep.mubr.f32.mxu0 0.0
  %769 = vmatmul.mubr.f32.gmra.mrb[0].mxu0 %v253
  %v770 = vpop.f32.mrb[0].mxu0
  %v771 = vadd.f32 0.0, %v770
  %v772 = vpop.f32.mrb[0].mxu0
  %773 = vmatprep.mubr.f32.mxu0 0.0
  %774 = vmatmul.mubr.f32.gmra.mrb[0].mxu0 %v256
  %v775 = vpop.f32.mrb[0].mxu0
  %v776 = vadd.f32 0.0, %v775
  %v777 = vpop.f32.mrb[0].mxu0
  %778 = vmatprep.mubr.f32.mxu0 0.0
  %779 = vmatmul.mubr.f32.gmra.mrb[0].mxu0 %v259
  %v780 = vpop.f32.mrb[0].mxu0
  %v781 = vadd.f32 0.0, %v780
  %v782 = vpop.f32.mrb[0].mxu0
  %783 = vmatprep.mubr.f32.mxu0 0.0
  %784 = vmatmul.mubr.f32.gmra.mrb[0].mxu0 %v262
  %v785 = vpop.f32.mrb[0].mxu0
  %v786 = vadd.f32 0.0, %v785
  %v787 = vpop.f32.mrb[0].mxu0
  %788 = vmatprep.mubr.f32.mxu0 0.0
  %789 = vmatmul.mubr.f32.gmra.mrb[0].mxu0 %v265
  %v790 = vpop.f32.mrb[0].mxu0
  %v791 = vadd.f32 0.0, %v790
  %v792 = vpop.f32.mrb[0].mxu0
  %793 = vmatprep.mubr.f32.mxu0 0.0
  %794 = vmatmul.mubr.f32.gmra.mrb[0].mxu0 %v268
  %v795 = vpop.f32.mrb[0].mxu0
  %v796 = vadd.f32 0.0, %v795
  %v797 = vpop.f32.mrb[0].mxu0
  %798 = vmatprep.mubr.f32.mxu0 0.0
  %799 = vmatmul.mubr.f32.gmra.mrb[0].mxu0 %v271
  %v800 = vpop.f32.mrb[0].mxu0
  %v801 = vadd.f32 0.0, %v800
  %v802 = vpop.f32.mrb[0].mxu0
  %803 = vmatprep.mubr.f32.mxu0 0.0
  %804 = vmatmul.mubr.f32.gmra.mrb[0].mxu0 %v274
  %v805 = vpop.f32.mrb[0].mxu0
  %v806 = vadd.f32 0.0, %v805
  %v807 = vpop.f32.mrb[0].mxu0
  %808 = vmatprep.mubr.f32.mxu0 0.0
  %809 = vmatmul.mubr.f32.gmra.mrb[0].mxu0 %v277
  %v810 = vpop.f32.mrb[0].mxu0
  %v811 = vadd.f32 0.0, %v810
  %v812 = vpop.f32.mrb[0].mxu0
  %813 = vmatprep.mubr.f32.mxu0 0.0
  %814 = vmatmul.mubr.f32.gmra.mrb[0].mxu0 %v280
  %v815 = vpop.f32.mrb[0].mxu0
  %v816 = vadd.f32 0.0, %v815
  %v817 = vpop.f32.mrb[0].mxu0
  %818 = vmatprep.mubr.f32.mxu0 0.0
  %819 = vmatmul.mubr.f32.gmra.mrb[0].mxu0 %v283
  %v820 = vpop.f32.mrb[0].mxu0
  %v821 = vadd.f32 0.0, %v820
  %v822 = vpop.f32.mrb[0].mxu0
  %823 = vmatprep.mubr.f32.mxu0 0.0
  %824 = vmatmul.mubr.f32.gmra.mrb[0].mxu0 %v286
  %v825 = vpop.f32.mrb[0].mxu0
  %v826 = vadd.f32 0.0, %v825
  %v827 = vpop.f32.mrb[0].mxu0
  %828 = vmatprep.mubr.f32.mxu0 0.0
  %829 = vmatmul.mubr.f32.gmra.mrb[0].mxu0 %v289
  %v830 = vpop.f32.mrb[0].mxu0
  %v831 = vadd.f32 0.0, %v830
  %v832 = vpop.f32.mrb[0].mxu0
  %833 = vmatprep.mubr.f32.mxu0 0.0
  %834 = vmatmul.mubr.f32.gmra.mrb[0].mxu0 %v292
  %v835 = vpop.f32.mrb[0].mxu0
  %v836 = vadd.f32 0.0, %v835
  %v837 = vpop.f32.mrb[0].mxu0
  %838 = vmatprep.mubr.f32.mxu0 0.0
  %839 = vmatmul.mubr.f32.gmra.mrb[0].mxu0 %v295
  %v840 = vpop.f32.mrb[0].mxu0
  %v841 = vadd.f32 0.0, %v840
  %v842 = vpop.f32.mrb[0].mxu0
  %843 = vmatprep.mubr.f32.mxu0 0.0
  %844 = vmatmul.mubr.f32.gmra.mrb[0].mxu0 %v298
  %v845 = vpop.f32.mrb[0].mxu0
  %v846 = vadd.f32 0.0, %v845
  %v847 = vpop.f32.mrb[0].mxu0
  %848 = vmatprep.mubr.f32.mxu0 0.0
  %849 = vmatmul.mubr.f32.gmra.mrb[0].mxu0 %v301
  %v850 = vpop.f32.mrb[0].mxu0
  %v851 = vadd.f32 0.0, %v850
  %v852 = vpop.f32.mrb[0].mxu0
  %853 = vmatprep.mubr.f32.mxu0 0.0
  %854 = vmatmul.mubr.f32.gmra.mrb[0].mxu0 %v304
  %v855 = vpop.f32.mrb[0].mxu0
  %v856 = vadd.f32 0.0, %v855
  %v857 = vpop.f32.mrb[0].mxu0
  %858 = vmatprep.mubr.f32.mxu0 0.0
  %859 = vmatmul.mubr.f32.gmra.mrb[0].mxu0 %v307
  %v860 = vpop.f32.mrb[0].mxu0
  %v861 = vadd.f32 0.0, %v860
  %v862 = vpop.f32.mrb[0].mxu0
  %863 = vmatprep.mubr.f32.mxu0 0.0
  %864 = vmatmul.mubr.f32.gmra.mrb[0].mxu0 %v310
  %v865 = vpop.f32.mrb[0].mxu0
  %v866 = vadd.f32 0.0, %v865
  %v867 = vpop.f32.mrb[0].mxu0
  %868 = vmatprep.mubr.f32.mxu0 0.0
  %869 = vmatmul.mubr.f32.gmra.mrb[0].mxu0 %v313
  %v870 = vpop.f32.mrb[0].mxu0
  %v871 = vadd.f32 0.0, %v870
  %v872 = vpop.f32.mrb[0].mxu0
  %873 = vmatprep.mubr.f32.mxu0 0.0
  %874 = vmatmul.mubr.f32.gmra.mrb[0].mxu0 %v316
  %v875 = vpop.f32.mrb[0].mxu0
  %v876 = vadd.f32 0.0, %v875
  %v877 = vpop.f32.mrb[0].mxu0
  %878 = vmatprep.mubr.f32.mxu0 0.0
  %879 = vmatmul.mubr.f32.gmra.mrb[0].mxu0 %v319
  %v880 = vpop.f32.mrb[0].mxu0
  %v881 = vadd.f32 0.0, %v880
  %v882 = vpop.f32.mrb[0].mxu0
  %883 = vmatprep.mubr.f32.mxu0 0.0
  %884 = vmatmul.mubr.f32.gmra.mrb[0].mxu0 %v322
  %v885 = vpop.f32.mrb[0].mxu0
  %v886 = vadd.f32 0.0, %v885
  %v887 = vpop.f32.mrb[0].mxu0
  %888 = vmatprep.mubr.f32.mxu0 0.0
  %889 = vmatmul.mubr.f32.gmra.mrb[0].mxu0 %v325
  %v890 = vpop.f32.mrb[0].mxu0
  %v891 = vadd.f32 0.0, %v890
  %v892 = vpop.f32.mrb[0].mxu0
  %893 = vmatprep.mubr.f32.mxu0 0.0
  %894 = vmatmul.mubr.f32.gmra.mrb[0].mxu0 %v328
  %v895 = vpop.f32.mrb[0].mxu0
  %v896 = vadd.f32 0.0, %v895
  %v897 = vpop.f32.mrb[0].mxu0
  %898 = vmatprep.mubr.f32.mxu0 0.0
  %899 = vmatmul.mubr.f32.gmra.mrb[0].mxu0 %v331
  %v900 = vpop.f32.mrb[0].mxu0
  %v901 = vadd.f32 0.0, %v900
  %v902 = vpop.f32.mrb[0].mxu0
  %903 = vmatprep.mubr.f32.mxu0 0.0
  %904 = vmatmul.mubr.f32.gmra.mrb[0].mxu0 %v334
  %v905 = vpop.f32.mrb[0].mxu0
  %v906 = vadd.f32 0.0, %v905
  %v907 = vpop.f32.mrb[0].mxu0
  %908 = vmatprep.mubr.f32.mxu0 0.0
  %909 = vmatmul.mubr.f32.gmra.mrb[0].mxu0 %v337
  %v910 = vpop.f32.mrb[0].mxu0
  %v911 = vadd.f32 0.0, %v910
  %v912 = vpop.f32.mrb[0].mxu0
  %913 = vmatprep.mubr.f32.mxu0 0.0
  %914 = vmatmul.mubr.f32.gmra.mrb[0].mxu0 %v340
  %v915 = vpop.f32.mrb[0].mxu0
  %v916 = vadd.f32 0.0, %v915
  %v917 = vpop.f32.mrb[0].mxu0
  %918 = vmatprep.mubr.f32.mxu0 0.0
  %919 = vmatmul.mubr.f32.gmra.mrb[0].mxu0 %v343
  %v920 = vpop.f32.mrb[0].mxu0
  %v921 = vadd.f32 0.0, %v920
  %v922 = vpop.f32.mrb[0].mxu0
  %923 = vmatprep.mubr.f32.mxu0 0.0
  %924 = vmatmul.mubr.f32.gmra.mrb[0].mxu0 %v346
  %v925 = vpop.f32.mrb[0].mxu0
  %v926 = vadd.f32 0.0, %v925
  %v927 = vpop.f32.mrb[0].mxu0
  %928 = vmatprep.mubr.f32.mxu0 0.0
  %929 = vmatmul.mubr.f32.gmra.mrb[0].mxu0 %v349
  %v930 = vpop.f32.mrb[0].mxu0
  %v931 = vadd.f32 0.0, %v930
  %v932 = vpop.f32.mrb[0].mxu0
  %933 = vmatprep.mubr.f32.mxu0 0.0
  %934 = vmatmul.mubr.f32.gmra.mrb[0].mxu0 %v352
  %v935 = vpop.f32.mrb[0].mxu0
  %v936 = vadd.f32 0.0, %v935
  %v937 = vpop.f32.mrb[0].mxu0
  %938 = vmatprep.mubr.f32.mxu0 0.0
  %939 = vmatmul.mubr.f32.gmra.mrb[0].mxu0 %v355
  %v940 = vpop.f32.mrb[0].mxu0
  %v941 = vadd.f32 0.0, %v940
  %v942 = vpop.f32.mrb[0].mxu0
  %943 = vmatprep.mubr.f32.mxu0 0.0
  %944 = vmatmul.mubr.f32.gmra.mrb[0].mxu0 %v358
  %v945 = vpop.f32.mrb[0].mxu0
  %v946 = vadd.f32 0.0, %v945
  %v947 = vpop.f32.mrb[0].mxu0
  %948 = vmatprep.mubr.f32.mxu0 0.0
  %949 = vmatmul.mubr.f32.gmra.mrb[0].mxu0 %v361
  %v950 = vpop.f32.mrb[0].mxu0
  %v951 = vadd.f32 0.0, %v950
  %v952 = vpop.f32.mrb[0].mxu0
  %953 = vmatprep.mubr.f32.mxu0 0.0
  %954 = vmatmul.mubr.f32.gmra.mrb[0].mxu0 %v364
  %v955 = vpop.f32.mrb[0].mxu0
  %v956 = vadd.f32 0.0, %v955
  %v957 = vpop.f32.mrb[0].mxu0
  %958 = vmatprep.mubr.f32.mxu0 0.0
  %959 = vmatmul.mubr.f32.gmra.mrb[0].mxu0 %v367
  %v960 = vpop.f32.mrb[0].mxu0
  %v961 = vadd.f32 0.0, %v960
  %v962 = vpop.f32.mrb[0].mxu0
  %963 = vmatprep.mubr.f32.mxu0 0.0
  %964 = vmatmul.mubr.f32.gmra.mrb[0].mxu0 %v370
  %v965 = vpop.f32.mrb[0].mxu0
  %v966 = vadd.f32 0.0, %v965
  %v967 = vpop.f32.mrb[0].mxu0
  %968 = vmatprep.mubr.f32.mxu0 0.0
  %969 = vmatmul.mubr.f32.gmra.mrb[0].mxu0 %v373
  %v970 = vpop.f32.mrb[0].mxu0
  %v971 = vadd.f32 0.0, %v970
  %v972 = vpop.f32.mrb[0].mxu0
  %973 = vmatprep.mubr.f32.mxu0 0.0
  %974 = vmatmul.mubr.f32.gmra.mrb[0].mxu0 %v376
  %v975 = vpop.f32.mrb[0].mxu0
  %v976 = vadd.f32 0.0, %v975
  %v977 = vpop.f32.mrb[0].mxu0
  %978 = vmatprep.mubr.f32.mxu0 0.0
  %979 = vmatmul.mubr.f32.gmra.mrb[0].mxu0 %v379
  %v980 = vpop.f32.mrb[0].mxu0
  %v981 = vadd.f32 0.0, %v980
  %v982 = vpop.f32.mrb[0].mxu0
  %983 = vmatprep.mubr.f32.mxu0 0.0
  %984 = vmatmul.mubr.f32.gmra.mrb[0].mxu0 %v382
  %v985 = vpop.f32.mrb[0].mxu0
  %v986 = vadd.f32 0.0, %v985
  %v987 = vpop.f32.mrb[0].mxu0
  %988 = vmatprep.mubr.f32.mxu0 0.0
  %989 = vmatmul.mubr.f32.gmra.mrb[0].mxu0 %v385
  %v990 = vpop.f32.mrb[0].mxu0
  %v991 = vadd.f32 0.0, %v990
  %v992 = vpop.f32.mrb[0].mxu0
  %993 = vmatprep.mubr.f32.mxu0 0.0
  %994 = vmatmul.mubr.f32.gmra.mrb[0].mxu0 %v388
  %v995 = vpop.f32.mrb[0].mxu0
  %v996 = vadd.f32 0.0, %v995
  %v997 = vpop.f32.mrb[0].mxu0
  %998 = vmatprep.mubr.f32.mxu0 0.0
  %999 = vmatmul.mubr.f32.gmra.mrb[0].mxu0 %v391
  %v1000 = vpop.f32.mrb[0].mxu0
  %v1001 = vadd.f32 0.0, %v1000
  %v1002 = vpop.f32.mrb[0].mxu0
  %1003 = vmatprep.mubr.f32.mxu0 0.0
  %1004 = vmatmul.mubr.f32.gmra.mrb[0].mxu0 %v394
  %v1005 = vpop.f32.mrb[0].mxu0
  %v1006 = vadd.f32 0.0, %v1005
  %v1007 = vpop.f32.mrb[0].mxu0
  %1008 = vmatprep.mubr.f32.mxu0 0.0
  %1009 = vmatmul.mubr.f32.gmra.mrb[0].mxu0 %v397
  %v1010 = vpop.f32.mrb[0].mxu0
  %v1011 = vadd.f32 0.0, %v1010
  %v1012 = vpop.f32.mrb[0].mxu0
  %1013 = vmatprep.mubr.f32.mxu0 0.0
  %1014 = vmatmul.mubr.f32.gmra.mrb[0].mxu0 %v400
  %v1015 = vpop.f32.mrb[0].mxu0
  %v1016 = vadd.f32 0.0, %v1015
  %v1017 = vpop.f32.mrb[0].mxu0
  %1018 = vmatprep.mubr.f32.mxu0 0.0
  %1019 = vmatmul.mubr.f32.gmra.mrb[0].mxu0 %v403
  %v1020 = vpop.f32.mrb[0].mxu0
  %v1021 = vadd.f32 0.0, %v1020
  %v1022 = vpop.f32.mrb[0].mxu0
  %1023 = vmatprep.mubr.f32.mxu0 0.0
  %1024 = vmatmul.mubr.f32.gmra.mrb[0].mxu0 %v406
  %v1025 = vpop.f32.mrb[0].mxu0
  %v1026 = vadd.f32 0.0, %v1025
  %v1027 = vpop.f32.mrb[0].mxu0
  %1028 = vmatprep.mubr.f32.mxu0 0.0
  %1029 = vmatmul.mubr.f32.gmra.mrb[0].mxu0 %v409
  %v1030 = vpop.f32.mrb[0].mxu0
  %v1031 = vadd.f32 0.0, %v1030
  %v1032 = vpop.f32.mrb[0].mxu0
  %1033 = vmatprep.mubr.f32.mxu0 0.0
  %1034 = vmatmul.mubr.f32.gmra.mrb[0].mxu0 %v412
  %v1035 = vpop.f32.mrb[0].mxu0
  %v1036 = vadd.f32 0.0, %v1035
  %v1037 = vpop.f32.mrb[0].mxu0
  %1038 = vmatprep.mubr.f32.mxu0 0.0
  %1039 = vmatmul.mubr.f32.gmra.mrb[0].mxu0 %v415
  %v1040 = vpop.f32.mrb[0].mxu0
  %v1041 = vadd.f32 0.0, %v1040
  %v1042 = vpop.f32.mrb[0].mxu0
  %1043 = vmatprep.mubr.f32.mxu0 0.0
  %1044 = vmatmul.mubr.f32.gmra.mrb[0].mxu0 %v418
  %v1045 = vpop.f32.mrb[0].mxu0
  %v1046 = vadd.f32 0.0, %v1045
  %v1047 = vpop.f32.mrb[0].mxu0
  %1048 = vmatprep.mubr.f32.mxu0 0.0
  %1049 = vmatmul.mubr.f32.gmra.mrb[0].mxu0 %v421
  %v1050 = vpop.f32.mrb[0].mxu0
  %v1051 = vadd.f32 0.0, %v1050
  %v1052 = vpop.f32.mrb[0].mxu0
  %1053 = vmatprep.mubr.f32.mxu0 0.0
  %1054 = vmatmul.mubr.f32.gmra.mrb[0].mxu0 %v424
  %v1055 = vpop.f32.mrb[0].mxu0
  %v1056 = vadd.f32 0.0, %v1055
  %v1057 = vpop.f32.mrb[0].mxu0
  %1058 = vmatprep.mubr.f32.mxu0 0.0
  %1059 = vmatmul.mubr.f32.gmra.mrb[0].mxu0 %v427
  %v1060 = vpop.f32.mrb[0].mxu0
  %v1061 = vadd.f32 0.0, %v1060
  %v1062 = vpop.f32.mrb[0].mxu0
  %1063 = vmatprep.mubr.f32.mxu0 0.0
  %1064 = vmatmul.mubr.f32.gmra.mrb[0].mxu0 %v430
  %v1065 = vpop.f32.mrb[0].mxu0
  %v1066 = vadd.f32 0.0, %v1065
  %v1067 = vpop.f32.mrb[0].mxu0
  %1068 = vmatprep.mubr.f32.mxu0 0.0
  %1069 = vmatmul.mubr.f32.gmra.mrb[0].mxu0 %v433
  %v1070 = vpop.f32.mrb[0].mxu0
  %v1071 = vadd.f32 0.0, %v1070
  %v1072 = vpop.f32.mrb[0].mxu0
  %1073 = vmatprep.mubr.f32.mxu0 0.0
  %1074 = vmatmul.mubr.f32.gmra.mrb[0].mxu0 %v436
  %v1075 = vpop.f32.mrb[0].mxu0
  %v1076 = vadd.f32 0.0, %v1075
  %v1077 = vpop.f32.mrb[0].mxu0
  %1078 = vmatprep.mubr.f32.mxu0 0.0
  %1079 = vmatmul.mubr.f32.gmra.mrb[0].mxu0 %v439
  %v1080 = vpop.f32.mrb[0].mxu0
  %v1081 = vadd.f32 0.0, %v1080
  %v1082 = vpop.f32.mrb[0].mxu0
  %1083 = vmatprep.mubr.f32.mxu0 0.0
  %1084 = vmatmul.mubr.f32.gmra.mrb[0].mxu0 %v442
  %v1085 = vpop.f32.mrb[0].mxu0
  %v1086 = vadd.f32 0.0, %v1085
  %v1087 = vpop.f32.mrb[0].mxu0
  %1088 = vmatprep.mubr.f32.mxu0 0.0
  %1089 = vmatmul.mubr.f32.gmra.mrb[0].mxu0 %v445
  %v1090 = vpop.f32.mrb[0].mxu0
  %v1091 = vadd.f32 0.0, %v1090
  %v1092 = vpop.f32.mrb[0].mxu0
  %1093 = vmatprep.mubr.f32.mxu0 0.0
  %1094 = vmatmul.mubr.f32.gmra.mrb[0].mxu0 %v448
  %v1095 = vpop.f32.mrb[0].mxu0
  %v1096 = vadd.f32 0.0, %v1095
  %v1097 = vpop.f32.mrb[0].mxu0
  %1098 = vmatprep.mubr.f32.mxu0 0.0
  %1099 = vmatmul.mubr.f32.gmra.mrb[0].mxu0 %v451
  %v1100 = vpop.f32.mrb[0].mxu0
  %v1101 = vadd.f32 0.0, %v1100
  %v1102 = vpop.f32.mrb[0].mxu0
  %1103 = vmatprep.mubr.f32.mxu0 0.0
  %1104 = vmatmul.mubr.f32.gmra.mrb[0].mxu0 %v454
  %v1105 = vpop.f32.mrb[0].mxu0
  %v1106 = vadd.f32 0.0, %v1105
  %v1107 = vpop.f32.mrb[0].mxu0
  %1108 = vmatprep.mubr.f32.mxu0 0.0
  %1109 = vmatmul.mubr.f32.gmra.mrb[0].mxu0 %v457
  %v1110 = vpop.f32.mrb[0].mxu0
  %v1111 = vadd.f32 0.0, %v1110
  %v1112 = vpop.f32.mrb[0].mxu0
  %1113 = vmatprep.mubr.f32.mxu0 0.0
  %1114 = vmatmul.mubr.f32.gmra.mrb[0].mxu0 %v460
  %v1115 = vpop.f32.mrb[0].mxu0
  %v1116 = vadd.f32 0.0, %v1115
  %v1117 = vpop.f32.mrb[0].mxu0
  %1118 = vmatprep.mubr.f32.mxu0 0.0
  %1119 = vmatmul.mubr.f32.gmra.mrb[0].mxu0 %v463
  %v1120 = vpop.f32.mrb[0].mxu0
  %v1121 = vadd.f32 0.0, %v1120
  %v1122 = vpop.f32.mrb[0].mxu0
  %1123 = vmatprep.mubr.f32.mxu0 0.0
  %1124 = vmatmul.mubr.f32.gmra.mrb[0].mxu0 %v466
  %v1125 = vpop.f32.mrb[0].mxu0
  %v1126 = vadd.f32 0.0, %v1125
  %v1127 = vpop.f32.mrb[0].mxu0
  %1128 = vmatprep.mubr.f32.mxu0 0.0
  %1129 = vmatmul.mubr.f32.gmra.mrb[0].mxu0 %v469
  %v1130 = vpop.f32.mrb[0].mxu0
  %v1131 = vadd.f32 0.0, %v1130
  %v1132 = vpop.f32.mrb[0].mxu0
  %1133 = vmatprep.mubr.f32.mxu0 0.0
  %1134 = vmatmul.mubr.f32.gmra.mrb[0].mxu0 %v472
  %v1135 = vpop.f32.mrb[0].mxu0
  %v1136 = vadd.f32 0.0, %v1135
  %v1137 = vpop.f32.mrb[0].mxu0
  %1138 = vmatprep.mubr.f32.mxu0 0.0
  %1139 = vmatmul.mubr.f32.gmra.mrb[0].mxu0 %v475
  %v1140 = vpop.f32.mrb[0].mxu0
  %v1141 = vadd.f32 0.0, %v1140
  %v1142 = vpop.f32.mrb[0].mxu0
  %1143 = vmatprep.mubr.f32.mxu0 0.0
  %1144 = vmatmul.mubr.f32.gmra.mrb[0].mxu0 %v478
  %v1145 = vpop.f32.mrb[0].mxu0
  %v1146 = vadd.f32 0.0, %v1145
  %v1147 = vpop.f32.mrb[0].mxu0
  %1148 = vmatprep.mubr.f32.mxu0 0.0
  %1149 = vmatmul.mubr.f32.gmra.mrb[0].mxu0 %v481
  %v1150 = vpop.f32.mrb[0].mxu0
  %v1151 = vadd.f32 0.0, %v1150
  %v1152 = vpop.f32.mrb[0].mxu0
  %1153 = vmatprep.mubr.f32.mxu0 0.0
  %1154 = vmatmul.mubr.f32.gmra.mrb[0].mxu0 %v484
  %v1155 = vpop.f32.mrb[0].mxu0
  %v1156 = vadd.f32 0.0, %v1155
  %v1157 = vpop.f32.mrb[0].mxu0
  %1158 = vmatprep.mubr.f32.mxu0 0.0
  %1159 = vmatmul.mubr.f32.gmra.mrb[0].mxu0 %v487
  %v1160 = vpop.f32.mrb[0].mxu0
  %v1161 = vadd.f32 0.0, %v1160
  %v1162 = vpop.f32.mrb[0].mxu0
  %1163 = vmatprep.mubr.f32.mxu0 0.0
  %1164 = vmatmul.mubr.f32.gmra.mrb[0].mxu0 %v490
  %v1165 = vpop.f32.mrb[0].mxu0
  %v1166 = vadd.f32 0.0, %v1165
  %v1167 = vpop.f32.mrb[0].mxu0
  %1168 = vmatprep.mubr.f32.mxu0 0.0
  %1169 = vmatmul.mubr.f32.gmra.mrb[0].mxu0 %v493
  %v1170 = vpop.f32.mrb[0].mxu0
  %v1171 = vadd.f32 0.0, %v1170
  %v1172 = vpop.f32.mrb[0].mxu0
  %1173 = vmatprep.mubr.f32.mxu0 0.0
  %1174 = vmatmul.mubr.f32.gmra.mrb[0].mxu0 %v496
  %v1175 = vpop.f32.mrb[0].mxu0
  %v1176 = vadd.f32 0.0, %v1175
  %v1177 = vpop.f32.mrb[0].mxu0
  %1178 = vmatprep.mubr.f32.mxu0 0.0
  %1179 = vmatmul.mubr.f32.gmra.mrb[0].mxu0 %v499
  %v1180 = vpop.f32.mrb[0].mxu0
  %v1181 = vadd.f32 0.0, %v1180
  %v1182 = vpop.f32.mrb[0].mxu0
  %1183 = vmatprep.mubr.f32.mxu0 0.0
  %1184 = vmatmul.mubr.f32.gmra.mrb[0].mxu0 %v502
  %v1185 = vpop.f32.mrb[0].mxu0
  %v1186 = vadd.f32 0.0, %v1185
  %v1187 = vpop.f32.mrb[0].mxu0
  %1188 = vmatprep.mubr.f32.mxu0 0.0
  %1189 = vmatmul.mubr.f32.gmra.mrb[0].mxu0 %v505
  %v1190 = vpop.f32.mrb[0].mxu0
  %v1191 = vadd.f32 0.0, %v1190
  %v1192 = vpop.f32.mrb[0].mxu0
  %1193 = vmatprep.mubr.f32.mxu0 0.0
  %1194 = vmatmul.mubr.f32.gmra.mrb[0].mxu0 %v508
  %v1195 = vpop.f32.mrb[0].mxu0
  %v1196 = vadd.f32 0.0, %v1195
  %v1197 = vpop.f32.mrb[0].mxu0
  %1198 = vmatprep.mubr.f32.mxu0 0.0
  %1199 = vmatmul.mubr.f32.gmra.mrb[0].mxu0 %v511
  %v1200 = vpop.f32.mrb[0].mxu0
  %v1201 = vadd.f32 0.0, %v1200
  %v1202 = vpop.f32.mrb[0].mxu0
  %1203 = vmatprep.mubr.f32.mxu0 0.0
  %1204 = vmatmul.mubr.f32.gmra.mrb[0].mxu0 %v514
  %v1205 = vpop.f32.mrb[0].mxu0
  %v1206 = vadd.f32 0.0, %v1205
  %v1207 = vpop.f32.mrb[0].mxu0
  %1208 = vmatprep.mubr.f32.mxu0 0.0
  %1209 = vmatmul.mubr.f32.gmra.mrb[0].mxu0 %v517
  %v1210 = vpop.f32.mrb[0].mxu0
  %v1211 = vadd.f32 0.0, %v1210
  %v1212 = vpop.f32.mrb[0].mxu0
  %1213 = vmatprep.mubr.f32.mxu0 0.0
  %1214 = vmatmul.mubr.f32.gmra.mrb[0].mxu0 %v520
  %v1215 = vpop.f32.mrb[0].mxu0
  %v1216 = vadd.f32 0.0, %v1215
  %v1217 = vpop.f32.mrb[0].mxu0
  %1218 = vmatprep.mubr.f32.mxu0 0.0
  %1219 = vmatmul.mubr.f32.gmra.mrb[0].mxu0 %v523
  %v1220 = vpop.f32.mrb[0].mxu0
  %v1221 = vadd.f32 0.0, %v1220
  %v1222 = vpop.f32.mrb[0].mxu0
  %1223 = vmatprep.mubr.f32.mxu0 0.0
  %1224 = vmatmul.mubr.f32.gmra.mrb[0].mxu0 %v526
  %v1225 = vpop.f32.mrb[0].mxu0
  %v1226 = vadd.f32 0.0, %v1225
  %v1227 = vpop.f32.mrb[0].mxu0
  %1228 = vmatprep.mubr.f32.mxu0 0.0
  %1229 = vmatmul.mubr.f32.gmra.mrb[0].mxu0 %v529
  %v1230 = vpop.f32.mrb[0].mxu0
  %v1231 = vadd.f32 0.0, %v1230
  %v1232 = vpop.f32.mrb[0].mxu0
  %1233 = vmatprep.mubr.f32.mxu0 0.0
  %1234 = vmatmul.mubr.f32.gmra.mrb[0].mxu0 %v532
  %v1235 = vpop.f32.mrb[0].mxu0
  %v1236 = vadd.f32 0.0, %v1235
  %v1237 = vpop.f32.mrb[0].mxu0
  %1238 = vmatprep.mubr.f32.mxu0 0.0
  %1239 = vmatmul.mubr.f32.gmra.mrb[0].mxu0 %v535
  %v1240 = vpop.f32.mrb[0].mxu0
  %v1241 = vadd.f32 0.0, %v1240
  %v1242 = vpop.f32.mrb[0].mxu0
  %1243 = vmatprep.mubr.f32.mxu0 0.0
  %1244 = vmatmul.mubr.f32.gmra.mrb[0].mxu0 %v538
  %v1245 = vpop.f32.mrb[0].mxu0
  %v1246 = vadd.f32 0.0, %v1245
  %v1247 = vpop.f32.mrb[0].mxu0
  %1248 = vdwg.mxu0
  %v1249 = vld [vmem:[%s1] sm:$0xff]
  %v1250 = vld [vmem:[%s1 + $0x8] sm:$0xff]
  %v1251 = vld [vmem:[%s1 + $0x10] sm:$0xff]
  %v1252 = vld [vmem:[%s1 + $0x18] sm:$0xff]
  %v1253 = vld [vmem:[%s1 + $0x20] sm:$0xff]
  %v1254 = vld [vmem:[%s1 + $0x28] sm:$0xff]
  %v1255 = vld [vmem:[%s1 + $0x30] sm:$0xff]
  %v1256 = vld [vmem:[%s1 + $0x38] sm:$0xff]
  %v1257 = vld [vmem:[%s1 + $0x40] sm:$0xff]
  %v1258 = vld [vmem:[%s1 + $0x48] sm:$0xff]
  %v1259 = vld [vmem:[%s1 + $0x50] sm:$0xff]
  %v1260 = vld [vmem:[%s1 + $0x58] sm:$0xff]
  %v1261 = vld [vmem:[%s1 + $0x60] sm:$0xff]
  %v1262 = vld [vmem:[%s1 + $0x68] sm:$0xff]
  %v1263 = vld [vmem:[%s1 + $0x70] sm:$0xff]
  %v1264 = vld [vmem:[%s1 + $0x78] sm:$0xff]
  %v1265 = vld [vmem:[%s1 + $0x80] sm:$0xff]
  %v1266 = vld [vmem:[%s1 + $0x88] sm:$0xff]
  %v1267 = vld [vmem:[%s1 + $0x90] sm:$0xff]
  %v1268 = vld [vmem:[%s1 + $0x98] sm:$0xff]
  %v1269 = vld [vmem:[%s1 + $0xa0] sm:$0xff]
  %v1270 = vld [vmem:[%s1 + $0xa8] sm:$0xff]
  %v1271 = vld [vmem:[%s1 + $0xb0] sm:$0xff]
  %v1272 = vld [vmem:[%s1 + $0xb8] sm:$0xff]
  %v1273 = vld [vmem:[%s1 + $0xc0] sm:$0xff]
  %v1274 = vld [vmem:[%s1 + $0xc8] sm:$0xff]
  %v1275 = vld [vmem:[%s1 + $0xd0] sm:$0xff]
  %v1276 = vld [vmem:[%s1 + $0xd8] sm:$0xff]
  %v1277 = vld [vmem:[%s1 + $0xe0] sm:$0xff]
  %v1278 = vld [vmem:[%s1 + $0xe8] sm:$0xff]
  %v1279 = vld [vmem:[%s1 + $0xf0] sm:$0xff]
  %v1280 = vld [vmem:[%s1 + $0xf8] sm:$0xff]
  %v1281 = vld [vmem:[%s1 + $0x100] sm:$0xff]
  %v1282 = vld [vmem:[%s1 + $0x108] sm:$0xff]
  %v1283 = vld [vmem:[%s1 + $0x110] sm:$0xff]
  %v1284 = vld [vmem:[%s1 + $0x118] sm:$0xff]
  %v1285 = vld [vmem:[%s1 + $0x120] sm:$0xff]
  %v1286 = vld [vmem:[%s1 + $0x128] sm:$0xff]
  %v1287 = vld [vmem:[%s1 + $0x130] sm:$0xff]
  %v1288 = vld [vmem:[%s1 + $0x138] sm:$0xff]
  %v1289 = vld [vmem:[%s1 + $0x140] sm:$0xff]
  %v1290 = vld [vmem:[%s1 + $0x148] sm:$0xff]
  %v1291 = vld [vmem:[%s1 + $0x150] sm:$0xff]
  %v1292 = vld [vmem:[%s1 + $0x158] sm:$0xff]
  %v1293 = vld [vmem:[%s1 + $0x160] sm:$0xff]
  %v1294 = vld [vmem:[%s1 + $0x168] sm:$0xff]
  %v1295 = vld [vmem:[%s1 + $0x170] sm:$0xff]
  %v1296 = vld [vmem:[%s1 + $0x178] sm:$0xff]
  %v1297 = vld [vmem:[%s1 + $0x180] sm:$0xff]
  %v1298 = vld [vmem:[%s1 + $0x188] sm:$0xff]
  %v1299 = vld [vmem:[%s1 + $0x190] sm:$0xff]
  %v1300 = vld [vmem:[%s1 + $0x198] sm:$0xff]
  %v1301 = vld [vmem:[%s1 + $0x1a0] sm:$0xff]
  %v1302 = vld [vmem:[%s1 + $0x1a8] sm:$0xff]
  %v1303 = vld [vmem:[%s1 + $0x1b0] sm:$0xff]
  %v1304 = vld [vmem:[%s1 + $0x1b8] sm:$0xff]
  %v1305 = vld [vmem:[%s1 + $0x1c0] sm:$0xff]
  %v1306 = vld [vmem:[%s1 + $0x1c8] sm:$0xff]
  %v1307 = vld [vmem:[%s1 + $0x1d0] sm:$0xff]
  %v1308 = vld [vmem:[%s1 + $0x1d8] sm:$0xff]
  %v1309 = vld [vmem:[%s1 + $0x1e0] sm:$0xff]
  %v1310 = vld [vmem:[%s1 + $0x1e8] sm:$0xff]
  %v1311 = vld [vmem:[%s1 + $0x1f0] sm:$0xff]
  %v1312 = vld [vmem:[%s1 + $0x1f8] sm:$0xff]
  %v1313 = vld [vmem:[%s1 + $0x200] sm:$0xff]
  %v1314 = vld [vmem:[%s1 + $0x208] sm:$0xff]
  %v1315 = vld [vmem:[%s1 + $0x210] sm:$0xff]
  %v1316 = vld [vmem:[%s1 + $0x218] sm:$0xff]
  %v1317 = vld [vmem:[%s1 + $0x220] sm:$0xff]
  %v1318 = vld [vmem:[%s1 + $0x228] sm:$0xff]
  %v1319 = vld [vmem:[%s1 + $0x230] sm:$0xff]
  %v1320 = vld [vmem:[%s1 + $0x238] sm:$0xff]
  %v1321 = vld [vmem:[%s1 + $0x240] sm:$0xff]
  %v1322 = vld [vmem:[%s1 + $0x248] sm:$0xff]
  %v1323 = vld [vmem:[%s1 + $0x250] sm:$0xff]
  %v1324 = vld [vmem:[%s1 + $0x258] sm:$0xff]
  %v1325 = vld [vmem:[%s1 + $0x260] sm:$0xff]
  %v1326 = vld [vmem:[%s1 + $0x268] sm:$0xff]
  %v1327 = vld [vmem:[%s1 + $0x270] sm:$0xff]
  %v1328 = vld [vmem:[%s1 + $0x278] sm:$0xff]
  %v1329 = vld [vmem:[%s1 + $0x280] sm:$0xff]
  %v1330 = vld [vmem:[%s1 + $0x288] sm:$0xff]
  %v1331 = vld [vmem:[%s1 + $0x290] sm:$0xff]
  %v1332 = vld [vmem:[%s1 + $0x298] sm:$0xff]
  %v1333 = vld [vmem:[%s1 + $0x2a0] sm:$0xff]
  %v1334 = vld [vmem:[%s1 + $0x2a8] sm:$0xff]
  %v1335 = vld [vmem:[%s1 + $0x2b0] sm:$0xff]
  %v1336 = vld [vmem:[%s1 + $0x2b8] sm:$0xff]
  %v1337 = vld [vmem:[%s1 + $0x2c0] sm:$0xff]
  %v1338 = vld [vmem:[%s1 + $0x2c8] sm:$0xff]
  %v1339 = vld [vmem:[%s1 + $0x2d0] sm:$0xff]
  %v1340 = vld [vmem:[%s1 + $0x2d8] sm:$0xff]
  %v1341 = vld [vmem:[%s1 + $0x2e0] sm:$0xff]
  %v1342 = vld [vmem:[%s1 + $0x2e8] sm:$0xff]
  %v1343 = vld [vmem:[%s1 + $0x2f0] sm:$0xff]
  %v1344 = vld [vmem:[%s1 + $0x2f8] sm:$0xff]
  %v1345 = vld [vmem:[%s1 + $0x300] sm:$0xff]
  %v1346 = vld [vmem:[%s1 + $0x308] sm:$0xff]
  %v1347 = vld [vmem:[%s1 + $0x310] sm:$0xff]
  %v1348 = vld [vmem:[%s1 + $0x318] sm:$0xff]
  %v1349 = vld [vmem:[%s1 + $0x320] sm:$0xff]
  %v1350 = vld [vmem:[%s1 + $0x328] sm:$0xff]
  %v1351 = vld [vmem:[%s1 + $0x330] sm:$0xff]
  %v1352 = vld [vmem:[%s1 + $0x338] sm:$0xff]
  %v1353 = vld [vmem:[%s1 + $0x340] sm:$0xff]
  %v1354 = vld [vmem:[%s1 + $0x348] sm:$0xff]
  %v1355 = vld [vmem:[%s1 + $0x350] sm:$0xff]
  %v1356 = vld [vmem:[%s1 + $0x358] sm:$0xff]
  %v1357 = vld [vmem:[%s1 + $0x360] sm:$0xff]
  %v1358 = vld [vmem:[%s1 + $0x368] sm:$0xff]
  %v1359 = vld [vmem:[%s1 + $0x370] sm:$0xff]
  %v1360 = vld [vmem:[%s1 + $0x378] sm:$0xff]
  %v1361 = vld [vmem:[%s1 + $0x380] sm:$0xff]
  %v1362 = vld [vmem:[%s1 + $0x388] sm:$0xff]
  %v1363 = vld [vmem:[%s1 + $0x390] sm:$0xff]
  %v1364 = vld [vmem:[%s1 + $0x398] sm:$0xff]
  %v1365 = vld [vmem:[%s1 + $0x3a0] sm:$0xff]
  %v1366 = vld [vmem:[%s1 + $0x3a8] sm:$0xff]
  %v1367 = vld [vmem:[%s1 + $0x3b0] sm:$0xff]
  %v1368 = vld [vmem:[%s1 + $0x3b8] sm:$0xff]
  %v1369 = vld [vmem:[%s1 + $0x3c0] sm:$0xff]
  %v1370 = vld [vmem:[%s1 + $0x3c8] sm:$0xff]
  %v1371 = vld [vmem:[%s1 + $0x3d0] sm:$0xff]
  %v1372 = vld [vmem:[%s1 + $0x3d8] sm:$0xff]
  %v1373 = vld [vmem:[%s1 + $0x3e0] sm:$0xff]
  %v1374 = vld [vmem:[%s1 + $0x3e8] sm:$0xff]
  %v1375 = vld [vmem:[%s1 + $0x3f0] sm:$0xff]
  %v1376 = vld [vmem:[%s1 + $0x3f8] sm:$0xff]
  %v1378 = vsel %vm155, %v1249, 0
  %v1381 = vsel %vm155, %v1250, 0
  %v1384 = vsel %vm155, %v1251, 0
  %v1387 = vsel %vm155, %v1252, 0
  %v1390 = vsel %vm155, %v1253, 0
  %v1393 = vsel %vm155, %v1254, 0
  %v1396 = vsel %vm155, %v1255, 0
  %v1399 = vsel %vm155, %v1256, 0
  %v1402 = vsel %vm155, %v1257, 0
  %v1405 = vsel %vm155, %v1258, 0
  %v1408 = vsel %vm155, %v1259, 0
  %v1411 = vsel %vm155, %v1260, 0
  %v1414 = vsel %vm155, %v1261, 0
  %v1417 = vsel %vm155, %v1262, 0
  %v1420 = vsel %vm155, %v1263, 0
  %v1423 = vsel %vm155, %v1264, 0
  %v1426 = vsel %vm155, %v1265, 0
  %v1429 = vsel %vm155, %v1266, 0
  %v1432 = vsel %vm155, %v1267, 0
  %v1435 = vsel %vm155, %v1268, 0
  %v1438 = vsel %vm155, %v1269, 0
  %v1441 = vsel %vm155, %v1270, 0
  %v1444 = vsel %vm155, %v1271, 0
  %v1447 = vsel %vm155, %v1272, 0
  %v1450 = vsel %vm155, %v1273, 0
  %v1453 = vsel %vm155, %v1274, 0
  %v1456 = vsel %vm155, %v1275, 0
  %v1459 = vsel %vm155, %v1276, 0
  %v1462 = vsel %vm155, %v1277, 0
  %v1465 = vsel %vm155, %v1278, 0
  %v1468 = vsel %vm155, %v1279, 0
  %v1471 = vsel %vm155, %v1280, 0
  %v1474 = vsel %vm155, %v1281, 0
  %v1477 = vsel %vm155, %v1282, 0
  %v1480 = vsel %vm155, %v1283, 0
  %v1483 = vsel %vm155, %v1284, 0
  %v1486 = vsel %vm155, %v1285, 0
  %v1489 = vsel %vm155, %v1286, 0
  %v1492 = vsel %vm155, %v1287, 0
  %v1495 = vsel %vm155, %v1288, 0
  %v1498 = vsel %vm155, %v1289, 0
  %v1501 = vsel %vm155, %v1290, 0
  %v1504 = vsel %vm155, %v1291, 0
  %v1507 = vsel %vm155, %v1292, 0
  %v1510 = vsel %vm155, %v1293, 0
  %v1513 = vsel %vm155, %v1294, 0
  %v1516 = vsel %vm155, %v1295, 0
  %v1519 = vsel %vm155, %v1296, 0
  %v1522 = vsel %vm155, %v1297, 0
  %v1525 = vsel %vm155, %v1298, 0
  %v1528 = vsel %vm155, %v1299, 0
  %v1531 = vsel %vm155, %v1300, 0
  %v1534 = vsel %vm155, %v1301, 0
  %v1537 = vsel %vm155, %v1302, 0
  %v1540 = vsel %vm155, %v1303, 0
  %v1543 = vsel %vm155, %v1304, 0
  %v1546 = vsel %vm155, %v1305, 0
  %v1549 = vsel %vm155, %v1306, 0
  %v1552 = vsel %vm155, %v1307, 0
  %v1555 = vsel %vm155, %v1308, 0
  %v1558 = vsel %vm155, %v1309, 0
  %v1561 = vsel %vm155, %v1310, 0
  %v1564 = vsel %vm155, %v1311, 0
  %v1567 = vsel %vm155, %v1312, 0
  %v1570 = vsel %vm155, %v1313, 0
  %v1573 = vsel %vm155, %v1314, 0
  %v1576 = vsel %vm155, %v1315, 0
  %v1579 = vsel %vm155, %v1316, 0
  %v1582 = vsel %vm155, %v1317, 0
  %v1585 = vsel %vm155, %v1318, 0
  %v1588 = vsel %vm155, %v1319, 0
  %v1591 = vsel %vm155, %v1320, 0
  %v1594 = vsel %vm155, %v1321, 0
  %v1597 = vsel %vm155, %v1322, 0
  %v1600 = vsel %vm155, %v1323, 0
  %v1603 = vsel %vm155, %v1324, 0
  %v1606 = vsel %vm155, %v1325, 0
  %v1609 = vsel %vm155, %v1326, 0
  %v1612 = vsel %vm155, %v1327, 0
  %v1615 = vsel %vm155, %v1328, 0
  %v1618 = vsel %vm155, %v1329, 0
  %v1621 = vsel %vm155, %v1330, 0
  %v1624 = vsel %vm155, %v1331, 0
  %v1627 = vsel %vm155, %v1332, 0
  %v1630 = vsel %vm155, %v1333, 0
  %v1633 = vsel %vm155, %v1334, 0
  %v1636 = vsel %vm155, %v1335, 0
  %v1639 = vsel %vm155, %v1336, 0
  %v1642 = vsel %vm155, %v1337, 0
  %v1645 = vsel %vm155, %v1338, 0
  %v1648 = vsel %vm155, %v1339, 0
  %v1651 = vsel %vm155, %v1340, 0
  %v1654 = vsel %vm155, %v1341, 0
  %v1657 = vsel %vm155, %v1342, 0
  %v1660 = vsel %vm155, %v1343, 0
  %v1663 = vsel %vm155, %v1344, 0
  %v1666 = vsel %vm155, %v1345, 0
  %v1669 = vsel %vm155, %v1346, 0
  %v1672 = vsel %vm155, %v1347, 0
  %v1675 = vsel %vm155, %v1348, 0
  %v1678 = vsel %vm155, %v1349, 0
  %v1681 = vsel %vm155, %v1350, 0
  %v1684 = vsel %vm155, %v1351, 0
  %v1687 = vsel %vm155, %v1352, 0
  %v1690 = vsel %vm155, %v1353, 0
  %v1693 = vsel %vm155, %v1354, 0
  %v1696 = vsel %vm155, %v1355, 0
  %v1699 = vsel %vm155, %v1356, 0
  %v1702 = vsel %vm155, %v1357, 0
  %v1705 = vsel %vm155, %v1358, 0
  %v1708 = vsel %vm155, %v1359, 0
  %v1711 = vsel %vm155, %v1360, 0
  %v1714 = vsel %vm155, %v1361, 0
  %v1717 = vsel %vm155, %v1362, 0
  %v1720 = vsel %vm155, %v1363, 0
  %v1723 = vsel %vm155, %v1364, 0
  %v1726 = vsel %vm155, %v1365, 0
  %v1729 = vsel %vm155, %v1366, 0
  %v1732 = vsel %vm155, %v1367, 0
  %v1735 = vsel %vm155, %v1368, 0
  %v1738 = vsel %vm155, %v1369, 0
  %v1741 = vsel %vm155, %v1370, 0
  %v1744 = vsel %vm155, %v1371, 0
  %v1747 = vsel %vm155, %v1372, 0
  %v1750 = vsel %vm155, %v1373, 0
  %v1753 = vsel %vm155, %v1374, 0
  %v1756 = vsel %vm155, %v1375, 0
  %v1759 = vsel %vm155, %v1376, 0
  %1761 = vmatprep.subr.mxu0 0.0
  %1762 = vmatpush1.msra.mxu0 %v23
  %1763 = vmatprep.subr.mxu0 0.0
  %1764 = vmatpush1.msra.mxu0 %v24
  %1765 = vmatprep.subr.mxu0 0.0
  %1766 = vmatpush1.msra.mxu0 %v25
  %1767 = vmatprep.subr.mxu0 0.0
  %1768 = vmatpush1.msra.mxu0 %v542
  %1769 = vmatprep.subr.mxu0 0.0
  %1770 = vmatpush1.msra.mxu0 0.0
  %1771 = vmatprep.subr.mxu0 0.0
  %1772 = vmatpush1.msra.mxu0 0.0
  %1773 = vmatprep.subr.mxu0 0.0
  %1774 = vmatpush1.msra.mxu0 0.0
  %1775 = vmatprep.subr.mxu0 0.0
  %1776 = vmatpush1.msra.mxu0 0.0
  %1777 = vmatprep.subr.mxu0 0.0
  %1778 = vmatpush1.msra.mxu0 0.0
  %1779 = vmatprep.subr.mxu0 0.0
  %1780 = vmatpush1.msra.mxu0 0.0
  %1781 = vmatprep.subr.mxu0 0.0
  %1782 = vmatpush1.msra.mxu0 0.0
  %1783 = vmatprep.subr.mxu0 0.0
  %1784 = vmatpush1.msra.mxu0 0.0
  %1785 = vmatprep.subr.mxu0 0.0
  %1786 = vmatpush1.msra.mxu0 0.0
  %1787 = vmatprep.subr.mxu0 0.0
  %1788 = vmatpush1.msra.mxu0 0.0
  %1789 = vmatprep.subr.mxu0 0.0
  %1790 = vmatpush1.msra.mxu0 0.0
  %1791 = vmatprep.subr.mxu0 0.0
  %1792 = vmatpush1.msra.mxu0 0.0
  %1793 = vmatprep.subr.mxu0 0.0
  %1794 = vmatpush1.msra.mxu0 0.0
  %1795 = vmatprep.subr.mxu0 0.0
  %1796 = vmatpush1.msra.mxu0 0.0
  %1797 = vmatprep.subr.mxu0 0.0
  %1798 = vmatpush1.msra.mxu0 0.0
  %1799 = vmatprep.subr.mxu0 0.0
  %1800 = vmatpush1.msra.mxu0 0.0
  %1801 = vmatprep.subr.mxu0 0.0
  %1802 = vmatpush1.msra.mxu0 0.0
  %1803 = vmatprep.subr.mxu0 0.0
  %1804 = vmatpush1.msra.mxu0 0.0
  %1805 = vmatprep.subr.mxu0 0.0
  %1806 = vmatpush1.msra.mxu0 0.0
  %1807 = vmatprep.subr.mxu0 0.0
  %1808 = vmatpush1.msra.mxu0 0.0
  %1809 = vmatprep.subr.mxu0 0.0
  %1810 = vmatpush1.msra.mxu0 0.0
  %1811 = vmatprep.subr.mxu0 0.0
  %1812 = vmatpush1.msra.mxu0 0.0
  %1813 = vmatprep.subr.mxu0 0.0
  %1814 = vmatpush1.msra.mxu0 0.0
  %1815 = vmatprep.subr.mxu0 0.0
  %1816 = vmatpush1.msra.mxu0 0.0
  %1817 = vmatprep.subr.mxu0 0.0
  %1818 = vmatpush1.msra.mxu0 0.0
  %1819 = vmatprep.subr.mxu0 0.0
  %1820 = vmatpush1.msra.mxu0 0.0
  %1821 = vmatprep.subr.mxu0 0.0
  %1822 = vmatpush1.msra.mxu0 0.0
  %1823 = vmatprep.subr.mxu0 0.0
  %1824 = vmatpush1.msra.mxu0 0.0
  %1825 = vmatprep.mubr.f32.mxu0 0.0
  %1826 = vmatmul.mubr.f32.gmra.mrb[0].mxu0 %v1378
  %v1827 = vpop.f32.mrb[0].mxu0
  %v1828 = vadd.f32 0.0, %v1827
  %v1829 = vpop.f32.mrb[0].mxu0
  %1830 = vmatprep.mubr.f32.mxu0 0.0
  %1831 = vmatmul.mubr.f32.gmra.mrb[0].mxu0 %v1381
  %v1832 = vpop.f32.mrb[0].mxu0
  %v1833 = vadd.f32 0.0, %v1832
  %v1834 = vpop.f32.mrb[0].mxu0
  %1835 = vmatprep.mubr.f32.mxu0 0.0
  %1836 = vmatmul.mubr.f32.gmra.mrb[0].mxu0 %v1384
  %v1837 = vpop.f32.mrb[0].mxu0
  %v1838 = vadd.f32 0.0, %v1837
  %v1839 = vpop.f32.mrb[0].mxu0
  %1840 = vmatprep.mubr.f32.mxu0 0.0
  %1841 = vmatmul.mubr.f32.gmra.mrb[0].mxu0 %v1387
  %v1842 = vpop.f32.mrb[0].mxu0
  %v1843 = vadd.f32 0.0, %v1842
  %v1844 = vpop.f32.mrb[0].mxu0
  %1845 = vmatprep.mubr.f32.mxu0 0.0
  %1846 = vmatmul.mubr.f32.gmra.mrb[0].mxu0 %v1390
  %v1847 = vpop.f32.mrb[0].mxu0
  %v1848 = vadd.f32 0.0, %v1847
  %v1849 = vpop.f32.mrb[0].mxu0
  %1850 = vmatprep.mubr.f32.mxu0 0.0
  %1851 = vmatmul.mubr.f32.gmra.mrb[0].mxu0 %v1393
  %v1852 = vpop.f32.mrb[0].mxu0
  %v1853 = vadd.f32 0.0, %v1852
  %v1854 = vpop.f32.mrb[0].mxu0
  %1855 = vmatprep.mubr.f32.mxu0 0.0
  %1856 = vmatmul.mubr.f32.gmra.mrb[0].mxu0 %v1396
  %v1857 = vpop.f32.mrb[0].mxu0
  %v1858 = vadd.f32 0.0, %v1857
  %v1859 = vpop.f32.mrb[0].mxu0
  %1860 = vmatprep.mubr.f32.mxu0 0.0
  %1861 = vmatmul.mubr.f32.gmra.mrb[0].mxu0 %v1399
  %v1862 = vpop.f32.mrb[0].mxu0
  %v1863 = vadd.f32 0.0, %v1862
  %v1864 = vpop.f32.mrb[0].mxu0
  %1865 = vmatprep.mubr.f32.mxu0 0.0
  %1866 = vmatmul.mubr.f32.gmra.mrb[0].mxu0 %v1402
  %v1867 = vpop.f32.mrb[0].mxu0
  %v1868 = vadd.f32 0.0, %v1867
  %v1869 = vpop.f32.mrb[0].mxu0
  %1870 = vmatprep.mubr.f32.mxu0 0.0
  %1871 = vmatmul.mubr.f32.gmra.mrb[0].mxu0 %v1405
  %v1872 = vpop.f32.mrb[0].mxu0
  %v1873 = vadd.f32 0.0, %v1872
  %v1874 = vpop.f32.mrb[0].mxu0
  %1875 = vmatprep.mubr.f32.mxu0 0.0
  %1876 = vmatmul.mubr.f32.gmra.mrb[0].mxu0 %v1408
  %v1877 = vpop.f32.mrb[0].mxu0
  %v1878 = vadd.f32 0.0, %v1877
  %v1879 = vpop.f32.mrb[0].mxu0
  %1880 = vmatprep.mubr.f32.mxu0 0.0
  %1881 = vmatmul.mubr.f32.gmra.mrb[0].mxu0 %v1411
  %v1882 = vpop.f32.mrb[0].mxu0
  %v1883 = vadd.f32 0.0, %v1882
  %v1884 = vpop.f32.mrb[0].mxu0
  %1885 = vmatprep.mubr.f32.mxu0 0.0
  %1886 = vmatmul.mubr.f32.gmra.mrb[0].mxu0 %v1414
  %v1887 = vpop.f32.mrb[0].mxu0
  %v1888 = vadd.f32 0.0, %v1887
  %v1889 = vpop.f32.mrb[0].mxu0
  %1890 = vmatprep.mubr.f32.mxu0 0.0
  %1891 = vmatmul.mubr.f32.gmra.mrb[0].mxu0 %v1417
  %v1892 = vpop.f32.mrb[0].mxu0
  %v1893 = vadd.f32 0.0, %v1892
  %v1894 = vpop.f32.mrb[0].mxu0
  %1895 = vmatprep.mubr.f32.mxu0 0.0
  %1896 = vmatmul.mubr.f32.gmra.mrb[0].mxu0 %v1420
  %v1897 = vpop.f32.mrb[0].mxu0
  %v1898 = vadd.f32 0.0, %v1897
  %v1899 = vpop.f32.mrb[0].mxu0
  %1900 = vmatprep.mubr.f32.mxu0 0.0
  %1901 = vmatmul.mubr.f32.gmra.mrb[0].mxu0 %v1423
  %v1902 = vpop.f32.mrb[0].mxu0
  %v1903 = vadd.f32 0.0, %v1902
  %v1904 = vpop.f32.mrb[0].mxu0
  %1905 = vmatprep.mubr.f32.mxu0 0.0
  %1906 = vmatmul.mubr.f32.gmra.mrb[0].mxu0 %v1426
  %v1907 = vpop.f32.mrb[0].mxu0
  %v1908 = vadd.f32 0.0, %v1907
  %v1909 = vpop.f32.mrb[0].mxu0
  %1910 = vmatprep.mubr.f32.mxu0 0.0
  %1911 = vmatmul.mubr.f32.gmra.mrb[0].mxu0 %v1429
  %v1912 = vpop.f32.mrb[0].mxu0
  %v1913 = vadd.f32 0.0, %v1912
  %v1914 = vpop.f32.mrb[0].mxu0
  %1915 = vmatprep.mubr.f32.mxu0 0.0
  %1916 = vmatmul.mubr.f32.gmra.mrb[0].mxu0 %v1432
  %v1917 = vpop.f32.mrb[0].mxu0
  %v1918 = vadd.f32 0.0, %v1917
  %v1919 = vpop.f32.mrb[0].mxu0
  %1920 = vmatprep.mubr.f32.mxu0 0.0
  %1921 = vmatmul.mubr.f32.gmra.mrb[0].mxu0 %v1435
  %v1922 = vpop.f32.mrb[0].mxu0
  %v1923 = vadd.f32 0.0, %v1922
  %v1924 = vpop.f32.mrb[0].mxu0
  %1925 = vmatprep.mubr.f32.mxu0 0.0
  %1926 = vmatmul.mubr.f32.gmra.mrb[0].mxu0 %v1438
  %v1927 = vpop.f32.mrb[0].mxu0
  %v1928 = vadd.f32 0.0, %v1927
  %v1929 = vpop.f32.mrb[0].mxu0
  %1930 = vmatprep.mubr.f32.mxu0 0.0
  %1931 = vmatmul.mubr.f32.gmra.mrb[0].mxu0 %v1441
  %v1932 = vpop.f32.mrb[0].mxu0
  %v1933 = vadd.f32 0.0, %v1932
  %v1934 = vpop.f32.mrb[0].mxu0
  %1935 = vmatprep.mubr.f32.mxu0 0.0
  %1936 = vmatmul.mubr.f32.gmra.mrb[0].mxu0 %v1444
  %v1937 = vpop.f32.mrb[0].mxu0
  %v1938 = vadd.f32 0.0, %v1937
  %v1939 = vpop.f32.mrb[0].mxu0
  %1940 = vmatprep.mubr.f32.mxu0 0.0
  %1941 = vmatmul.mubr.f32.gmra.mrb[0].mxu0 %v1447
  %v1942 = vpop.f32.mrb[0].mxu0
  %v1943 = vadd.f32 0.0, %v1942
  %v1944 = vpop.f32.mrb[0].mxu0
  %1945 = vmatprep.mubr.f32.mxu0 0.0
  %1946 = vmatmul.mubr.f32.gmra.mrb[0].mxu0 %v1450
  %v1947 = vpop.f32.mrb[0].mxu0
  %v1948 = vadd.f32 0.0, %v1947
  %v1949 = vpop.f32.mrb[0].mxu0
  %1950 = vmatprep.mubr.f32.mxu0 0.0
  %1951 = vmatmul.mubr.f32.gmra.mrb[0].mxu0 %v1453
  %v1952 = vpop.f32.mrb[0].mxu0
  %v1953 = vadd.f32 0.0, %v1952
  %v1954 = vpop.f32.mrb[0].mxu0
  %1955 = vmatprep.mubr.f32.mxu0 0.0
  %1956 = vmatmul.mubr.f32.gmra.mrb[0].mxu0 %v1456
  %v1957 = vpop.f32.mrb[0].mxu0
  %v1958 = vadd.f32 0.0, %v1957
  %v1959 = vpop.f32.mrb[0].mxu0
  %1960 = vmatprep.mubr.f32.mxu0 0.0
  %1961 = vmatmul.mubr.f32.gmra.mrb[0].mxu0 %v1459
  %v1962 = vpop.f32.mrb[0].mxu0
  %v1963 = vadd.f32 0.0, %v1962
  %v1964 = vpop.f32.mrb[0].mxu0
  %1965 = vmatprep.mubr.f32.mxu0 0.0
  %1966 = vmatmul.mubr.f32.gmra.mrb[0].mxu0 %v1462
  %v1967 = vpop.f32.mrb[0].mxu0
  %v1968 = vadd.f32 0.0, %v1967
  %v1969 = vpop.f32.mrb[0].mxu0
  %1970 = vmatprep.mubr.f32.mxu0 0.0
  %1971 = vmatmul.mubr.f32.gmra.mrb[0].mxu0 %v1465
  %v1972 = vpop.f32.mrb[0].mxu0
  %v1973 = vadd.f32 0.0, %v1972
  %v1974 = vpop.f32.mrb[0].mxu0
  %1975 = vmatprep.mubr.f32.mxu0 0.0
  %1976 = vmatmul.mubr.f32.gmra.mrb[0].mxu0 %v1468
  %v1977 = vpop.f32.mrb[0].mxu0
  %v1978 = vadd.f32 0.0, %v1977
  %v1979 = vpop.f32.mrb[0].mxu0
  %1980 = vmatprep.mubr.f32.mxu0 0.0
  %1981 = vmatmul.mubr.f32.gmra.mrb[0].mxu0 %v1471
  %v1982 = vpop.f32.mrb[0].mxu0
  %v1983 = vadd.f32 0.0, %v1982
  %v1984 = vpop.f32.mrb[0].mxu0
  %1985 = vmatprep.mubr.f32.mxu0 0.0
  %1986 = vmatmul.mubr.f32.gmra.mrb[0].mxu0 %v1474
  %v1987 = vpop.f32.mrb[0].mxu0
  %v1988 = vadd.f32 0.0, %v1987
  %v1989 = vpop.f32.mrb[0].mxu0
  %1990 = vmatprep.mubr.f32.mxu0 0.0
  %1991 = vmatmul.mubr.f32.gmra.mrb[0].mxu0 %v1477
  %v1992 = vpop.f32.mrb[0].mxu0
  %v1993 = vadd.f32 0.0, %v1992
  %v1994 = vpop.f32.mrb[0].mxu0
  %1995 = vmatprep.mubr.f32.mxu0 0.0
  %1996 = vmatmul.mubr.f32.gmra.mrb[0].mxu0 %v1480
  %v1997 = vpop.f32.mrb[0].mxu0
  %v1998 = vadd.f32 0.0, %v1997
  %v1999 = vpop.f32.mrb[0].mxu0
  %2000 = vmatprep.mubr.f32.mxu0 0.0
  %2001 = vmatmul.mubr.f32.gmra.mrb[0].mxu0 %v1483
  %v2002 = vpop.f32.mrb[0].mxu0
  %v2003 = vadd.f32 0.0, %v2002
  %v2004 = vpop.f32.mrb[0].mxu0
  %2005 = vmatprep.mubr.f32.mxu0 0.0
  %2006 = vmatmul.mubr.f32.gmra.mrb[0].mxu0 %v1486
  %v2007 = vpop.f32.mrb[0].mxu0
  %v2008 = vadd.f32 0.0, %v2007
  %v2009 = vpop.f32.mrb[0].mxu0
  %2010 = vmatprep.mubr.f32.mxu0 0.0
  %2011 = vmatmul.mubr.f32.gmra.mrb[0].mxu0 %v1489
  %v2012 = vpop.f32.mrb[0].mxu0
  %v2013 = vadd.f32 0.0, %v2012
  %v2014 = vpop.f32.mrb[0].mxu0
  %2015 = vmatprep.mubr.f32.mxu0 0.0
  %2016 = vmatmul.mubr.f32.gmra.mrb[0].mxu0 %v1492
  %v2017 = vpop.f32.mrb[0].mxu0
  %v2018 = vadd.f32 0.0, %v2017
  %v2019 = vpop.f32.mrb[0].mxu0
  %2020 = vmatprep.mubr.f32.mxu0 0.0
  %2021 = vmatmul.mubr.f32.gmra.mrb[0].mxu0 %v1495
  %v2022 = vpop.f32.mrb[0].mxu0
  %v2023 = vadd.f32 0.0, %v2022
  %v2024 = vpop.f32.mrb[0].mxu0
  %2025 = vmatprep.mubr.f32.mxu0 0.0
  %2026 = vmatmul.mubr.f32.gmra.mrb[0].mxu0 %v1498
  %v2027 = vpop.f32.mrb[0].mxu0
  %v2028 = vadd.f32 0.0, %v2027
  %v2029 = vpop.f32.mrb[0].mxu0
  %2030 = vmatprep.mubr.f32.mxu0 0.0
  %2031 = vmatmul.mubr.f32.gmra.mrb[0].mxu0 %v1501
  %v2032 = vpop.f32.mrb[0].mxu0
  %v2033 = vadd.f32 0.0, %v2032
  %v2034 = vpop.f32.mrb[0].mxu0
  %2035 = vmatprep.mubr.f32.mxu0 0.0
  %2036 = vmatmul.mubr.f32.gmra.mrb[0].mxu0 %v1504
  %v2037 = vpop.f32.mrb[0].mxu0
  %v2038 = vadd.f32 0.0, %v2037
  %v2039 = vpop.f32.mrb[0].mxu0
  %2040 = vmatprep.mubr.f32.mxu0 0.0
  %2041 = vmatmul.mubr.f32.gmra.mrb[0].mxu0 %v1507
  %v2042 = vpop.f32.mrb[0].mxu0
  %v2043 = vadd.f32 0.0, %v2042
  %v2044 = vpop.f32.mrb[0].mxu0
  %2045 = vmatprep.mubr.f32.mxu0 0.0
  %2046 = vmatmul.mubr.f32.gmra.mrb[0].mxu0 %v1510
  %v2047 = vpop.f32.mrb[0].mxu0
  %v2048 = vadd.f32 0.0, %v2047
  %v2049 = vpop.f32.mrb[0].mxu0
  %2050 = vmatprep.mubr.f32.mxu0 0.0
  %2051 = vmatmul.mubr.f32.gmra.mrb[0].mxu0 %v1513
  %v2052 = vpop.f32.mrb[0].mxu0
  %v2053 = vadd.f32 0.0, %v2052
  %v2054 = vpop.f32.mrb[0].mxu0
  %2055 = vmatprep.mubr.f32.mxu0 0.0
  %2056 = vmatmul.mubr.f32.gmra.mrb[0].mxu0 %v1516
  %v2057 = vpop.f32.mrb[0].mxu0
  %v2058 = vadd.f32 0.0, %v2057
  %v2059 = vpop.f32.mrb[0].mxu0
  %2060 = vmatprep.mubr.f32.mxu0 0.0
  %2061 = vmatmul.mubr.f32.gmra.mrb[0].mxu0 %v1519
  %v2062 = vpop.f32.mrb[0].mxu0
  %v2063 = vadd.f32 0.0, %v2062
  %v2064 = vpop.f32.mrb[0].mxu0
  %2065 = vmatprep.mubr.f32.mxu0 0.0
  %2066 = vmatmul.mubr.f32.gmra.mrb[0].mxu0 %v1522
  %v2067 = vpop.f32.mrb[0].mxu0
  %v2068 = vadd.f32 0.0, %v2067
  %v2069 = vpop.f32.mrb[0].mxu0
  %2070 = vmatprep.mubr.f32.mxu0 0.0
  %2071 = vmatmul.mubr.f32.gmra.mrb[0].mxu0 %v1525
  %v2072 = vpop.f32.mrb[0].mxu0
  %v2073 = vadd.f32 0.0, %v2072
  %v2074 = vpop.f32.mrb[0].mxu0
  %2075 = vmatprep.mubr.f32.mxu0 0.0
  %2076 = vmatmul.mubr.f32.gmra.mrb[0].mxu0 %v1528
  %v2077 = vpop.f32.mrb[0].mxu0
  %v2078 = vadd.f32 0.0, %v2077
  %v2079 = vpop.f32.mrb[0].mxu0
  %2080 = vmatprep.mubr.f32.mxu0 0.0
  %2081 = vmatmul.mubr.f32.gmra.mrb[0].mxu0 %v1531
  %v2082 = vpop.f32.mrb[0].mxu0
  %v2083 = vadd.f32 0.0, %v2082
  %v2084 = vpop.f32.mrb[0].mxu0
  %2085 = vmatprep.mubr.f32.mxu0 0.0
  %2086 = vmatmul.mubr.f32.gmra.mrb[0].mxu0 %v1534
  %v2087 = vpop.f32.mrb[0].mxu0
  %v2088 = vadd.f32 0.0, %v2087
  %v2089 = vpop.f32.mrb[0].mxu0
  %2090 = vmatprep.mubr.f32.mxu0 0.0
  %2091 = vmatmul.mubr.f32.gmra.mrb[0].mxu0 %v1537
  %v2092 = vpop.f32.mrb[0].mxu0
  %v2093 = vadd.f32 0.0, %v2092
  %v2094 = vpop.f32.mrb[0].mxu0
  %2095 = vmatprep.mubr.f32.mxu0 0.0
  %2096 = vmatmul.mubr.f32.gmra.mrb[0].mxu0 %v1540
  %v2097 = vpop.f32.mrb[0].mxu0
  %v2098 = vadd.f32 0.0, %v2097
  %v2099 = vpop.f32.mrb[0].mxu0
  %2100 = vmatprep.mubr.f32.mxu0 0.0
  %2101 = vmatmul.mubr.f32.gmra.mrb[0].mxu0 %v1543
  %v2102 = vpop.f32.mrb[0].mxu0
  %v2103 = vadd.f32 0.0, %v2102
  %v2104 = vpop.f32.mrb[0].mxu0
  %2105 = vmatprep.mubr.f32.mxu0 0.0
  %2106 = vmatmul.mubr.f32.gmra.mrb[0].mxu0 %v1546
  %v2107 = vpop.f32.mrb[0].mxu0
  %v2108 = vadd.f32 0.0, %v2107
  %v2109 = vpop.f32.mrb[0].mxu0
  %2110 = vmatprep.mubr.f32.mxu0 0.0
  %2111 = vmatmul.mubr.f32.gmra.mrb[0].mxu0 %v1549
  %v2112 = vpop.f32.mrb[0].mxu0
  %v2113 = vadd.f32 0.0, %v2112
  %v2114 = vpop.f32.mrb[0].mxu0
  %2115 = vmatprep.mubr.f32.mxu0 0.0
  %2116 = vmatmul.mubr.f32.gmra.mrb[0].mxu0 %v1552
  %v2117 = vpop.f32.mrb[0].mxu0
  %v2118 = vadd.f32 0.0, %v2117
  %v2119 = vpop.f32.mrb[0].mxu0
  %2120 = vmatprep.mubr.f32.mxu0 0.0
  %2121 = vmatmul.mubr.f32.gmra.mrb[0].mxu0 %v1555
  %v2122 = vpop.f32.mrb[0].mxu0
  %v2123 = vadd.f32 0.0, %v2122
  %v2124 = vpop.f32.mrb[0].mxu0
  %2125 = vmatprep.mubr.f32.mxu0 0.0
  %2126 = vmatmul.mubr.f32.gmra.mrb[0].mxu0 %v1558
  %v2127 = vpop.f32.mrb[0].mxu0
  %v2128 = vadd.f32 0.0, %v2127
  %v2129 = vpop.f32.mrb[0].mxu0
  %2130 = vmatprep.mubr.f32.mxu0 0.0
  %2131 = vmatmul.mubr.f32.gmra.mrb[0].mxu0 %v1561
  %v2132 = vpop.f32.mrb[0].mxu0
  %v2133 = vadd.f32 0.0, %v2132
  %v2134 = vpop.f32.mrb[0].mxu0
  %2135 = vmatprep.mubr.f32.mxu0 0.0
  %2136 = vmatmul.mubr.f32.gmra.mrb[0].mxu0 %v1564
  %v2137 = vpop.f32.mrb[0].mxu0
  %v2138 = vadd.f32 0.0, %v2137
  %v2139 = vpop.f32.mrb[0].mxu0
  %2140 = vmatprep.mubr.f32.mxu0 0.0
  %2141 = vmatmul.mubr.f32.gmra.mrb[0].mxu0 %v1567
  %v2142 = vpop.f32.mrb[0].mxu0
  %v2143 = vadd.f32 0.0, %v2142
  %v2144 = vpop.f32.mrb[0].mxu0
  %2145 = vmatprep.mubr.f32.mxu0 0.0
  %2146 = vmatmul.mubr.f32.gmra.mrb[0].mxu0 %v1570
  %v2147 = vpop.f32.mrb[0].mxu0
  %v2148 = vadd.f32 0.0, %v2147
  %v2149 = vpop.f32.mrb[0].mxu0
  %2150 = vmatprep.mubr.f32.mxu0 0.0
  %2151 = vmatmul.mubr.f32.gmra.mrb[0].mxu0 %v1573
  %v2152 = vpop.f32.mrb[0].mxu0
  %v2153 = vadd.f32 0.0, %v2152
  %v2154 = vpop.f32.mrb[0].mxu0
  %2155 = vmatprep.mubr.f32.mxu0 0.0
  %2156 = vmatmul.mubr.f32.gmra.mrb[0].mxu0 %v1576
  %v2157 = vpop.f32.mrb[0].mxu0
  %v2158 = vadd.f32 0.0, %v2157
  %v2159 = vpop.f32.mrb[0].mxu0
  %2160 = vmatprep.mubr.f32.mxu0 0.0
  %2161 = vmatmul.mubr.f32.gmra.mrb[0].mxu0 %v1579
  %v2162 = vpop.f32.mrb[0].mxu0
  %v2163 = vadd.f32 0.0, %v2162
  %v2164 = vpop.f32.mrb[0].mxu0
  %2165 = vmatprep.mubr.f32.mxu0 0.0
  %2166 = vmatmul.mubr.f32.gmra.mrb[0].mxu0 %v1582
  %v2167 = vpop.f32.mrb[0].mxu0
  %v2168 = vadd.f32 0.0, %v2167
  %v2169 = vpop.f32.mrb[0].mxu0
  %2170 = vmatprep.mubr.f32.mxu0 0.0
  %2171 = vmatmul.mubr.f32.gmra.mrb[0].mxu0 %v1585
  %v2172 = vpop.f32.mrb[0].mxu0
  %v2173 = vadd.f32 0.0, %v2172
  %v2174 = vpop.f32.mrb[0].mxu0
  %2175 = vmatprep.mubr.f32.mxu0 0.0
  %2176 = vmatmul.mubr.f32.gmra.mrb[0].mxu0 %v1588
  %v2177 = vpop.f32.mrb[0].mxu0
  %v2178 = vadd.f32 0.0, %v2177
  %v2179 = vpop.f32.mrb[0].mxu0
  %2180 = vmatprep.mubr.f32.mxu0 0.0
  %2181 = vmatmul.mubr.f32.gmra.mrb[0].mxu0 %v1591
  %v2182 = vpop.f32.mrb[0].mxu0
  %v2183 = vadd.f32 0.0, %v2182
  %v2184 = vpop.f32.mrb[0].mxu0
  %2185 = vmatprep.mubr.f32.mxu0 0.0
  %2186 = vmatmul.mubr.f32.gmra.mrb[0].mxu0 %v1594
  %v2187 = vpop.f32.mrb[0].mxu0
  %v2188 = vadd.f32 0.0, %v2187
  %v2189 = vpop.f32.mrb[0].mxu0
  %2190 = vmatprep.mubr.f32.mxu0 0.0
  %2191 = vmatmul.mubr.f32.gmra.mrb[0].mxu0 %v1597
  %v2192 = vpop.f32.mrb[0].mxu0
  %v2193 = vadd.f32 0.0, %v2192
  %v2194 = vpop.f32.mrb[0].mxu0
  %2195 = vmatprep.mubr.f32.mxu0 0.0
  %2196 = vmatmul.mubr.f32.gmra.mrb[0].mxu0 %v1600
  %v2197 = vpop.f32.mrb[0].mxu0
  %v2198 = vadd.f32 0.0, %v2197
  %v2199 = vpop.f32.mrb[0].mxu0
  %2200 = vmatprep.mubr.f32.mxu0 0.0
  %2201 = vmatmul.mubr.f32.gmra.mrb[0].mxu0 %v1603
  %v2202 = vpop.f32.mrb[0].mxu0
  %v2203 = vadd.f32 0.0, %v2202
  %v2204 = vpop.f32.mrb[0].mxu0
  %2205 = vmatprep.mubr.f32.mxu0 0.0
  %2206 = vmatmul.mubr.f32.gmra.mrb[0].mxu0 %v1606
  %v2207 = vpop.f32.mrb[0].mxu0
  %v2208 = vadd.f32 0.0, %v2207
  %v2209 = vpop.f32.mrb[0].mxu0
  %2210 = vmatprep.mubr.f32.mxu0 0.0
  %2211 = vmatmul.mubr.f32.gmra.mrb[0].mxu0 %v1609
  %v2212 = vpop.f32.mrb[0].mxu0
  %v2213 = vadd.f32 0.0, %v2212
  %v2214 = vpop.f32.mrb[0].mxu0
  %2215 = vmatprep.mubr.f32.mxu0 0.0
  %2216 = vmatmul.mubr.f32.gmra.mrb[0].mxu0 %v1612
  %v2217 = vpop.f32.mrb[0].mxu0
  %v2218 = vadd.f32 0.0, %v2217
  %v2219 = vpop.f32.mrb[0].mxu0
  %2220 = vmatprep.mubr.f32.mxu0 0.0
  %2221 = vmatmul.mubr.f32.gmra.mrb[0].mxu0 %v1615
  %v2222 = vpop.f32.mrb[0].mxu0
  %v2223 = vadd.f32 0.0, %v2222
  %v2224 = vpop.f32.mrb[0].mxu0
  %2225 = vmatprep.mubr.f32.mxu0 0.0
  %2226 = vmatmul.mubr.f32.gmra.mrb[0].mxu0 %v1618
  %v2227 = vpop.f32.mrb[0].mxu0
  %v2228 = vadd.f32 0.0, %v2227
  %v2229 = vpop.f32.mrb[0].mxu0
  %2230 = vmatprep.mubr.f32.mxu0 0.0
  %2231 = vmatmul.mubr.f32.gmra.mrb[0].mxu0 %v1621
  %v2232 = vpop.f32.mrb[0].mxu0
  %v2233 = vadd.f32 0.0, %v2232
  %v2234 = vpop.f32.mrb[0].mxu0
  %2235 = vmatprep.mubr.f32.mxu0 0.0
  %2236 = vmatmul.mubr.f32.gmra.mrb[0].mxu0 %v1624
  %v2237 = vpop.f32.mrb[0].mxu0
  %v2238 = vadd.f32 0.0, %v2237
  %v2239 = vpop.f32.mrb[0].mxu0
  %2240 = vmatprep.mubr.f32.mxu0 0.0
  %2241 = vmatmul.mubr.f32.gmra.mrb[0].mxu0 %v1627
  %v2242 = vpop.f32.mrb[0].mxu0
  %v2243 = vadd.f32 0.0, %v2242
  %v2244 = vpop.f32.mrb[0].mxu0
  %2245 = vmatprep.mubr.f32.mxu0 0.0
  %2246 = vmatmul.mubr.f32.gmra.mrb[0].mxu0 %v1630
  %v2247 = vpop.f32.mrb[0].mxu0
  %v2248 = vadd.f32 0.0, %v2247
  %v2249 = vpop.f32.mrb[0].mxu0
  %2250 = vmatprep.mubr.f32.mxu0 0.0
  %2251 = vmatmul.mubr.f32.gmra.mrb[0].mxu0 %v1633
  %v2252 = vpop.f32.mrb[0].mxu0
  %v2253 = vadd.f32 0.0, %v2252
  %v2254 = vpop.f32.mrb[0].mxu0
  %2255 = vmatprep.mubr.f32.mxu0 0.0
  %2256 = vmatmul.mubr.f32.gmra.mrb[0].mxu0 %v1636
  %v2257 = vpop.f32.mrb[0].mxu0
  %v2258 = vadd.f32 0.0, %v2257
  %v2259 = vpop.f32.mrb[0].mxu0
  %2260 = vmatprep.mubr.f32.mxu0 0.0
  %2261 = vmatmul.mubr.f32.gmra.mrb[0].mxu0 %v1639
  %v2262 = vpop.f32.mrb[0].mxu0
  %v2263 = vadd.f32 0.0, %v2262
  %v2264 = vpop.f32.mrb[0].mxu0
  %2265 = vmatprep.mubr.f32.mxu0 0.0
  %2266 = vmatmul.mubr.f32.gmra.mrb[0].mxu0 %v1642
  %v2267 = vpop.f32.mrb[0].mxu0
  %v2268 = vadd.f32 0.0, %v2267
  %v2269 = vpop.f32.mrb[0].mxu0
  %2270 = vmatprep.mubr.f32.mxu0 0.0
  %2271 = vmatmul.mubr.f32.gmra.mrb[0].mxu0 %v1645
  %v2272 = vpop.f32.mrb[0].mxu0
  %v2273 = vadd.f32 0.0, %v2272
  %v2274 = vpop.f32.mrb[0].mxu0
  %2275 = vmatprep.mubr.f32.mxu0 0.0
  %2276 = vmatmul.mubr.f32.gmra.mrb[0].mxu0 %v1648
  %v2277 = vpop.f32.mrb[0].mxu0
  %v2278 = vadd.f32 0.0, %v2277
  %v2279 = vpop.f32.mrb[0].mxu0
  %2280 = vmatprep.mubr.f32.mxu0 0.0
  %2281 = vmatmul.mubr.f32.gmra.mrb[0].mxu0 %v1651
  %v2282 = vpop.f32.mrb[0].mxu0
  %v2283 = vadd.f32 0.0, %v2282
  %v2284 = vpop.f32.mrb[0].mxu0
  %2285 = vmatprep.mubr.f32.mxu0 0.0
  %2286 = vmatmul.mubr.f32.gmra.mrb[0].mxu0 %v1654
  %v2287 = vpop.f32.mrb[0].mxu0
  %v2288 = vadd.f32 0.0, %v2287
  %v2289 = vpop.f32.mrb[0].mxu0
  %2290 = vmatprep.mubr.f32.mxu0 0.0
  %2291 = vmatmul.mubr.f32.gmra.mrb[0].mxu0 %v1657
  %v2292 = vpop.f32.mrb[0].mxu0
  %v2293 = vadd.f32 0.0, %v2292
  %v2294 = vpop.f32.mrb[0].mxu0
  %2295 = vmatprep.mubr.f32.mxu0 0.0
  %2296 = vmatmul.mubr.f32.gmra.mrb[0].mxu0 %v1660
  %v2297 = vpop.f32.mrb[0].mxu0
  %v2298 = vadd.f32 0.0, %v2297
  %v2299 = vpop.f32.mrb[0].mxu0
  %2300 = vmatprep.mubr.f32.mxu0 0.0
  %2301 = vmatmul.mubr.f32.gmra.mrb[0].mxu0 %v1663
  %v2302 = vpop.f32.mrb[0].mxu0
  %v2303 = vadd.f32 0.0, %v2302
  %v2304 = vpop.f32.mrb[0].mxu0
  %2305 = vmatprep.mubr.f32.mxu0 0.0
  %2306 = vmatmul.mubr.f32.gmra.mrb[0].mxu0 %v1666
  %v2307 = vpop.f32.mrb[0].mxu0
  %v2308 = vadd.f32 0.0, %v2307
  %v2309 = vpop.f32.mrb[0].mxu0
  %2310 = vmatprep.mubr.f32.mxu0 0.0
  %2311 = vmatmul.mubr.f32.gmra.mrb[0].mxu0 %v1669
  %v2312 = vpop.f32.mrb[0].mxu0
  %v2313 = vadd.f32 0.0, %v2312
  %v2314 = vpop.f32.mrb[0].mxu0
  %2315 = vmatprep.mubr.f32.mxu0 0.0
  %2316 = vmatmul.mubr.f32.gmra.mrb[0].mxu0 %v1672
  %v2317 = vpop.f32.mrb[0].mxu0
  %v2318 = vadd.f32 0.0, %v2317
  %v2319 = vpop.f32.mrb[0].mxu0
  %2320 = vmatprep.mubr.f32.mxu0 0.0
  %2321 = vmatmul.mubr.f32.gmra.mrb[0].mxu0 %v1675
  %v2322 = vpop.f32.mrb[0].mxu0
  %v2323 = vadd.f32 0.0, %v2322
  %v2324 = vpop.f32.mrb[0].mxu0
  %2325 = vmatprep.mubr.f32.mxu0 0.0
  %2326 = vmatmul.mubr.f32.gmra.mrb[0].mxu0 %v1678
  %v2327 = vpop.f32.mrb[0].mxu0
  %v2328 = vadd.f32 0.0, %v2327
  %v2329 = vpop.f32.mrb[0].mxu0
  %2330 = vmatprep.mubr.f32.mxu0 0.0
  %2331 = vmatmul.mubr.f32.gmra.mrb[0].mxu0 %v1681
  %v2332 = vpop.f32.mrb[0].mxu0
  %v2333 = vadd.f32 0.0, %v2332
  %v2334 = vpop.f32.mrb[0].mxu0
  %2335 = vmatprep.mubr.f32.mxu0 0.0
  %2336 = vmatmul.mubr.f32.gmra.mrb[0].mxu0 %v1684
  %v2337 = vpop.f32.mrb[0].mxu0
  %v2338 = vadd.f32 0.0, %v2337
  %v2339 = vpop.f32.mrb[0].mxu0
  %2340 = vmatprep.mubr.f32.mxu0 0.0
  %2341 = vmatmul.mubr.f32.gmra.mrb[0].mxu0 %v1687
  %v2342 = vpop.f32.mrb[0].mxu0
  %v2343 = vadd.f32 0.0, %v2342
  %v2344 = vpop.f32.mrb[0].mxu0
  %2345 = vmatprep.mubr.f32.mxu0 0.0
  %2346 = vmatmul.mubr.f32.gmra.mrb[0].mxu0 %v1690
  %v2347 = vpop.f32.mrb[0].mxu0
  %v2348 = vadd.f32 0.0, %v2347
  %v2349 = vpop.f32.mrb[0].mxu0
  %2350 = vmatprep.mubr.f32.mxu0 0.0
  %2351 = vmatmul.mubr.f32.gmra.mrb[0].mxu0 %v1693
  %v2352 = vpop.f32.mrb[0].mxu0
  %v2353 = vadd.f32 0.0, %v2352
  %v2354 = vpop.f32.mrb[0].mxu0
  %2355 = vmatprep.mubr.f32.mxu0 0.0
  %2356 = vmatmul.mubr.f32.gmra.mrb[0].mxu0 %v1696
  %v2357 = vpop.f32.mrb[0].mxu0
  %v2358 = vadd.f32 0.0, %v2357
  %v2359 = vpop.f32.mrb[0].mxu0
  %2360 = vmatprep.mubr.f32.mxu0 0.0
  %2361 = vmatmul.mubr.f32.gmra.mrb[0].mxu0 %v1699
  %v2362 = vpop.f32.mrb[0].mxu0
  %v2363 = vadd.f32 0.0, %v2362
  %v2364 = vpop.f32.mrb[0].mxu0
  %2365 = vmatprep.mubr.f32.mxu0 0.0
  %2366 = vmatmul.mubr.f32.gmra.mrb[0].mxu0 %v1702
  %v2367 = vpop.f32.mrb[0].mxu0
  %v2368 = vadd.f32 0.0, %v2367
  %v2369 = vpop.f32.mrb[0].mxu0
  %2370 = vmatprep.mubr.f32.mxu0 0.0
  %2371 = vmatmul.mubr.f32.gmra.mrb[0].mxu0 %v1705
  %v2372 = vpop.f32.mrb[0].mxu0
  %v2373 = vadd.f32 0.0, %v2372
  %v2374 = vpop.f32.mrb[0].mxu0
  %2375 = vmatprep.mubr.f32.mxu0 0.0
  %2376 = vmatmul.mubr.f32.gmra.mrb[0].mxu0 %v1708
  %v2377 = vpop.f32.mrb[0].mxu0
  %v2378 = vadd.f32 0.0, %v2377
  %v2379 = vpop.f32.mrb[0].mxu0
  %2380 = vmatprep.mubr.f32.mxu0 0.0
  %2381 = vmatmul.mubr.f32.gmra.mrb[0].mxu0 %v1711
  %v2382 = vpop.f32.mrb[0].mxu0
  %v2383 = vadd.f32 0.0, %v2382
  %v2384 = vpop.f32.mrb[0].mxu0
  %2385 = vmatprep.mubr.f32.mxu0 0.0
  %2386 = vmatmul.mubr.f32.gmra.mrb[0].mxu0 %v1714
  %v2387 = vpop.f32.mrb[0].mxu0
  %v2388 = vadd.f32 0.0, %v2387
  %v2389 = vpop.f32.mrb[0].mxu0
  %2390 = vmatprep.mubr.f32.mxu0 0.0
  %2391 = vmatmul.mubr.f32.gmra.mrb[0].mxu0 %v1717
  %v2392 = vpop.f32.mrb[0].mxu0
  %v2393 = vadd.f32 0.0, %v2392
  %v2394 = vpop.f32.mrb[0].mxu0
  %2395 = vmatprep.mubr.f32.mxu0 0.0
  %2396 = vmatmul.mubr.f32.gmra.mrb[0].mxu0 %v1720
  %v2397 = vpop.f32.mrb[0].mxu0
  %v2398 = vadd.f32 0.0, %v2397
  %v2399 = vpop.f32.mrb[0].mxu0
  %2400 = vmatprep.mubr.f32.mxu0 0.0
  %2401 = vmatmul.mubr.f32.gmra.mrb[0].mxu0 %v1723
  %v2402 = vpop.f32.mrb[0].mxu0
  %v2403 = vadd.f32 0.0, %v2402
  %v2404 = vpop.f32.mrb[0].mxu0
  %2405 = vmatprep.mubr.f32.mxu0 0.0
  %2406 = vmatmul.mubr.f32.gmra.mrb[0].mxu0 %v1726
  %v2407 = vpop.f32.mrb[0].mxu0
  %v2408 = vadd.f32 0.0, %v2407
  %v2409 = vpop.f32.mrb[0].mxu0
  %2410 = vmatprep.mubr.f32.mxu0 0.0
  %2411 = vmatmul.mubr.f32.gmra.mrb[0].mxu0 %v1729
  %v2412 = vpop.f32.mrb[0].mxu0
  %v2413 = vadd.f32 0.0, %v2412
  %v2414 = vpop.f32.mrb[0].mxu0
  %2415 = vmatprep.mubr.f32.mxu0 0.0
  %2416 = vmatmul.mubr.f32.gmra.mrb[0].mxu0 %v1732
  %v2417 = vpop.f32.mrb[0].mxu0
  %v2418 = vadd.f32 0.0, %v2417
  %v2419 = vpop.f32.mrb[0].mxu0
  %2420 = vmatprep.mubr.f32.mxu0 0.0
  %2421 = vmatmul.mubr.f32.gmra.mrb[0].mxu0 %v1735
  %v2422 = vpop.f32.mrb[0].mxu0
  %v2423 = vadd.f32 0.0, %v2422
  %v2424 = vpop.f32.mrb[0].mxu0
  %2425 = vmatprep.mubr.f32.mxu0 0.0
  %2426 = vmatmul.mubr.f32.gmra.mrb[0].mxu0 %v1738
  %v2427 = vpop.f32.mrb[0].mxu0
  %v2428 = vadd.f32 0.0, %v2427
  %v2429 = vpop.f32.mrb[0].mxu0
  %2430 = vmatprep.mubr.f32.mxu0 0.0
  %2431 = vmatmul.mubr.f32.gmra.mrb[0].mxu0 %v1741
  %v2432 = vpop.f32.mrb[0].mxu0
  %v2433 = vadd.f32 0.0, %v2432
  %v2434 = vpop.f32.mrb[0].mxu0
  %2435 = vmatprep.mubr.f32.mxu0 0.0
  %2436 = vmatmul.mubr.f32.gmra.mrb[0].mxu0 %v1744
  %v2437 = vpop.f32.mrb[0].mxu0
  %v2438 = vadd.f32 0.0, %v2437
  %v2439 = vpop.f32.mrb[0].mxu0
  %2440 = vmatprep.mubr.f32.mxu0 0.0
  %2441 = vmatmul.mubr.f32.gmra.mrb[0].mxu0 %v1747
  %v2442 = vpop.f32.mrb[0].mxu0
  %v2443 = vadd.f32 0.0, %v2442
  %v2444 = vpop.f32.mrb[0].mxu0
  %2445 = vmatprep.mubr.f32.mxu0 0.0
  %2446 = vmatmul.mubr.f32.gmra.mrb[0].mxu0 %v1750
  %v2447 = vpop.f32.mrb[0].mxu0
  %v2448 = vadd.f32 0.0, %v2447
  %v2449 = vpop.f32.mrb[0].mxu0
  %2450 = vmatprep.mubr.f32.mxu0 0.0
  %2451 = vmatmul.mubr.f32.gmra.mrb[0].mxu0 %v1753
  %v2452 = vpop.f32.mrb[0].mxu0
  %v2453 = vadd.f32 0.0, %v2452
  %v2454 = vpop.f32.mrb[0].mxu0
  %2455 = vmatprep.mubr.f32.mxu0 0.0
  %2456 = vmatmul.mubr.f32.gmra.mrb[0].mxu0 %v1756
  %v2457 = vpop.f32.mrb[0].mxu0
  %v2458 = vadd.f32 0.0, %v2457
  %v2459 = vpop.f32.mrb[0].mxu0
  %2460 = vmatprep.mubr.f32.mxu0 0.0
  %2461 = vmatmul.mubr.f32.gmra.mrb[0].mxu0 %v1759
  %v2462 = vpop.f32.mrb[0].mxu0
  %v2463 = vadd.f32 0.0, %v2462
  %v2464 = vpop.f32.mrb[0].mxu0
  %2465 = vdwg.mxu0
  %v2466 = vmax.f32 %v611, %v1828
  %v2467 = vmax.f32 %v616, %v1833
  %v2468 = vmax.f32 %v621, %v1838
  %v2469 = vmax.f32 %v626, %v1843
  %v2470 = vmax.f32 %v631, %v1848
  %v2471 = vmax.f32 %v636, %v1853
  %v2472 = vmax.f32 %v641, %v1858
  %v2473 = vmax.f32 %v646, %v1863
  %v2474 = vmax.f32 %v651, %v1868
  %v2475 = vmax.f32 %v656, %v1873
  %v2476 = vmax.f32 %v661, %v1878
  %v2477 = vmax.f32 %v666, %v1883
  %v2478 = vmax.f32 %v671, %v1888
  %v2479 = vmax.f32 %v676, %v1893
  %v2480 = vmax.f32 %v681, %v1898
  %v2481 = vmax.f32 %v686, %v1903
  %v2482 = vmax.f32 %v691, %v1908
  %v2483 = vmax.f32 %v696, %v1913
  %v2484 = vmax.f32 %v701, %v1918
  %v2485 = vmax.f32 %v706, %v1923
  %v2486 = vmax.f32 %v711, %v1928
  %v2487 = vmax.f32 %v716, %v1933
  %v2488 = vmax.f32 %v721, %v1938
  %v2489 = vmax.f32 %v726, %v1943
  %v2490 = vmax.f32 %v731, %v1948
  %v2491 = vmax.f32 %v736, %v1953
  %v2492 = vmax.f32 %v741, %v1958
  %v2493 = vmax.f32 %v746, %v1963
  %v2494 = vmax.f32 %v751, %v1968
  %v2495 = vmax.f32 %v756, %v1973
  %v2496 = vmax.f32 %v761, %v1978
  %v2497 = vmax.f32 %v766, %v1983
  %v2498 = vmax.f32 %v771, %v1988
  %v2499 = vmax.f32 %v776, %v1993
  %v2500 = vmax.f32 %v781, %v1998
  %v2501 = vmax.f32 %v786, %v2003
  %v2502 = vmax.f32 %v791, %v2008
  %v2503 = vmax.f32 %v796, %v2013
  %v2504 = vmax.f32 %v801, %v2018
  %v2505 = vmax.f32 %v806, %v2023
  %v2506 = vmax.f32 %v811, %v2028
  %v2507 = vmax.f32 %v816, %v2033
  %v2508 = vmax.f32 %v821, %v2038
  %v2509 = vmax.f32 %v826, %v2043
  %v2510 = vmax.f32 %v831, %v2048
  %v2511 = vmax.f32 %v836, %v2053
  %v2512 = vmax.f32 %v841, %v2058
  %v2513 = vmax.f32 %v846, %v2063
  %v2514 = vmax.f32 %v851, %v2068
  %v2515 = vmax.f32 %v856, %v2073
  %v2516 = vmax.f32 %v861, %v2078
  %v2517 = vmax.f32 %v866, %v2083
  %v2518 = vmax.f32 %v871, %v2088
  %v2519 = vmax.f32 %v876, %v2093
  %v2520 = vmax.f32 %v881, %v2098
  %v2521 = vmax.f32 %v886, %v2103
  %v2522 = vmax.f32 %v891, %v2108
  %v2523 = vmax.f32 %v896, %v2113
  %v2524 = vmax.f32 %v901, %v2118
  %v2525 = vmax.f32 %v906, %v2123
  %v2526 = vmax.f32 %v911, %v2128
  %v2527 = vmax.f32 %v916, %v2133
  %v2528 = vmax.f32 %v921, %v2138
  %v2529 = vmax.f32 %v926, %v2143
  %v2530 = vmax.f32 %v931, %v2148
  %v2531 = vmax.f32 %v936, %v2153
  %v2532 = vmax.f32 %v941, %v2158
  %v2533 = vmax.f32 %v946, %v2163
  %v2534 = vmax.f32 %v951, %v2168
  %v2535 = vmax.f32 %v956, %v2173
  %v2536 = vmax.f32 %v961, %v2178
  %v2537 = vmax.f32 %v966, %v2183
  %v2538 = vmax.f32 %v971, %v2188
  %v2539 = vmax.f32 %v976, %v2193
  %v2540 = vmax.f32 %v981, %v2198
  %v2541 = vmax.f32 %v986, %v2203
  %v2542 = vmax.f32 %v991, %v2208
  %v2543 = vmax.f32 %v996, %v2213
  %v2544 = vmax.f32 %v1001, %v2218
  %v2545 = vmax.f32 %v1006, %v2223
  %v2546 = vmax.f32 %v1011, %v2228
  %v2547 = vmax.f32 %v1016, %v2233
  %v2548 = vmax.f32 %v1021, %v2238
  %v2549 = vmax.f32 %v1026, %v2243
  %v2550 = vmax.f32 %v1031, %v2248
  %v2551 = vmax.f32 %v1036, %v2253
  %v2552 = vmax.f32 %v1041, %v2258
  %v2553 = vmax.f32 %v1046, %v2263
  %v2554 = vmax.f32 %v1051, %v2268
  %v2555 = vmax.f32 %v1056, %v2273
  %v2556 = vmax.f32 %v1061, %v2278
  %v2557 = vmax.f32 %v1066, %v2283
  %v2558 = vmax.f32 %v1071, %v2288
  %v2559 = vmax.f32 %v1076, %v2293
  %v2560 = vmax.f32 %v1081, %v2298
  %v2561 = vmax.f32 %v1086, %v2303
  %v2562 = vmax.f32 %v1091, %v2308
  %v2563 = vmax.f32 %v1096, %v2313
  %v2564 = vmax.f32 %v1101, %v2318
  %v2565 = vmax.f32 %v1106, %v2323
  %v2566 = vmax.f32 %v1111, %v2328
  %v2567 = vmax.f32 %v1116, %v2333
  %v2568 = vmax.f32 %v1121, %v2338
  %v2569 = vmax.f32 %v1126, %v2343
  %v2570 = vmax.f32 %v1131, %v2348
  %v2571 = vmax.f32 %v1136, %v2353
  %v2572 = vmax.f32 %v1141, %v2358
  %v2573 = vmax.f32 %v1146, %v2363
  %v2574 = vmax.f32 %v1151, %v2368
  %v2575 = vmax.f32 %v1156, %v2373
  %v2576 = vmax.f32 %v1161, %v2378
  %v2577 = vmax.f32 %v1166, %v2383
  %v2578 = vmax.f32 %v1171, %v2388
  %v2579 = vmax.f32 %v1176, %v2393
  %v2580 = vmax.f32 %v1181, %v2398
  %v2581 = vmax.f32 %v1186, %v2403
  %v2582 = vmax.f32 %v1191, %v2408
  %v2583 = vmax.f32 %v1196, %v2413
  %v2584 = vmax.f32 %v1201, %v2418
  %v2585 = vmax.f32 %v1206, %v2423
  %v2586 = vmax.f32 %v1211, %v2428
  %v2587 = vmax.f32 %v1216, %v2433
  %v2588 = vmax.f32 %v1221, %v2438
  %v2589 = vmax.f32 %v1226, %v2443
  %v2590 = vmax.f32 %v1231, %v2448
  %v2591 = vmax.f32 %v1236, %v2453
  %v2592 = vmax.f32 %v1241, %v2458
  %v2593 = vmax.f32 %v1246, %v2463
  %v2594 = vld [vmem:[%s2] sm:$0xff]
  %v2595 = vld [vmem:[%s2 + $0x8] sm:$0xff]
  %v2596 = vld [vmem:[%s2 + $0x10] sm:$0xff]
  %v2597 = vld [vmem:[%s2 + $0x18] sm:$0xff]
  %v2598 = vld [vmem:[%s2 + $0x20] sm:$0xff]
  %v2599 = vld [vmem:[%s2 + $0x28] sm:$0xff]
  %v2600 = vld [vmem:[%s2 + $0x30] sm:$0xff]
  %v2601 = vld [vmem:[%s2 + $0x38] sm:$0xff]
  %v2602 = vld [vmem:[%s2 + $0x40] sm:$0xff]
  %v2603 = vld [vmem:[%s2 + $0x48] sm:$0xff]
  %v2604 = vld [vmem:[%s2 + $0x50] sm:$0xff]
  %v2605 = vld [vmem:[%s2 + $0x58] sm:$0xff]
  %v2606 = vld [vmem:[%s2 + $0x60] sm:$0xff]
  %v2607 = vld [vmem:[%s2 + $0x68] sm:$0xff]
  %v2608 = vld [vmem:[%s2 + $0x70] sm:$0xff]
  %v2609 = vld [vmem:[%s2 + $0x78] sm:$0xff]
  %v2610 = vld [vmem:[%s2 + $0x80] sm:$0xff]
  %v2611 = vld [vmem:[%s2 + $0x88] sm:$0xff]
  %v2612 = vld [vmem:[%s2 + $0x90] sm:$0xff]
  %v2613 = vld [vmem:[%s2 + $0x98] sm:$0xff]
  %v2614 = vld [vmem:[%s2 + $0xa0] sm:$0xff]
  %v2615 = vld [vmem:[%s2 + $0xa8] sm:$0xff]
  %v2616 = vld [vmem:[%s2 + $0xb0] sm:$0xff]
  %v2617 = vld [vmem:[%s2 + $0xb8] sm:$0xff]
  %v2618 = vld [vmem:[%s2 + $0xc0] sm:$0xff]
  %v2619 = vld [vmem:[%s2 + $0xc8] sm:$0xff]
  %v2620 = vld [vmem:[%s2 + $0xd0] sm:$0xff]
  %v2621 = vld [vmem:[%s2 + $0xd8] sm:$0xff]
  %v2622 = vld [vmem:[%s2 + $0xe0] sm:$0xff]
  %v2623 = vld [vmem:[%s2 + $0xe8] sm:$0xff]
  %v2624 = vld [vmem:[%s2 + $0xf0] sm:$0xff]
  %v2625 = vld [vmem:[%s2 + $0xf8] sm:$0xff]
  %v2626 = vld [vmem:[%s2 + $0x100] sm:$0xff]
  %v2627 = vld [vmem:[%s2 + $0x108] sm:$0xff]
  %v2628 = vld [vmem:[%s2 + $0x110] sm:$0xff]
  %v2629 = vld [vmem:[%s2 + $0x118] sm:$0xff]
  %v2630 = vld [vmem:[%s2 + $0x120] sm:$0xff]
  %v2631 = vld [vmem:[%s2 + $0x128] sm:$0xff]
  %v2632 = vld [vmem:[%s2 + $0x130] sm:$0xff]
  %v2633 = vld [vmem:[%s2 + $0x138] sm:$0xff]
  %v2634 = vld [vmem:[%s2 + $0x140] sm:$0xff]
  %v2635 = vld [vmem:[%s2 + $0x148] sm:$0xff]
  %v2636 = vld [vmem:[%s2 + $0x150] sm:$0xff]
  %v2637 = vld [vmem:[%s2 + $0x158] sm:$0xff]
  %v2638 = vld [vmem:[%s2 + $0x160] sm:$0xff]
  %v2639 = vld [vmem:[%s2 + $0x168] sm:$0xff]
  %v2640 = vld [vmem:[%s2 + $0x170] sm:$0xff]
  %v2641 = vld [vmem:[%s2 + $0x178] sm:$0xff]
  %v2642 = vld [vmem:[%s2 + $0x180] sm:$0xff]
  %v2643 = vld [vmem:[%s2 + $0x188] sm:$0xff]
  %v2644 = vld [vmem:[%s2 + $0x190] sm:$0xff]
  %v2645 = vld [vmem:[%s2 + $0x198] sm:$0xff]
  %v2646 = vld [vmem:[%s2 + $0x1a0] sm:$0xff]
  %v2647 = vld [vmem:[%s2 + $0x1a8] sm:$0xff]
  %v2648 = vld [vmem:[%s2 + $0x1b0] sm:$0xff]
  %v2649 = vld [vmem:[%s2 + $0x1b8] sm:$0xff]
  %v2650 = vld [vmem:[%s2 + $0x1c0] sm:$0xff]
  %v2651 = vld [vmem:[%s2 + $0x1c8] sm:$0xff]
  %v2652 = vld [vmem:[%s2 + $0x1d0] sm:$0xff]
  %v2653 = vld [vmem:[%s2 + $0x1d8] sm:$0xff]
  %v2654 = vld [vmem:[%s2 + $0x1e0] sm:$0xff]
  %v2655 = vld [vmem:[%s2 + $0x1e8] sm:$0xff]
  %v2656 = vld [vmem:[%s2 + $0x1f0] sm:$0xff]
  %v2657 = vld [vmem:[%s2 + $0x1f8] sm:$0xff]
  %v2658 = vld [vmem:[%s2 + $0x200] sm:$0xff]
  %v2659 = vld [vmem:[%s2 + $0x208] sm:$0xff]
  %v2660 = vld [vmem:[%s2 + $0x210] sm:$0xff]
  %v2661 = vld [vmem:[%s2 + $0x218] sm:$0xff]
  %v2662 = vld [vmem:[%s2 + $0x220] sm:$0xff]
  %v2663 = vld [vmem:[%s2 + $0x228] sm:$0xff]
  %v2664 = vld [vmem:[%s2 + $0x230] sm:$0xff]
  %v2665 = vld [vmem:[%s2 + $0x238] sm:$0xff]
  %v2666 = vld [vmem:[%s2 + $0x240] sm:$0xff]
  %v2667 = vld [vmem:[%s2 + $0x248] sm:$0xff]
  %v2668 = vld [vmem:[%s2 + $0x250] sm:$0xff]
  %v2669 = vld [vmem:[%s2 + $0x258] sm:$0xff]
  %v2670 = vld [vmem:[%s2 + $0x260] sm:$0xff]
  %v2671 = vld [vmem:[%s2 + $0x268] sm:$0xff]
  %v2672 = vld [vmem:[%s2 + $0x270] sm:$0xff]
  %v2673 = vld [vmem:[%s2 + $0x278] sm:$0xff]
  %v2674 = vld [vmem:[%s2 + $0x280] sm:$0xff]
  %v2675 = vld [vmem:[%s2 + $0x288] sm:$0xff]
  %v2676 = vld [vmem:[%s2 + $0x290] sm:$0xff]
  %v2677 = vld [vmem:[%s2 + $0x298] sm:$0xff]
  %v2678 = vld [vmem:[%s2 + $0x2a0] sm:$0xff]
  %v2679 = vld [vmem:[%s2 + $0x2a8] sm:$0xff]
  %v2680 = vld [vmem:[%s2 + $0x2b0] sm:$0xff]
  %v2681 = vld [vmem:[%s2 + $0x2b8] sm:$0xff]
  %v2682 = vld [vmem:[%s2 + $0x2c0] sm:$0xff]
  %v2683 = vld [vmem:[%s2 + $0x2c8] sm:$0xff]
  %v2684 = vld [vmem:[%s2 + $0x2d0] sm:$0xff]
  %v2685 = vld [vmem:[%s2 + $0x2d8] sm:$0xff]
  %v2686 = vld [vmem:[%s2 + $0x2e0] sm:$0xff]
  %v2687 = vld [vmem:[%s2 + $0x2e8] sm:$0xff]
  %v2688 = vld [vmem:[%s2 + $0x2f0] sm:$0xff]
  %v2689 = vld [vmem:[%s2 + $0x2f8] sm:$0xff]
  %v2690 = vld [vmem:[%s2 + $0x300] sm:$0xff]
  %v2691 = vld [vmem:[%s2 + $0x308] sm:$0xff]
  %v2692 = vld [vmem:[%s2 + $0x310] sm:$0xff]
  %v2693 = vld [vmem:[%s2 + $0x318] sm:$0xff]
  %v2694 = vld [vmem:[%s2 + $0x320] sm:$0xff]
  %v2695 = vld [vmem:[%s2 + $0x328] sm:$0xff]
  %v2696 = vld [vmem:[%s2 + $0x330] sm:$0xff]
  %v2697 = vld [vmem:[%s2 + $0x338] sm:$0xff]
  %v2698 = vld [vmem:[%s2 + $0x340] sm:$0xff]
  %v2699 = vld [vmem:[%s2 + $0x348] sm:$0xff]
  %v2700 = vld [vmem:[%s2 + $0x350] sm:$0xff]
  %v2701 = vld [vmem:[%s2 + $0x358] sm:$0xff]
  %v2702 = vld [vmem:[%s2 + $0x360] sm:$0xff]
  %v2703 = vld [vmem:[%s2 + $0x368] sm:$0xff]
  %v2704 = vld [vmem:[%s2 + $0x370] sm:$0xff]
  %v2705 = vld [vmem:[%s2 + $0x378] sm:$0xff]
  %v2706 = vld [vmem:[%s2 + $0x380] sm:$0xff]
  %v2707 = vld [vmem:[%s2 + $0x388] sm:$0xff]
  %v2708 = vld [vmem:[%s2 + $0x390] sm:$0xff]
  %v2709 = vld [vmem:[%s2 + $0x398] sm:$0xff]
  %v2710 = vld [vmem:[%s2 + $0x3a0] sm:$0xff]
  %v2711 = vld [vmem:[%s2 + $0x3a8] sm:$0xff]
  %v2712 = vld [vmem:[%s2 + $0x3b0] sm:$0xff]
  %v2713 = vld [vmem:[%s2 + $0x3b8] sm:$0xff]
  %v2714 = vld [vmem:[%s2 + $0x3c0] sm:$0xff]
  %v2715 = vld [vmem:[%s2 + $0x3c8] sm:$0xff]
  %v2716 = vld [vmem:[%s2 + $0x3d0] sm:$0xff]
  %v2717 = vld [vmem:[%s2 + $0x3d8] sm:$0xff]
  %v2718 = vld [vmem:[%s2 + $0x3e0] sm:$0xff]
  %v2719 = vld [vmem:[%s2 + $0x3e8] sm:$0xff]
  %v2720 = vld [vmem:[%s2 + $0x3f0] sm:$0xff]
  %v2721 = vld [vmem:[%s2 + $0x3f8] sm:$0xff]
  %v2723 = vsel %vm155, %v2594, 0
  %v2726 = vsel %vm155, %v2595, 0
  %v2729 = vsel %vm155, %v2596, 0
  %v2732 = vsel %vm155, %v2597, 0
  %v2735 = vsel %vm155, %v2598, 0
  %v2738 = vsel %vm155, %v2599, 0
  %v2741 = vsel %vm155, %v2600, 0
  %v2744 = vsel %vm155, %v2601, 0
  %v2747 = vsel %vm155, %v2602, 0
  %v2750 = vsel %vm155, %v2603, 0
  %v2753 = vsel %vm155, %v2604, 0
  %v2756 = vsel %vm155, %v2605, 0
  %v2759 = vsel %vm155, %v2606, 0
  %v2762 = vsel %vm155, %v2607, 0
  %v2765 = vsel %vm155, %v2608, 0
  %v2768 = vsel %vm155, %v2609, 0
  %v2771 = vsel %vm155, %v2610, 0
  %v2774 = vsel %vm155, %v2611, 0
  %v2777 = vsel %vm155, %v2612, 0
  %v2780 = vsel %vm155, %v2613, 0
  %v2783 = vsel %vm155, %v2614, 0
  %v2786 = vsel %vm155, %v2615, 0
  %v2789 = vsel %vm155, %v2616, 0
  %v2792 = vsel %vm155, %v2617, 0
  %v2795 = vsel %vm155, %v2618, 0
  %v2798 = vsel %vm155, %v2619, 0
  %v2801 = vsel %vm155, %v2620, 0
  %v2804 = vsel %vm155, %v2621, 0
  %v2807 = vsel %vm155, %v2622, 0
  %v2810 = vsel %vm155, %v2623, 0
  %v2813 = vsel %vm155, %v2624, 0
  %v2816 = vsel %vm155, %v2625, 0
  %v2819 = vsel %vm155, %v2626, 0
  %v2822 = vsel %vm155, %v2627, 0
  %v2825 = vsel %vm155, %v2628, 0
  %v2828 = vsel %vm155, %v2629, 0
  %v2831 = vsel %vm155, %v2630, 0
  %v2834 = vsel %vm155, %v2631, 0
  %v2837 = vsel %vm155, %v2632, 0
  %v2840 = vsel %vm155, %v2633, 0
  %v2843 = vsel %vm155, %v2634, 0
  %v2846 = vsel %vm155, %v2635, 0
  %v2849 = vsel %vm155, %v2636, 0
  %v2852 = vsel %vm155, %v2637, 0
  %v2855 = vsel %vm155, %v2638, 0
  %v2858 = vsel %vm155, %v2639, 0
  %v2861 = vsel %vm155, %v2640, 0
  %v2864 = vsel %vm155, %v2641, 0
  %v2867 = vsel %vm155, %v2642, 0
  %v2870 = vsel %vm155, %v2643, 0
  %v2873 = vsel %vm155, %v2644, 0
  %v2876 = vsel %vm155, %v2645, 0
  %v2879 = vsel %vm155, %v2646, 0
  %v2882 = vsel %vm155, %v2647, 0
  %v2885 = vsel %vm155, %v2648, 0
  %v2888 = vsel %vm155, %v2649, 0
  %v2891 = vsel %vm155, %v2650, 0
  %v2894 = vsel %vm155, %v2651, 0
  %v2897 = vsel %vm155, %v2652, 0
  %v2900 = vsel %vm155, %v2653, 0
  %v2903 = vsel %vm155, %v2654, 0
  %v2906 = vsel %vm155, %v2655, 0
  %v2909 = vsel %vm155, %v2656, 0
  %v2912 = vsel %vm155, %v2657, 0
  %v2915 = vsel %vm155, %v2658, 0
  %v2918 = vsel %vm155, %v2659, 0
  %v2921 = vsel %vm155, %v2660, 0
  %v2924 = vsel %vm155, %v2661, 0
  %v2927 = vsel %vm155, %v2662, 0
  %v2930 = vsel %vm155, %v2663, 0
  %v2933 = vsel %vm155, %v2664, 0
  %v2936 = vsel %vm155, %v2665, 0
  %v2939 = vsel %vm155, %v2666, 0
  %v2942 = vsel %vm155, %v2667, 0
  %v2945 = vsel %vm155, %v2668, 0
  %v2948 = vsel %vm155, %v2669, 0
  %v2951 = vsel %vm155, %v2670, 0
  %v2954 = vsel %vm155, %v2671, 0
  %v2957 = vsel %vm155, %v2672, 0
  %v2960 = vsel %vm155, %v2673, 0
  %v2963 = vsel %vm155, %v2674, 0
  %v2966 = vsel %vm155, %v2675, 0
  %v2969 = vsel %vm155, %v2676, 0
  %v2972 = vsel %vm155, %v2677, 0
  %v2975 = vsel %vm155, %v2678, 0
  %v2978 = vsel %vm155, %v2679, 0
  %v2981 = vsel %vm155, %v2680, 0
  %v2984 = vsel %vm155, %v2681, 0
  %v2987 = vsel %vm155, %v2682, 0
  %v2990 = vsel %vm155, %v2683, 0
  %v2993 = vsel %vm155, %v2684, 0
  %v2996 = vsel %vm155, %v2685, 0
  %v2999 = vsel %vm155, %v2686, 0
  %v3002 = vsel %vm155, %v2687, 0
  %v3005 = vsel %vm155, %v2688, 0
  %v3008 = vsel %vm155, %v2689, 0
  %v3011 = vsel %vm155, %v2690, 0
  %v3014 = vsel %vm155, %v2691, 0
  %v3017 = vsel %vm155, %v2692, 0
  %v3020 = vsel %vm155, %v2693, 0
  %v3023 = vsel %vm155, %v2694, 0
  %v3026 = vsel %vm155, %v2695, 0
  %v3029 = vsel %vm155, %v2696, 0
  %v3032 = vsel %vm155, %v2697, 0
  %v3035 = vsel %vm155, %v2698, 0
  %v3038 = vsel %vm155, %v2699, 0
  %v3041 = vsel %vm155, %v2700, 0
  %v3044 = vsel %vm155, %v2701, 0
  %v3047 = vsel %vm155, %v2702, 0
  %v3050 = vsel %vm155, %v2703, 0
  %v3053 = vsel %vm155, %v2704, 0
  %v3056 = vsel %vm155, %v2705, 0
  %v3059 = vsel %vm155, %v2706, 0
  %v3062 = vsel %vm155, %v2707, 0
  %v3065 = vsel %vm155, %v2708, 0
  %v3068 = vsel %vm155, %v2709, 0
  %v3071 = vsel %vm155, %v2710, 0
  %v3074 = vsel %vm155, %v2711, 0
  %v3077 = vsel %vm155, %v2712, 0
  %v3080 = vsel %vm155, %v2713, 0
  %v3083 = vsel %vm155, %v2714, 0
  %v3086 = vsel %vm155, %v2715, 0
  %v3089 = vsel %vm155, %v2716, 0
  %v3092 = vsel %vm155, %v2717, 0
  %v3095 = vsel %vm155, %v2718, 0
  %v3098 = vsel %vm155, %v2719, 0
  %v3101 = vsel %vm155, %v2720, 0
  %v3104 = vsel %vm155, %v2721, 0
  %3106 = vmatprep.subr.mxu0 0.0
  %3107 = vmatpush1.msra.mxu0 %v23
  %3108 = vmatprep.subr.mxu0 0.0
  %3109 = vmatpush1.msra.mxu0 %v24
  %3110 = vmatprep.subr.mxu0 0.0
  %3111 = vmatpush1.msra.mxu0 %v25
  %3112 = vmatprep.subr.mxu0 0.0
  %3113 = vmatpush1.msra.mxu0 %v542
  %3114 = vmatprep.subr.mxu0 0.0
  %3115 = vmatpush1.msra.mxu0 0.0
  %3116 = vmatprep.subr.mxu0 0.0
  %3117 = vmatpush1.msra.mxu0 0.0
  %3118 = vmatprep.subr.mxu0 0.0
  %3119 = vmatpush1.msra.mxu0 0.0
  %3120 = vmatprep.subr.mxu0 0.0
  %3121 = vmatpush1.msra.mxu0 0.0
  %3122 = vmatprep.subr.mxu0 0.0
  %3123 = vmatpush1.msra.mxu0 0.0
  %3124 = vmatprep.subr.mxu0 0.0
  %3125 = vmatpush1.msra.mxu0 0.0
  %3126 = vmatprep.subr.mxu0 0.0
  %3127 = vmatpush1.msra.mxu0 0.0
  %3128 = vmatprep.subr.mxu0 0.0
  %3129 = vmatpush1.msra.mxu0 0.0
  %3130 = vmatprep.subr.mxu0 0.0
  %3131 = vmatpush1.msra.mxu0 0.0
  %3132 = vmatprep.subr.mxu0 0.0
  %3133 = vmatpush1.msra.mxu0 0.0
  %3134 = vmatprep.subr.mxu0 0.0
  %3135 = vmatpush1.msra.mxu0 0.0
  %3136 = vmatprep.subr.mxu0 0.0
  %3137 = vmatpush1.msra.mxu0 0.0
  %3138 = vmatprep.subr.mxu0 0.0
  %3139 = vmatpush1.msra.mxu0 0.0
  %3140 = vmatprep.subr.mxu0 0.0
  %3141 = vmatpush1.msra.mxu0 0.0
  %3142 = vmatprep.subr.mxu0 0.0
  %3143 = vmatpush1.msra.mxu0 0.0
  %3144 = vmatprep.subr.mxu0 0.0
  %3145 = vmatpush1.msra.mxu0 0.0
  %3146 = vmatprep.subr.mxu0 0.0
  %3147 = vmatpush1.msra.mxu0 0.0
  %3148 = vmatprep.subr.mxu0 0.0
  %3149 = vmatpush1.msra.mxu0 0.0
  %3150 = vmatprep.subr.mxu0 0.0
  %3151 = vmatpush1.msra.mxu0 0.0
  %3152 = vmatprep.subr.mxu0 0.0
  %3153 = vmatpush1.msra.mxu0 0.0
  %3154 = vmatprep.subr.mxu0 0.0
  %3155 = vmatpush1.msra.mxu0 0.0
  %3156 = vmatprep.subr.mxu0 0.0
  %3157 = vmatpush1.msra.mxu0 0.0
  %3158 = vmatprep.subr.mxu0 0.0
  %3159 = vmatpush1.msra.mxu0 0.0
  %3160 = vmatprep.subr.mxu0 0.0
  %3161 = vmatpush1.msra.mxu0 0.0
  %3162 = vmatprep.subr.mxu0 0.0
  %3163 = vmatpush1.msra.mxu0 0.0
  %3164 = vmatprep.subr.mxu0 0.0
  %3165 = vmatpush1.msra.mxu0 0.0
  %3166 = vmatprep.subr.mxu0 0.0
  %3167 = vmatpush1.msra.mxu0 0.0
  %3168 = vmatprep.subr.mxu0 0.0
  %3169 = vmatpush1.msra.mxu0 0.0
  %3170 = vmatprep.mubr.f32.mxu0 0.0
  %3171 = vmatmul.mubr.f32.gmra.mrb[0].mxu0 %v2723
  %v3172 = vpop.f32.mrb[0].mxu0
  %v3173 = vadd.f32 0.0, %v3172
  %v3174 = vpop.f32.mrb[0].mxu0
  %3175 = vmatprep.mubr.f32.mxu0 0.0
  %3176 = vmatmul.mubr.f32.gmra.mrb[0].mxu0 %v2726
  %v3177 = vpop.f32.mrb[0].mxu0
  %v3178 = vadd.f32 0.0, %v3177
  %v3179 = vpop.f32.mrb[0].mxu0
  %3180 = vmatprep.mubr.f32.mxu0 0.0
  %3181 = vmatmul.mubr.f32.gmra.mrb[0].mxu0 %v2729
  %v3182 = vpop.f32.mrb[0].mxu0
  %v3183 = vadd.f32 0.0, %v3182
  %v3184 = vpop.f32.mrb[0].mxu0
  %3185 = vmatprep.mubr.f32.mxu0 0.0
  %3186 = vmatmul.mubr.f32.gmra.mrb[0].mxu0 %v2732
  %v3187 = vpop.f32.mrb[0].mxu0
  %v3188 = vadd.f32 0.0, %v3187
  %v3189 = vpop.f32.mrb[0].mxu0
  %3190 = vmatprep.mubr.f32.mxu0 0.0
  %3191 = vmatmul.mubr.f32.gmra.mrb[0].mxu0 %v2735
  %v3192 = vpop.f32.mrb[0].mxu0
  %v3193 = vadd.f32 0.0, %v3192
  %v3194 = vpop.f32.mrb[0].mxu0
  %3195 = vmatprep.mubr.f32.mxu0 0.0
  %3196 = vmatmul.mubr.f32.gmra.mrb[0].mxu0 %v2738
  %v3197 = vpop.f32.mrb[0].mxu0
  %v3198 = vadd.f32 0.0, %v3197
  %v3199 = vpop.f32.mrb[0].mxu0
  %3200 = vmatprep.mubr.f32.mxu0 0.0
  %3201 = vmatmul.mubr.f32.gmra.mrb[0].mxu0 %v2741
  %v3202 = vpop.f32.mrb[0].mxu0
  %v3203 = vadd.f32 0.0, %v3202
  %v3204 = vpop.f32.mrb[0].mxu0
  %3205 = vmatprep.mubr.f32.mxu0 0.0
  %3206 = vmatmul.mubr.f32.gmra.mrb[0].mxu0 %v2744
  %v3207 = vpop.f32.mrb[0].mxu0
  %v3208 = vadd.f32 0.0, %v3207
  %v3209 = vpop.f32.mrb[0].mxu0
  %3210 = vmatprep.mubr.f32.mxu0 0.0
  %3211 = vmatmul.mubr.f32.gmra.mrb[0].mxu0 %v2747
  %v3212 = vpop.f32.mrb[0].mxu0
  %v3213 = vadd.f32 0.0, %v3212
  %v3214 = vpop.f32.mrb[0].mxu0
  %3215 = vmatprep.mubr.f32.mxu0 0.0
  %3216 = vmatmul.mubr.f32.gmra.mrb[0].mxu0 %v2750
  %v3217 = vpop.f32.mrb[0].mxu0
  %v3218 = vadd.f32 0.0, %v3217
  %v3219 = vpop.f32.mrb[0].mxu0
  %3220 = vmatprep.mubr.f32.mxu0 0.0
  %3221 = vmatmul.mubr.f32.gmra.mrb[0].mxu0 %v2753
  %v3222 = vpop.f32.mrb[0].mxu0
  %v3223 = vadd.f32 0.0, %v3222
  %v3224 = vpop.f32.mrb[0].mxu0
  %3225 = vmatprep.mubr.f32.mxu0 0.0
  %3226 = vmatmul.mubr.f32.gmra.mrb[0].mxu0 %v2756
  %v3227 = vpop.f32.mrb[0].mxu0
  %v3228 = vadd.f32 0.0, %v3227
  %v3229 = vpop.f32.mrb[0].mxu0
  %3230 = vmatprep.mubr.f32.mxu0 0.0
  %3231 = vmatmul.mubr.f32.gmra.mrb[0].mxu0 %v2759
  %v3232 = vpop.f32.mrb[0].mxu0
  %v3233 = vadd.f32 0.0, %v3232
  %v3234 = vpop.f32.mrb[0].mxu0
  %3235 = vmatprep.mubr.f32.mxu0 0.0
  %3236 = vmatmul.mubr.f32.gmra.mrb[0].mxu0 %v2762
  %v3237 = vpop.f32.mrb[0].mxu0
  %v3238 = vadd.f32 0.0, %v3237
  %v3239 = vpop.f32.mrb[0].mxu0
  %3240 = vmatprep.mubr.f32.mxu0 0.0
  %3241 = vmatmul.mubr.f32.gmra.mrb[0].mxu0 %v2765
  %v3242 = vpop.f32.mrb[0].mxu0
  %v3243 = vadd.f32 0.0, %v3242
  %v3244 = vpop.f32.mrb[0].mxu0
  %3245 = vmatprep.mubr.f32.mxu0 0.0
  %3246 = vmatmul.mubr.f32.gmra.mrb[0].mxu0 %v2768
  %v3247 = vpop.f32.mrb[0].mxu0
  %v3248 = vadd.f32 0.0, %v3247
  %v3249 = vpop.f32.mrb[0].mxu0
  %3250 = vmatprep.mubr.f32.mxu0 0.0
  %3251 = vmatmul.mubr.f32.gmra.mrb[0].mxu0 %v2771
  %v3252 = vpop.f32.mrb[0].mxu0
  %v3253 = vadd.f32 0.0, %v3252
  %v3254 = vpop.f32.mrb[0].mxu0
  %3255 = vmatprep.mubr.f32.mxu0 0.0
  %3256 = vmatmul.mubr.f32.gmra.mrb[0].mxu0 %v2774
  %v3257 = vpop.f32.mrb[0].mxu0
  %v3258 = vadd.f32 0.0, %v3257
  %v3259 = vpop.f32.mrb[0].mxu0
  %3260 = vmatprep.mubr.f32.mxu0 0.0
  %3261 = vmatmul.mubr.f32.gmra.mrb[0].mxu0 %v2777
  %v3262 = vpop.f32.mrb[0].mxu0
  %v3263 = vadd.f32 0.0, %v3262
  %v3264 = vpop.f32.mrb[0].mxu0
  %3265 = vmatprep.mubr.f32.mxu0 0.0
  %3266 = vmatmul.mubr.f32.gmra.mrb[0].mxu0 %v2780
  %v3267 = vpop.f32.mrb[0].mxu0
  %v3268 = vadd.f32 0.0, %v3267
  %v3269 = vpop.f32.mrb[0].mxu0
  %3270 = vmatprep.mubr.f32.mxu0 0.0
  %3271 = vmatmul.mubr.f32.gmra.mrb[0].mxu0 %v2783
  %v3272 = vpop.f32.mrb[0].mxu0
  %v3273 = vadd.f32 0.0, %v3272
  %v3274 = vpop.f32.mrb[0].mxu0
  %3275 = vmatprep.mubr.f32.mxu0 0.0
  %3276 = vmatmul.mubr.f32.gmra.mrb[0].mxu0 %v2786
  %v3277 = vpop.f32.mrb[0].mxu0
  %v3278 = vadd.f32 0.0, %v3277
  %v3279 = vpop.f32.mrb[0].mxu0
  %3280 = vmatprep.mubr.f32.mxu0 0.0
  %3281 = vmatmul.mubr.f32.gmra.mrb[0].mxu0 %v2789
  %v3282 = vpop.f32.mrb[0].mxu0
  %v3283 = vadd.f32 0.0, %v3282
  %v3284 = vpop.f32.mrb[0].mxu0
  %3285 = vmatprep.mubr.f32.mxu0 0.0
  %3286 = vmatmul.mubr.f32.gmra.mrb[0].mxu0 %v2792
  %v3287 = vpop.f32.mrb[0].mxu0
  %v3288 = vadd.f32 0.0, %v3287
  %v3289 = vpop.f32.mrb[0].mxu0
  %3290 = vmatprep.mubr.f32.mxu0 0.0
  %3291 = vmatmul.mubr.f32.gmra.mrb[0].mxu0 %v2795
  %v3292 = vpop.f32.mrb[0].mxu0
  %v3293 = vadd.f32 0.0, %v3292
  %v3294 = vpop.f32.mrb[0].mxu0
  %3295 = vmatprep.mubr.f32.mxu0 0.0
  %3296 = vmatmul.mubr.f32.gmra.mrb[0].mxu0 %v2798
  %v3297 = vpop.f32.mrb[0].mxu0
  %v3298 = vadd.f32 0.0, %v3297
  %v3299 = vpop.f32.mrb[0].mxu0
  %3300 = vmatprep.mubr.f32.mxu0 0.0
  %3301 = vmatmul.mubr.f32.gmra.mrb[0].mxu0 %v2801
  %v3302 = vpop.f32.mrb[0].mxu0
  %v3303 = vadd.f32 0.0, %v3302
  %v3304 = vpop.f32.mrb[0].mxu0
  %3305 = vmatprep.mubr.f32.mxu0 0.0
  %3306 = vmatmul.mubr.f32.gmra.mrb[0].mxu0 %v2804
  %v3307 = vpop.f32.mrb[0].mxu0
  %v3308 = vadd.f32 0.0, %v3307
  %v3309 = vpop.f32.mrb[0].mxu0
  %3310 = vmatprep.mubr.f32.mxu0 0.0
  %3311 = vmatmul.mubr.f32.gmra.mrb[0].mxu0 %v2807
  %v3312 = vpop.f32.mrb[0].mxu0
  %v3313 = vadd.f32 0.0, %v3312
  %v3314 = vpop.f32.mrb[0].mxu0
  %3315 = vmatprep.mubr.f32.mxu0 0.0
  %3316 = vmatmul.mubr.f32.gmra.mrb[0].mxu0 %v2810
  %v3317 = vpop.f32.mrb[0].mxu0
  %v3318 = vadd.f32 0.0, %v3317
  %v3319 = vpop.f32.mrb[0].mxu0
  %3320 = vmatprep.mubr.f32.mxu0 0.0
  %3321 = vmatmul.mubr.f32.gmra.mrb[0].mxu0 %v2813
  %v3322 = vpop.f32.mrb[0].mxu0
  %v3323 = vadd.f32 0.0, %v3322
  %v3324 = vpop.f32.mrb[0].mxu0
  %3325 = vmatprep.mubr.f32.mxu0 0.0
  %3326 = vmatmul.mubr.f32.gmra.mrb[0].mxu0 %v2816
  %v3327 = vpop.f32.mrb[0].mxu0
  %v3328 = vadd.f32 0.0, %v3327
  %v3329 = vpop.f32.mrb[0].mxu0
  %3330 = vmatprep.mubr.f32.mxu0 0.0
  %3331 = vmatmul.mubr.f32.gmra.mrb[0].mxu0 %v2819
  %v3332 = vpop.f32.mrb[0].mxu0
  %v3333 = vadd.f32 0.0, %v3332
  %v3334 = vpop.f32.mrb[0].mxu0
  %3335 = vmatprep.mubr.f32.mxu0 0.0
  %3336 = vmatmul.mubr.f32.gmra.mrb[0].mxu0 %v2822
  %v3337 = vpop.f32.mrb[0].mxu0
  %v3338 = vadd.f32 0.0, %v3337
  %v3339 = vpop.f32.mrb[0].mxu0
  %3340 = vmatprep.mubr.f32.mxu0 0.0
  %3341 = vmatmul.mubr.f32.gmra.mrb[0].mxu0 %v2825
  %v3342 = vpop.f32.mrb[0].mxu0
  %v3343 = vadd.f32 0.0, %v3342
  %v3344 = vpop.f32.mrb[0].mxu0
  %3345 = vmatprep.mubr.f32.mxu0 0.0
  %3346 = vmatmul.mubr.f32.gmra.mrb[0].mxu0 %v2828
  %v3347 = vpop.f32.mrb[0].mxu0
  %v3348 = vadd.f32 0.0, %v3347
  %v3349 = vpop.f32.mrb[0].mxu0
  %3350 = vmatprep.mubr.f32.mxu0 0.0
  %3351 = vmatmul.mubr.f32.gmra.mrb[0].mxu0 %v2831
  %v3352 = vpop.f32.mrb[0].mxu0
  %v3353 = vadd.f32 0.0, %v3352
  %v3354 = vpop.f32.mrb[0].mxu0
  %3355 = vmatprep.mubr.f32.mxu0 0.0
  %3356 = vmatmul.mubr.f32.gmra.mrb[0].mxu0 %v2834
  %v3357 = vpop.f32.mrb[0].mxu0
  %v3358 = vadd.f32 0.0, %v3357
  %v3359 = vpop.f32.mrb[0].mxu0
  %3360 = vmatprep.mubr.f32.mxu0 0.0
  %3361 = vmatmul.mubr.f32.gmra.mrb[0].mxu0 %v2837
  %v3362 = vpop.f32.mrb[0].mxu0
  %v3363 = vadd.f32 0.0, %v3362
  %v3364 = vpop.f32.mrb[0].mxu0
  %3365 = vmatprep.mubr.f32.mxu0 0.0
  %3366 = vmatmul.mubr.f32.gmra.mrb[0].mxu0 %v2840
  %v3367 = vpop.f32.mrb[0].mxu0
  %v3368 = vadd.f32 0.0, %v3367
  %v3369 = vpop.f32.mrb[0].mxu0
  %3370 = vmatprep.mubr.f32.mxu0 0.0
  %3371 = vmatmul.mubr.f32.gmra.mrb[0].mxu0 %v2843
  %v3372 = vpop.f32.mrb[0].mxu0
  %v3373 = vadd.f32 0.0, %v3372
  %v3374 = vpop.f32.mrb[0].mxu0
  %3375 = vmatprep.mubr.f32.mxu0 0.0
  %3376 = vmatmul.mubr.f32.gmra.mrb[0].mxu0 %v2846
  %v3377 = vpop.f32.mrb[0].mxu0
  %v3378 = vadd.f32 0.0, %v3377
  %v3379 = vpop.f32.mrb[0].mxu0
  %3380 = vmatprep.mubr.f32.mxu0 0.0
  %3381 = vmatmul.mubr.f32.gmra.mrb[0].mxu0 %v2849
  %v3382 = vpop.f32.mrb[0].mxu0
  %v3383 = vadd.f32 0.0, %v3382
  %v3384 = vpop.f32.mrb[0].mxu0
  %3385 = vmatprep.mubr.f32.mxu0 0.0
  %3386 = vmatmul.mubr.f32.gmra.mrb[0].mxu0 %v2852
  %v3387 = vpop.f32.mrb[0].mxu0
  %v3388 = vadd.f32 0.0, %v3387
  %v3389 = vpop.f32.mrb[0].mxu0
  %3390 = vmatprep.mubr.f32.mxu0 0.0
  %3391 = vmatmul.mubr.f32.gmra.mrb[0].mxu0 %v2855
  %v3392 = vpop.f32.mrb[0].mxu0
  %v3393 = vadd.f32 0.0, %v3392
  %v3394 = vpop.f32.mrb[0].mxu0
  %3395 = vmatprep.mubr.f32.mxu0 0.0
  %3396 = vmatmul.mubr.f32.gmra.mrb[0].mxu0 %v2858
  %v3397 = vpop.f32.mrb[0].mxu0
  %v3398 = vadd.f32 0.0, %v3397
  %v3399 = vpop.f32.mrb[0].mxu0
  %3400 = vmatprep.mubr.f32.mxu0 0.0
  %3401 = vmatmul.mubr.f32.gmra.mrb[0].mxu0 %v2861
  %v3402 = vpop.f32.mrb[0].mxu0
  %v3403 = vadd.f32 0.0, %v3402
  %v3404 = vpop.f32.mrb[0].mxu0
  %3405 = vmatprep.mubr.f32.mxu0 0.0
  %3406 = vmatmul.mubr.f32.gmra.mrb[0].mxu0 %v2864
  %v3407 = vpop.f32.mrb[0].mxu0
  %v3408 = vadd.f32 0.0, %v3407
  %v3409 = vpop.f32.mrb[0].mxu0
  %3410 = vmatprep.mubr.f32.mxu0 0.0
  %3411 = vmatmul.mubr.f32.gmra.mrb[0].mxu0 %v2867
  %v3412 = vpop.f32.mrb[0].mxu0
  %v3413 = vadd.f32 0.0, %v3412
  %v3414 = vpop.f32.mrb[0].mxu0
  %3415 = vmatprep.mubr.f32.mxu0 0.0
  %3416 = vmatmul.mubr.f32.gmra.mrb[0].mxu0 %v2870
  %v3417 = vpop.f32.mrb[0].mxu0
  %v3418 = vadd.f32 0.0, %v3417
  %v3419 = vpop.f32.mrb[0].mxu0
  %3420 = vmatprep.mubr.f32.mxu0 0.0
  %3421 = vmatmul.mubr.f32.gmra.mrb[0].mxu0 %v2873
  %v3422 = vpop.f32.mrb[0].mxu0
  %v3423 = vadd.f32 0.0, %v3422
  %v3424 = vpop.f32.mrb[0].mxu0
  %3425 = vmatprep.mubr.f32.mxu0 0.0
  %3426 = vmatmul.mubr.f32.gmra.mrb[0].mxu0 %v2876
  %v3427 = vpop.f32.mrb[0].mxu0
  %v3428 = vadd.f32 0.0, %v3427
  %v3429 = vpop.f32.mrb[0].mxu0
  %3430 = vmatprep.mubr.f32.mxu0 0.0
  %3431 = vmatmul.mubr.f32.gmra.mrb[0].mxu0 %v2879
  %v3432 = vpop.f32.mrb[0].mxu0
  %v3433 = vadd.f32 0.0, %v3432
  %v3434 = vpop.f32.mrb[0].mxu0
  %3435 = vmatprep.mubr.f32.mxu0 0.0
  %3436 = vmatmul.mubr.f32.gmra.mrb[0].mxu0 %v2882
  %v3437 = vpop.f32.mrb[0].mxu0
  %v3438 = vadd.f32 0.0, %v3437
  %v3439 = vpop.f32.mrb[0].mxu0
  %3440 = vmatprep.mubr.f32.mxu0 0.0
  %3441 = vmatmul.mubr.f32.gmra.mrb[0].mxu0 %v2885
  %v3442 = vpop.f32.mrb[0].mxu0
  %v3443 = vadd.f32 0.0, %v3442
  %v3444 = vpop.f32.mrb[0].mxu0
  %3445 = vmatprep.mubr.f32.mxu0 0.0
  %3446 = vmatmul.mubr.f32.gmra.mrb[0].mxu0 %v2888
  %v3447 = vpop.f32.mrb[0].mxu0
  %v3448 = vadd.f32 0.0, %v3447
  %v3449 = vpop.f32.mrb[0].mxu0
  %3450 = vmatprep.mubr.f32.mxu0 0.0
  %3451 = vmatmul.mubr.f32.gmra.mrb[0].mxu0 %v2891
  %v3452 = vpop.f32.mrb[0].mxu0
  %v3453 = vadd.f32 0.0, %v3452
  %v3454 = vpop.f32.mrb[0].mxu0
  %3455 = vmatprep.mubr.f32.mxu0 0.0
  %3456 = vmatmul.mubr.f32.gmra.mrb[0].mxu0 %v2894
  %v3457 = vpop.f32.mrb[0].mxu0
  %v3458 = vadd.f32 0.0, %v3457
  %v3459 = vpop.f32.mrb[0].mxu0
  %3460 = vmatprep.mubr.f32.mxu0 0.0
  %3461 = vmatmul.mubr.f32.gmra.mrb[0].mxu0 %v2897
  %v3462 = vpop.f32.mrb[0].mxu0
  %v3463 = vadd.f32 0.0, %v3462
  %v3464 = vpop.f32.mrb[0].mxu0
  %3465 = vmatprep.mubr.f32.mxu0 0.0
  %3466 = vmatmul.mubr.f32.gmra.mrb[0].mxu0 %v2900
  %v3467 = vpop.f32.mrb[0].mxu0
  %v3468 = vadd.f32 0.0, %v3467
  %v3469 = vpop.f32.mrb[0].mxu0
  %3470 = vmatprep.mubr.f32.mxu0 0.0
  %3471 = vmatmul.mubr.f32.gmra.mrb[0].mxu0 %v2903
  %v3472 = vpop.f32.mrb[0].mxu0
  %v3473 = vadd.f32 0.0, %v3472
  %v3474 = vpop.f32.mrb[0].mxu0
  %3475 = vmatprep.mubr.f32.mxu0 0.0
  %3476 = vmatmul.mubr.f32.gmra.mrb[0].mxu0 %v2906
  %v3477 = vpop.f32.mrb[0].mxu0
  %v3478 = vadd.f32 0.0, %v3477
  %v3479 = vpop.f32.mrb[0].mxu0
  %3480 = vmatprep.mubr.f32.mxu0 0.0
  %3481 = vmatmul.mubr.f32.gmra.mrb[0].mxu0 %v2909
  %v3482 = vpop.f32.mrb[0].mxu0
  %v3483 = vadd.f32 0.0, %v3482
  %v3484 = vpop.f32.mrb[0].mxu0
  %3485 = vmatprep.mubr.f32.mxu0 0.0
  %3486 = vmatmul.mubr.f32.gmra.mrb[0].mxu0 %v2912
  %v3487 = vpop.f32.mrb[0].mxu0
  %v3488 = vadd.f32 0.0, %v3487
  %v3489 = vpop.f32.mrb[0].mxu0
  %3490 = vmatprep.mubr.f32.mxu0 0.0
  %3491 = vmatmul.mubr.f32.gmra.mrb[0].mxu0 %v2915
  %v3492 = vpop.f32.mrb[0].mxu0
  %v3493 = vadd.f32 0.0, %v3492
  %v3494 = vpop.f32.mrb[0].mxu0
  %3495 = vmatprep.mubr.f32.mxu0 0.0
  %3496 = vmatmul.mubr.f32.gmra.mrb[0].mxu0 %v2918
  %v3497 = vpop.f32.mrb[0].mxu0
  %v3498 = vadd.f32 0.0, %v3497
  %v3499 = vpop.f32.mrb[0].mxu0
  %3500 = vmatprep.mubr.f32.mxu0 0.0
  %3501 = vmatmul.mubr.f32.gmra.mrb[0].mxu0 %v2921
  %v3502 = vpop.f32.mrb[0].mxu0
  %v3503 = vadd.f32 0.0, %v3502
  %v3504 = vpop.f32.mrb[0].mxu0
  %3505 = vmatprep.mubr.f32.mxu0 0.0
  %3506 = vmatmul.mubr.f32.gmra.mrb[0].mxu0 %v2924
  %v3507 = vpop.f32.mrb[0].mxu0
  %v3508 = vadd.f32 0.0, %v3507
  %v3509 = vpop.f32.mrb[0].mxu0
  %3510 = vmatprep.mubr.f32.mxu0 0.0
  %3511 = vmatmul.mubr.f32.gmra.mrb[0].mxu0 %v2927
  %v3512 = vpop.f32.mrb[0].mxu0
  %v3513 = vadd.f32 0.0, %v3512
  %v3514 = vpop.f32.mrb[0].mxu0
  %3515 = vmatprep.mubr.f32.mxu0 0.0
  %3516 = vmatmul.mubr.f32.gmra.mrb[0].mxu0 %v2930
  %v3517 = vpop.f32.mrb[0].mxu0
  %v3518 = vadd.f32 0.0, %v3517
  %v3519 = vpop.f32.mrb[0].mxu0
  %3520 = vmatprep.mubr.f32.mxu0 0.0
  %3521 = vmatmul.mubr.f32.gmra.mrb[0].mxu0 %v2933
  %v3522 = vpop.f32.mrb[0].mxu0
  %v3523 = vadd.f32 0.0, %v3522
  %v3524 = vpop.f32.mrb[0].mxu0
  %3525 = vmatprep.mubr.f32.mxu0 0.0
  %3526 = vmatmul.mubr.f32.gmra.mrb[0].mxu0 %v2936
  %v3527 = vpop.f32.mrb[0].mxu0
  %v3528 = vadd.f32 0.0, %v3527
  %v3529 = vpop.f32.mrb[0].mxu0
  %3530 = vmatprep.mubr.f32.mxu0 0.0
  %3531 = vmatmul.mubr.f32.gmra.mrb[0].mxu0 %v2939
  %v3532 = vpop.f32.mrb[0].mxu0
  %v3533 = vadd.f32 0.0, %v3532
  %v3534 = vpop.f32.mrb[0].mxu0
  %3535 = vmatprep.mubr.f32.mxu0 0.0
  %3536 = vmatmul.mubr.f32.gmra.mrb[0].mxu0 %v2942
  %v3537 = vpop.f32.mrb[0].mxu0
  %v3538 = vadd.f32 0.0, %v3537
  %v3539 = vpop.f32.mrb[0].mxu0
  %3540 = vmatprep.mubr.f32.mxu0 0.0
  %3541 = vmatmul.mubr.f32.gmra.mrb[0].mxu0 %v2945
  %v3542 = vpop.f32.mrb[0].mxu0
  %v3543 = vadd.f32 0.0, %v3542
  %v3544 = vpop.f32.mrb[0].mxu0
  %3545 = vmatprep.mubr.f32.mxu0 0.0
  %3546 = vmatmul.mubr.f32.gmra.mrb[0].mxu0 %v2948
  %v3547 = vpop.f32.mrb[0].mxu0
  %v3548 = vadd.f32 0.0, %v3547
  %v3549 = vpop.f32.mrb[0].mxu0
  %3550 = vmatprep.mubr.f32.mxu0 0.0
  %3551 = vmatmul.mubr.f32.gmra.mrb[0].mxu0 %v2951
  %v3552 = vpop.f32.mrb[0].mxu0
  %v3553 = vadd.f32 0.0, %v3552
  %v3554 = vpop.f32.mrb[0].mxu0
  %3555 = vmatprep.mubr.f32.mxu0 0.0
  %3556 = vmatmul.mubr.f32.gmra.mrb[0].mxu0 %v2954
  %v3557 = vpop.f32.mrb[0].mxu0
  %v3558 = vadd.f32 0.0, %v3557
  %v3559 = vpop.f32.mrb[0].mxu0
  %3560 = vmatprep.mubr.f32.mxu0 0.0
  %3561 = vmatmul.mubr.f32.gmra.mrb[0].mxu0 %v2957
  %v3562 = vpop.f32.mrb[0].mxu0
  %v3563 = vadd.f32 0.0, %v3562
  %v3564 = vpop.f32.mrb[0].mxu0
  %3565 = vmatprep.mubr.f32.mxu0 0.0
  %3566 = vmatmul.mubr.f32.gmra.mrb[0].mxu0 %v2960
  %v3567 = vpop.f32.mrb[0].mxu0
  %v3568 = vadd.f32 0.0, %v3567
  %v3569 = vpop.f32.mrb[0].mxu0
  %3570 = vmatprep.mubr.f32.mxu0 0.0
  %3571 = vmatmul.mubr.f32.gmra.mrb[0].mxu0 %v2963
  %v3572 = vpop.f32.mrb[0].mxu0
  %v3573 = vadd.f32 0.0, %v3572
  %v3574 = vpop.f32.mrb[0].mxu0
  %3575 = vmatprep.mubr.f32.mxu0 0.0
  %3576 = vmatmul.mubr.f32.gmra.mrb[0].mxu0 %v2966
  %v3577 = vpop.f32.mrb[0].mxu0
  %v3578 = vadd.f32 0.0, %v3577
  %v3579 = vpop.f32.mrb[0].mxu0
  %3580 = vmatprep.mubr.f32.mxu0 0.0
  %3581 = vmatmul.mubr.f32.gmra.mrb[0].mxu0 %v2969
  %v3582 = vpop.f32.mrb[0].mxu0
  %v3583 = vadd.f32 0.0, %v3582
  %v3584 = vpop.f32.mrb[0].mxu0
  %3585 = vmatprep.mubr.f32.mxu0 0.0
  %3586 = vmatmul.mubr.f32.gmra.mrb[0].mxu0 %v2972
  %v3587 = vpop.f32.mrb[0].mxu0
  %v3588 = vadd.f32 0.0, %v3587
  %v3589 = vpop.f32.mrb[0].mxu0
  %3590 = vmatprep.mubr.f32.mxu0 0.0
  %3591 = vmatmul.mubr.f32.gmra.mrb[0].mxu0 %v2975
  %v3592 = vpop.f32.mrb[0].mxu0
  %v3593 = vadd.f32 0.0, %v3592
  %v3594 = vpop.f32.mrb[0].mxu0
  %3595 = vmatprep.mubr.f32.mxu0 0.0
  %3596 = vmatmul.mubr.f32.gmra.mrb[0].mxu0 %v2978
  %v3597 = vpop.f32.mrb[0].mxu0
  %v3598 = vadd.f32 0.0, %v3597
  %v3599 = vpop.f32.mrb[0].mxu0
  %3600 = vmatprep.mubr.f32.mxu0 0.0
  %3601 = vmatmul.mubr.f32.gmra.mrb[0].mxu0 %v2981
  %v3602 = vpop.f32.mrb[0].mxu0
  %v3603 = vadd.f32 0.0, %v3602
  %v3604 = vpop.f32.mrb[0].mxu0
  %3605 = vmatprep.mubr.f32.mxu0 0.0
  %3606 = vmatmul.mubr.f32.gmra.mrb[0].mxu0 %v2984
  %v3607 = vpop.f32.mrb[0].mxu0
  %v3608 = vadd.f32 0.0, %v3607
  %v3609 = vpop.f32.mrb[0].mxu0
  %3610 = vmatprep.mubr.f32.mxu0 0.0
  %3611 = vmatmul.mubr.f32.gmra.mrb[0].mxu0 %v2987
  %v3612 = vpop.f32.mrb[0].mxu0
  %v3613 = vadd.f32 0.0, %v3612
  %v3614 = vpop.f32.mrb[0].mxu0
  %3615 = vmatprep.mubr.f32.mxu0 0.0
  %3616 = vmatmul.mubr.f32.gmra.mrb[0].mxu0 %v2990
  %v3617 = vpop.f32.mrb[0].mxu0
  %v3618 = vadd.f32 0.0, %v3617
  %v3619 = vpop.f32.mrb[0].mxu0
  %3620 = vmatprep.mubr.f32.mxu0 0.0
  %3621 = vmatmul.mubr.f32.gmra.mrb[0].mxu0 %v2993
  %v3622 = vpop.f32.mrb[0].mxu0
  %v3623 = vadd.f32 0.0, %v3622
  %v3624 = vpop.f32.mrb[0].mxu0
  %3625 = vmatprep.mubr.f32.mxu0 0.0
  %3626 = vmatmul.mubr.f32.gmra.mrb[0].mxu0 %v2996
  %v3627 = vpop.f32.mrb[0].mxu0
  %v3628 = vadd.f32 0.0, %v3627
  %v3629 = vpop.f32.mrb[0].mxu0
  %3630 = vmatprep.mubr.f32.mxu0 0.0
  %3631 = vmatmul.mubr.f32.gmra.mrb[0].mxu0 %v2999
  %v3632 = vpop.f32.mrb[0].mxu0
  %v3633 = vadd.f32 0.0, %v3632
  %v3634 = vpop.f32.mrb[0].mxu0
  %3635 = vmatprep.mubr.f32.mxu0 0.0
  %3636 = vmatmul.mubr.f32.gmra.mrb[0].mxu0 %v3002
  %v3637 = vpop.f32.mrb[0].mxu0
  %v3638 = vadd.f32 0.0, %v3637
  %v3639 = vpop.f32.mrb[0].mxu0
  %3640 = vmatprep.mubr.f32.mxu0 0.0
  %3641 = vmatmul.mubr.f32.gmra.mrb[0].mxu0 %v3005
  %v3642 = vpop.f32.mrb[0].mxu0
  %v3643 = vadd.f32 0.0, %v3642
  %v3644 = vpop.f32.mrb[0].mxu0
  %3645 = vmatprep.mubr.f32.mxu0 0.0
  %3646 = vmatmul.mubr.f32.gmra.mrb[0].mxu0 %v3008
  %v3647 = vpop.f32.mrb[0].mxu0
  %v3648 = vadd.f32 0.0, %v3647
  %v3649 = vpop.f32.mrb[0].mxu0
  %3650 = vmatprep.mubr.f32.mxu0 0.0
  %3651 = vmatmul.mubr.f32.gmra.mrb[0].mxu0 %v3011
  %v3652 = vpop.f32.mrb[0].mxu0
  %v3653 = vadd.f32 0.0, %v3652
  %v3654 = vpop.f32.mrb[0].mxu0
  %3655 = vmatprep.mubr.f32.mxu0 0.0
  %3656 = vmatmul.mubr.f32.gmra.mrb[0].mxu0 %v3014
  %v3657 = vpop.f32.mrb[0].mxu0
  %v3658 = vadd.f32 0.0, %v3657
  %v3659 = vpop.f32.mrb[0].mxu0
  %3660 = vmatprep.mubr.f32.mxu0 0.0
  %3661 = vmatmul.mubr.f32.gmra.mrb[0].mxu0 %v3017
  %v3662 = vpop.f32.mrb[0].mxu0
  %v3663 = vadd.f32 0.0, %v3662
  %v3664 = vpop.f32.mrb[0].mxu0
  %3665 = vmatprep.mubr.f32.mxu0 0.0
  %3666 = vmatmul.mubr.f32.gmra.mrb[0].mxu0 %v3020
  %v3667 = vpop.f32.mrb[0].mxu0
  %v3668 = vadd.f32 0.0, %v3667
  %v3669 = vpop.f32.mrb[0].mxu0
  %3670 = vmatprep.mubr.f32.mxu0 0.0
  %3671 = vmatmul.mubr.f32.gmra.mrb[0].mxu0 %v3023
  %v3672 = vpop.f32.mrb[0].mxu0
  %v3673 = vadd.f32 0.0, %v3672
  %v3674 = vpop.f32.mrb[0].mxu0
  %3675 = vmatprep.mubr.f32.mxu0 0.0
  %3676 = vmatmul.mubr.f32.gmra.mrb[0].mxu0 %v3026
  %v3677 = vpop.f32.mrb[0].mxu0
  %v3678 = vadd.f32 0.0, %v3677
  %v3679 = vpop.f32.mrb[0].mxu0
  %3680 = vmatprep.mubr.f32.mxu0 0.0
  %3681 = vmatmul.mubr.f32.gmra.mrb[0].mxu0 %v3029
  %v3682 = vpop.f32.mrb[0].mxu0
  %v3683 = vadd.f32 0.0, %v3682
  %v3684 = vpop.f32.mrb[0].mxu0
  %3685 = vmatprep.mubr.f32.mxu0 0.0
  %3686 = vmatmul.mubr.f32.gmra.mrb[0].mxu0 %v3032
  %v3687 = vpop.f32.mrb[0].mxu0
  %v3688 = vadd.f32 0.0, %v3687
  %v3689 = vpop.f32.mrb[0].mxu0
  %3690 = vmatprep.mubr.f32.mxu0 0.0
  %3691 = vmatmul.mubr.f32.gmra.mrb[0].mxu0 %v3035
  %v3692 = vpop.f32.mrb[0].mxu0
  %v3693 = vadd.f32 0.0, %v3692
  %v3694 = vpop.f32.mrb[0].mxu0
  %3695 = vmatprep.mubr.f32.mxu0 0.0
  %3696 = vmatmul.mubr.f32.gmra.mrb[0].mxu0 %v3038
  %v3697 = vpop.f32.mrb[0].mxu0
  %v3698 = vadd.f32 0.0, %v3697
  %v3699 = vpop.f32.mrb[0].mxu0
  %3700 = vmatprep.mubr.f32.mxu0 0.0
  %3701 = vmatmul.mubr.f32.gmra.mrb[0].mxu0 %v3041
  %v3702 = vpop.f32.mrb[0].mxu0
  %v3703 = vadd.f32 0.0, %v3702
  %v3704 = vpop.f32.mrb[0].mxu0
  %3705 = vmatprep.mubr.f32.mxu0 0.0
  %3706 = vmatmul.mubr.f32.gmra.mrb[0].mxu0 %v3044
  %v3707 = vpop.f32.mrb[0].mxu0
  %v3708 = vadd.f32 0.0, %v3707
  %v3709 = vpop.f32.mrb[0].mxu0
  %3710 = vmatprep.mubr.f32.mxu0 0.0
  %3711 = vmatmul.mubr.f32.gmra.mrb[0].mxu0 %v3047
  %v3712 = vpop.f32.mrb[0].mxu0
  %v3713 = vadd.f32 0.0, %v3712
  %v3714 = vpop.f32.mrb[0].mxu0
  %3715 = vmatprep.mubr.f32.mxu0 0.0
  %3716 = vmatmul.mubr.f32.gmra.mrb[0].mxu0 %v3050
  %v3717 = vpop.f32.mrb[0].mxu0
  %v3718 = vadd.f32 0.0, %v3717
  %v3719 = vpop.f32.mrb[0].mxu0
  %3720 = vmatprep.mubr.f32.mxu0 0.0
  %3721 = vmatmul.mubr.f32.gmra.mrb[0].mxu0 %v3053
  %v3722 = vpop.f32.mrb[0].mxu0
  %v3723 = vadd.f32 0.0, %v3722
  %v3724 = vpop.f32.mrb[0].mxu0
  %3725 = vmatprep.mubr.f32.mxu0 0.0
  %3726 = vmatmul.mubr.f32.gmra.mrb[0].mxu0 %v3056
  %v3727 = vpop.f32.mrb[0].mxu0
  %v3728 = vadd.f32 0.0, %v3727
  %v3729 = vpop.f32.mrb[0].mxu0
  %3730 = vmatprep.mubr.f32.mxu0 0.0
  %3731 = vmatmul.mubr.f32.gmra.mrb[0].mxu0 %v3059
  %v3732 = vpop.f32.mrb[0].mxu0
  %v3733 = vadd.f32 0.0, %v3732
  %v3734 = vpop.f32.mrb[0].mxu0
  %3735 = vmatprep.mubr.f32.mxu0 0.0
  %3736 = vmatmul.mubr.f32.gmra.mrb[0].mxu0 %v3062
  %v3737 = vpop.f32.mrb[0].mxu0
  %v3738 = vadd.f32 0.0, %v3737
  %v3739 = vpop.f32.mrb[0].mxu0
  %3740 = vmatprep.mubr.f32.mxu0 0.0
  %3741 = vmatmul.mubr.f32.gmra.mrb[0].mxu0 %v3065
  %v3742 = vpop.f32.mrb[0].mxu0
  %v3743 = vadd.f32 0.0, %v3742
  %v3744 = vpop.f32.mrb[0].mxu0
  %3745 = vmatprep.mubr.f32.mxu0 0.0
  %3746 = vmatmul.mubr.f32.gmra.mrb[0].mxu0 %v3068
  %v3747 = vpop.f32.mrb[0].mxu0
  %v3748 = vadd.f32 0.0, %v3747
  %v3749 = vpop.f32.mrb[0].mxu0
  %3750 = vmatprep.mubr.f32.mxu0 0.0
  %3751 = vmatmul.mubr.f32.gmra.mrb[0].mxu0 %v3071
  %v3752 = vpop.f32.mrb[0].mxu0
  %v3753 = vadd.f32 0.0, %v3752
  %v3754 = vpop.f32.mrb[0].mxu0
  %3755 = vmatprep.mubr.f32.mxu0 0.0
  %3756 = vmatmul.mubr.f32.gmra.mrb[0].mxu0 %v3074
  %v3757 = vpop.f32.mrb[0].mxu0
  %v3758 = vadd.f32 0.0, %v3757
  %v3759 = vpop.f32.mrb[0].mxu0
  %3760 = vmatprep.mubr.f32.mxu0 0.0
  %3761 = vmatmul.mubr.f32.gmra.mrb[0].mxu0 %v3077
  %v3762 = vpop.f32.mrb[0].mxu0
  %v3763 = vadd.f32 0.0, %v3762
  %v3764 = vpop.f32.mrb[0].mxu0
  %3765 = vmatprep.mubr.f32.mxu0 0.0
  %3766 = vmatmul.mubr.f32.gmra.mrb[0].mxu0 %v3080
  %v3767 = vpop.f32.mrb[0].mxu0
  %v3768 = vadd.f32 0.0, %v3767
  %v3769 = vpop.f32.mrb[0].mxu0
  %3770 = vmatprep.mubr.f32.mxu0 0.0
  %3771 = vmatmul.mubr.f32.gmra.mrb[0].mxu0 %v3083
  %v3772 = vpop.f32.mrb[0].mxu0
  %v3773 = vadd.f32 0.0, %v3772
  %v3774 = vpop.f32.mrb[0].mxu0
  %3775 = vmatprep.mubr.f32.mxu0 0.0
  %3776 = vmatmul.mubr.f32.gmra.mrb[0].mxu0 %v3086
  %v3777 = vpop.f32.mrb[0].mxu0
  %v3778 = vadd.f32 0.0, %v3777
  %v3779 = vpop.f32.mrb[0].mxu0
  %3780 = vmatprep.mubr.f32.mxu0 0.0
  %3781 = vmatmul.mubr.f32.gmra.mrb[0].mxu0 %v3089
  %v3782 = vpop.f32.mrb[0].mxu0
  %v3783 = vadd.f32 0.0, %v3782
  %v3784 = vpop.f32.mrb[0].mxu0
  %3785 = vmatprep.mubr.f32.mxu0 0.0
  %3786 = vmatmul.mubr.f32.gmra.mrb[0].mxu0 %v3092
  %v3787 = vpop.f32.mrb[0].mxu0
  %v3788 = vadd.f32 0.0, %v3787
  %v3789 = vpop.f32.mrb[0].mxu0
  %3790 = vmatprep.mubr.f32.mxu0 0.0
  %3791 = vmatmul.mubr.f32.gmra.mrb[0].mxu0 %v3095
  %v3792 = vpop.f32.mrb[0].mxu0
  %v3793 = vadd.f32 0.0, %v3792
  %v3794 = vpop.f32.mrb[0].mxu0
  %3795 = vmatprep.mubr.f32.mxu0 0.0
  %3796 = vmatmul.mubr.f32.gmra.mrb[0].mxu0 %v3098
  %v3797 = vpop.f32.mrb[0].mxu0
  %v3798 = vadd.f32 0.0, %v3797
  %v3799 = vpop.f32.mrb[0].mxu0
  %3800 = vmatprep.mubr.f32.mxu0 0.0
  %3801 = vmatmul.mubr.f32.gmra.mrb[0].mxu0 %v3101
  %v3802 = vpop.f32.mrb[0].mxu0
  %v3803 = vadd.f32 0.0, %v3802
  %v3804 = vpop.f32.mrb[0].mxu0
  %3805 = vmatprep.mubr.f32.mxu0 0.0
  %3806 = vmatmul.mubr.f32.gmra.mrb[0].mxu0 %v3104
  %v3807 = vpop.f32.mrb[0].mxu0
  %v3808 = vadd.f32 0.0, %v3807
  %v3809 = vpop.f32.mrb[0].mxu0
  %3810 = vdwg.mxu0
  %v3811 = vmax.f32 %v2466, %v3173
  %v3812 = vmax.f32 %v2467, %v3178
  %v3813 = vmax.f32 %v2468, %v3183
  %v3814 = vmax.f32 %v2469, %v3188
  %v3815 = vmax.f32 %v2470, %v3193
  %v3816 = vmax.f32 %v2471, %v3198
  %v3817 = vmax.f32 %v2472, %v3203
  %v3818 = vmax.f32 %v2473, %v3208
  %v3819 = vmax.f32 %v2474, %v3213
  %v3820 = vmax.f32 %v2475, %v3218
  %v3821 = vmax.f32 %v2476, %v3223
  %v3822 = vmax.f32 %v2477, %v3228
  %v3823 = vmax.f32 %v2478, %v3233
  %v3824 = vmax.f32 %v2479, %v3238
  %v3825 = vmax.f32 %v2480, %v3243
  %v3826 = vmax.f32 %v2481, %v3248
  %v3827 = vmax.f32 %v2482, %v3253
  %v3828 = vmax.f32 %v2483, %v3258
  %v3829 = vmax.f32 %v2484, %v3263
  %v3830 = vmax.f32 %v2485, %v3268
  %v3831 = vmax.f32 %v2486, %v3273
  %v3832 = vmax.f32 %v2487, %v3278
  %v3833 = vmax.f32 %v2488, %v3283
  %v3834 = vmax.f32 %v2489, %v3288
  %v3835 = vmax.f32 %v2490, %v3293
  %v3836 = vmax.f32 %v2491, %v3298
  %v3837 = vmax.f32 %v2492, %v3303
  %v3838 = vmax.f32 %v2493, %v3308
  %v3839 = vmax.f32 %v2494, %v3313
  %v3840 = vmax.f32 %v2495, %v3318
  %v3841 = vmax.f32 %v2496, %v3323
  %v3842 = vmax.f32 %v2497, %v3328
  %v3843 = vmax.f32 %v2498, %v3333
  %v3844 = vmax.f32 %v2499, %v3338
  %v3845 = vmax.f32 %v2500, %v3343
  %v3846 = vmax.f32 %v2501, %v3348
  %v3847 = vmax.f32 %v2502, %v3353
  %v3848 = vmax.f32 %v2503, %v3358
  %v3849 = vmax.f32 %v2504, %v3363
  %v3850 = vmax.f32 %v2505, %v3368
  %v3851 = vmax.f32 %v2506, %v3373
  %v3852 = vmax.f32 %v2507, %v3378
  %v3853 = vmax.f32 %v2508, %v3383
  %v3854 = vmax.f32 %v2509, %v3388
  %v3855 = vmax.f32 %v2510, %v3393
  %v3856 = vmax.f32 %v2511, %v3398
  %v3857 = vmax.f32 %v2512, %v3403
  %v3858 = vmax.f32 %v2513, %v3408
  %v3859 = vmax.f32 %v2514, %v3413
  %v3860 = vmax.f32 %v2515, %v3418
  %v3861 = vmax.f32 %v2516, %v3423
  %v3862 = vmax.f32 %v2517, %v3428
  %v3863 = vmax.f32 %v2518, %v3433
  %v3864 = vmax.f32 %v2519, %v3438
  %v3865 = vmax.f32 %v2520, %v3443
  %v3866 = vmax.f32 %v2521, %v3448
  %v3867 = vmax.f32 %v2522, %v3453
  %v3868 = vmax.f32 %v2523, %v3458
  %v3869 = vmax.f32 %v2524, %v3463
  %v3870 = vmax.f32 %v2525, %v3468
  %v3871 = vmax.f32 %v2526, %v3473
  %v3872 = vmax.f32 %v2527, %v3478
  %v3873 = vmax.f32 %v2528, %v3483
  %v3874 = vmax.f32 %v2529, %v3488
  %v3875 = vmax.f32 %v2530, %v3493
  %v3876 = vmax.f32 %v2531, %v3498
  %v3877 = vmax.f32 %v2532, %v3503
  %v3878 = vmax.f32 %v2533, %v3508
  %v3879 = vmax.f32 %v2534, %v3513
  %v3880 = vmax.f32 %v2535, %v3518
  %v3881 = vmax.f32 %v2536, %v3523
  %v3882 = vmax.f32 %v2537, %v3528
  %v3883 = vmax.f32 %v2538, %v3533
  %v3884 = vmax.f32 %v2539, %v3538
  %v3885 = vmax.f32 %v2540, %v3543
  %v3886 = vmax.f32 %v2541, %v3548
  %v3887 = vmax.f32 %v2542, %v3553
  %v3888 = vmax.f32 %v2543, %v3558
  %v3889 = vmax.f32 %v2544, %v3563
  %v3890 = vmax.f32 %v2545, %v3568
  %v3891 = vmax.f32 %v2546, %v3573
  %v3892 = vmax.f32 %v2547, %v3578
  %v3893 = vmax.f32 %v2548, %v3583
  %v3894 = vmax.f32 %v2549, %v3588
  %v3895 = vmax.f32 %v2550, %v3593
  %v3896 = vmax.f32 %v2551, %v3598
  %v3897 = vmax.f32 %v2552, %v3603
  %v3898 = vmax.f32 %v2553, %v3608
  %v3899 = vmax.f32 %v2554, %v3613
  %v3900 = vmax.f32 %v2555, %v3618
  %v3901 = vmax.f32 %v2556, %v3623
  %v3902 = vmax.f32 %v2557, %v3628
  %v3903 = vmax.f32 %v2558, %v3633
  %v3904 = vmax.f32 %v2559, %v3638
  %v3905 = vmax.f32 %v2560, %v3643
  %v3906 = vmax.f32 %v2561, %v3648
  %v3907 = vmax.f32 %v2562, %v3653
  %v3908 = vmax.f32 %v2563, %v3658
  %v3909 = vmax.f32 %v2564, %v3663
  %v3910 = vmax.f32 %v2565, %v3668
  %v3911 = vmax.f32 %v2566, %v3673
  %v3912 = vmax.f32 %v2567, %v3678
  %v3913 = vmax.f32 %v2568, %v3683
  %v3914 = vmax.f32 %v2569, %v3688
  %v3915 = vmax.f32 %v2570, %v3693
  %v3916 = vmax.f32 %v2571, %v3698
  %v3917 = vmax.f32 %v2572, %v3703
  %v3918 = vmax.f32 %v2573, %v3708
  %v3919 = vmax.f32 %v2574, %v3713
  %v3920 = vmax.f32 %v2575, %v3718
  %v3921 = vmax.f32 %v2576, %v3723
  %v3922 = vmax.f32 %v2577, %v3728
  %v3923 = vmax.f32 %v2578, %v3733
  %v3924 = vmax.f32 %v2579, %v3738
  %v3925 = vmax.f32 %v2580, %v3743
  %v3926 = vmax.f32 %v2581, %v3748
  %v3927 = vmax.f32 %v2582, %v3753
  %v3928 = vmax.f32 %v2583, %v3758
  %v3929 = vmax.f32 %v2584, %v3763
  %v3930 = vmax.f32 %v2585, %v3768
  %v3931 = vmax.f32 %v2586, %v3773
  %v3932 = vmax.f32 %v2587, %v3778
  %v3933 = vmax.f32 %v2588, %v3783
  %v3934 = vmax.f32 %v2589, %v3788
  %v3935 = vmax.f32 %v2590, %v3793
  %v3936 = vmax.f32 %v2591, %v3798
  %v3937 = vmax.f32 %v2592, %v3803
  %v3938 = vmax.f32 %v2593, %v3808
  %v3939 = vld [vmem:[%s3] sm:$0xff]
  %v3940 = vld [vmem:[%s3 + $0x8] sm:$0xff]
  %v3941 = vld [vmem:[%s3 + $0x10] sm:$0xff]
  %v3942 = vld [vmem:[%s3 + $0x18] sm:$0xff]
  %v3943 = vld [vmem:[%s3 + $0x20] sm:$0xff]
  %v3944 = vld [vmem:[%s3 + $0x28] sm:$0xff]
  %v3945 = vld [vmem:[%s3 + $0x30] sm:$0xff]
  %v3946 = vld [vmem:[%s3 + $0x38] sm:$0xff]
  %v3947 = vld [vmem:[%s3 + $0x40] sm:$0xff]
  %v3948 = vld [vmem:[%s3 + $0x48] sm:$0xff]
  %v3949 = vld [vmem:[%s3 + $0x50] sm:$0xff]
  %v3950 = vld [vmem:[%s3 + $0x58] sm:$0xff]
  %v3951 = vld [vmem:[%s3 + $0x60] sm:$0xff]
  %v3952 = vld [vmem:[%s3 + $0x68] sm:$0xff]
  %v3953 = vld [vmem:[%s3 + $0x70] sm:$0xff]
  %v3954 = vld [vmem:[%s3 + $0x78] sm:$0xff]
  %v3955 = vld [vmem:[%s3 + $0x80] sm:$0xff]
  %v3956 = vld [vmem:[%s3 + $0x88] sm:$0xff]
  %v3957 = vld [vmem:[%s3 + $0x90] sm:$0xff]
  %v3958 = vld [vmem:[%s3 + $0x98] sm:$0xff]
  %v3959 = vld [vmem:[%s3 + $0xa0] sm:$0xff]
  %v3960 = vld [vmem:[%s3 + $0xa8] sm:$0xff]
  %v3961 = vld [vmem:[%s3 + $0xb0] sm:$0xff]
  %v3962 = vld [vmem:[%s3 + $0xb8] sm:$0xff]
  %v3963 = vld [vmem:[%s3 + $0xc0] sm:$0xff]
  %v3964 = vld [vmem:[%s3 + $0xc8] sm:$0xff]
  %v3965 = vld [vmem:[%s3 + $0xd0] sm:$0xff]
  %v3966 = vld [vmem:[%s3 + $0xd8] sm:$0xff]
  %v3967 = vld [vmem:[%s3 + $0xe0] sm:$0xff]
  %v3968 = vld [vmem:[%s3 + $0xe8] sm:$0xff]
  %v3969 = vld [vmem:[%s3 + $0xf0] sm:$0xff]
  %v3970 = vld [vmem:[%s3 + $0xf8] sm:$0xff]
  %v3971 = vld [vmem:[%s3 + $0x100] sm:$0xff]
  %v3972 = vld [vmem:[%s3 + $0x108] sm:$0xff]
  %v3973 = vld [vmem:[%s3 + $0x110] sm:$0xff]
  %v3974 = vld [vmem:[%s3 + $0x118] sm:$0xff]
  %v3975 = vld [vmem:[%s3 + $0x120] sm:$0xff]
  %v3976 = vld [vmem:[%s3 + $0x128] sm:$0xff]
  %v3977 = vld [vmem:[%s3 + $0x130] sm:$0xff]
  %v3978 = vld [vmem:[%s3 + $0x138] sm:$0xff]
  %v3979 = vld [vmem:[%s3 + $0x140] sm:$0xff]
  %v3980 = vld [vmem:[%s3 + $0x148] sm:$0xff]
  %v3981 = vld [vmem:[%s3 + $0x150] sm:$0xff]
  %v3982 = vld [vmem:[%s3 + $0x158] sm:$0xff]
  %v3983 = vld [vmem:[%s3 + $0x160] sm:$0xff]
  %v3984 = vld [vmem:[%s3 + $0x168] sm:$0xff]
  %v3985 = vld [vmem:[%s3 + $0x170] sm:$0xff]
  %v3986 = vld [vmem:[%s3 + $0x178] sm:$0xff]
  %v3987 = vld [vmem:[%s3 + $0x180] sm:$0xff]
  %v3988 = vld [vmem:[%s3 + $0x188] sm:$0xff]
  %v3989 = vld [vmem:[%s3 + $0x190] sm:$0xff]
  %v3990 = vld [vmem:[%s3 + $0x198] sm:$0xff]
  %v3991 = vld [vmem:[%s3 + $0x1a0] sm:$0xff]
  %v3992 = vld [vmem:[%s3 + $0x1a8] sm:$0xff]
  %v3993 = vld [vmem:[%s3 + $0x1b0] sm:$0xff]
  %v3994 = vld [vmem:[%s3 + $0x1b8] sm:$0xff]
  %v3995 = vld [vmem:[%s3 + $0x1c0] sm:$0xff]
  %v3996 = vld [vmem:[%s3 + $0x1c8] sm:$0xff]
  %v3997 = vld [vmem:[%s3 + $0x1d0] sm:$0xff]
  %v3998 = vld [vmem:[%s3 + $0x1d8] sm:$0xff]
  %v3999 = vld [vmem:[%s3 + $0x1e0] sm:$0xff]
  %v4000 = vld [vmem:[%s3 + $0x1e8] sm:$0xff]
  %v4001 = vld [vmem:[%s3 + $0x1f0] sm:$0xff]
  %v4002 = vld [vmem:[%s3 + $0x1f8] sm:$0xff]
  %v4003 = vld [vmem:[%s3 + $0x200] sm:$0xff]
  %v4004 = vld [vmem:[%s3 + $0x208] sm:$0xff]
  %v4005 = vld [vmem:[%s3 + $0x210] sm:$0xff]
  %v4006 = vld [vmem:[%s3 + $0x218] sm:$0xff]
  %v4007 = vld [vmem:[%s3 + $0x220] sm:$0xff]
  %v4008 = vld [vmem:[%s3 + $0x228] sm:$0xff]
  %v4009 = vld [vmem:[%s3 + $0x230] sm:$0xff]
  %v4010 = vld [vmem:[%s3 + $0x238] sm:$0xff]
  %v4011 = vld [vmem:[%s3 + $0x240] sm:$0xff]
  %v4012 = vld [vmem:[%s3 + $0x248] sm:$0xff]
  %v4013 = vld [vmem:[%s3 + $0x250] sm:$0xff]
  %v4014 = vld [vmem:[%s3 + $0x258] sm:$0xff]
  %v4015 = vld [vmem:[%s3 + $0x260] sm:$0xff]
  %v4016 = vld [vmem:[%s3 + $0x268] sm:$0xff]
  %v4017 = vld [vmem:[%s3 + $0x270] sm:$0xff]
  %v4018 = vld [vmem:[%s3 + $0x278] sm:$0xff]
  %v4019 = vld [vmem:[%s3 + $0x280] sm:$0xff]
  %v4020 = vld [vmem:[%s3 + $0x288] sm:$0xff]
  %v4021 = vld [vmem:[%s3 + $0x290] sm:$0xff]
  %v4022 = vld [vmem:[%s3 + $0x298] sm:$0xff]
  %v4023 = vld [vmem:[%s3 + $0x2a0] sm:$0xff]
  %v4024 = vld [vmem:[%s3 + $0x2a8] sm:$0xff]
  %v4025 = vld [vmem:[%s3 + $0x2b0] sm:$0xff]
  %v4026 = vld [vmem:[%s3 + $0x2b8] sm:$0xff]
  %v4027 = vld [vmem:[%s3 + $0x2c0] sm:$0xff]
  %v4028 = vld [vmem:[%s3 + $0x2c8] sm:$0xff]
  %v4029 = vld [vmem:[%s3 + $0x2d0] sm:$0xff]
  %v4030 = vld [vmem:[%s3 + $0x2d8] sm:$0xff]
  %v4031 = vld [vmem:[%s3 + $0x2e0] sm:$0xff]
  %v4032 = vld [vmem:[%s3 + $0x2e8] sm:$0xff]
  %v4033 = vld [vmem:[%s3 + $0x2f0] sm:$0xff]
  %v4034 = vld [vmem:[%s3 + $0x2f8] sm:$0xff]
  %v4035 = vld [vmem:[%s3 + $0x300] sm:$0xff]
  %v4036 = vld [vmem:[%s3 + $0x308] sm:$0xff]
  %v4037 = vld [vmem:[%s3 + $0x310] sm:$0xff]
  %v4038 = vld [vmem:[%s3 + $0x318] sm:$0xff]
  %v4039 = vld [vmem:[%s3 + $0x320] sm:$0xff]
  %v4040 = vld [vmem:[%s3 + $0x328] sm:$0xff]
  %v4041 = vld [vmem:[%s3 + $0x330] sm:$0xff]
  %v4042 = vld [vmem:[%s3 + $0x338] sm:$0xff]
  %v4043 = vld [vmem:[%s3 + $0x340] sm:$0xff]
  %v4044 = vld [vmem:[%s3 + $0x348] sm:$0xff]
  %v4045 = vld [vmem:[%s3 + $0x350] sm:$0xff]
  %v4046 = vld [vmem:[%s3 + $0x358] sm:$0xff]
  %v4047 = vld [vmem:[%s3 + $0x360] sm:$0xff]
  %v4048 = vld [vmem:[%s3 + $0x368] sm:$0xff]
  %v4049 = vld [vmem:[%s3 + $0x370] sm:$0xff]
  %v4050 = vld [vmem:[%s3 + $0x378] sm:$0xff]
  %v4051 = vld [vmem:[%s3 + $0x380] sm:$0xff]
  %v4052 = vld [vmem:[%s3 + $0x388] sm:$0xff]
  %v4053 = vld [vmem:[%s3 + $0x390] sm:$0xff]
  %v4054 = vld [vmem:[%s3 + $0x398] sm:$0xff]
  %v4055 = vld [vmem:[%s3 + $0x3a0] sm:$0xff]
  %v4056 = vld [vmem:[%s3 + $0x3a8] sm:$0xff]
  %v4057 = vld [vmem:[%s3 + $0x3b0] sm:$0xff]
  %v4058 = vld [vmem:[%s3 + $0x3b8] sm:$0xff]
  %v4059 = vld [vmem:[%s3 + $0x3c0] sm:$0xff]
  %v4060 = vld [vmem:[%s3 + $0x3c8] sm:$0xff]
  %v4061 = vld [vmem:[%s3 + $0x3d0] sm:$0xff]
  %v4062 = vld [vmem:[%s3 + $0x3d8] sm:$0xff]
  %v4063 = vld [vmem:[%s3 + $0x3e0] sm:$0xff]
  %v4064 = vld [vmem:[%s3 + $0x3e8] sm:$0xff]
  %v4065 = vld [vmem:[%s3 + $0x3f0] sm:$0xff]
  %v4066 = vld [vmem:[%s3 + $0x3f8] sm:$0xff]
  %v4068 = vsel %vm155, %v3939, 0
  %v4071 = vsel %vm155, %v3940, 0
  %v4074 = vsel %vm155, %v3941, 0
  %v4077 = vsel %vm155, %v3942, 0
  %v4080 = vsel %vm155, %v3943, 0
  %v4083 = vsel %vm155, %v3944, 0
  %v4086 = vsel %vm155, %v3945, 0
  %v4089 = vsel %vm155, %v3946, 0
  %v4092 = vsel %vm155, %v3947, 0
  %v4095 = vsel %vm155, %v3948, 0
  %v4098 = vsel %vm155, %v3949, 0
  %v4101 = vsel %vm155, %v3950, 0
  %v4104 = vsel %vm155, %v3951, 0
  %v4107 = vsel %vm155, %v3952, 0
  %v4110 = vsel %vm155, %v3953, 0
  %v4113 = vsel %vm155, %v3954, 0
  %v4116 = vsel %vm155, %v3955, 0
  %v4119 = vsel %vm155, %v3956, 0
  %v4122 = vsel %vm155, %v3957, 0
  %v4125 = vsel %vm155, %v3958, 0
  %v4128 = vsel %vm155, %v3959, 0
  %v4131 = vsel %vm155, %v3960, 0
  %v4134 = vsel %vm155, %v3961, 0
  %v4137 = vsel %vm155, %v3962, 0
  %v4140 = vsel %vm155, %v3963, 0
  %v4143 = vsel %vm155, %v3964, 0
  %v4146 = vsel %vm155, %v3965, 0
  %v4149 = vsel %vm155, %v3966, 0
  %v4152 = vsel %vm155, %v3967, 0
  %v4155 = vsel %vm155, %v3968, 0
  %v4158 = vsel %vm155, %v3969, 0
  %v4161 = vsel %vm155, %v3970, 0
  %v4164 = vsel %vm155, %v3971, 0
  %v4167 = vsel %vm155, %v3972, 0
  %v4170 = vsel %vm155, %v3973, 0
  %v4173 = vsel %vm155, %v3974, 0
  %v4176 = vsel %vm155, %v3975, 0
  %v4179 = vsel %vm155, %v3976, 0
  %v4182 = vsel %vm155, %v3977, 0
  %v4185 = vsel %vm155, %v3978, 0
  %v4188 = vsel %vm155, %v3979, 0
  %v4191 = vsel %vm155, %v3980, 0
  %v4194 = vsel %vm155, %v3981, 0
  %v4197 = vsel %vm155, %v3982, 0
  %v4200 = vsel %vm155, %v3983, 0
  %v4203 = vsel %vm155, %v3984, 0
  %v4206 = vsel %vm155, %v3985, 0
  %v4209 = vsel %vm155, %v3986, 0
  %v4212 = vsel %vm155, %v3987, 0
  %v4215 = vsel %vm155, %v3988, 0
  %v4218 = vsel %vm155, %v3989, 0
  %v4221 = vsel %vm155, %v3990, 0
  %v4224 = vsel %vm155, %v3991, 0
  %v4227 = vsel %vm155, %v3992, 0
  %v4230 = vsel %vm155, %v3993, 0
  %v4233 = vsel %vm155, %v3994, 0
  %v4236 = vsel %vm155, %v3995, 0
  %v4239 = vsel %vm155, %v3996, 0
  %v4242 = vsel %vm155, %v3997, 0
  %v4245 = vsel %vm155, %v3998, 0
  %v4248 = vsel %vm155, %v3999, 0
  %v4251 = vsel %vm155, %v4000, 0
  %v4254 = vsel %vm155, %v4001, 0
  %v4257 = vsel %vm155, %v4002, 0
  %v4260 = vsel %vm155, %v4003, 0
  %v4263 = vsel %vm155, %v4004, 0
  %v4266 = vsel %vm155, %v4005, 0
  %v4269 = vsel %vm155, %v4006, 0
  %v4272 = vsel %vm155, %v4007, 0
  %v4275 = vsel %vm155, %v4008, 0
  %v4278 = vsel %vm155, %v4009, 0
  %v4281 = vsel %vm155, %v4010, 0
  %v4284 = vsel %vm155, %v4011, 0
  %v4287 = vsel %vm155, %v4012, 0
  %v4290 = vsel %vm155, %v4013, 0
  %v4293 = vsel %vm155, %v4014, 0
  %v4296 = vsel %vm155, %v4015, 0
  %v4299 = vsel %vm155, %v4016, 0
  %v4302 = vsel %vm155, %v4017, 0
  %v4305 = vsel %vm155, %v4018, 0
  %v4308 = vsel %vm155, %v4019, 0
  %v4311 = vsel %vm155, %v4020, 0
  %v4314 = vsel %vm155, %v4021, 0
  %v4317 = vsel %vm155, %v4022, 0
  %v4320 = vsel %vm155, %v4023, 0
  %v4323 = vsel %vm155, %v4024, 0
  %v4326 = vsel %vm155, %v4025, 0
  %v4329 = vsel %vm155, %v4026, 0
  %v4332 = vsel %vm155, %v4027, 0
  %v4335 = vsel %vm155, %v4028, 0
  %v4338 = vsel %vm155, %v4029, 0
  %v4341 = vsel %vm155, %v4030, 0
  %v4344 = vsel %vm155, %v4031, 0
  %v4347 = vsel %vm155, %v4032, 0
  %v4350 = vsel %vm155, %v4033, 0
  %v4353 = vsel %vm155, %v4034, 0
  %v4356 = vsel %vm155, %v4035, 0
  %v4359 = vsel %vm155, %v4036, 0
  %v4362 = vsel %vm155, %v4037, 0
  %v4365 = vsel %vm155, %v4038, 0
  %v4368 = vsel %vm155, %v4039, 0
  %v4371 = vsel %vm155, %v4040, 0
  %v4374 = vsel %vm155, %v4041, 0
  %v4377 = vsel %vm155, %v4042, 0
  %v4380 = vsel %vm155, %v4043, 0
  %v4383 = vsel %vm155, %v4044, 0
  %v4386 = vsel %vm155, %v4045, 0
  %v4389 = vsel %vm155, %v4046, 0
  %v4392 = vsel %vm155, %v4047, 0
  %v4395 = vsel %vm155, %v4048, 0
  %v4398 = vsel %vm155, %v4049, 0
  %v4401 = vsel %vm155, %v4050, 0
  %v4404 = vsel %vm155, %v4051, 0
  %v4407 = vsel %vm155, %v4052, 0
  %v4410 = vsel %vm155, %v4053, 0
  %v4413 = vsel %vm155, %v4054, 0
  %v4416 = vsel %vm155, %v4055, 0
  %v4419 = vsel %vm155, %v4056, 0
  %v4422 = vsel %vm155, %v4057, 0
  %v4425 = vsel %vm155, %v4058, 0
  %v4428 = vsel %vm155, %v4059, 0
  %v4431 = vsel %vm155, %v4060, 0
  %v4434 = vsel %vm155, %v4061, 0
  %v4437 = vsel %vm155, %v4062, 0
  %v4440 = vsel %vm155, %v4063, 0
  %v4443 = vsel %vm155, %v4064, 0
  %v4446 = vsel %vm155, %v4065, 0
  %v4449 = vsel %vm155, %v4066, 0
  %4451 = vmatprep.subr.mxu0 0.0
  %4452 = vmatpush1.msra.mxu0 %v23
  %4453 = vmatprep.subr.mxu0 0.0
  %4454 = vmatpush1.msra.mxu0 %v24
  %4455 = vmatprep.subr.mxu0 0.0
  %4456 = vmatpush1.msra.mxu0 %v25
  %4457 = vmatprep.subr.mxu0 0.0
  %4458 = vmatpush1.msra.mxu0 %v542
  %4459 = vmatprep.subr.mxu0 0.0
  %4460 = vmatpush1.msra.mxu0 0.0
  %4461 = vmatprep.subr.mxu0 0.0
  %4462 = vmatpush1.msra.mxu0 0.0
  %4463 = vmatprep.subr.mxu0 0.0
  %4464 = vmatpush1.msra.mxu0 0.0
  %4465 = vmatprep.subr.mxu0 0.0
  %4466 = vmatpush1.msra.mxu0 0.0
  %4467 = vmatprep.subr.mxu0 0.0
  %4468 = vmatpush1.msra.mxu0 0.0
  %4469 = vmatprep.subr.mxu0 0.0
  %4470 = vmatpush1.msra.mxu0 0.0
  %4471 = vmatprep.subr.mxu0 0.0
  %4472 = vmatpush1.msra.mxu0 0.0
  %4473 = vmatprep.subr.mxu0 0.0
  %4474 = vmatpush1.msra.mxu0 0.0
  %4475 = vmatprep.subr.mxu0 0.0
  %4476 = vmatpush1.msra.mxu0 0.0
  %4477 = vmatprep.subr.mxu0 0.0
  %4478 = vmatpush1.msra.mxu0 0.0
  %4479 = vmatprep.subr.mxu0 0.0
  %4480 = vmatpush1.msra.mxu0 0.0
  %4481 = vmatprep.subr.mxu0 0.0
  %4482 = vmatpush1.msra.mxu0 0.0
  %4483 = vmatprep.subr.mxu0 0.0
  %4484 = vmatpush1.msra.mxu0 0.0
  %4485 = vmatprep.subr.mxu0 0.0
  %4486 = vmatpush1.msra.mxu0 0.0
  %4487 = vmatprep.subr.mxu0 0.0
  %4488 = vmatpush1.msra.mxu0 0.0
  %4489 = vmatprep.subr.mxu0 0.0
  %4490 = vmatpush1.msra.mxu0 0.0
  %4491 = vmatprep.subr.mxu0 0.0
  %4492 = vmatpush1.msra.mxu0 0.0
  %4493 = vmatprep.subr.mxu0 0.0
  %4494 = vmatpush1.msra.mxu0 0.0
  %4495 = vmatprep.subr.mxu0 0.0
  %4496 = vmatpush1.msra.mxu0 0.0
  %4497 = vmatprep.subr.mxu0 0.0
  %4498 = vmatpush1.msra.mxu0 0.0
  %4499 = vmatprep.subr.mxu0 0.0
  %4500 = vmatpush1.msra.mxu0 0.0
  %4501 = vmatprep.subr.mxu0 0.0
  %4502 = vmatpush1.msra.mxu0 0.0
  %4503 = vmatprep.subr.mxu0 0.0
  %4504 = vmatpush1.msra.mxu0 0.0
  %4505 = vmatprep.subr.mxu0 0.0
  %4506 = vmatpush1.msra.mxu0 0.0
  %4507 = vmatprep.subr.mxu0 0.0
  %4508 = vmatpush1.msra.mxu0 0.0
  %4509 = vmatprep.subr.mxu0 0.0
  %4510 = vmatpush1.msra.mxu0 0.0
  %4511 = vmatprep.subr.mxu0 0.0
  %4512 = vmatpush1.msra.mxu0 0.0
  %4513 = vmatprep.subr.mxu0 0.0
  %4514 = vmatpush1.msra.mxu0 0.0
  %4515 = vmatprep.mubr.f32.mxu0 0.0
  %4516 = vmatmul.mubr.f32.gmra.mrb[0].mxu0 %v4068
  %v4517 = vpop.f32.mrb[0].mxu0
  %v4518 = vadd.f32 0.0, %v4517
  %v4519 = vpop.f32.mrb[0].mxu0
  %4520 = vmatprep.mubr.f32.mxu0 0.0
  %4521 = vmatmul.mubr.f32.gmra.mrb[0].mxu0 %v4071
  %v4522 = vpop.f32.mrb[0].mxu0
  %v4523 = vadd.f32 0.0, %v4522
  %v4524 = vpop.f32.mrb[0].mxu0
  %4525 = vmatprep.mubr.f32.mxu0 0.0
  %4526 = vmatmul.mubr.f32.gmra.mrb[0].mxu0 %v4074
  %v4527 = vpop.f32.mrb[0].mxu0
  %v4528 = vadd.f32 0.0, %v4527
  %v4529 = vpop.f32.mrb[0].mxu0
  %4530 = vmatprep.mubr.f32.mxu0 0.0
  %4531 = vmatmul.mubr.f32.gmra.mrb[0].mxu0 %v4077
  %v4532 = vpop.f32.mrb[0].mxu0
  %v4533 = vadd.f32 0.0, %v4532
  %v4534 = vpop.f32.mrb[0].mxu0
  %4535 = vmatprep.mubr.f32.mxu0 0.0
  %4536 = vmatmul.mubr.f32.gmra.mrb[0].mxu0 %v4080
  %v4537 = vpop.f32.mrb[0].mxu0
  %v4538 = vadd.f32 0.0, %v4537
  %v4539 = vpop.f32.mrb[0].mxu0
  %4540 = vmatprep.mubr.f32.mxu0 0.0
  %4541 = vmatmul.mubr.f32.gmra.mrb[0].mxu0 %v4083
  %v4542 = vpop.f32.mrb[0].mxu0
  %v4543 = vadd.f32 0.0, %v4542
  %v4544 = vpop.f32.mrb[0].mxu0
  %4545 = vmatprep.mubr.f32.mxu0 0.0
  %4546 = vmatmul.mubr.f32.gmra.mrb[0].mxu0 %v4086
  %v4547 = vpop.f32.mrb[0].mxu0
  %v4548 = vadd.f32 0.0, %v4547
  %v4549 = vpop.f32.mrb[0].mxu0
  %4550 = vmatprep.mubr.f32.mxu0 0.0
  %4551 = vmatmul.mubr.f32.gmra.mrb[0].mxu0 %v4089
  %v4552 = vpop.f32.mrb[0].mxu0
  %v4553 = vadd.f32 0.0, %v4552
  %v4554 = vpop.f32.mrb[0].mxu0
  %4555 = vmatprep.mubr.f32.mxu0 0.0
  %4556 = vmatmul.mubr.f32.gmra.mrb[0].mxu0 %v4092
  %v4557 = vpop.f32.mrb[0].mxu0
  %v4558 = vadd.f32 0.0, %v4557
  %v4559 = vpop.f32.mrb[0].mxu0
  %4560 = vmatprep.mubr.f32.mxu0 0.0
  %4561 = vmatmul.mubr.f32.gmra.mrb[0].mxu0 %v4095
  %v4562 = vpop.f32.mrb[0].mxu0
  %v4563 = vadd.f32 0.0, %v4562
  %v4564 = vpop.f32.mrb[0].mxu0
  %4565 = vmatprep.mubr.f32.mxu0 0.0
  %4566 = vmatmul.mubr.f32.gmra.mrb[0].mxu0 %v4098
  %v4567 = vpop.f32.mrb[0].mxu0
  %v4568 = vadd.f32 0.0, %v4567
  %v4569 = vpop.f32.mrb[0].mxu0
  %4570 = vmatprep.mubr.f32.mxu0 0.0
  %4571 = vmatmul.mubr.f32.gmra.mrb[0].mxu0 %v4101
  %v4572 = vpop.f32.mrb[0].mxu0
  %v4573 = vadd.f32 0.0, %v4572
  %v4574 = vpop.f32.mrb[0].mxu0
  %4575 = vmatprep.mubr.f32.mxu0 0.0
  %4576 = vmatmul.mubr.f32.gmra.mrb[0].mxu0 %v4104
  %v4577 = vpop.f32.mrb[0].mxu0
  %v4578 = vadd.f32 0.0, %v4577
  %v4579 = vpop.f32.mrb[0].mxu0
  %4580 = vmatprep.mubr.f32.mxu0 0.0
  %4581 = vmatmul.mubr.f32.gmra.mrb[0].mxu0 %v4107
  %v4582 = vpop.f32.mrb[0].mxu0
  %v4583 = vadd.f32 0.0, %v4582
  %v4584 = vpop.f32.mrb[0].mxu0
  %4585 = vmatprep.mubr.f32.mxu0 0.0
  %4586 = vmatmul.mubr.f32.gmra.mrb[0].mxu0 %v4110
  %v4587 = vpop.f32.mrb[0].mxu0
  %v4588 = vadd.f32 0.0, %v4587
  %v4589 = vpop.f32.mrb[0].mxu0
  %4590 = vmatprep.mubr.f32.mxu0 0.0
  %4591 = vmatmul.mubr.f32.gmra.mrb[0].mxu0 %v4113
  %v4592 = vpop.f32.mrb[0].mxu0
  %v4593 = vadd.f32 0.0, %v4592
  %v4594 = vpop.f32.mrb[0].mxu0
  %4595 = vmatprep.mubr.f32.mxu0 0.0
  %4596 = vmatmul.mubr.f32.gmra.mrb[0].mxu0 %v4116
  %v4597 = vpop.f32.mrb[0].mxu0
  %v4598 = vadd.f32 0.0, %v4597
  %v4599 = vpop.f32.mrb[0].mxu0
  %4600 = vmatprep.mubr.f32.mxu0 0.0
  %4601 = vmatmul.mubr.f32.gmra.mrb[0].mxu0 %v4119
  %v4602 = vpop.f32.mrb[0].mxu0
  %v4603 = vadd.f32 0.0, %v4602
  %v4604 = vpop.f32.mrb[0].mxu0
  %4605 = vmatprep.mubr.f32.mxu0 0.0
  %4606 = vmatmul.mubr.f32.gmra.mrb[0].mxu0 %v4122
  %v4607 = vpop.f32.mrb[0].mxu0
  %v4608 = vadd.f32 0.0, %v4607
  %v4609 = vpop.f32.mrb[0].mxu0
  %4610 = vmatprep.mubr.f32.mxu0 0.0
  %4611 = vmatmul.mubr.f32.gmra.mrb[0].mxu0 %v4125
  %v4612 = vpop.f32.mrb[0].mxu0
  %v4613 = vadd.f32 0.0, %v4612
  %v4614 = vpop.f32.mrb[0].mxu0
  %4615 = vmatprep.mubr.f32.mxu0 0.0
  %4616 = vmatmul.mubr.f32.gmra.mrb[0].mxu0 %v4128
  %v4617 = vpop.f32.mrb[0].mxu0
  %v4618 = vadd.f32 0.0, %v4617
  %v4619 = vpop.f32.mrb[0].mxu0
  %4620 = vmatprep.mubr.f32.mxu0 0.0
  %4621 = vmatmul.mubr.f32.gmra.mrb[0].mxu0 %v4131
  %v4622 = vpop.f32.mrb[0].mxu0
  %v4623 = vadd.f32 0.0, %v4622
  %v4624 = vpop.f32.mrb[0].mxu0
  %4625 = vmatprep.mubr.f32.mxu0 0.0
  %4626 = vmatmul.mubr.f32.gmra.mrb[0].mxu0 %v4134
  %v4627 = vpop.f32.mrb[0].mxu0
  %v4628 = vadd.f32 0.0, %v4627
  %v4629 = vpop.f32.mrb[0].mxu0
  %4630 = vmatprep.mubr.f32.mxu0 0.0
  %4631 = vmatmul.mubr.f32.gmra.mrb[0].mxu0 %v4137
  %v4632 = vpop.f32.mrb[0].mxu0
  %v4633 = vadd.f32 0.0, %v4632
  %v4634 = vpop.f32.mrb[0].mxu0
  %4635 = vmatprep.mubr.f32.mxu0 0.0
  %4636 = vmatmul.mubr.f32.gmra.mrb[0].mxu0 %v4140
  %v4637 = vpop.f32.mrb[0].mxu0
  %v4638 = vadd.f32 0.0, %v4637
  %v4639 = vpop.f32.mrb[0].mxu0
  %4640 = vmatprep.mubr.f32.mxu0 0.0
  %4641 = vmatmul.mubr.f32.gmra.mrb[0].mxu0 %v4143
  %v4642 = vpop.f32.mrb[0].mxu0
  %v4643 = vadd.f32 0.0, %v4642
  %v4644 = vpop.f32.mrb[0].mxu0
  %4645 = vmatprep.mubr.f32.mxu0 0.0
  %4646 = vmatmul.mubr.f32.gmra.mrb[0].mxu0 %v4146
  %v4647 = vpop.f32.mrb[0].mxu0
  %v4648 = vadd.f32 0.0, %v4647
  %v4649 = vpop.f32.mrb[0].mxu0
  %4650 = vmatprep.mubr.f32.mxu0 0.0
  %4651 = vmatmul.mubr.f32.gmra.mrb[0].mxu0 %v4149
  %v4652 = vpop.f32.mrb[0].mxu0
  %v4653 = vadd.f32 0.0, %v4652
  %v4654 = vpop.f32.mrb[0].mxu0
  %4655 = vmatprep.mubr.f32.mxu0 0.0
  %4656 = vmatmul.mubr.f32.gmra.mrb[0].mxu0 %v4152
  %v4657 = vpop.f32.mrb[0].mxu0
  %v4658 = vadd.f32 0.0, %v4657
  %v4659 = vpop.f32.mrb[0].mxu0
  %4660 = vmatprep.mubr.f32.mxu0 0.0
  %4661 = vmatmul.mubr.f32.gmra.mrb[0].mxu0 %v4155
  %v4662 = vpop.f32.mrb[0].mxu0
  %v4663 = vadd.f32 0.0, %v4662
  %v4664 = vpop.f32.mrb[0].mxu0
  %4665 = vmatprep.mubr.f32.mxu0 0.0
  %4666 = vmatmul.mubr.f32.gmra.mrb[0].mxu0 %v4158
  %v4667 = vpop.f32.mrb[0].mxu0
  %v4668 = vadd.f32 0.0, %v4667
  %v4669 = vpop.f32.mrb[0].mxu0
  %4670 = vmatprep.mubr.f32.mxu0 0.0
  %4671 = vmatmul.mubr.f32.gmra.mrb[0].mxu0 %v4161
  %v4672 = vpop.f32.mrb[0].mxu0
  %v4673 = vadd.f32 0.0, %v4672
  %v4674 = vpop.f32.mrb[0].mxu0
  %4675 = vmatprep.mubr.f32.mxu0 0.0
  %4676 = vmatmul.mubr.f32.gmra.mrb[0].mxu0 %v4164
  %v4677 = vpop.f32.mrb[0].mxu0
  %v4678 = vadd.f32 0.0, %v4677
  %v4679 = vpop.f32.mrb[0].mxu0
  %4680 = vmatprep.mubr.f32.mxu0 0.0
  %4681 = vmatmul.mubr.f32.gmra.mrb[0].mxu0 %v4167
  %v4682 = vpop.f32.mrb[0].mxu0
  %v4683 = vadd.f32 0.0, %v4682
  %v4684 = vpop.f32.mrb[0].mxu0
  %4685 = vmatprep.mubr.f32.mxu0 0.0
  %4686 = vmatmul.mubr.f32.gmra.mrb[0].mxu0 %v4170
  %v4687 = vpop.f32.mrb[0].mxu0
  %v4688 = vadd.f32 0.0, %v4687
  %v4689 = vpop.f32.mrb[0].mxu0
  %4690 = vmatprep.mubr.f32.mxu0 0.0
  %4691 = vmatmul.mubr.f32.gmra.mrb[0].mxu0 %v4173
  %v4692 = vpop.f32.mrb[0].mxu0
  %v4693 = vadd.f32 0.0, %v4692
  %v4694 = vpop.f32.mrb[0].mxu0
  %4695 = vmatprep.mubr.f32.mxu0 0.0
  %4696 = vmatmul.mubr.f32.gmra.mrb[0].mxu0 %v4176
  %v4697 = vpop.f32.mrb[0].mxu0
  %v4698 = vadd.f32 0.0, %v4697
  %v4699 = vpop.f32.mrb[0].mxu0
  %4700 = vmatprep.mubr.f32.mxu0 0.0
  %4701 = vmatmul.mubr.f32.gmra.mrb[0].mxu0 %v4179
  %v4702 = vpop.f32.mrb[0].mxu0
  %v4703 = vadd.f32 0.0, %v4702
  %v4704 = vpop.f32.mrb[0].mxu0
  %4705 = vmatprep.mubr.f32.mxu0 0.0
  %4706 = vmatmul.mubr.f32.gmra.mrb[0].mxu0 %v4182
  %v4707 = vpop.f32.mrb[0].mxu0
  %v4708 = vadd.f32 0.0, %v4707
  %v4709 = vpop.f32.mrb[0].mxu0
  %4710 = vmatprep.mubr.f32.mxu0 0.0
  %4711 = vmatmul.mubr.f32.gmra.mrb[0].mxu0 %v4185
  %v4712 = vpop.f32.mrb[0].mxu0
  %v4713 = vadd.f32 0.0, %v4712
  %v4714 = vpop.f32.mrb[0].mxu0
  %4715 = vmatprep.mubr.f32.mxu0 0.0
  %4716 = vmatmul.mubr.f32.gmra.mrb[0].mxu0 %v4188
  %v4717 = vpop.f32.mrb[0].mxu0
  %v4718 = vadd.f32 0.0, %v4717
  %v4719 = vpop.f32.mrb[0].mxu0
  %4720 = vmatprep.mubr.f32.mxu0 0.0
  %4721 = vmatmul.mubr.f32.gmra.mrb[0].mxu0 %v4191
  %v4722 = vpop.f32.mrb[0].mxu0
  %v4723 = vadd.f32 0.0, %v4722
  %v4724 = vpop.f32.mrb[0].mxu0
  %4725 = vmatprep.mubr.f32.mxu0 0.0
  %4726 = vmatmul.mubr.f32.gmra.mrb[0].mxu0 %v4194
  %v4727 = vpop.f32.mrb[0].mxu0
  %v4728 = vadd.f32 0.0, %v4727
  %v4729 = vpop.f32.mrb[0].mxu0
  %4730 = vmatprep.mubr.f32.mxu0 0.0
  %4731 = vmatmul.mubr.f32.gmra.mrb[0].mxu0 %v4197
  %v4732 = vpop.f32.mrb[0].mxu0
  %v4733 = vadd.f32 0.0, %v4732
  %v4734 = vpop.f32.mrb[0].mxu0
  %4735 = vmatprep.mubr.f32.mxu0 0.0
  %4736 = vmatmul.mubr.f32.gmra.mrb[0].mxu0 %v4200
  %v4737 = vpop.f32.mrb[0].mxu0
  %v4738 = vadd.f32 0.0, %v4737
  %v4739 = vpop.f32.mrb[0].mxu0
  %4740 = vmatprep.mubr.f32.mxu0 0.0
  %4741 = vmatmul.mubr.f32.gmra.mrb[0].mxu0 %v4203
  %v4742 = vpop.f32.mrb[0].mxu0
  %v4743 = vadd.f32 0.0, %v4742
  %v4744 = vpop.f32.mrb[0].mxu0
  %4745 = vmatprep.mubr.f32.mxu0 0.0
  %4746 = vmatmul.mubr.f32.gmra.mrb[0].mxu0 %v4206
  %v4747 = vpop.f32.mrb[0].mxu0
  %v4748 = vadd.f32 0.0, %v4747
  %v4749 = vpop.f32.mrb[0].mxu0
  %4750 = vmatprep.mubr.f32.mxu0 0.0
  %4751 = vmatmul.mubr.f32.gmra.mrb[0].mxu0 %v4209
  %v4752 = vpop.f32.mrb[0].mxu0
  %v4753 = vadd.f32 0.0, %v4752
  %v4754 = vpop.f32.mrb[0].mxu0
  %4755 = vmatprep.mubr.f32.mxu0 0.0
  %4756 = vmatmul.mubr.f32.gmra.mrb[0].mxu0 %v4212
  %v4757 = vpop.f32.mrb[0].mxu0
  %v4758 = vadd.f32 0.0, %v4757
  %v4759 = vpop.f32.mrb[0].mxu0
  %4760 = vmatprep.mubr.f32.mxu0 0.0
  %4761 = vmatmul.mubr.f32.gmra.mrb[0].mxu0 %v4215
  %v4762 = vpop.f32.mrb[0].mxu0
  %v4763 = vadd.f32 0.0, %v4762
  %v4764 = vpop.f32.mrb[0].mxu0
  %4765 = vmatprep.mubr.f32.mxu0 0.0
  %4766 = vmatmul.mubr.f32.gmra.mrb[0].mxu0 %v4218
  %v4767 = vpop.f32.mrb[0].mxu0
  %v4768 = vadd.f32 0.0, %v4767
  %v4769 = vpop.f32.mrb[0].mxu0
  %4770 = vmatprep.mubr.f32.mxu0 0.0
  %4771 = vmatmul.mubr.f32.gmra.mrb[0].mxu0 %v4221
  %v4772 = vpop.f32.mrb[0].mxu0
  %v4773 = vadd.f32 0.0, %v4772
  %v4774 = vpop.f32.mrb[0].mxu0
  %4775 = vmatprep.mubr.f32.mxu0 0.0
  %4776 = vmatmul.mubr.f32.gmra.mrb[0].mxu0 %v4224
  %v4777 = vpop.f32.mrb[0].mxu0
  %v4778 = vadd.f32 0.0, %v4777
  %v4779 = vpop.f32.mrb[0].mxu0
  %4780 = vmatprep.mubr.f32.mxu0 0.0
  %4781 = vmatmul.mubr.f32.gmra.mrb[0].mxu0 %v4227
  %v4782 = vpop.f32.mrb[0].mxu0
  %v4783 = vadd.f32 0.0, %v4782
  %v4784 = vpop.f32.mrb[0].mxu0
  %4785 = vmatprep.mubr.f32.mxu0 0.0
  %4786 = vmatmul.mubr.f32.gmra.mrb[0].mxu0 %v4230
  %v4787 = vpop.f32.mrb[0].mxu0
  %v4788 = vadd.f32 0.0, %v4787
  %v4789 = vpop.f32.mrb[0].mxu0
  %4790 = vmatprep.mubr.f32.mxu0 0.0
  %4791 = vmatmul.mubr.f32.gmra.mrb[0].mxu0 %v4233
  %v4792 = vpop.f32.mrb[0].mxu0
  %v4793 = vadd.f32 0.0, %v4792
  %v4794 = vpop.f32.mrb[0].mxu0
  %4795 = vmatprep.mubr.f32.mxu0 0.0
  %4796 = vmatmul.mubr.f32.gmra.mrb[0].mxu0 %v4236
  %v4797 = vpop.f32.mrb[0].mxu0
  %v4798 = vadd.f32 0.0, %v4797
  %v4799 = vpop.f32.mrb[0].mxu0
  %4800 = vmatprep.mubr.f32.mxu0 0.0
  %4801 = vmatmul.mubr.f32.gmra.mrb[0].mxu0 %v4239
  %v4802 = vpop.f32.mrb[0].mxu0
  %v4803 = vadd.f32 0.0, %v4802
  %v4804 = vpop.f32.mrb[0].mxu0
  %4805 = vmatprep.mubr.f32.mxu0 0.0
  %4806 = vmatmul.mubr.f32.gmra.mrb[0].mxu0 %v4242
  %v4807 = vpop.f32.mrb[0].mxu0
  %v4808 = vadd.f32 0.0, %v4807
  %v4809 = vpop.f32.mrb[0].mxu0
  %4810 = vmatprep.mubr.f32.mxu0 0.0
  %4811 = vmatmul.mubr.f32.gmra.mrb[0].mxu0 %v4245
  %v4812 = vpop.f32.mrb[0].mxu0
  %v4813 = vadd.f32 0.0, %v4812
  %v4814 = vpop.f32.mrb[0].mxu0
  %4815 = vmatprep.mubr.f32.mxu0 0.0
  %4816 = vmatmul.mubr.f32.gmra.mrb[0].mxu0 %v4248
  %v4817 = vpop.f32.mrb[0].mxu0
  %v4818 = vadd.f32 0.0, %v4817
  %v4819 = vpop.f32.mrb[0].mxu0
  %4820 = vmatprep.mubr.f32.mxu0 0.0
  %4821 = vmatmul.mubr.f32.gmra.mrb[0].mxu0 %v4251
  %v4822 = vpop.f32.mrb[0].mxu0
  %v4823 = vadd.f32 0.0, %v4822
  %v4824 = vpop.f32.mrb[0].mxu0
  %4825 = vmatprep.mubr.f32.mxu0 0.0
  %4826 = vmatmul.mubr.f32.gmra.mrb[0].mxu0 %v4254
  %v4827 = vpop.f32.mrb[0].mxu0
  %v4828 = vadd.f32 0.0, %v4827
  %v4829 = vpop.f32.mrb[0].mxu0
  %4830 = vmatprep.mubr.f32.mxu0 0.0
  %4831 = vmatmul.mubr.f32.gmra.mrb[0].mxu0 %v4257
  %v4832 = vpop.f32.mrb[0].mxu0
  %v4833 = vadd.f32 0.0, %v4832
  %v4834 = vpop.f32.mrb[0].mxu0
  %4835 = vmatprep.mubr.f32.mxu0 0.0
  %4836 = vmatmul.mubr.f32.gmra.mrb[0].mxu0 %v4260
  %v4837 = vpop.f32.mrb[0].mxu0
  %v4838 = vadd.f32 0.0, %v4837
  %v4839 = vpop.f32.mrb[0].mxu0
  %4840 = vmatprep.mubr.f32.mxu0 0.0
  %4841 = vmatmul.mubr.f32.gmra.mrb[0].mxu0 %v4263
  %v4842 = vpop.f32.mrb[0].mxu0
  %v4843 = vadd.f32 0.0, %v4842
  %v4844 = vpop.f32.mrb[0].mxu0
  %4845 = vmatprep.mubr.f32.mxu0 0.0
  %4846 = vmatmul.mubr.f32.gmra.mrb[0].mxu0 %v4266
  %v4847 = vpop.f32.mrb[0].mxu0
  %v4848 = vadd.f32 0.0, %v4847
  %v4849 = vpop.f32.mrb[0].mxu0
  %4850 = vmatprep.mubr.f32.mxu0 0.0
  %4851 = vmatmul.mubr.f32.gmra.mrb[0].mxu0 %v4269
  %v4852 = vpop.f32.mrb[0].mxu0
  %v4853 = vadd.f32 0.0, %v4852
  %v4854 = vpop.f32.mrb[0].mxu0
  %4855 = vmatprep.mubr.f32.mxu0 0.0
  %4856 = vmatmul.mubr.f32.gmra.mrb[0].mxu0 %v4272
  %v4857 = vpop.f32.mrb[0].mxu0
  %v4858 = vadd.f32 0.0, %v4857
  %v4859 = vpop.f32.mrb[0].mxu0
  %4860 = vmatprep.mubr.f32.mxu0 0.0
  %4861 = vmatmul.mubr.f32.gmra.mrb[0].mxu0 %v4275
  %v4862 = vpop.f32.mrb[0].mxu0
  %v4863 = vadd.f32 0.0, %v4862
  %v4864 = vpop.f32.mrb[0].mxu0
  %4865 = vmatprep.mubr.f32.mxu0 0.0
  %4866 = vmatmul.mubr.f32.gmra.mrb[0].mxu0 %v4278
  %v4867 = vpop.f32.mrb[0].mxu0
  %v4868 = vadd.f32 0.0, %v4867
  %v4869 = vpop.f32.mrb[0].mxu0
  %4870 = vmatprep.mubr.f32.mxu0 0.0
  %4871 = vmatmul.mubr.f32.gmra.mrb[0].mxu0 %v4281
  %v4872 = vpop.f32.mrb[0].mxu0
  %v4873 = vadd.f32 0.0, %v4872
  %v4874 = vpop.f32.mrb[0].mxu0
  %4875 = vmatprep.mubr.f32.mxu0 0.0
  %4876 = vmatmul.mubr.f32.gmra.mrb[0].mxu0 %v4284
  %v4877 = vpop.f32.mrb[0].mxu0
  %v4878 = vadd.f32 0.0, %v4877
  %v4879 = vpop.f32.mrb[0].mxu0
  %4880 = vmatprep.mubr.f32.mxu0 0.0
  %4881 = vmatmul.mubr.f32.gmra.mrb[0].mxu0 %v4287
  %v4882 = vpop.f32.mrb[0].mxu0
  %v4883 = vadd.f32 0.0, %v4882
  %v4884 = vpop.f32.mrb[0].mxu0
  %4885 = vmatprep.mubr.f32.mxu0 0.0
  %4886 = vmatmul.mubr.f32.gmra.mrb[0].mxu0 %v4290
  %v4887 = vpop.f32.mrb[0].mxu0
  %v4888 = vadd.f32 0.0, %v4887
  %v4889 = vpop.f32.mrb[0].mxu0
  %4890 = vmatprep.mubr.f32.mxu0 0.0
  %4891 = vmatmul.mubr.f32.gmra.mrb[0].mxu0 %v4293
  %v4892 = vpop.f32.mrb[0].mxu0
  %v4893 = vadd.f32 0.0, %v4892
  %v4894 = vpop.f32.mrb[0].mxu0
  %4895 = vmatprep.mubr.f32.mxu0 0.0
  %4896 = vmatmul.mubr.f32.gmra.mrb[0].mxu0 %v4296
  %v4897 = vpop.f32.mrb[0].mxu0
  %v4898 = vadd.f32 0.0, %v4897
  %v4899 = vpop.f32.mrb[0].mxu0
  %4900 = vmatprep.mubr.f32.mxu0 0.0
  %4901 = vmatmul.mubr.f32.gmra.mrb[0].mxu0 %v4299
  %v4902 = vpop.f32.mrb[0].mxu0
  %v4903 = vadd.f32 0.0, %v4902
  %v4904 = vpop.f32.mrb[0].mxu0
  %4905 = vmatprep.mubr.f32.mxu0 0.0
  %4906 = vmatmul.mubr.f32.gmra.mrb[0].mxu0 %v4302
  %v4907 = vpop.f32.mrb[0].mxu0
  %v4908 = vadd.f32 0.0, %v4907
  %v4909 = vpop.f32.mrb[0].mxu0
  %4910 = vmatprep.mubr.f32.mxu0 0.0
  %4911 = vmatmul.mubr.f32.gmra.mrb[0].mxu0 %v4305
  %v4912 = vpop.f32.mrb[0].mxu0
  %v4913 = vadd.f32 0.0, %v4912
  %v4914 = vpop.f32.mrb[0].mxu0
  %4915 = vmatprep.mubr.f32.mxu0 0.0
  %4916 = vmatmul.mubr.f32.gmra.mrb[0].mxu0 %v4308
  %v4917 = vpop.f32.mrb[0].mxu0
  %v4918 = vadd.f32 0.0, %v4917
  %v4919 = vpop.f32.mrb[0].mxu0
  %4920 = vmatprep.mubr.f32.mxu0 0.0
  %4921 = vmatmul.mubr.f32.gmra.mrb[0].mxu0 %v4311
  %v4922 = vpop.f32.mrb[0].mxu0
  %v4923 = vadd.f32 0.0, %v4922
  %v4924 = vpop.f32.mrb[0].mxu0
  %4925 = vmatprep.mubr.f32.mxu0 0.0
  %4926 = vmatmul.mubr.f32.gmra.mrb[0].mxu0 %v4314
  %v4927 = vpop.f32.mrb[0].mxu0
  %v4928 = vadd.f32 0.0, %v4927
  %v4929 = vpop.f32.mrb[0].mxu0
  %4930 = vmatprep.mubr.f32.mxu0 0.0
  %4931 = vmatmul.mubr.f32.gmra.mrb[0].mxu0 %v4317
  %v4932 = vpop.f32.mrb[0].mxu0
  %v4933 = vadd.f32 0.0, %v4932
  %v4934 = vpop.f32.mrb[0].mxu0
  %4935 = vmatprep.mubr.f32.mxu0 0.0
  %4936 = vmatmul.mubr.f32.gmra.mrb[0].mxu0 %v4320
  %v4937 = vpop.f32.mrb[0].mxu0
  %v4938 = vadd.f32 0.0, %v4937
  %v4939 = vpop.f32.mrb[0].mxu0
  %4940 = vmatprep.mubr.f32.mxu0 0.0
  %4941 = vmatmul.mubr.f32.gmra.mrb[0].mxu0 %v4323
  %v4942 = vpop.f32.mrb[0].mxu0
  %v4943 = vadd.f32 0.0, %v4942
  %v4944 = vpop.f32.mrb[0].mxu0
  %4945 = vmatprep.mubr.f32.mxu0 0.0
  %4946 = vmatmul.mubr.f32.gmra.mrb[0].mxu0 %v4326
  %v4947 = vpop.f32.mrb[0].mxu0
  %v4948 = vadd.f32 0.0, %v4947
  %v4949 = vpop.f32.mrb[0].mxu0
  %4950 = vmatprep.mubr.f32.mxu0 0.0
  %4951 = vmatmul.mubr.f32.gmra.mrb[0].mxu0 %v4329
  %v4952 = vpop.f32.mrb[0].mxu0
  %v4953 = vadd.f32 0.0, %v4952
  %v4954 = vpop.f32.mrb[0].mxu0
  %4955 = vmatprep.mubr.f32.mxu0 0.0
  %4956 = vmatmul.mubr.f32.gmra.mrb[0].mxu0 %v4332
  %v4957 = vpop.f32.mrb[0].mxu0
  %v4958 = vadd.f32 0.0, %v4957
  %v4959 = vpop.f32.mrb[0].mxu0
  %4960 = vmatprep.mubr.f32.mxu0 0.0
  %4961 = vmatmul.mubr.f32.gmra.mrb[0].mxu0 %v4335
  %v4962 = vpop.f32.mrb[0].mxu0
  %v4963 = vadd.f32 0.0, %v4962
  %v4964 = vpop.f32.mrb[0].mxu0
  %4965 = vmatprep.mubr.f32.mxu0 0.0
  %4966 = vmatmul.mubr.f32.gmra.mrb[0].mxu0 %v4338
  %v4967 = vpop.f32.mrb[0].mxu0
  %v4968 = vadd.f32 0.0, %v4967
  %v4969 = vpop.f32.mrb[0].mxu0
  %4970 = vmatprep.mubr.f32.mxu0 0.0
  %4971 = vmatmul.mubr.f32.gmra.mrb[0].mxu0 %v4341
  %v4972 = vpop.f32.mrb[0].mxu0
  %v4973 = vadd.f32 0.0, %v4972
  %v4974 = vpop.f32.mrb[0].mxu0
  %4975 = vmatprep.mubr.f32.mxu0 0.0
  %4976 = vmatmul.mubr.f32.gmra.mrb[0].mxu0 %v4344
  %v4977 = vpop.f32.mrb[0].mxu0
  %v4978 = vadd.f32 0.0, %v4977
  %v4979 = vpop.f32.mrb[0].mxu0
  %4980 = vmatprep.mubr.f32.mxu0 0.0
  %4981 = vmatmul.mubr.f32.gmra.mrb[0].mxu0 %v4347
  %v4982 = vpop.f32.mrb[0].mxu0
  %v4983 = vadd.f32 0.0, %v4982
  %v4984 = vpop.f32.mrb[0].mxu0
  %4985 = vmatprep.mubr.f32.mxu0 0.0
  %4986 = vmatmul.mubr.f32.gmra.mrb[0].mxu0 %v4350
  %v4987 = vpop.f32.mrb[0].mxu0
  %v4988 = vadd.f32 0.0, %v4987
  %v4989 = vpop.f32.mrb[0].mxu0
  %4990 = vmatprep.mubr.f32.mxu0 0.0
  %4991 = vmatmul.mubr.f32.gmra.mrb[0].mxu0 %v4353
  %v4992 = vpop.f32.mrb[0].mxu0
  %v4993 = vadd.f32 0.0, %v4992
  %v4994 = vpop.f32.mrb[0].mxu0
  %4995 = vmatprep.mubr.f32.mxu0 0.0
  %4996 = vmatmul.mubr.f32.gmra.mrb[0].mxu0 %v4356
  %v4997 = vpop.f32.mrb[0].mxu0
  %v4998 = vadd.f32 0.0, %v4997
  %v4999 = vpop.f32.mrb[0].mxu0
  %5000 = vmatprep.mubr.f32.mxu0 0.0
  %5001 = vmatmul.mubr.f32.gmra.mrb[0].mxu0 %v4359
  %v5002 = vpop.f32.mrb[0].mxu0
  %v5003 = vadd.f32 0.0, %v5002
  %v5004 = vpop.f32.mrb[0].mxu0
  %5005 = vmatprep.mubr.f32.mxu0 0.0
  %5006 = vmatmul.mubr.f32.gmra.mrb[0].mxu0 %v4362
  %v5007 = vpop.f32.mrb[0].mxu0
  %v5008 = vadd.f32 0.0, %v5007
  %v5009 = vpop.f32.mrb[0].mxu0
  %5010 = vmatprep.mubr.f32.mxu0 0.0
  %5011 = vmatmul.mubr.f32.gmra.mrb[0].mxu0 %v4365
  %v5012 = vpop.f32.mrb[0].mxu0
  %v5013 = vadd.f32 0.0, %v5012
  %v5014 = vpop.f32.mrb[0].mxu0
  %5015 = vmatprep.mubr.f32.mxu0 0.0
  %5016 = vmatmul.mubr.f32.gmra.mrb[0].mxu0 %v4368
  %v5017 = vpop.f32.mrb[0].mxu0
  %v5018 = vadd.f32 0.0, %v5017
  %v5019 = vpop.f32.mrb[0].mxu0
  %5020 = vmatprep.mubr.f32.mxu0 0.0
  %5021 = vmatmul.mubr.f32.gmra.mrb[0].mxu0 %v4371
  %v5022 = vpop.f32.mrb[0].mxu0
  %v5023 = vadd.f32 0.0, %v5022
  %v5024 = vpop.f32.mrb[0].mxu0
  %5025 = vmatprep.mubr.f32.mxu0 0.0
  %5026 = vmatmul.mubr.f32.gmra.mrb[0].mxu0 %v4374
  %v5027 = vpop.f32.mrb[0].mxu0
  %v5028 = vadd.f32 0.0, %v5027
  %v5029 = vpop.f32.mrb[0].mxu0
  %5030 = vmatprep.mubr.f32.mxu0 0.0
  %5031 = vmatmul.mubr.f32.gmra.mrb[0].mxu0 %v4377
  %v5032 = vpop.f32.mrb[0].mxu0
  %v5033 = vadd.f32 0.0, %v5032
  %v5034 = vpop.f32.mrb[0].mxu0
  %5035 = vmatprep.mubr.f32.mxu0 0.0
  %5036 = vmatmul.mubr.f32.gmra.mrb[0].mxu0 %v4380
  %v5037 = vpop.f32.mrb[0].mxu0
  %v5038 = vadd.f32 0.0, %v5037
  %v5039 = vpop.f32.mrb[0].mxu0
  %5040 = vmatprep.mubr.f32.mxu0 0.0
  %5041 = vmatmul.mubr.f32.gmra.mrb[0].mxu0 %v4383
  %v5042 = vpop.f32.mrb[0].mxu0
  %v5043 = vadd.f32 0.0, %v5042
  %v5044 = vpop.f32.mrb[0].mxu0
  %5045 = vmatprep.mubr.f32.mxu0 0.0
  %5046 = vmatmul.mubr.f32.gmra.mrb[0].mxu0 %v4386
  %v5047 = vpop.f32.mrb[0].mxu0
  %v5048 = vadd.f32 0.0, %v5047
  %v5049 = vpop.f32.mrb[0].mxu0
  %5050 = vmatprep.mubr.f32.mxu0 0.0
  %5051 = vmatmul.mubr.f32.gmra.mrb[0].mxu0 %v4389
  %v5052 = vpop.f32.mrb[0].mxu0
  %v5053 = vadd.f32 0.0, %v5052
  %v5054 = vpop.f32.mrb[0].mxu0
  %5055 = vmatprep.mubr.f32.mxu0 0.0
  %5056 = vmatmul.mubr.f32.gmra.mrb[0].mxu0 %v4392
  %v5057 = vpop.f32.mrb[0].mxu0
  %v5058 = vadd.f32 0.0, %v5057
  %v5059 = vpop.f32.mrb[0].mxu0
  %5060 = vmatprep.mubr.f32.mxu0 0.0
  %5061 = vmatmul.mubr.f32.gmra.mrb[0].mxu0 %v4395
  %v5062 = vpop.f32.mrb[0].mxu0
  %v5063 = vadd.f32 0.0, %v5062
  %v5064 = vpop.f32.mrb[0].mxu0
  %5065 = vmatprep.mubr.f32.mxu0 0.0
  %5066 = vmatmul.mubr.f32.gmra.mrb[0].mxu0 %v4398
  %v5067 = vpop.f32.mrb[0].mxu0
  %v5068 = vadd.f32 0.0, %v5067
  %v5069 = vpop.f32.mrb[0].mxu0
  %5070 = vmatprep.mubr.f32.mxu0 0.0
  %5071 = vmatmul.mubr.f32.gmra.mrb[0].mxu0 %v4401
  %v5072 = vpop.f32.mrb[0].mxu0
  %v5073 = vadd.f32 0.0, %v5072
  %v5074 = vpop.f32.mrb[0].mxu0
  %5075 = vmatprep.mubr.f32.mxu0 0.0
  %5076 = vmatmul.mubr.f32.gmra.mrb[0].mxu0 %v4404
  %v5077 = vpop.f32.mrb[0].mxu0
  %v5078 = vadd.f32 0.0, %v5077
  %v5079 = vpop.f32.mrb[0].mxu0
  %5080 = vmatprep.mubr.f32.mxu0 0.0
  %5081 = vmatmul.mubr.f32.gmra.mrb[0].mxu0 %v4407
  %v5082 = vpop.f32.mrb[0].mxu0
  %v5083 = vadd.f32 0.0, %v5082
  %v5084 = vpop.f32.mrb[0].mxu0
  %5085 = vmatprep.mubr.f32.mxu0 0.0
  %5086 = vmatmul.mubr.f32.gmra.mrb[0].mxu0 %v4410
  %v5087 = vpop.f32.mrb[0].mxu0
  %v5088 = vadd.f32 0.0, %v5087
  %v5089 = vpop.f32.mrb[0].mxu0
  %5090 = vmatprep.mubr.f32.mxu0 0.0
  %5091 = vmatmul.mubr.f32.gmra.mrb[0].mxu0 %v4413
  %v5092 = vpop.f32.mrb[0].mxu0
  %v5093 = vadd.f32 0.0, %v5092
  %v5094 = vpop.f32.mrb[0].mxu0
  %5095 = vmatprep.mubr.f32.mxu0 0.0
  %5096 = vmatmul.mubr.f32.gmra.mrb[0].mxu0 %v4416
  %v5097 = vpop.f32.mrb[0].mxu0
  %v5098 = vadd.f32 0.0, %v5097
  %v5099 = vpop.f32.mrb[0].mxu0
  %5100 = vmatprep.mubr.f32.mxu0 0.0
  %5101 = vmatmul.mubr.f32.gmra.mrb[0].mxu0 %v4419
  %v5102 = vpop.f32.mrb[0].mxu0
  %v5103 = vadd.f32 0.0, %v5102
  %v5104 = vpop.f32.mrb[0].mxu0
  %5105 = vmatprep.mubr.f32.mxu0 0.0
  %5106 = vmatmul.mubr.f32.gmra.mrb[0].mxu0 %v4422
  %v5107 = vpop.f32.mrb[0].mxu0
  %v5108 = vadd.f32 0.0, %v5107
  %v5109 = vpop.f32.mrb[0].mxu0
  %5110 = vmatprep.mubr.f32.mxu0 0.0
  %5111 = vmatmul.mubr.f32.gmra.mrb[0].mxu0 %v4425
  %v5112 = vpop.f32.mrb[0].mxu0
  %v5113 = vadd.f32 0.0, %v5112
  %v5114 = vpop.f32.mrb[0].mxu0
  %5115 = vmatprep.mubr.f32.mxu0 0.0
  %5116 = vmatmul.mubr.f32.gmra.mrb[0].mxu0 %v4428
  %v5117 = vpop.f32.mrb[0].mxu0
  %v5118 = vadd.f32 0.0, %v5117
  %v5119 = vpop.f32.mrb[0].mxu0
  %5120 = vmatprep.mubr.f32.mxu0 0.0
  %5121 = vmatmul.mubr.f32.gmra.mrb[0].mxu0 %v4431
  %v5122 = vpop.f32.mrb[0].mxu0
  %v5123 = vadd.f32 0.0, %v5122
  %v5124 = vpop.f32.mrb[0].mxu0
  %5125 = vmatprep.mubr.f32.mxu0 0.0
  %5126 = vmatmul.mubr.f32.gmra.mrb[0].mxu0 %v4434
  %v5127 = vpop.f32.mrb[0].mxu0
  %v5128 = vadd.f32 0.0, %v5127
  %v5129 = vpop.f32.mrb[0].mxu0
  %5130 = vmatprep.mubr.f32.mxu0 0.0
  %5131 = vmatmul.mubr.f32.gmra.mrb[0].mxu0 %v4437
  %v5132 = vpop.f32.mrb[0].mxu0
  %v5133 = vadd.f32 0.0, %v5132
  %v5134 = vpop.f32.mrb[0].mxu0
  %5135 = vmatprep.mubr.f32.mxu0 0.0
  %5136 = vmatmul.mubr.f32.gmra.mrb[0].mxu0 %v4440
  %v5137 = vpop.f32.mrb[0].mxu0
  %v5138 = vadd.f32 0.0, %v5137
  %v5139 = vpop.f32.mrb[0].mxu0
  %5140 = vmatprep.mubr.f32.mxu0 0.0
  %5141 = vmatmul.mubr.f32.gmra.mrb[0].mxu0 %v4443
  %v5142 = vpop.f32.mrb[0].mxu0
  %v5143 = vadd.f32 0.0, %v5142
  %v5144 = vpop.f32.mrb[0].mxu0
  %5145 = vmatprep.mubr.f32.mxu0 0.0
  %5146 = vmatmul.mubr.f32.gmra.mrb[0].mxu0 %v4446
  %v5147 = vpop.f32.mrb[0].mxu0
  %v5148 = vadd.f32 0.0, %v5147
  %v5149 = vpop.f32.mrb[0].mxu0
  %5150 = vmatprep.mubr.f32.mxu0 0.0
  %5151 = vmatmul.mubr.f32.gmra.mrb[0].mxu0 %v4449
  %v5152 = vpop.f32.mrb[0].mxu0
  %v5153 = vadd.f32 0.0, %v5152
  %v5154 = vpop.f32.mrb[0].mxu0
  %5155 = vdwg.mxu0
  %v5156 = vmax.f32 %v3811, %v4518
  %v5157 = vmax.f32 %v3812, %v4523
  %v5158 = vmax.f32 %v3813, %v4528
  %v5159 = vmax.f32 %v3814, %v4533
  %v5160 = vmax.f32 %v3815, %v4538
  %v5161 = vmax.f32 %v3816, %v4543
  %v5162 = vmax.f32 %v3817, %v4548
  %v5163 = vmax.f32 %v3818, %v4553
  %v5164 = vmax.f32 %v3819, %v4558
  %v5165 = vmax.f32 %v3820, %v4563
  %v5166 = vmax.f32 %v3821, %v4568
  %v5167 = vmax.f32 %v3822, %v4573
  %v5168 = vmax.f32 %v3823, %v4578
  %v5169 = vmax.f32 %v3824, %v4583
  %v5170 = vmax.f32 %v3825, %v4588
  %v5171 = vmax.f32 %v3826, %v4593
  %v5172 = vmax.f32 %v3827, %v4598
  %v5173 = vmax.f32 %v3828, %v4603
  %v5174 = vmax.f32 %v3829, %v4608
  %v5175 = vmax.f32 %v3830, %v4613
  %v5176 = vmax.f32 %v3831, %v4618
  %v5177 = vmax.f32 %v3832, %v4623
  %v5178 = vmax.f32 %v3833, %v4628
  %v5179 = vmax.f32 %v3834, %v4633
  %v5180 = vmax.f32 %v3835, %v4638
  %v5181 = vmax.f32 %v3836, %v4643
  %v5182 = vmax.f32 %v3837, %v4648
  %v5183 = vmax.f32 %v3838, %v4653
  %v5184 = vmax.f32 %v3839, %v4658
  %v5185 = vmax.f32 %v3840, %v4663
  %v5186 = vmax.f32 %v3841, %v4668
  %v5187 = vmax.f32 %v3842, %v4673
  %v5188 = vmax.f32 %v3843, %v4678
  %v5189 = vmax.f32 %v3844, %v4683
  %v5190 = vmax.f32 %v3845, %v4688
  %v5191 = vmax.f32 %v3846, %v4693
  %v5192 = vmax.f32 %v3847, %v4698
  %v5193 = vmax.f32 %v3848, %v4703
  %v5194 = vmax.f32 %v3849, %v4708
  %v5195 = vmax.f32 %v3850, %v4713
  %v5196 = vmax.f32 %v3851, %v4718
  %v5197 = vmax.f32 %v3852, %v4723
  %v5198 = vmax.f32 %v3853, %v4728
  %v5199 = vmax.f32 %v3854, %v4733
  %v5200 = vmax.f32 %v3855, %v4738
  %v5201 = vmax.f32 %v3856, %v4743
  %v5202 = vmax.f32 %v3857, %v4748
  %v5203 = vmax.f32 %v3858, %v4753
  %v5204 = vmax.f32 %v3859, %v4758
  %v5205 = vmax.f32 %v3860, %v4763
  %v5206 = vmax.f32 %v3861, %v4768
  %v5207 = vmax.f32 %v3862, %v4773
  %v5208 = vmax.f32 %v3863, %v4778
  %v5209 = vmax.f32 %v3864, %v4783
  %v5210 = vmax.f32 %v3865, %v4788
  %v5211 = vmax.f32 %v3866, %v4793
  %v5212 = vmax.f32 %v3867, %v4798
  %v5213 = vmax.f32 %v3868, %v4803
  %v5214 = vmax.f32 %v3869, %v4808
  %v5215 = vmax.f32 %v3870, %v4813
  %v5216 = vmax.f32 %v3871, %v4818
  %v5217 = vmax.f32 %v3872, %v4823
  %v5218 = vmax.f32 %v3873, %v4828
  %v5219 = vmax.f32 %v3874, %v4833
  %v5220 = vmax.f32 %v3875, %v4838
  %v5221 = vmax.f32 %v3876, %v4843
  %v5222 = vmax.f32 %v3877, %v4848
  %v5223 = vmax.f32 %v3878, %v4853
  %v5224 = vmax.f32 %v3879, %v4858
  %v5225 = vmax.f32 %v3880, %v4863
  %v5226 = vmax.f32 %v3881, %v4868
  %v5227 = vmax.f32 %v3882, %v4873
  %v5228 = vmax.f32 %v3883, %v4878
  %v5229 = vmax.f32 %v3884, %v4883
  %v5230 = vmax.f32 %v3885, %v4888
  %v5231 = vmax.f32 %v3886, %v4893
  %v5232 = vmax.f32 %v3887, %v4898
  %v5233 = vmax.f32 %v3888, %v4903
  %v5234 = vmax.f32 %v3889, %v4908
  %v5235 = vmax.f32 %v3890, %v4913
  %v5236 = vmax.f32 %v3891, %v4918
  %v5237 = vmax.f32 %v3892, %v4923
  %v5238 = vmax.f32 %v3893, %v4928
  %v5239 = vmax.f32 %v3894, %v4933
  %v5240 = vmax.f32 %v3895, %v4938
  %v5241 = vmax.f32 %v3896, %v4943
  %v5242 = vmax.f32 %v3897, %v4948
  %v5243 = vmax.f32 %v3898, %v4953
  %v5244 = vmax.f32 %v3899, %v4958
  %v5245 = vmax.f32 %v3900, %v4963
  %v5246 = vmax.f32 %v3901, %v4968
  %v5247 = vmax.f32 %v3902, %v4973
  %v5248 = vmax.f32 %v3903, %v4978
  %v5249 = vmax.f32 %v3904, %v4983
  %v5250 = vmax.f32 %v3905, %v4988
  %v5251 = vmax.f32 %v3906, %v4993
  %v5252 = vmax.f32 %v3907, %v4998
  %v5253 = vmax.f32 %v3908, %v5003
  %v5254 = vmax.f32 %v3909, %v5008
  %v5255 = vmax.f32 %v3910, %v5013
  %v5256 = vmax.f32 %v3911, %v5018
  %v5257 = vmax.f32 %v3912, %v5023
  %v5258 = vmax.f32 %v3913, %v5028
  %v5259 = vmax.f32 %v3914, %v5033
  %v5260 = vmax.f32 %v3915, %v5038
  %v5261 = vmax.f32 %v3916, %v5043
  %v5262 = vmax.f32 %v3917, %v5048
  %v5263 = vmax.f32 %v3918, %v5053
  %v5264 = vmax.f32 %v3919, %v5058
  %v5265 = vmax.f32 %v3920, %v5063
  %v5266 = vmax.f32 %v3921, %v5068
  %v5267 = vmax.f32 %v3922, %v5073
  %v5268 = vmax.f32 %v3923, %v5078
  %v5269 = vmax.f32 %v3924, %v5083
  %v5270 = vmax.f32 %v3925, %v5088
  %v5271 = vmax.f32 %v3926, %v5093
  %v5272 = vmax.f32 %v3927, %v5098
  %v5273 = vmax.f32 %v3928, %v5103
  %v5274 = vmax.f32 %v3929, %v5108
  %v5275 = vmax.f32 %v3930, %v5113
  %v5276 = vmax.f32 %v3931, %v5118
  %v5277 = vmax.f32 %v3932, %v5123
  %v5278 = vmax.f32 %v3933, %v5128
  %v5279 = vmax.f32 %v3934, %v5133
  %v5280 = vmax.f32 %v3935, %v5138
  %v5281 = vmax.f32 %v3936, %v5143
  %v5282 = vmax.f32 %v3937, %v5148
  %v5283 = vmax.f32 %v3938, %v5153
  %v5284 = vld [vmem:[%s5] sm:$0x1]
  %v5286 = vlaneseq
  %v5287 = vshrl.u32 %v5286, 7
  %v5288 = vsub.s32 0, %v5287
  %v5289 = vrot.slane %v5284, %v5288
  %v5291 = vadd.f32 %v5156, %v5289
  %v5292 = vadd.f32 %v5157, %v5289
  %v5293 = vadd.f32 %v5158, %v5289
  %v5294 = vadd.f32 %v5159, %v5289
  %v5295 = vadd.f32 %v5160, %v5289
  %v5296 = vadd.f32 %v5161, %v5289
  %v5297 = vadd.f32 %v5162, %v5289
  %v5298 = vadd.f32 %v5163, %v5289
  %v5299 = vadd.f32 %v5164, %v5289
  %v5300 = vadd.f32 %v5165, %v5289
  %v5301 = vadd.f32 %v5166, %v5289
  %v5302 = vadd.f32 %v5167, %v5289
  %v5303 = vadd.f32 %v5168, %v5289
  %v5304 = vadd.f32 %v5169, %v5289
  %v5305 = vadd.f32 %v5170, %v5289
  %v5306 = vadd.f32 %v5171, %v5289
  %v5307 = vadd.f32 %v5172, %v5289
  %v5308 = vadd.f32 %v5173, %v5289
  %v5309 = vadd.f32 %v5174, %v5289
  %v5310 = vadd.f32 %v5175, %v5289
  %v5311 = vadd.f32 %v5176, %v5289
  %v5312 = vadd.f32 %v5177, %v5289
  %v5313 = vadd.f32 %v5178, %v5289
  %v5314 = vadd.f32 %v5179, %v5289
  %v5315 = vadd.f32 %v5180, %v5289
  %v5316 = vadd.f32 %v5181, %v5289
  %v5317 = vadd.f32 %v5182, %v5289
  %v5318 = vadd.f32 %v5183, %v5289
  %v5319 = vadd.f32 %v5184, %v5289
  %v5320 = vadd.f32 %v5185, %v5289
  %v5321 = vadd.f32 %v5186, %v5289
  %v5322 = vadd.f32 %v5187, %v5289
  %v5323 = vadd.f32 %v5188, %v5289
  %v5324 = vadd.f32 %v5189, %v5289
  %v5325 = vadd.f32 %v5190, %v5289
  %v5326 = vadd.f32 %v5191, %v5289
  %v5327 = vadd.f32 %v5192, %v5289
  %v5328 = vadd.f32 %v5193, %v5289
  %v5329 = vadd.f32 %v5194, %v5289
  %v5330 = vadd.f32 %v5195, %v5289
  %v5331 = vadd.f32 %v5196, %v5289
  %v5332 = vadd.f32 %v5197, %v5289
  %v5333 = vadd.f32 %v5198, %v5289
  %v5334 = vadd.f32 %v5199, %v5289
  %v5335 = vadd.f32 %v5200, %v5289
  %v5336 = vadd.f32 %v5201, %v5289
  %v5337 = vadd.f32 %v5202, %v5289
  %v5338 = vadd.f32 %v5203, %v5289
  %v5339 = vadd.f32 %v5204, %v5289
  %v5340 = vadd.f32 %v5205, %v5289
  %v5341 = vadd.f32 %v5206, %v5289
  %v5342 = vadd.f32 %v5207, %v5289
  %v5343 = vadd.f32 %v5208, %v5289
  %v5344 = vadd.f32 %v5209, %v5289
  %v5345 = vadd.f32 %v5210, %v5289
  %v5346 = vadd.f32 %v5211, %v5289
  %v5347 = vadd.f32 %v5212, %v5289
  %v5348 = vadd.f32 %v5213, %v5289
  %v5349 = vadd.f32 %v5214, %v5289
  %v5350 = vadd.f32 %v5215, %v5289
  %v5351 = vadd.f32 %v5216, %v5289
  %v5352 = vadd.f32 %v5217, %v5289
  %v5353 = vadd.f32 %v5218, %v5289
  %v5354 = vadd.f32 %v5219, %v5289
  %v5355 = vadd.f32 %v5220, %v5289
  %v5356 = vadd.f32 %v5221, %v5289
  %v5357 = vadd.f32 %v5222, %v5289
  %v5358 = vadd.f32 %v5223, %v5289
  %v5359 = vadd.f32 %v5224, %v5289
  %v5360 = vadd.f32 %v5225, %v5289
  %v5361 = vadd.f32 %v5226, %v5289
  %v5362 = vadd.f32 %v5227, %v5289
  %v5363 = vadd.f32 %v5228, %v5289
  %v5364 = vadd.f32 %v5229, %v5289
  %v5365 = vadd.f32 %v5230, %v5289
  %v5366 = vadd.f32 %v5231, %v5289
  %v5367 = vadd.f32 %v5232, %v5289
  %v5368 = vadd.f32 %v5233, %v5289
  %v5369 = vadd.f32 %v5234, %v5289
  %v5370 = vadd.f32 %v5235, %v5289
  %v5371 = vadd.f32 %v5236, %v5289
  %v5372 = vadd.f32 %v5237, %v5289
  %v5373 = vadd.f32 %v5238, %v5289
  %v5374 = vadd.f32 %v5239, %v5289
  %v5375 = vadd.f32 %v5240, %v5289
  %v5376 = vadd.f32 %v5241, %v5289
  %v5377 = vadd.f32 %v5242, %v5289
  %v5378 = vadd.f32 %v5243, %v5289
  %v5379 = vadd.f32 %v5244, %v5289
  %v5380 = vadd.f32 %v5245, %v5289
  %v5381 = vadd.f32 %v5246, %v5289
  %v5382 = vadd.f32 %v5247, %v5289
  %v5383 = vadd.f32 %v5248, %v5289
  %v5384 = vadd.f32 %v5249, %v5289
  %v5385 = vadd.f32 %v5250, %v5289
  %v5386 = vadd.f32 %v5251, %v5289
  %v5387 = vadd.f32 %v5252, %v5289
  %v5388 = vadd.f32 %v5253, %v5289
  %v5389 = vadd.f32 %v5254, %v5289
  %v5390 = vadd.f32 %v5255, %v5289
  %v5391 = vadd.f32 %v5256, %v5289
  %v5392 = vadd.f32 %v5257, %v5289
  %v5393 = vadd.f32 %v5258, %v5289
  %v5394 = vadd.f32 %v5259, %v5289
  %v5395 = vadd.f32 %v5260, %v5289
  %v5396 = vadd.f32 %v5261, %v5289
  %v5397 = vadd.f32 %v5262, %v5289
  %v5398 = vadd.f32 %v5263, %v5289
  %v5399 = vadd.f32 %v5264, %v5289
  %v5400 = vadd.f32 %v5265, %v5289
  %v5401 = vadd.f32 %v5266, %v5289
  %v5402 = vadd.f32 %v5267, %v5289
  %v5403 = vadd.f32 %v5268, %v5289
  %v5404 = vadd.f32 %v5269, %v5289
  %v5405 = vadd.f32 %v5270, %v5289
  %v5406 = vadd.f32 %v5271, %v5289
  %v5407 = vadd.f32 %v5272, %v5289
  %v5408 = vadd.f32 %v5273, %v5289
  %v5409 = vadd.f32 %v5274, %v5289
  %v5410 = vadd.f32 %v5275, %v5289
  %v5411 = vadd.f32 %v5276, %v5289
  %v5412 = vadd.f32 %v5277, %v5289
  %v5413 = vadd.f32 %v5278, %v5289
  %v5414 = vadd.f32 %v5279, %v5289
  %v5415 = vadd.f32 %v5280, %v5289
  %v5416 = vadd.f32 %v5281, %v5289
  %v5417 = vadd.f32 %v5282, %v5289
  %v5418 = vadd.f32 %v5283, %v5289
  %v5419 = vmax.f32 %v5291, 0.0
  %v5420 = vmax.f32 %v5292, 0.0
  %v5421 = vmax.f32 %v5293, 0.0
  %v5422 = vmax.f32 %v5294, 0.0
  %v5423 = vmax.f32 %v5295, 0.0
  %v5424 = vmax.f32 %v5296, 0.0
  %v5425 = vmax.f32 %v5297, 0.0
  %v5426 = vmax.f32 %v5298, 0.0
  %v5427 = vmax.f32 %v5299, 0.0
  %v5428 = vmax.f32 %v5300, 0.0
  %v5429 = vmax.f32 %v5301, 0.0
  %v5430 = vmax.f32 %v5302, 0.0
  %v5431 = vmax.f32 %v5303, 0.0
  %v5432 = vmax.f32 %v5304, 0.0
  %v5433 = vmax.f32 %v5305, 0.0
  %v5434 = vmax.f32 %v5306, 0.0
  %v5435 = vmax.f32 %v5307, 0.0
  %v5436 = vmax.f32 %v5308, 0.0
  %v5437 = vmax.f32 %v5309, 0.0
  %v5438 = vmax.f32 %v5310, 0.0
  %v5439 = vmax.f32 %v5311, 0.0
  %v5440 = vmax.f32 %v5312, 0.0
  %v5441 = vmax.f32 %v5313, 0.0
  %v5442 = vmax.f32 %v5314, 0.0
  %v5443 = vmax.f32 %v5315, 0.0
  %v5444 = vmax.f32 %v5316, 0.0
  %v5445 = vmax.f32 %v5317, 0.0
  %v5446 = vmax.f32 %v5318, 0.0
  %v5447 = vmax.f32 %v5319, 0.0
  %v5448 = vmax.f32 %v5320, 0.0
  %v5449 = vmax.f32 %v5321, 0.0
  %v5450 = vmax.f32 %v5322, 0.0
  %v5451 = vmax.f32 %v5323, 0.0
  %v5452 = vmax.f32 %v5324, 0.0
  %v5453 = vmax.f32 %v5325, 0.0
  %v5454 = vmax.f32 %v5326, 0.0
  %v5455 = vmax.f32 %v5327, 0.0
  %v5456 = vmax.f32 %v5328, 0.0
  %v5457 = vmax.f32 %v5329, 0.0
  %v5458 = vmax.f32 %v5330, 0.0
  %v5459 = vmax.f32 %v5331, 0.0
  %v5460 = vmax.f32 %v5332, 0.0
  %v5461 = vmax.f32 %v5333, 0.0
  %v5462 = vmax.f32 %v5334, 0.0
  %v5463 = vmax.f32 %v5335, 0.0
  %v5464 = vmax.f32 %v5336, 0.0
  %v5465 = vmax.f32 %v5337, 0.0
  %v5466 = vmax.f32 %v5338, 0.0
  %v5467 = vmax.f32 %v5339, 0.0
  %v5468 = vmax.f32 %v5340, 0.0
  %v5469 = vmax.f32 %v5341, 0.0
  %v5470 = vmax.f32 %v5342, 0.0
  %v5471 = vmax.f32 %v5343, 0.0
  %v5472 = vmax.f32 %v5344, 0.0
  %v5473 = vmax.f32 %v5345, 0.0
  %v5474 = vmax.f32 %v5346, 0.0
  %v5475 = vmax.f32 %v5347, 0.0
  %v5476 = vmax.f32 %v5348, 0.0
  %v5477 = vmax.f32 %v5349, 0.0
  %v5478 = vmax.f32 %v5350, 0.0
  %v5479 = vmax.f32 %v5351, 0.0
  %v5480 = vmax.f32 %v5352, 0.0
  %v5481 = vmax.f32 %v5353, 0.0
  %v5482 = vmax.f32 %v5354, 0.0
  %v5483 = vmax.f32 %v5355, 0.0
  %v5484 = vmax.f32 %v5356, 0.0
  %v5485 = vmax.f32 %v5357, 0.0
  %v5486 = vmax.f32 %v5358, 0.0
  %v5487 = vmax.f32 %v5359, 0.0
  %v5488 = vmax.f32 %v5360, 0.0
  %v5489 = vmax.f32 %v5361, 0.0
  %v5490 = vmax.f32 %v5362, 0.0
  %v5491 = vmax.f32 %v5363, 0.0
  %v5492 = vmax.f32 %v5364, 0.0
  %v5493 = vmax.f32 %v5365, 0.0
  %v5494 = vmax.f32 %v5366, 0.0
  %v5495 = vmax.f32 %v5367, 0.0
  %v5496 = vmax.f32 %v5368, 0.0
  %v5497 = vmax.f32 %v5369, 0.0
  %v5498 = vmax.f32 %v5370, 0.0
  %v5499 = vmax.f32 %v5371, 0.0
  %v5500 = vmax.f32 %v5372, 0.0
  %v5501 = vmax.f32 %v5373, 0.0
  %v5502 = vmax.f32 %v5374, 0.0
  %v5503 = vmax.f32 %v5375, 0.0
  %v5504 = vmax.f32 %v5376, 0.0
  %v5505 = vmax.f32 %v5377, 0.0
  %v5506 = vmax.f32 %v5378, 0.0
  %v5507 = vmax.f32 %v5379, 0.0
  %v5508 = vmax.f32 %v5380, 0.0
  %v5509 = vmax.f32 %v5381, 0.0
  %v5510 = vmax.f32 %v5382, 0.0
  %v5511 = vmax.f32 %v5383, 0.0
  %v5512 = vmax.f32 %v5384, 0.0
  %v5513 = vmax.f32 %v5385, 0.0
  %v5514 = vmax.f32 %v5386, 0.0
  %v5515 = vmax.f32 %v5387, 0.0
  %v5516 = vmax.f32 %v5388, 0.0
  %v5517 = vmax.f32 %v5389, 0.0
  %v5518 = vmax.f32 %v5390, 0.0
  %v5519 = vmax.f32 %v5391, 0.0
  %v5520 = vmax.f32 %v5392, 0.0
  %v5521 = vmax.f32 %v5393, 0.0
  %v5522 = vmax.f32 %v5394, 0.0
  %v5523 = vmax.f32 %v5395, 0.0
  %v5524 = vmax.f32 %v5396, 0.0
  %v5525 = vmax.f32 %v5397, 0.0
  %v5526 = vmax.f32 %v5398, 0.0
  %v5527 = vmax.f32 %v5399, 0.0
  %v5528 = vmax.f32 %v5400, 0.0
  %v5529 = vmax.f32 %v5401, 0.0
  %v5530 = vmax.f32 %v5402, 0.0
  %v5531 = vmax.f32 %v5403, 0.0
  %v5532 = vmax.f32 %v5404, 0.0
  %v5533 = vmax.f32 %v5405, 0.0
  %v5534 = vmax.f32 %v5406, 0.0
  %v5535 = vmax.f32 %v5407, 0.0
  %v5536 = vmax.f32 %v5408, 0.0
  %v5537 = vmax.f32 %v5409, 0.0
  %v5538 = vmax.f32 %v5410, 0.0
  %v5539 = vmax.f32 %v5411, 0.0
  %v5540 = vmax.f32 %v5412, 0.0
  %v5541 = vmax.f32 %v5413, 0.0
  %v5542 = vmax.f32 %v5414, 0.0
  %v5543 = vmax.f32 %v5415, 0.0
  %v5544 = vmax.f32 %v5416, 0.0
  %v5545 = vmax.f32 %v5417, 0.0
  %v5546 = vmax.f32 %v5418, 0.0
  %vm5547 = vcmask 261120
  %5548 = vst.msk [vmem:[%s6] sm:$0xff] %vm5547, %v5419
  %5549 = vst.msk [vmem:[%s6 + $0x8] sm:$0xff] %vm5547, %v5420
  %5550 = vst.msk [vmem:[%s6 + $0x10] sm:$0xff] %vm5547, %v5421
  %5551 = vst.msk [vmem:[%s6 + $0x18] sm:$0xff] %vm5547, %v5422
  %5552 = vst.msk [vmem:[%s6 + $0x20] sm:$0xff] %vm5547, %v5423
  %5553 = vst.msk [vmem:[%s6 + $0x28] sm:$0xff] %vm5547, %v5424
  %5554 = vst.msk [vmem:[%s6 + $0x30] sm:$0xff] %vm5547, %v5425
  %5555 = vst.msk [vmem:[%s6 + $0x38] sm:$0xff] %vm5547, %v5426
  %5556 = vst.msk [vmem:[%s6 + $0x40] sm:$0xff] %vm5547, %v5427
  %5557 = vst.msk [vmem:[%s6 + $0x48] sm:$0xff] %vm5547, %v5428
  %5558 = vst.msk [vmem:[%s6 + $0x50] sm:$0xff] %vm5547, %v5429
  %5559 = vst.msk [vmem:[%s6 + $0x58] sm:$0xff] %vm5547, %v5430
  %5560 = vst.msk [vmem:[%s6 + $0x60] sm:$0xff] %vm5547, %v5431
  %5561 = vst.msk [vmem:[%s6 + $0x68] sm:$0xff] %vm5547, %v5432
  %5562 = vst.msk [vmem:[%s6 + $0x70] sm:$0xff] %vm5547, %v5433
  %5563 = vst.msk [vmem:[%s6 + $0x78] sm:$0xff] %vm5547, %v5434
  %5564 = vst.msk [vmem:[%s6 + $0x80] sm:$0xff] %vm5547, %v5435
  %5565 = vst.msk [vmem:[%s6 + $0x88] sm:$0xff] %vm5547, %v5436
  %5566 = vst.msk [vmem:[%s6 + $0x90] sm:$0xff] %vm5547, %v5437
  %5567 = vst.msk [vmem:[%s6 + $0x98] sm:$0xff] %vm5547, %v5438
  %5568 = vst.msk [vmem:[%s6 + $0xa0] sm:$0xff] %vm5547, %v5439
  %5569 = vst.msk [vmem:[%s6 + $0xa8] sm:$0xff] %vm5547, %v5440
  %5570 = vst.msk [vmem:[%s6 + $0xb0] sm:$0xff] %vm5547, %v5441
  %5571 = vst.msk [vmem:[%s6 + $0xb8] sm:$0xff] %vm5547, %v5442
  %5572 = vst.msk [vmem:[%s6 + $0xc0] sm:$0xff] %vm5547, %v5443
  %5573 = vst.msk [vmem:[%s6 + $0xc8] sm:$0xff] %vm5547, %v5444
  %5574 = vst.msk [vmem:[%s6 + $0xd0] sm:$0xff] %vm5547, %v5445
  %5575 = vst.msk [vmem:[%s6 + $0xd8] sm:$0xff] %vm5547, %v5446
  %5576 = vst.msk [vmem:[%s6 + $0xe0] sm:$0xff] %vm5547, %v5447
  %5577 = vst.msk [vmem:[%s6 + $0xe8] sm:$0xff] %vm5547, %v5448
  %5578 = vst.msk [vmem:[%s6 + $0xf0] sm:$0xff] %vm5547, %v5449
  %5579 = vst.msk [vmem:[%s6 + $0xf8] sm:$0xff] %vm5547, %v5450
  %5580 = vst.msk [vmem:[%s6 + $0x100] sm:$0xff] %vm5547, %v5451
  %5581 = vst.msk [vmem:[%s6 + $0x108] sm:$0xff] %vm5547, %v5452
  %5582 = vst.msk [vmem:[%s6 + $0x110] sm:$0xff] %vm5547, %v5453
  %5583 = vst.msk [vmem:[%s6 + $0x118] sm:$0xff] %vm5547, %v5454
  %5584 = vst.msk [vmem:[%s6 + $0x120] sm:$0xff] %vm5547, %v5455
  %5585 = vst.msk [vmem:[%s6 + $0x128] sm:$0xff] %vm5547, %v5456
  %5586 = vst.msk [vmem:[%s6 + $0x130] sm:$0xff] %vm5547, %v5457
  %5587 = vst.msk [vmem:[%s6 + $0x138] sm:$0xff] %vm5547, %v5458
  %5588 = vst.msk [vmem:[%s6 + $0x140] sm:$0xff] %vm5547, %v5459
  %5589 = vst.msk [vmem:[%s6 + $0x148] sm:$0xff] %vm5547, %v5460
  %5590 = vst.msk [vmem:[%s6 + $0x150] sm:$0xff] %vm5547, %v5461
  %5591 = vst.msk [vmem:[%s6 + $0x158] sm:$0xff] %vm5547, %v5462
  %5592 = vst.msk [vmem:[%s6 + $0x160] sm:$0xff] %vm5547, %v5463
  %5593 = vst.msk [vmem:[%s6 + $0x168] sm:$0xff] %vm5547, %v5464
  %5594 = vst.msk [vmem:[%s6 + $0x170] sm:$0xff] %vm5547, %v5465
  %5595 = vst.msk [vmem:[%s6 + $0x178] sm:$0xff] %vm5547, %v5466
  %5596 = vst.msk [vmem:[%s6 + $0x180] sm:$0xff] %vm5547, %v5467
  %5597 = vst.msk [vmem:[%s6 + $0x188] sm:$0xff] %vm5547, %v5468
  %5598 = vst.msk [vmem:[%s6 + $0x190] sm:$0xff] %vm5547, %v5469
  %5599 = vst.msk [vmem:[%s6 + $0x198] sm:$0xff] %vm5547, %v5470
  %5600 = vst.msk [vmem:[%s6 + $0x1a0] sm:$0xff] %vm5547, %v5471
  %5601 = vst.msk [vmem:[%s6 + $0x1a8] sm:$0xff] %vm5547, %v5472
  %5602 = vst.msk [vmem:[%s6 + $0x1b0] sm:$0xff] %vm5547, %v5473
  %5603 = vst.msk [vmem:[%s6 + $0x1b8] sm:$0xff] %vm5547, %v5474
  %5604 = vst.msk [vmem:[%s6 + $0x1c0] sm:$0xff] %vm5547, %v5475
  %5605 = vst.msk [vmem:[%s6 + $0x1c8] sm:$0xff] %vm5547, %v5476
  %5606 = vst.msk [vmem:[%s6 + $0x1d0] sm:$0xff] %vm5547, %v5477
  %5607 = vst.msk [vmem:[%s6 + $0x1d8] sm:$0xff] %vm5547, %v5478
  %5608 = vst.msk [vmem:[%s6 + $0x1e0] sm:$0xff] %vm5547, %v5479
  %5609 = vst.msk [vmem:[%s6 + $0x1e8] sm:$0xff] %vm5547, %v5480
  %5610 = vst.msk [vmem:[%s6 + $0x1f0] sm:$0xff] %vm5547, %v5481
  %5611 = vst.msk [vmem:[%s6 + $0x1f8] sm:$0xff] %vm5547, %v5482
  %5612 = vst.msk [vmem:[%s6 + $0x200] sm:$0xff] %vm5547, %v5483
  %5613 = vst.msk [vmem:[%s6 + $0x208] sm:$0xff] %vm5547, %v5484
  %5614 = vst.msk [vmem:[%s6 + $0x210] sm:$0xff] %vm5547, %v5485
  %5615 = vst.msk [vmem:[%s6 + $0x218] sm:$0xff] %vm5547, %v5486
  %5616 = vst.msk [vmem:[%s6 + $0x220] sm:$0xff] %vm5547, %v5487
  %5617 = vst.msk [vmem:[%s6 + $0x228] sm:$0xff] %vm5547, %v5488
  %5618 = vst.msk [vmem:[%s6 + $0x230] sm:$0xff] %vm5547, %v5489
  %5619 = vst.msk [vmem:[%s6 + $0x238] sm:$0xff] %vm5547, %v5490
  %5620 = vst.msk [vmem:[%s6 + $0x240] sm:$0xff] %vm5547, %v5491
  %5621 = vst.msk [vmem:[%s6 + $0x248] sm:$0xff] %vm5547, %v5492
  %5622 = vst.msk [vmem:[%s6 + $0x250] sm:$0xff] %vm5547, %v5493
  %5623 = vst.msk [vmem:[%s6 + $0x258] sm:$0xff] %vm5547, %v5494
  %5624 = vst.msk [vmem:[%s6 + $0x260] sm:$0xff] %vm5547, %v5495
  %5625 = vst.msk [vmem:[%s6 + $0x268] sm:$0xff] %vm5547, %v5496
  %5626 = vst.msk [vmem:[%s6 + $0x270] sm:$0xff] %vm5547, %v5497
  %5627 = vst.msk [vmem:[%s6 + $0x278] sm:$0xff] %vm5547, %v5498
  %5628 = vst.msk [vmem:[%s6 + $0x280] sm:$0xff] %vm5547, %v5499
  %5629 = vst.msk [vmem:[%s6 + $0x288] sm:$0xff] %vm5547, %v5500
  %5630 = vst.msk [vmem:[%s6 + $0x290] sm:$0xff] %vm5547, %v5501
  %5631 = vst.msk [vmem:[%s6 + $0x298] sm:$0xff] %vm5547, %v5502
  %5632 = vst.msk [vmem:[%s6 + $0x2a0] sm:$0xff] %vm5547, %v5503
  %5633 = vst.msk [vmem:[%s6 + $0x2a8] sm:$0xff] %vm5547, %v5504
  %5634 = vst.msk [vmem:[%s6 + $0x2b0] sm:$0xff] %vm5547, %v5505
  %5635 = vst.msk [vmem:[%s6 + $0x2b8] sm:$0xff] %vm5547, %v5506
  %5636 = vst.msk [vmem:[%s6 + $0x2c0] sm:$0xff] %vm5547, %v5507
  %5637 = vst.msk [vmem:[%s6 + $0x2c8] sm:$0xff] %vm5547, %v5508
  %5638 = vst.msk [vmem:[%s6 + $0x2d0] sm:$0xff] %vm5547, %v5509
  %5639 = vst.msk [vmem:[%s6 + $0x2d8] sm:$0xff] %vm5547, %v5510
  %5640 = vst.msk [vmem:[%s6 + $0x2e0] sm:$0xff] %vm5547, %v5511
  %5641 = vst.msk [vmem:[%s6 + $0x2e8] sm:$0xff] %vm5547, %v5512
  %5642 = vst.msk [vmem:[%s6 + $0x2f0] sm:$0xff] %vm5547, %v5513
  %5643 = vst.msk [vmem:[%s6 + $0x2f8] sm:$0xff] %vm5547, %v5514
  %5644 = vst.msk [vmem:[%s6 + $0x300] sm:$0xff] %vm5547, %v5515
  %5645 = vst.msk [vmem:[%s6 + $0x308] sm:$0xff] %vm5547, %v5516
  %5646 = vst.msk [vmem:[%s6 + $0x310] sm:$0xff] %vm5547, %v5517
  %5647 = vst.msk [vmem:[%s6 + $0x318] sm:$0xff] %vm5547, %v5518
  %5648 = vst.msk [vmem:[%s6 + $0x320] sm:$0xff] %vm5547, %v5519
  %5649 = vst.msk [vmem:[%s6 + $0x328] sm:$0xff] %vm5547, %v5520
  %5650 = vst.msk [vmem:[%s6 + $0x330] sm:$0xff] %vm5547, %v5521
  %5651 = vst.msk [vmem:[%s6 + $0x338] sm:$0xff] %vm5547, %v5522
  %5652 = vst.msk [vmem:[%s6 + $0x340] sm:$0xff] %vm5547, %v5523
  %5653 = vst.msk [vmem:[%s6 + $0x348] sm:$0xff] %vm5547, %v5524
  %5654 = vst.msk [vmem:[%s6 + $0x350] sm:$0xff] %vm5547, %v5525
  %5655 = vst.msk [vmem:[%s6 + $0x358] sm:$0xff] %vm5547, %v5526
  %5656 = vst.msk [vmem:[%s6 + $0x360] sm:$0xff] %vm5547, %v5527
  %5657 = vst.msk [vmem:[%s6 + $0x368] sm:$0xff] %vm5547, %v5528
  %5658 = vst.msk [vmem:[%s6 + $0x370] sm:$0xff] %vm5547, %v5529
  %5659 = vst.msk [vmem:[%s6 + $0x378] sm:$0xff] %vm5547, %v5530
  %5660 = vst.msk [vmem:[%s6 + $0x380] sm:$0xff] %vm5547, %v5531
  %5661 = vst.msk [vmem:[%s6 + $0x388] sm:$0xff] %vm5547, %v5532
  %5662 = vst.msk [vmem:[%s6 + $0x390] sm:$0xff] %vm5547, %v5533
  %5663 = vst.msk [vmem:[%s6 + $0x398] sm:$0xff] %vm5547, %v5534
  %5664 = vst.msk [vmem:[%s6 + $0x3a0] sm:$0xff] %vm5547, %v5535
  %5665 = vst.msk [vmem:[%s6 + $0x3a8] sm:$0xff] %vm5547, %v5536
  %5666 = vst.msk [vmem:[%s6 + $0x3b0] sm:$0xff] %vm5547, %v5537
  %5667 = vst.msk [vmem:[%s6 + $0x3b8] sm:$0xff] %vm5547, %v5538
  %5668 = vst.msk [vmem:[%s6 + $0x3c0] sm:$0xff] %vm5547, %v5539
  %5669 = vst.msk [vmem:[%s6 + $0x3c8] sm:$0xff] %vm5547, %v5540
  %5670 = vst.msk [vmem:[%s6 + $0x3d0] sm:$0xff] %vm5547, %v5541
  %5671 = vst.msk [vmem:[%s6 + $0x3d8] sm:$0xff] %vm5547, %v5542
  %5672 = vst.msk [vmem:[%s6 + $0x3e0] sm:$0xff] %vm5547, %v5543
  %5673 = vst.msk [vmem:[%s6 + $0x3e8] sm:$0xff] %vm5547, %v5544
  %5674 = vst.msk [vmem:[%s6 + $0x3f0] sm:$0xff] %vm5547, %v5545
  %5675 = vst.msk [vmem:[%s6 + $0x3f8] sm:$0xff] %vm5547, %v5546
  // Predicated region
  $region26: #{siamese_forward.3} parent=0 // pred_check
    _
  $region27: #{siamese_forward.3} parent=0 // pred_check_branch
    %5677 = sbr.rel (0) target = $region29
  $region28: #{siamese_forward.3} parent=0 // pred_region
    _
  $region29: #{siamese_forward.3} parent=0 // pred_fallthru
    _
  // Predicated region
  $region30: #{siamese_forward.3} parent=0 // pred_check
    _
  $region31: #{siamese_forward.3} parent=0 // pred_check_branch
    %5679 = sbr.rel (0) target = $region33
  $region32: #{siamese_forward.3} parent=0 // pred_region
    _
  $region33: #{siamese_forward.3} parent=0 // pred_fallthru
    _

// kernel: siamese_forward.4
$region0: #{siamese_forward.4}
  #allocation0 [shape = 'u32[]', space=smem, size = 0x4, offset = 0x4, fixed_abs, tag = 'smem constant byte address 0x4 - core index']
  #allocation1 [shape = 'u32[144,128]{1,0:T(1,128)}', space=vmem, size = 0x12000, scoped, tag = 'internal scratch']
  %s0 = inlined_call_operand.vmem [shape: f32[1024,288], index: 0, kind: input, shape index: {}]
  %s1 = inlined_call_operand.vmem [shape: f32[288,64], index: 1, kind: input, shape index: {}]
  %s2 = inlined_call_operand.vmem [shape: f32[1,64], index: 2, kind: input, shape index: {}]
  %s3 = inlined_call_operand.vmem [shape: f32[1024,64], index: 3, kind: output, shape index: {}]
  %s4 = sld [smem:[#allocation0]]
  $region22: #{siamese_forward.4} parent=0
    _
  %s6 = ssub.s32 1, %s4
  %s7 = scalar_select 0, %s6, %s4
  // Predicated region
  $region2: #{siamese_forward.4} parent=0 // pred_check
    _
  $region3: #{siamese_forward.4} parent=0 // pred_check_branch
    %9 = sbr.rel (0) target = $region5
  $region4: #{siamese_forward.4} parent=0 // pred_region
    _
  $region5: #{siamese_forward.4} parent=0 // pred_fallthru
    _
  // Predicated region
  $region6: #{siamese_forward.4} parent=0 // pred_check
    _
  $region7: #{siamese_forward.4} parent=0 // pred_check_branch
    %11 = sbr.rel (0) target = $region9
  $region8: #{siamese_forward.4} parent=0 // pred_region
    _
  $region9: #{siamese_forward.4} parent=0 // pred_fallthru
    _
  // Predicated region
  $region10: #{siamese_forward.4} parent=0 // pred_check
    _
  $region11: #{siamese_forward.4} parent=0 // pred_check_branch
    %13 = sbr.rel (0) target = $region13
  $region12: #{siamese_forward.4} parent=0 // pred_region
    _
  $region13: #{siamese_forward.4} parent=0 // pred_fallthru
    _
  %v14 = vld [vmem:[%s0] sm:$0xff]
  %v15 = vld [vmem:[%s0 + $0x8] sm:$0xff]
  %v16 = vld [vmem:[%s0 + $0x10] sm:$0xff]
  %v17 = vld [vmem:[%s0 + $0x18] sm:$0xff]
  %v18 = vld [vmem:[%s0 + $0x20] sm:$0xff]
  %v19 = vld [vmem:[%s0 + $0x28] sm:$0xff]
  %v20 = vld [vmem:[%s0 + $0x30] sm:$0xff]
  %v21 = vld [vmem:[%s0 + $0x38] sm:$0xff]
  %v22 = vld [vmem:[%s0 + $0x40] sm:$0xff]
  %v23 = vld [vmem:[%s0 + $0x48] sm:$0xff]
  %v24 = vld [vmem:[%s0 + $0x50] sm:$0xff]
  %v25 = vld [vmem:[%s0 + $0x58] sm:$0xff]
  %v26 = vld [vmem:[%s0 + $0x60] sm:$0xff]
  %v27 = vld [vmem:[%s0 + $0x68] sm:$0xff]
  %v28 = vld [vmem:[%s0 + $0x70] sm:$0xff]
  %v29 = vld [vmem:[%s0 + $0x78] sm:$0xff]
  %v30 = vld [vmem:[%s0 + $0x80] sm:$0xff]
  %v31 = vld [vmem:[%s0 + $0x88] sm:$0xff]
  %v32 = vld [vmem:[%s0 + $0x90] sm:$0xff]
  %v33 = vld [vmem:[%s0 + $0x98] sm:$0xff]
  %v34 = vld [vmem:[%s0 + $0xa0] sm:$0xff]
  %v35 = vld [vmem:[%s0 + $0xa8] sm:$0xff]
  %v36 = vld [vmem:[%s0 + $0xb0] sm:$0xff]
  %v37 = vld [vmem:[%s0 + $0xb8] sm:$0xff]
  %v38 = vld [vmem:[%s0 + $0xc0] sm:$0xff]
  %v39 = vld [vmem:[%s0 + $0xc8] sm:$0xff]
  %v40 = vld [vmem:[%s0 + $0xd0] sm:$0xff]
  %v41 = vld [vmem:[%s0 + $0xd8] sm:$0xff]
  %v42 = vld [vmem:[%s0 + $0xe0] sm:$0xff]
  %v43 = vld [vmem:[%s0 + $0xe8] sm:$0xff]
  %v44 = vld [vmem:[%s0 + $0xf0] sm:$0xff]
  %v45 = vld [vmem:[%s0 + $0xf8] sm:$0xff]
  %v46 = vld [vmem:[%s0 + $0x100] sm:$0xff]
  %v47 = vld [vmem:[%s0 + $0x108] sm:$0xff]
  %v48 = vld [vmem:[%s0 + $0x110] sm:$0xff]
  %v49 = vld [vmem:[%s0 + $0x118] sm:$0xff]
  %v50 = vld [vmem:[%s0 + $0x120] sm:$0xff]
  %v51 = vld [vmem:[%s0 + $0x128] sm:$0xff]
  %v52 = vld [vmem:[%s0 + $0x130] sm:$0xff]
  %v53 = vld [vmem:[%s0 + $0x138] sm:$0xff]
  %v54 = vld [vmem:[%s0 + $0x140] sm:$0xff]
  %v55 = vld [vmem:[%s0 + $0x148] sm:$0xff]
  %v56 = vld [vmem:[%s0 + $0x150] sm:$0xff]
  %v57 = vld [vmem:[%s0 + $0x158] sm:$0xff]
  %v58 = vld [vmem:[%s0 + $0x160] sm:$0xff]
  %v59 = vld [vmem:[%s0 + $0x168] sm:$0xff]
  %v60 = vld [vmem:[%s0 + $0x170] sm:$0xff]
  %v61 = vld [vmem:[%s0 + $0x178] sm:$0xff]
  %v62 = vld [vmem:[%s0 + $0x180] sm:$0xff]
  %v63 = vld [vmem:[%s0 + $0x188] sm:$0xff]
  %v64 = vld [vmem:[%s0 + $0x190] sm:$0xff]
  %v65 = vld [vmem:[%s0 + $0x198] sm:$0xff]
  %v66 = vld [vmem:[%s0 + $0x1a0] sm:$0xff]
  %v67 = vld [vmem:[%s0 + $0x1a8] sm:$0xff]
  %v68 = vld [vmem:[%s0 + $0x1b0] sm:$0xff]
  %v69 = vld [vmem:[%s0 + $0x1b8] sm:$0xff]
  %v70 = vld [vmem:[%s0 + $0x1c0] sm:$0xff]
  %v71 = vld [vmem:[%s0 + $0x1c8] sm:$0xff]
  %v72 = vld [vmem:[%s0 + $0x1d0] sm:$0xff]
  %v73 = vld [vmem:[%s0 + $0x1d8] sm:$0xff]
  %v74 = vld [vmem:[%s0 + $0x1e0] sm:$0xff]
  %v75 = vld [vmem:[%s0 + $0x1e8] sm:$0xff]
  %v76 = vld [vmem:[%s0 + $0x1f0] sm:$0xff]
  %v77 = vld [vmem:[%s0 + $0x1f8] sm:$0xff]
  %v78 = vld [vmem:[%s0 + $0x200] sm:$0xff]
  %v79 = vld [vmem:[%s0 + $0x208] sm:$0xff]
  %v80 = vld [vmem:[%s0 + $0x210] sm:$0xff]
  %v81 = vld [vmem:[%s0 + $0x218] sm:$0xff]
  %v82 = vld [vmem:[%s0 + $0x220] sm:$0xff]
  %v83 = vld [vmem:[%s0 + $0x228] sm:$0xff]
  %v84 = vld [vmem:[%s0 + $0x230] sm:$0xff]
  %v85 = vld [vmem:[%s0 + $0x238] sm:$0xff]
  %v86 = vld [vmem:[%s0 + $0x240] sm:$0xff]
  %v87 = vld [vmem:[%s0 + $0x248] sm:$0xff]
  %v88 = vld [vmem:[%s0 + $0x250] sm:$0xff]
  %v89 = vld [vmem:[%s0 + $0x258] sm:$0xff]
  %v90 = vld [vmem:[%s0 + $0x260] sm:$0xff]
  %v91 = vld [vmem:[%s0 + $0x268] sm:$0xff]
  %v92 = vld [vmem:[%s0 + $0x270] sm:$0xff]
  %v93 = vld [vmem:[%s0 + $0x278] sm:$0xff]
  %v94 = vld [vmem:[%s0 + $0x280] sm:$0xff]
  %v95 = vld [vmem:[%s0 + $0x288] sm:$0xff]
  %v96 = vld [vmem:[%s0 + $0x290] sm:$0xff]
  %v97 = vld [vmem:[%s0 + $0x298] sm:$0xff]
  %v98 = vld [vmem:[%s0 + $0x2a0] sm:$0xff]
  %v99 = vld [vmem:[%s0 + $0x2a8] sm:$0xff]
  %v100 = vld [vmem:[%s0 + $0x2b0] sm:$0xff]
  %v101 = vld [vmem:[%s0 + $0x2b8] sm:$0xff]
  %v102 = vld [vmem:[%s0 + $0x2c0] sm:$0xff]
  %v103 = vld [vmem:[%s0 + $0x2c8] sm:$0xff]
  %v104 = vld [vmem:[%s0 + $0x2d0] sm:$0xff]
  %v105 = vld [vmem:[%s0 + $0x2d8] sm:$0xff]
  %v106 = vld [vmem:[%s0 + $0x2e0] sm:$0xff]
  %v107 = vld [vmem:[%s0 + $0x2e8] sm:$0xff]
  %v108 = vld [vmem:[%s0 + $0x2f0] sm:$0xff]
  %v109 = vld [vmem:[%s0 + $0x2f8] sm:$0xff]
  %v110 = vld [vmem:[%s0 + $0x300] sm:$0xff]
  %v111 = vld [vmem:[%s0 + $0x308] sm:$0xff]
  %v112 = vld [vmem:[%s0 + $0x310] sm:$0xff]
  %v113 = vld [vmem:[%s0 + $0x318] sm:$0xff]
  %v114 = vld [vmem:[%s0 + $0x320] sm:$0xff]
  %v115 = vld [vmem:[%s0 + $0x328] sm:$0xff]
  %v116 = vld [vmem:[%s0 + $0x330] sm:$0xff]
  %v117 = vld [vmem:[%s0 + $0x338] sm:$0xff]
  %v118 = vld [vmem:[%s0 + $0x340] sm:$0xff]
  %v119 = vld [vmem:[%s0 + $0x348] sm:$0xff]
  %v120 = vld [vmem:[%s0 + $0x350] sm:$0xff]
  %v121 = vld [vmem:[%s0 + $0x358] sm:$0xff]
  %v122 = vld [vmem:[%s0 + $0x360] sm:$0xff]
  %v123 = vld [vmem:[%s0 + $0x368] sm:$0xff]
  %v124 = vld [vmem:[%s0 + $0x370] sm:$0xff]
  %v125 = vld [vmem:[%s0 + $0x378] sm:$0xff]
  %v126 = vld [vmem:[%s0 + $0x380] sm:$0xff]
  %v127 = vld [vmem:[%s0 + $0x388] sm:$0xff]
  %v128 = vld [vmem:[%s0 + $0x390] sm:$0xff]
  %v129 = vld [vmem:[%s0 + $0x398] sm:$0xff]
  %v130 = vld [vmem:[%s0 + $0x3a0] sm:$0xff]
  %v131 = vld [vmem:[%s0 + $0x3a8] sm:$0xff]
  %v132 = vld [vmem:[%s0 + $0x3b0] sm:$0xff]
  %v133 = vld [vmem:[%s0 + $0x3b8] sm:$0xff]
  %v134 = vld [vmem:[%s0 + $0x3c0] sm:$0xff]
  %v135 = vld [vmem:[%s0 + $0x3c8] sm:$0xff]
  %v136 = vld [vmem:[%s0 + $0x3d0] sm:$0xff]
  %v137 = vld [vmem:[%s0 + $0x3d8] sm:$0xff]
  %v138 = vld [vmem:[%s0 + $0x3e0] sm:$0xff]
  %v139 = vld [vmem:[%s0 + $0x3e8] sm:$0xff]
  %v140 = vld [vmem:[%s0 + $0x3f0] sm:$0xff]
  %v141 = vld [vmem:[%s0 + $0x3f8] sm:$0xff]
  %v142 = vld [vmem:[%s0 + $0x400] sm:$0xff]
  %v143 = vld [vmem:[%s0 + $0x408] sm:$0xff]
  %v144 = vld [vmem:[%s0 + $0x410] sm:$0xff]
  %v145 = vld [vmem:[%s0 + $0x418] sm:$0xff]
  %v146 = vld [vmem:[%s0 + $0x420] sm:$0xff]
  %v147 = vld [vmem:[%s0 + $0x428] sm:$0xff]
  %v148 = vld [vmem:[%s0 + $0x430] sm:$0xff]
  %v149 = vld [vmem:[%s0 + $0x438] sm:$0xff]
  %v150 = vld [vmem:[%s0 + $0x440] sm:$0xff]
  %v151 = vld [vmem:[%s0 + $0x448] sm:$0xff]
  %v152 = vld [vmem:[%s0 + $0x450] sm:$0xff]
  %v153 = vld [vmem:[%s0 + $0x458] sm:$0xff]
  %v154 = vld [vmem:[%s0 + $0x460] sm:$0xff]
  %v155 = vld [vmem:[%s0 + $0x468] sm:$0xff]
  %v156 = vld [vmem:[%s0 + $0x470] sm:$0xff]
  %v157 = vld [vmem:[%s0 + $0x478] sm:$0xff]
  %v158 = vld [vmem:[%s0 + $0x480] sm:$0xff]
  %v159 = vld [vmem:[%s0 + $0x488] sm:$0xff]
  %v160 = vld [vmem:[%s0 + $0x490] sm:$0xff]
  %v161 = vld [vmem:[%s0 + $0x498] sm:$0xff]
  %v162 = vld [vmem:[%s0 + $0x4a0] sm:$0xff]
  %v163 = vld [vmem:[%s0 + $0x4a8] sm:$0xff]
  %v164 = vld [vmem:[%s0 + $0x4b0] sm:$0xff]
  %v165 = vld [vmem:[%s0 + $0x4b8] sm:$0xff]
  %v166 = vld [vmem:[%s0 + $0x4c0] sm:$0xff]
  %v167 = vld [vmem:[%s0 + $0x4c8] sm:$0xff]
  %v168 = vld [vmem:[%s0 + $0x4d0] sm:$0xff]
  %v169 = vld [vmem:[%s0 + $0x4d8] sm:$0xff]
  %v170 = vld [vmem:[%s0 + $0x4e0] sm:$0xff]
  %v171 = vld [vmem:[%s0 + $0x4e8] sm:$0xff]
  %v172 = vld [vmem:[%s0 + $0x4f0] sm:$0xff]
  %v173 = vld [vmem:[%s0 + $0x4f8] sm:$0xff]
  %v174 = vld [vmem:[%s0 + $0x500] sm:$0xff]
  %v175 = vld [vmem:[%s0 + $0x508] sm:$0xff]
  %v176 = vld [vmem:[%s0 + $0x510] sm:$0xff]
  %v177 = vld [vmem:[%s0 + $0x518] sm:$0xff]
  %v178 = vld [vmem:[%s0 + $0x520] sm:$0xff]
  %v179 = vld [vmem:[%s0 + $0x528] sm:$0xff]
  %v180 = vld [vmem:[%s0 + $0x530] sm:$0xff]
  %v181 = vld [vmem:[%s0 + $0x538] sm:$0xff]
  %v182 = vld [vmem:[%s0 + $0x540] sm:$0xff]
  %v183 = vld [vmem:[%s0 + $0x548] sm:$0xff]
  %v184 = vld [vmem:[%s0 + $0x550] sm:$0xff]
  %v185 = vld [vmem:[%s0 + $0x558] sm:$0xff]
  %v186 = vld [vmem:[%s0 + $0x560] sm:$0xff]
  %v187 = vld [vmem:[%s0 + $0x568] sm:$0xff]
  %v188 = vld [vmem:[%s0 + $0x570] sm:$0xff]
  %v189 = vld [vmem:[%s0 + $0x578] sm:$0xff]
  %v190 = vld [vmem:[%s0 + $0x580] sm:$0xff]
  %v191 = vld [vmem:[%s0 + $0x588] sm:$0xff]
  %v192 = vld [vmem:[%s0 + $0x590] sm:$0xff]
  %v193 = vld [vmem:[%s0 + $0x598] sm:$0xff]
  %v194 = vld [vmem:[%s0 + $0x5a0] sm:$0xff]
  %v195 = vld [vmem:[%s0 + $0x5a8] sm:$0xff]
  %v196 = vld [vmem:[%s0 + $0x5b0] sm:$0xff]
  %v197 = vld [vmem:[%s0 + $0x5b8] sm:$0xff]
  %v198 = vld [vmem:[%s0 + $0x5c0] sm:$0xff]
  %v199 = vld [vmem:[%s0 + $0x5c8] sm:$0xff]
  %v200 = vld [vmem:[%s0 + $0x5d0] sm:$0xff]
  %v201 = vld [vmem:[%s0 + $0x5d8] sm:$0xff]
  %v202 = vld [vmem:[%s0 + $0x5e0] sm:$0xff]
  %v203 = vld [vmem:[%s0 + $0x5e8] sm:$0xff]
  %v204 = vld [vmem:[%s0 + $0x5f0] sm:$0xff]
  %v205 = vld [vmem:[%s0 + $0x5f8] sm:$0xff]
  %v206 = vld [vmem:[%s0 + $0x600] sm:$0xff]
  %v207 = vld [vmem:[%s0 + $0x608] sm:$0xff]
  %v208 = vld [vmem:[%s0 + $0x610] sm:$0xff]
  %v209 = vld [vmem:[%s0 + $0x618] sm:$0xff]
  %v210 = vld [vmem:[%s0 + $0x620] sm:$0xff]
  %v211 = vld [vmem:[%s0 + $0x628] sm:$0xff]
  %v212 = vld [vmem:[%s0 + $0x630] sm:$0xff]
  %v213 = vld [vmem:[%s0 + $0x638] sm:$0xff]
  %v214 = vld [vmem:[%s0 + $0x640] sm:$0xff]
  %v215 = vld [vmem:[%s0 + $0x648] sm:$0xff]
  %v216 = vld [vmem:[%s0 + $0x650] sm:$0xff]
  %v217 = vld [vmem:[%s0 + $0x658] sm:$0xff]
  %v218 = vld [vmem:[%s0 + $0x660] sm:$0xff]
  %v219 = vld [vmem:[%s0 + $0x668] sm:$0xff]
  %v220 = vld [vmem:[%s0 + $0x670] sm:$0xff]
  %v221 = vld [vmem:[%s0 + $0x678] sm:$0xff]
  %v222 = vld [vmem:[%s0 + $0x680] sm:$0xff]
  %v223 = vld [vmem:[%s0 + $0x688] sm:$0xff]
  %v224 = vld [vmem:[%s0 + $0x690] sm:$0xff]
  %v225 = vld [vmem:[%s0 + $0x698] sm:$0xff]
  %v226 = vld [vmem:[%s0 + $0x6a0] sm:$0xff]
  %v227 = vld [vmem:[%s0 + $0x6a8] sm:$0xff]
  %v228 = vld [vmem:[%s0 + $0x6b0] sm:$0xff]
  %v229 = vld [vmem:[%s0 + $0x6b8] sm:$0xff]
  %v230 = vld [vmem:[%s0 + $0x6c0] sm:$0xff]
  %v231 = vld [vmem:[%s0 + $0x6c8] sm:$0xff]
  %v232 = vld [vmem:[%s0 + $0x6d0] sm:$0xff]
  %v233 = vld [vmem:[%s0 + $0x6d8] sm:$0xff]
  %v234 = vld [vmem:[%s0 + $0x6e0] sm:$0xff]
  %v235 = vld [vmem:[%s0 + $0x6e8] sm:$0xff]
  %v236 = vld [vmem:[%s0 + $0x6f0] sm:$0xff]
  %v237 = vld [vmem:[%s0 + $0x6f8] sm:$0xff]
  %v238 = vld [vmem:[%s0 + $0x700] sm:$0xff]
  %v239 = vld [vmem:[%s0 + $0x708] sm:$0xff]
  %v240 = vld [vmem:[%s0 + $0x710] sm:$0xff]
  %v241 = vld [vmem:[%s0 + $0x718] sm:$0xff]
  %v242 = vld [vmem:[%s0 + $0x720] sm:$0xff]
  %v243 = vld [vmem:[%s0 + $0x728] sm:$0xff]
  %v244 = vld [vmem:[%s0 + $0x730] sm:$0xff]
  %v245 = vld [vmem:[%s0 + $0x738] sm:$0xff]
  %v246 = vld [vmem:[%s0 + $0x740] sm:$0xff]
  %v247 = vld [vmem:[%s0 + $0x748] sm:$0xff]
  %v248 = vld [vmem:[%s0 + $0x750] sm:$0xff]
  %v249 = vld [vmem:[%s0 + $0x758] sm:$0xff]
  %v250 = vld [vmem:[%s0 + $0x760] sm:$0xff]
  %v251 = vld [vmem:[%s0 + $0x768] sm:$0xff]
  %v252 = vld [vmem:[%s0 + $0x770] sm:$0xff]
  %v253 = vld [vmem:[%s0 + $0x778] sm:$0xff]
  %v254 = vld [vmem:[%s0 + $0x780] sm:$0xff]
  %v255 = vld [vmem:[%s0 + $0x788] sm:$0xff]
  %v256 = vld [vmem:[%s0 + $0x790] sm:$0xff]
  %v257 = vld [vmem:[%s0 + $0x798] sm:$0xff]
  %v258 = vld [vmem:[%s0 + $0x7a0] sm:$0xff]
  %v259 = vld [vmem:[%s0 + $0x7a8] sm:$0xff]
  %v260 = vld [vmem:[%s0 + $0x7b0] sm:$0xff]
  %v261 = vld [vmem:[%s0 + $0x7b8] sm:$0xff]
  %v262 = vld [vmem:[%s0 + $0x7c0] sm:$0xff]
  %v263 = vld [vmem:[%s0 + $0x7c8] sm:$0xff]
  %v264 = vld [vmem:[%s0 + $0x7d0] sm:$0xff]
  %v265 = vld [vmem:[%s0 + $0x7d8] sm:$0xff]
  %v266 = vld [vmem:[%s0 + $0x7e0] sm:$0xff]
  %v267 = vld [vmem:[%s0 + $0x7e8] sm:$0xff]
  %v268 = vld [vmem:[%s0 + $0x7f0] sm:$0xff]
  %v269 = vld [vmem:[%s0 + $0x7f8] sm:$0xff]
  %v270 = vld [vmem:[%s0 + $0x800] sm:$0xff]
  %v271 = vld [vmem:[%s0 + $0x808] sm:$0xff]
  %v272 = vld [vmem:[%s0 + $0x810] sm:$0xff]
  %v273 = vld [vmem:[%s0 + $0x818] sm:$0xff]
  %v274 = vld [vmem:[%s0 + $0x820] sm:$0xff]
  %v275 = vld [vmem:[%s0 + $0x828] sm:$0xff]
  %v276 = vld [vmem:[%s0 + $0x830] sm:$0xff]
  %v277 = vld [vmem:[%s0 + $0x838] sm:$0xff]
  %v278 = vld [vmem:[%s0 + $0x840] sm:$0xff]
  %v279 = vld [vmem:[%s0 + $0x848] sm:$0xff]
  %v280 = vld [vmem:[%s0 + $0x850] sm:$0xff]
  %v281 = vld [vmem:[%s0 + $0x858] sm:$0xff]
  %v282 = vld [vmem:[%s0 + $0x860] sm:$0xff]
  %v283 = vld [vmem:[%s0 + $0x868] sm:$0xff]
  %v284 = vld [vmem:[%s0 + $0x870] sm:$0xff]
  %v285 = vld [vmem:[%s0 + $0x878] sm:$0xff]
  %v286 = vld [vmem:[%s0 + $0x880] sm:$0xff]
  %v287 = vld [vmem:[%s0 + $0x888] sm:$0xff]
  %v288 = vld [vmem:[%s0 + $0x890] sm:$0xff]
  %v289 = vld [vmem:[%s0 + $0x898] sm:$0xff]
  %v290 = vld [vmem:[%s0 + $0x8a0] sm:$0xff]
  %v291 = vld [vmem:[%s0 + $0x8a8] sm:$0xff]
  %v292 = vld [vmem:[%s0 + $0x8b0] sm:$0xff]
  %v293 = vld [vmem:[%s0 + $0x8b8] sm:$0xff]
  %v294 = vld [vmem:[%s0 + $0x8c0] sm:$0xff]
  %v295 = vld [vmem:[%s0 + $0x8c8] sm:$0xff]
  %v296 = vld [vmem:[%s0 + $0x8d0] sm:$0xff]
  %v297 = vld [vmem:[%s0 + $0x8d8] sm:$0xff]
  %v298 = vld [vmem:[%s0 + $0x8e0] sm:$0xff]
  %v299 = vld [vmem:[%s0 + $0x8e8] sm:$0xff]
  %v300 = vld [vmem:[%s0 + $0x8f0] sm:$0xff]
  %v301 = vld [vmem:[%s0 + $0x8f8] sm:$0xff]
  %v302 = vld [vmem:[%s0 + $0x900] sm:$0xff]
  %v303 = vld [vmem:[%s0 + $0x908] sm:$0xff]
  %v304 = vld [vmem:[%s0 + $0x910] sm:$0xff]
  %v305 = vld [vmem:[%s0 + $0x918] sm:$0xff]
  %v306 = vld [vmem:[%s0 + $0x920] sm:$0xff]
  %v307 = vld [vmem:[%s0 + $0x928] sm:$0xff]
  %v308 = vld [vmem:[%s0 + $0x930] sm:$0xff]
  %v309 = vld [vmem:[%s0 + $0x938] sm:$0xff]
  %v310 = vld [vmem:[%s0 + $0x940] sm:$0xff]
  %v311 = vld [vmem:[%s0 + $0x948] sm:$0xff]
  %v312 = vld [vmem:[%s0 + $0x950] sm:$0xff]
  %v313 = vld [vmem:[%s0 + $0x958] sm:$0xff]
  %v314 = vld [vmem:[%s0 + $0x960] sm:$0xff]
  %v315 = vld [vmem:[%s0 + $0x968] sm:$0xff]
  %v316 = vld [vmem:[%s0 + $0x970] sm:$0xff]
  %v317 = vld [vmem:[%s0 + $0x978] sm:$0xff]
  %v318 = vld [vmem:[%s0 + $0x980] sm:$0xff]
  %v319 = vld [vmem:[%s0 + $0x988] sm:$0xff]
  %v320 = vld [vmem:[%s0 + $0x990] sm:$0xff]
  %v321 = vld [vmem:[%s0 + $0x998] sm:$0xff]
  %v322 = vld [vmem:[%s0 + $0x9a0] sm:$0xff]
  %v323 = vld [vmem:[%s0 + $0x9a8] sm:$0xff]
  %v324 = vld [vmem:[%s0 + $0x9b0] sm:$0xff]
  %v325 = vld [vmem:[%s0 + $0x9b8] sm:$0xff]
  %v326 = vld [vmem:[%s0 + $0x9c0] sm:$0xff]
  %v327 = vld [vmem:[%s0 + $0x9c8] sm:$0xff]
  %v328 = vld [vmem:[%s0 + $0x9d0] sm:$0xff]
  %v329 = vld [vmem:[%s0 + $0x9d8] sm:$0xff]
  %v330 = vld [vmem:[%s0 + $0x9e0] sm:$0xff]
  %v331 = vld [vmem:[%s0 + $0x9e8] sm:$0xff]
  %v332 = vld [vmem:[%s0 + $0x9f0] sm:$0xff]
  %v333 = vld [vmem:[%s0 + $0x9f8] sm:$0xff]
  %v334 = vld [vmem:[%s0 + $0xa00] sm:$0xff]
  %v335 = vld [vmem:[%s0 + $0xa08] sm:$0xff]
  %v336 = vld [vmem:[%s0 + $0xa10] sm:$0xff]
  %v337 = vld [vmem:[%s0 + $0xa18] sm:$0xff]
  %v338 = vld [vmem:[%s0 + $0xa20] sm:$0xff]
  %v339 = vld [vmem:[%s0 + $0xa28] sm:$0xff]
  %v340 = vld [vmem:[%s0 + $0xa30] sm:$0xff]
  %v341 = vld [vmem:[%s0 + $0xa38] sm:$0xff]
  %v342 = vld [vmem:[%s0 + $0xa40] sm:$0xff]
  %v343 = vld [vmem:[%s0 + $0xa48] sm:$0xff]
  %v344 = vld [vmem:[%s0 + $0xa50] sm:$0xff]
  %v345 = vld [vmem:[%s0 + $0xa58] sm:$0xff]
  %v346 = vld [vmem:[%s0 + $0xa60] sm:$0xff]
  %v347 = vld [vmem:[%s0 + $0xa68] sm:$0xff]
  %v348 = vld [vmem:[%s0 + $0xa70] sm:$0xff]
  %v349 = vld [vmem:[%s0 + $0xa78] sm:$0xff]
  %v350 = vld [vmem:[%s0 + $0xa80] sm:$0xff]
  %v351 = vld [vmem:[%s0 + $0xa88] sm:$0xff]
  %v352 = vld [vmem:[%s0 + $0xa90] sm:$0xff]
  %v353 = vld [vmem:[%s0 + $0xa98] sm:$0xff]
  %v354 = vld [vmem:[%s0 + $0xaa0] sm:$0xff]
  %v355 = vld [vmem:[%s0 + $0xaa8] sm:$0xff]
  %v356 = vld [vmem:[%s0 + $0xab0] sm:$0xff]
  %v357 = vld [vmem:[%s0 + $0xab8] sm:$0xff]
  %v358 = vld [vmem:[%s0 + $0xac0] sm:$0xff]
  %v359 = vld [vmem:[%s0 + $0xac8] sm:$0xff]
  %v360 = vld [vmem:[%s0 + $0xad0] sm:$0xff]
  %v361 = vld [vmem:[%s0 + $0xad8] sm:$0xff]
  %v362 = vld [vmem:[%s0 + $0xae0] sm:$0xff]
  %v363 = vld [vmem:[%s0 + $0xae8] sm:$0xff]
  %v364 = vld [vmem:[%s0 + $0xaf0] sm:$0xff]
  %v365 = vld [vmem:[%s0 + $0xaf8] sm:$0xff]
  %v366 = vld [vmem:[%s0 + $0xb00] sm:$0xff]
  %v367 = vld [vmem:[%s0 + $0xb08] sm:$0xff]
  %v368 = vld [vmem:[%s0 + $0xb10] sm:$0xff]
  %v369 = vld [vmem:[%s0 + $0xb18] sm:$0xff]
  %v370 = vld [vmem:[%s0 + $0xb20] sm:$0xff]
  %v371 = vld [vmem:[%s0 + $0xb28] sm:$0xff]
  %v372 = vld [vmem:[%s0 + $0xb30] sm:$0xff]
  %v373 = vld [vmem:[%s0 + $0xb38] sm:$0xff]
  %v374 = vld [vmem:[%s0 + $0xb40] sm:$0xff]
  %v375 = vld [vmem:[%s0 + $0xb48] sm:$0xff]
  %v376 = vld [vmem:[%s0 + $0xb50] sm:$0xff]
  %v377 = vld [vmem:[%s0 + $0xb58] sm:$0xff]
  %v378 = vld [vmem:[%s0 + $0xb60] sm:$0xff]
  %v379 = vld [vmem:[%s0 + $0xb68] sm:$0xff]
  %v380 = vld [vmem:[%s0 + $0xb70] sm:$0xff]
  %v381 = vld [vmem:[%s0 + $0xb78] sm:$0xff]
  %v382 = vld [vmem:[%s0 + $0xb80] sm:$0xff]
  %v383 = vld [vmem:[%s0 + $0xb88] sm:$0xff]
  %v384 = vld [vmem:[%s0 + $0xb90] sm:$0xff]
  %v385 = vld [vmem:[%s0 + $0xb98] sm:$0xff]
  %v386 = vld [vmem:[%s0 + $0xba0] sm:$0xff]
  %v387 = vld [vmem:[%s0 + $0xba8] sm:$0xff]
  %v388 = vld [vmem:[%s0 + $0xbb0] sm:$0xff]
  %v389 = vld [vmem:[%s0 + $0xbb8] sm:$0xff]
  %v390 = vld [vmem:[%s0 + $0xbc0] sm:$0xff]
  %v391 = vld [vmem:[%s0 + $0xbc8] sm:$0xff]
  %v392 = vld [vmem:[%s0 + $0xbd0] sm:$0xff]
  %v393 = vld [vmem:[%s0 + $0xbd8] sm:$0xff]
  %v394 = vld [vmem:[%s0 + $0xbe0] sm:$0xff]
  %v395 = vld [vmem:[%s0 + $0xbe8] sm:$0xff]
  %v396 = vld [vmem:[%s0 + $0xbf0] sm:$0xff]
  %v397 = vld [vmem:[%s0 + $0xbf8] sm:$0xff]
  %v398 = vld [vmem:[%s1] sm:$0xff]
  %v399 = vld [vmem:[%s1 + $0x8] sm:$0xff]
  %v400 = vld [vmem:[%s1 + $0x10] sm:$0xff]
  %v401 = vld [vmem:[%s1 + $0x18] sm:$0xff]
  %v402 = vld [vmem:[%s1 + $0x20] sm:$0xff]
  %v403 = vld [vmem:[%s1 + $0x28] sm:$0xff]
  %v404 = vld [vmem:[%s1 + $0x30] sm:$0xff]
  %v405 = vld [vmem:[%s1 + $0x38] sm:$0xff]
  %v406 = vld [vmem:[%s1 + $0x40] sm:$0xff]
  %v407 = vld [vmem:[%s1 + $0x48] sm:$0xff]
  %v408 = vld [vmem:[%s1 + $0x50] sm:$0xff]
  %v409 = vld [vmem:[%s1 + $0x58] sm:$0xff]
  %v410 = vld [vmem:[%s1 + $0x60] sm:$0xff]
  %v411 = vld [vmem:[%s1 + $0x68] sm:$0xff]
  %v412 = vld [vmem:[%s1 + $0x70] sm:$0xff]
  %v413 = vld [vmem:[%s1 + $0x78] sm:$0xff]
  %v414 = vld [vmem:[%s1 + $0x80] sm:$0xff]
  %v415 = vld [vmem:[%s1 + $0x88] sm:$0xff]
  %v416 = vld [vmem:[%s1 + $0x90] sm:$0xff]
  %v417 = vld [vmem:[%s1 + $0x98] sm:$0xff]
  %v418 = vld [vmem:[%s1 + $0xa0] sm:$0xff]
  %v419 = vld [vmem:[%s1 + $0xa8] sm:$0xff]
  %v420 = vld [vmem:[%s1 + $0xb0] sm:$0xff]
  %v421 = vld [vmem:[%s1 + $0xb8] sm:$0xff]
  %v422 = vld [vmem:[%s1 + $0xc0] sm:$0xff]
  %v423 = vld [vmem:[%s1 + $0xc8] sm:$0xff]
  %v424 = vld [vmem:[%s1 + $0xd0] sm:$0xff]
  %v425 = vld [vmem:[%s1 + $0xd8] sm:$0xff]
  %v426 = vld [vmem:[%s1 + $0xe0] sm:$0xff]
  %v427 = vld [vmem:[%s1 + $0xe8] sm:$0xff]
  %v428 = vld [vmem:[%s1 + $0xf0] sm:$0xff]
  %v429 = vld [vmem:[%s1 + $0xf8] sm:$0xff]
  %v430 = vld [vmem:[%s1 + $0x100] sm:$0xff]
  %v431 = vld [vmem:[%s1 + $0x108] sm:$0xff]
  %v432 = vld [vmem:[%s1 + $0x110] sm:$0xff]
  %v433 = vld [vmem:[%s1 + $0x118] sm:$0xff]
  %v434 = vld [vmem:[%s2] sm:$0x1]
  %v436 = vlaneseq
  %v437 = vshrl.u32 %v436, 7
  %v438 = vsub.s32 0, %v437
  %v439 = vrot.slane %v434, %v438
  %vm441 = vcmask 261120
  %v443 = vsel %vm441, %v16, 0
  %v446 = vsel %vm441, %v19, 0
  %v449 = vsel %vm441, %v22, 0
  %v452 = vsel %vm441, %v25, 0
  %v455 = vsel %vm441, %v28, 0
  %v458 = vsel %vm441, %v31, 0
  %v461 = vsel %vm441, %v34, 0
  %v464 = vsel %vm441, %v37, 0
  %v467 = vsel %vm441, %v40, 0
  %v470 = vsel %vm441, %v43, 0
  %v473 = vsel %vm441, %v46, 0
  %v476 = vsel %vm441, %v49, 0
  %v479 = vsel %vm441, %v52, 0
  %v482 = vsel %vm441, %v55, 0
  %v485 = vsel %vm441, %v58, 0
  %v488 = vsel %vm441, %v61, 0
  %v491 = vsel %vm441, %v64, 0
  %v494 = vsel %vm441, %v67, 0
  %v497 = vsel %vm441, %v70, 0
  %v500 = vsel %vm441, %v73, 0
  %v503 = vsel %vm441, %v76, 0
  %v506 = vsel %vm441, %v79, 0
  %v509 = vsel %vm441, %v82, 0
  %v512 = vsel %vm441, %v85, 0
  %v515 = vsel %vm441, %v88, 0
  %v518 = vsel %vm441, %v91, 0
  %v521 = vsel %vm441, %v94, 0
  %v524 = vsel %vm441, %v97, 0
  %v527 = vsel %vm441, %v100, 0
  %v530 = vsel %vm441, %v103, 0
  %v533 = vsel %vm441, %v106, 0
  %v536 = vsel %vm441, %v109, 0
  %v539 = vsel %vm441, %v112, 0
  %v542 = vsel %vm441, %v115, 0
  %v545 = vsel %vm441, %v118, 0
  %v548 = vsel %vm441, %v121, 0
  %v551 = vsel %vm441, %v124, 0
  %v554 = vsel %vm441, %v127, 0
  %v557 = vsel %vm441, %v130, 0
  %v560 = vsel %vm441, %v133, 0
  %v563 = vsel %vm441, %v136, 0
  %v566 = vsel %vm441, %v139, 0
  %v569 = vsel %vm441, %v142, 0
  %v572 = vsel %vm441, %v145, 0
  %v575 = vsel %vm441, %v148, 0
  %v578 = vsel %vm441, %v151, 0
  %v581 = vsel %vm441, %v154, 0
  %v584 = vsel %vm441, %v157, 0
  %v587 = vsel %vm441, %v160, 0
  %v590 = vsel %vm441, %v163, 0
  %v593 = vsel %vm441, %v166, 0
  %v596 = vsel %vm441, %v169, 0
  %v599 = vsel %vm441, %v172, 0
  %v602 = vsel %vm441, %v175, 0
  %v605 = vsel %vm441, %v178, 0
  %v608 = vsel %vm441, %v181, 0
  %v611 = vsel %vm441, %v184, 0
  %v614 = vsel %vm441, %v187, 0
  %v617 = vsel %vm441, %v190, 0
  %v620 = vsel %vm441, %v193, 0
  %v623 = vsel %vm441, %v196, 0
  %v626 = vsel %vm441, %v199, 0
  %v629 = vsel %vm441, %v202, 0
  %v632 = vsel %vm441, %v205, 0
  %v635 = vsel %vm441, %v208, 0
  %v638 = vsel %vm441, %v211, 0
  %v641 = vsel %vm441, %v214, 0
  %v644 = vsel %vm441, %v217, 0
  %v647 = vsel %vm441, %v220, 0
  %v650 = vsel %vm441, %v223, 0
  %v653 = vsel %vm441, %v226, 0
  %v656 = vsel %vm441, %v229, 0
  %v659 = vsel %vm441, %v232, 0
  %v662 = vsel %vm441, %v235, 0
  %v665 = vsel %vm441, %v238, 0
  %v668 = vsel %vm441, %v241, 0
  %v671 = vsel %vm441, %v244, 0
  %v674 = vsel %vm441, %v247, 0
  %v677 = vsel %vm441, %v250, 0
  %v680 = vsel %vm441, %v253, 0
  %v683 = vsel %vm441, %v256, 0
  %v686 = vsel %vm441, %v259, 0
  %v689 = vsel %vm441, %v262, 0
  %v692 = vsel %vm441, %v265, 0
  %v695 = vsel %vm441, %v268, 0
  %v698 = vsel %vm441, %v271, 0
  %v701 = vsel %vm441, %v274, 0
  %v704 = vsel %vm441, %v277, 0
  %v707 = vsel %vm441, %v280, 0
  %v710 = vsel %vm441, %v283, 0
  %v713 = vsel %vm441, %v286, 0
  %v716 = vsel %vm441, %v289, 0
  %v719 = vsel %vm441, %v292, 0
  %v722 = vsel %vm441, %v295, 0
  %v725 = vsel %vm441, %v298, 0
  %v728 = vsel %vm441, %v301, 0
  %v731 = vsel %vm441, %v304, 0
  %v734 = vsel %vm441, %v307, 0
  %v737 = vsel %vm441, %v310, 0
  %v740 = vsel %vm441, %v313, 0
  %v743 = vsel %vm441, %v316, 0
  %v746 = vsel %vm441, %v319, 0
  %v749 = vsel %vm441, %v322, 0
  %v752 = vsel %vm441, %v325, 0
  %v755 = vsel %vm441, %v328, 0
  %v758 = vsel %vm441, %v331, 0
  %v761 = vsel %vm441, %v334, 0
  %v764 = vsel %vm441, %v337, 0
  %v767 = vsel %vm441, %v340, 0
  %v770 = vsel %vm441, %v343, 0
  %v773 = vsel %vm441, %v346, 0
  %v776 = vsel %vm441, %v349, 0
  %v779 = vsel %vm441, %v352, 0
  %v782 = vsel %vm441, %v355, 0
  %v785 = vsel %vm441, %v358, 0
  %v788 = vsel %vm441, %v361, 0
  %v791 = vsel %vm441, %v364, 0
  %v794 = vsel %vm441, %v367, 0
  %v797 = vsel %vm441, %v370, 0
  %v800 = vsel %vm441, %v373, 0
  %v803 = vsel %vm441, %v376, 0
  %v806 = vsel %vm441, %v379, 0
  %v809 = vsel %vm441, %v382, 0
  %v812 = vsel %vm441, %v385, 0
  %v815 = vsel %vm441, %v388, 0
  %v818 = vsel %vm441, %v391, 0
  %v821 = vsel %vm441, %v394, 0
  %v824 = vsel %vm441, %v397, 0
  %826 = vmatprep.subr.mxu0 0.0
  %827 = vmatpush1.msra.mxu0 %v398
  %828 = vmatprep.subr.mxu0 0.0
  %829 = vmatpush1.msra.mxu0 %v399
  %830 = vmatprep.subr.mxu0 0.0
  %831 = vmatpush1.msra.mxu0 %v400
  %832 = vmatprep.subr.mxu0 0.0
  %833 = vmatpush1.msra.mxu0 %v401
  %834 = vmatprep.subr.mxu0 0.0
  %835 = vmatpush1.msra.mxu0 %v402
  %836 = vmatprep.subr.mxu0 0.0
  %837 = vmatpush1.msra.mxu0 %v403
  %838 = vmatprep.subr.mxu0 0.0
  %839 = vmatpush1.msra.mxu0 %v404
  %840 = vmatprep.subr.mxu0 0.0
  %841 = vmatpush1.msra.mxu0 %v405
  %842 = vmatprep.subr.mxu0 0.0
  %843 = vmatpush1.msra.mxu0 %v406
  %844 = vmatprep.subr.mxu0 0.0
  %845 = vmatpush1.msra.mxu0 %v407
  %846 = vmatprep.subr.mxu0 0.0
  %847 = vmatpush1.msra.mxu0 %v408
  %848 = vmatprep.subr.mxu0 0.0
  %849 = vmatpush1.msra.mxu0 %v409
  %850 = vmatprep.subr.mxu0 0.0
  %851 = vmatpush1.msra.mxu0 %v410
  %852 = vmatprep.subr.mxu0 0.0
  %853 = vmatpush1.msra.mxu0 %v411
  %854 = vmatprep.subr.mxu0 0.0
  %855 = vmatpush1.msra.mxu0 %v412
  %856 = vmatprep.subr.mxu0 0.0
  %857 = vmatpush1.msra.mxu0 %v413
  %858 = vmatprep.subr.mxu0 0.0
  %859 = vmatpush1.msra.mxu0 %v414
  %860 = vmatprep.subr.mxu0 0.0
  %861 = vmatpush1.msra.mxu0 %v415
  %862 = vmatprep.subr.mxu0 0.0
  %863 = vmatpush1.msra.mxu0 %v416
  %864 = vmatprep.subr.mxu0 0.0
  %865 = vmatpush1.msra.mxu0 %v417
  %866 = vmatprep.subr.mxu0 0.0
  %867 = vmatpush1.msra.mxu0 %v418
  %868 = vmatprep.subr.mxu0 0.0
  %869 = vmatpush1.msra.mxu0 %v419
  %870 = vmatprep.subr.mxu0 0.0
  %871 = vmatpush1.msra.mxu0 %v420
  %872 = vmatprep.subr.mxu0 0.0
  %873 = vmatpush1.msra.mxu0 %v421
  %874 = vmatprep.subr.mxu0 0.0
  %875 = vmatpush1.msra.mxu0 %v422
  %876 = vmatprep.subr.mxu0 0.0
  %877 = vmatpush1.msra.mxu0 %v423
  %878 = vmatprep.subr.mxu0 0.0
  %879 = vmatpush1.msra.mxu0 %v424
  %880 = vmatprep.subr.mxu0 0.0
  %881 = vmatpush1.msra.mxu0 %v425
  %882 = vmatprep.subr.mxu0 0.0
  %883 = vmatpush1.msra.mxu0 %v426
  %884 = vmatprep.subr.mxu0 0.0
  %885 = vmatpush1.msra.mxu0 %v427
  %886 = vmatprep.subr.mxu0 0.0
  %887 = vmatpush1.msra.mxu0 %v428
  %888 = vmatprep.subr.mxu0 0.0
  %889 = vmatpush1.msra.mxu0 %v429
  %890 = vmatprep.mubr.f32.mxu0 %v15
  %891 = vmatmul.mubr.f32.gmra.mrb[0].mxu0 %v14
  %v892 = vpop.f32.mrb[0].mxu0
  %v893 = vadd.f32 %v439, %v892
  %v894 = vpop.f32.mrb[0].mxu0
  %895 = vmatprep.mubr.f32.mxu0 %v18
  %896 = vmatmul.mubr.f32.gmra.mrb[0].mxu0 %v17
  %v897 = vpop.f32.mrb[0].mxu0
  %v898 = vadd.f32 %v439, %v897
  %v899 = vpop.f32.mrb[0].mxu0
  %900 = vmatprep.mubr.f32.mxu0 %v21
  %901 = vmatmul.mubr.f32.gmra.mrb[0].mxu0 %v20
  %v902 = vpop.f32.mrb[0].mxu0
  %v903 = vadd.f32 %v439, %v902
  %v904 = vpop.f32.mrb[0].mxu0
  %905 = vmatprep.mubr.f32.mxu0 %v24
  %906 = vmatmul.mubr.f32.gmra.mrb[0].mxu0 %v23
  %v907 = vpop.f32.mrb[0].mxu0
  %v908 = vadd.f32 %v439, %v907
  %v909 = vpop.f32.mrb[0].mxu0
  %910 = vmatprep.mubr.f32.mxu0 %v27
  %911 = vmatmul.mubr.f32.gmra.mrb[0].mxu0 %v26
  %v912 = vpop.f32.mrb[0].mxu0
  %v913 = vadd.f32 %v439, %v912
  %v914 = vpop.f32.mrb[0].mxu0
  %915 = vmatprep.mubr.f32.mxu0 %v30
  %916 = vmatmul.mubr.f32.gmra.mrb[0].mxu0 %v29
  %v917 = vpop.f32.mrb[0].mxu0
  %v918 = vadd.f32 %v439, %v917
  %v919 = vpop.f32.mrb[0].mxu0
  %920 = vmatprep.mubr.f32.mxu0 %v33
  %921 = vmatmul.mubr.f32.gmra.mrb[0].mxu0 %v32
  %v922 = vpop.f32.mrb[0].mxu0
  %v923 = vadd.f32 %v439, %v922
  %v924 = vpop.f32.mrb[0].mxu0
  %925 = vmatprep.mubr.f32.mxu0 %v36
  %926 = vmatmul.mubr.f32.gmra.mrb[0].mxu0 %v35
  %v927 = vpop.f32.mrb[0].mxu0
  %v928 = vadd.f32 %v439, %v927
  %v929 = vpop.f32.mrb[0].mxu0
  %930 = vmatprep.mubr.f32.mxu0 %v39
  %931 = vmatmul.mubr.f32.gmra.mrb[0].mxu0 %v38
  %v932 = vpop.f32.mrb[0].mxu0
  %v933 = vadd.f32 %v439, %v932
  %v934 = vpop.f32.mrb[0].mxu0
  %935 = vmatprep.mubr.f32.mxu0 %v42
  %936 = vmatmul.mubr.f32.gmra.mrb[0].mxu0 %v41
  %v937 = vpop.f32.mrb[0].mxu0
  %v938 = vadd.f32 %v439, %v937
  %v939 = vpop.f32.mrb[0].mxu0
  %940 = vmatprep.mubr.f32.mxu0 %v45
  %941 = vmatmul.mubr.f32.gmra.mrb[0].mxu0 %v44
  %v942 = vpop.f32.mrb[0].mxu0
  %v943 = vadd.f32 %v439, %v942
  %v944 = vpop.f32.mrb[0].mxu0
  %945 = vmatprep.mubr.f32.mxu0 %v48
  %946 = vmatmul.mubr.f32.gmra.mrb[0].mxu0 %v47
  %v947 = vpop.f32.mrb[0].mxu0
  %v948 = vadd.f32 %v439, %v947
  %v949 = vpop.f32.mrb[0].mxu0
  %950 = vmatprep.mubr.f32.mxu0 %v51
  %951 = vmatmul.mubr.f32.gmra.mrb[0].mxu0 %v50
  %v952 = vpop.f32.mrb[0].mxu0
  %v953 = vadd.f32 %v439, %v952
  %v954 = vpop.f32.mrb[0].mxu0
  %955 = vmatprep.mubr.f32.mxu0 %v54
  %956 = vmatmul.mubr.f32.gmra.mrb[0].mxu0 %v53
  %v957 = vpop.f32.mrb[0].mxu0
  %v958 = vadd.f32 %v439, %v957
  %v959 = vpop.f32.mrb[0].mxu0
  %960 = vmatprep.mubr.f32.mxu0 %v57
  %961 = vmatmul.mubr.f32.gmra.mrb[0].mxu0 %v56
  %v962 = vpop.f32.mrb[0].mxu0
  %v963 = vadd.f32 %v439, %v962
  %v964 = vpop.f32.mrb[0].mxu0
  %965 = vmatprep.mubr.f32.mxu0 %v60
  %966 = vmatmul.mubr.f32.gmra.mrb[0].mxu0 %v59
  %v967 = vpop.f32.mrb[0].mxu0
  %v968 = vadd.f32 %v439, %v967
  %v969 = vpop.f32.mrb[0].mxu0
  %970 = vmatprep.mubr.f32.mxu0 %v63
  %971 = vmatmul.mubr.f32.gmra.mrb[0].mxu0 %v62
  %v972 = vpop.f32.mrb[0].mxu0
  %v973 = vadd.f32 %v439, %v972
  %v974 = vpop.f32.mrb[0].mxu0
  %975 = vmatprep.mubr.f32.mxu0 %v66
  %976 = vmatmul.mubr.f32.gmra.mrb[0].mxu0 %v65
  %v977 = vpop.f32.mrb[0].mxu0
  %v978 = vadd.f32 %v439, %v977
  %v979 = vpop.f32.mrb[0].mxu0
  %980 = vmatprep.mubr.f32.mxu0 %v69
  %981 = vmatmul.mubr.f32.gmra.mrb[0].mxu0 %v68
  %v982 = vpop.f32.mrb[0].mxu0
  %v983 = vadd.f32 %v439, %v982
  %v984 = vpop.f32.mrb[0].mxu0
  %985 = vmatprep.mubr.f32.mxu0 %v72
  %986 = vmatmul.mubr.f32.gmra.mrb[0].mxu0 %v71
  %v987 = vpop.f32.mrb[0].mxu0
  %v988 = vadd.f32 %v439, %v987
  %v989 = vpop.f32.mrb[0].mxu0
  %990 = vmatprep.mubr.f32.mxu0 %v75
  %991 = vmatmul.mubr.f32.gmra.mrb[0].mxu0 %v74
  %v992 = vpop.f32.mrb[0].mxu0
  %v993 = vadd.f32 %v439, %v992
  %v994 = vpop.f32.mrb[0].mxu0
  %995 = vmatprep.mubr.f32.mxu0 %v78
  %996 = vmatmul.mubr.f32.gmra.mrb[0].mxu0 %v77
  %v997 = vpop.f32.mrb[0].mxu0
  %v998 = vadd.f32 %v439, %v997
  %v999 = vpop.f32.mrb[0].mxu0
  %1000 = vmatprep.mubr.f32.mxu0 %v81
  %1001 = vmatmul.mubr.f32.gmra.mrb[0].mxu0 %v80
  %v1002 = vpop.f32.mrb[0].mxu0
  %v1003 = vadd.f32 %v439, %v1002
  %v1004 = vpop.f32.mrb[0].mxu0
  %1005 = vmatprep.mubr.f32.mxu0 %v84
  %1006 = vmatmul.mubr.f32.gmra.mrb[0].mxu0 %v83
  %v1007 = vpop.f32.mrb[0].mxu0
  %v1008 = vadd.f32 %v439, %v1007
  %v1009 = vpop.f32.mrb[0].mxu0
  %1010 = vmatprep.mubr.f32.mxu0 %v87
  %1011 = vmatmul.mubr.f32.gmra.mrb[0].mxu0 %v86
  %v1012 = vpop.f32.mrb[0].mxu0
  %v1013 = vadd.f32 %v439, %v1012
  %v1014 = vpop.f32.mrb[0].mxu0
  %1015 = vmatprep.mubr.f32.mxu0 %v90
  %1016 = vmatmul.mubr.f32.gmra.mrb[0].mxu0 %v89
  %v1017 = vpop.f32.mrb[0].mxu0
  %v1018 = vadd.f32 %v439, %v1017
  %v1019 = vpop.f32.mrb[0].mxu0
  %1020 = vmatprep.mubr.f32.mxu0 %v93
  %1021 = vmatmul.mubr.f32.gmra.mrb[0].mxu0 %v92
  %v1022 = vpop.f32.mrb[0].mxu0
  %v1023 = vadd.f32 %v439, %v1022
  %v1024 = vpop.f32.mrb[0].mxu0
  %1025 = vmatprep.mubr.f32.mxu0 %v96
  %1026 = vmatmul.mubr.f32.gmra.mrb[0].mxu0 %v95
  %v1027 = vpop.f32.mrb[0].mxu0
  %v1028 = vadd.f32 %v439, %v1027
  %v1029 = vpop.f32.mrb[0].mxu0
  %1030 = vmatprep.mubr.f32.mxu0 %v99
  %1031 = vmatmul.mubr.f32.gmra.mrb[0].mxu0 %v98
  %v1032 = vpop.f32.mrb[0].mxu0
  %v1033 = vadd.f32 %v439, %v1032
  %v1034 = vpop.f32.mrb[0].mxu0
  %1035 = vmatprep.mubr.f32.mxu0 %v102
  %1036 = vmatmul.mubr.f32.gmra.mrb[0].mxu0 %v101
  %v1037 = vpop.f32.mrb[0].mxu0
  %v1038 = vadd.f32 %v439, %v1037
  %v1039 = vpop.f32.mrb[0].mxu0
  %1040 = vmatprep.mubr.f32.mxu0 %v105
  %1041 = vmatmul.mubr.f32.gmra.mrb[0].mxu0 %v104
  %v1042 = vpop.f32.mrb[0].mxu0
  %v1043 = vadd.f32 %v439, %v1042
  %v1044 = vpop.f32.mrb[0].mxu0
  %1045 = vmatprep.mubr.f32.mxu0 %v108
  %1046 = vmatmul.mubr.f32.gmra.mrb[0].mxu0 %v107
  %v1047 = vpop.f32.mrb[0].mxu0
  %v1048 = vadd.f32 %v439, %v1047
  %v1049 = vpop.f32.mrb[0].mxu0
  %1050 = vmatprep.mubr.f32.mxu0 %v111
  %1051 = vmatmul.mubr.f32.gmra.mrb[0].mxu0 %v110
  %v1052 = vpop.f32.mrb[0].mxu0
  %v1053 = vadd.f32 %v439, %v1052
  %v1054 = vpop.f32.mrb[0].mxu0
  %1055 = vmatprep.mubr.f32.mxu0 %v114
  %1056 = vmatmul.mubr.f32.gmra.mrb[0].mxu0 %v113
  %v1057 = vpop.f32.mrb[0].mxu0
  %v1058 = vadd.f32 %v439, %v1057
  %v1059 = vpop.f32.mrb[0].mxu0
  %1060 = vmatprep.mubr.f32.mxu0 %v117
  %1061 = vmatmul.mubr.f32.gmra.mrb[0].mxu0 %v116
  %v1062 = vpop.f32.mrb[0].mxu0
  %v1063 = vadd.f32 %v439, %v1062
  %v1064 = vpop.f32.mrb[0].mxu0
  %1065 = vmatprep.mubr.f32.mxu0 %v120
  %1066 = vmatmul.mubr.f32.gmra.mrb[0].mxu0 %v119
  %v1067 = vpop.f32.mrb[0].mxu0
  %v1068 = vadd.f32 %v439, %v1067
  %v1069 = vpop.f32.mrb[0].mxu0
  %1070 = vmatprep.mubr.f32.mxu0 %v123
  %1071 = vmatmul.mubr.f32.gmra.mrb[0].mxu0 %v122
  %v1072 = vpop.f32.mrb[0].mxu0
  %v1073 = vadd.f32 %v439, %v1072
  %v1074 = vpop.f32.mrb[0].mxu0
  %1075 = vmatprep.mubr.f32.mxu0 %v126
  %1076 = vmatmul.mubr.f32.gmra.mrb[0].mxu0 %v125
  %v1077 = vpop.f32.mrb[0].mxu0
  %v1078 = vadd.f32 %v439, %v1077
  %v1079 = vpop.f32.mrb[0].mxu0
  %1080 = vmatprep.mubr.f32.mxu0 %v129
  %1081 = vmatmul.mubr.f32.gmra.mrb[0].mxu0 %v128
  %v1082 = vpop.f32.mrb[0].mxu0
  %v1083 = vadd.f32 %v439, %v1082
  %v1084 = vpop.f32.mrb[0].mxu0
  %1085 = vmatprep.mubr.f32.mxu0 %v132
  %1086 = vmatmul.mubr.f32.gmra.mrb[0].mxu0 %v131
  %v1087 = vpop.f32.mrb[0].mxu0
  %v1088 = vadd.f32 %v439, %v1087
  %v1089 = vpop.f32.mrb[0].mxu0
  %1090 = vmatprep.mubr.f32.mxu0 %v135
  %1091 = vmatmul.mubr.f32.gmra.mrb[0].mxu0 %v134
  %v1092 = vpop.f32.mrb[0].mxu0
  %v1093 = vadd.f32 %v439, %v1092
  %v1094 = vpop.f32.mrb[0].mxu0
  %1095 = vmatprep.mubr.f32.mxu0 %v138
  %1096 = vmatmul.mubr.f32.gmra.mrb[0].mxu0 %v137
  %v1097 = vpop.f32.mrb[0].mxu0
  %v1098 = vadd.f32 %v439, %v1097
  %v1099 = vpop.f32.mrb[0].mxu0
  %1100 = vmatprep.mubr.f32.mxu0 %v141
  %1101 = vmatmul.mubr.f32.gmra.mrb[0].mxu0 %v140
  %v1102 = vpop.f32.mrb[0].mxu0
  %v1103 = vadd.f32 %v439, %v1102
  %v1104 = vpop.f32.mrb[0].mxu0
  %1105 = vmatprep.mubr.f32.mxu0 %v144
  %1106 = vmatmul.mubr.f32.gmra.mrb[0].mxu0 %v143
  %v1107 = vpop.f32.mrb[0].mxu0
  %v1108 = vadd.f32 %v439, %v1107
  %v1109 = vpop.f32.mrb[0].mxu0
  %1110 = vmatprep.mubr.f32.mxu0 %v147
  %1111 = vmatmul.mubr.f32.gmra.mrb[0].mxu0 %v146
  %v1112 = vpop.f32.mrb[0].mxu0
  %v1113 = vadd.f32 %v439, %v1112
  %v1114 = vpop.f32.mrb[0].mxu0
  %1115 = vmatprep.mubr.f32.mxu0 %v150
  %1116 = vmatmul.mubr.f32.gmra.mrb[0].mxu0 %v149
  %v1117 = vpop.f32.mrb[0].mxu0
  %v1118 = vadd.f32 %v439, %v1117
  %v1119 = vpop.f32.mrb[0].mxu0
  %1120 = vmatprep.mubr.f32.mxu0 %v153
  %1121 = vmatmul.mubr.f32.gmra.mrb[0].mxu0 %v152
  %v1122 = vpop.f32.mrb[0].mxu0
  %v1123 = vadd.f32 %v439, %v1122
  %v1124 = vpop.f32.mrb[0].mxu0
  %1125 = vmatprep.mubr.f32.mxu0 %v156
  %1126 = vmatmul.mubr.f32.gmra.mrb[0].mxu0 %v155
  %v1127 = vpop.f32.mrb[0].mxu0
  %v1128 = vadd.f32 %v439, %v1127
  %v1129 = vpop.f32.mrb[0].mxu0
  %1130 = vmatprep.mubr.f32.mxu0 %v159
  %1131 = vmatmul.mubr.f32.gmra.mrb[0].mxu0 %v158
  %v1132 = vpop.f32.mrb[0].mxu0
  %v1133 = vadd.f32 %v439, %v1132
  %v1134 = vpop.f32.mrb[0].mxu0
  %1135 = vmatprep.mubr.f32.mxu0 %v162
  %1136 = vmatmul.mubr.f32.gmra.mrb[0].mxu0 %v161
  %v1137 = vpop.f32.mrb[0].mxu0
  %v1138 = vadd.f32 %v439, %v1137
  %v1139 = vpop.f32.mrb[0].mxu0
  %1140 = vmatprep.mubr.f32.mxu0 %v165
  %1141 = vmatmul.mubr.f32.gmra.mrb[0].mxu0 %v164
  %v1142 = vpop.f32.mrb[0].mxu0
  %v1143 = vadd.f32 %v439, %v1142
  %v1144 = vpop.f32.mrb[0].mxu0
  %1145 = vmatprep.mubr.f32.mxu0 %v168
  %1146 = vmatmul.mubr.f32.gmra.mrb[0].mxu0 %v167
  %v1147 = vpop.f32.mrb[0].mxu0
  %v1148 = vadd.f32 %v439, %v1147
  %v1149 = vpop.f32.mrb[0].mxu0
  %1150 = vmatprep.mubr.f32.mxu0 %v171
  %1151 = vmatmul.mubr.f32.gmra.mrb[0].mxu0 %v170
  %v1152 = vpop.f32.mrb[0].mxu0
  %v1153 = vadd.f32 %v439, %v1152
  %v1154 = vpop.f32.mrb[0].mxu0
  %1155 = vmatprep.mubr.f32.mxu0 %v174
  %1156 = vmatmul.mubr.f32.gmra.mrb[0].mxu0 %v173
  %v1157 = vpop.f32.mrb[0].mxu0
  %v1158 = vadd.f32 %v439, %v1157
  %v1159 = vpop.f32.mrb[0].mxu0
  %1160 = vmatprep.mubr.f32.mxu0 %v177
  %1161 = vmatmul.mubr.f32.gmra.mrb[0].mxu0 %v176
  %v1162 = vpop.f32.mrb[0].mxu0
  %v1163 = vadd.f32 %v439, %v1162
  %v1164 = vpop.f32.mrb[0].mxu0
  %1165 = vmatprep.mubr.f32.mxu0 %v180
  %1166 = vmatmul.mubr.f32.gmra.mrb[0].mxu0 %v179
  %v1167 = vpop.f32.mrb[0].mxu0
  %v1168 = vadd.f32 %v439, %v1167
  %v1169 = vpop.f32.mrb[0].mxu0
  %1170 = vmatprep.mubr.f32.mxu0 %v183
  %1171 = vmatmul.mubr.f32.gmra.mrb[0].mxu0 %v182
  %v1172 = vpop.f32.mrb[0].mxu0
  %v1173 = vadd.f32 %v439, %v1172
  %v1174 = vpop.f32.mrb[0].mxu0
  %1175 = vmatprep.mubr.f32.mxu0 %v186
  %1176 = vmatmul.mubr.f32.gmra.mrb[0].mxu0 %v185
  %v1177 = vpop.f32.mrb[0].mxu0
  %v1178 = vadd.f32 %v439, %v1177
  %v1179 = vpop.f32.mrb[0].mxu0
  %1180 = vmatprep.mubr.f32.mxu0 %v189
  %1181 = vmatmul.mubr.f32.gmra.mrb[0].mxu0 %v188
  %v1182 = vpop.f32.mrb[0].mxu0
  %v1183 = vadd.f32 %v439, %v1182
  %v1184 = vpop.f32.mrb[0].mxu0
  %1185 = vmatprep.mubr.f32.mxu0 %v192
  %1186 = vmatmul.mubr.f32.gmra.mrb[0].mxu0 %v191
  %v1187 = vpop.f32.mrb[0].mxu0
  %v1188 = vadd.f32 %v439, %v1187
  %v1189 = vpop.f32.mrb[0].mxu0
  %1190 = vmatprep.mubr.f32.mxu0 %v195
  %1191 = vmatmul.mubr.f32.gmra.mrb[0].mxu0 %v194
  %v1192 = vpop.f32.mrb[0].mxu0
  %v1193 = vadd.f32 %v439, %v1192
  %v1194 = vpop.f32.mrb[0].mxu0
  %1195 = vmatprep.mubr.f32.mxu0 %v198
  %1196 = vmatmul.mubr.f32.gmra.mrb[0].mxu0 %v197
  %v1197 = vpop.f32.mrb[0].mxu0
  %v1198 = vadd.f32 %v439, %v1197
  %v1199 = vpop.f32.mrb[0].mxu0
  %1200 = vmatprep.mubr.f32.mxu0 %v201
  %1201 = vmatmul.mubr.f32.gmra.mrb[0].mxu0 %v200
  %v1202 = vpop.f32.mrb[0].mxu0
  %v1203 = vadd.f32 %v439, %v1202
  %v1204 = vpop.f32.mrb[0].mxu0
  %1205 = vmatprep.mubr.f32.mxu0 %v204
  %1206 = vmatmul.mubr.f32.gmra.mrb[0].mxu0 %v203
  %v1207 = vpop.f32.mrb[0].mxu0
  %v1208 = vadd.f32 %v439, %v1207
  %v1209 = vpop.f32.mrb[0].mxu0
  %1210 = vmatprep.mubr.f32.mxu0 %v207
  %1211 = vmatmul.mubr.f32.gmra.mrb[0].mxu0 %v206
  %v1212 = vpop.f32.mrb[0].mxu0
  %v1213 = vadd.f32 %v439, %v1212
  %v1214 = vpop.f32.mrb[0].mxu0
  %1215 = vmatprep.mubr.f32.mxu0 %v210
  %1216 = vmatmul.mubr.f32.gmra.mrb[0].mxu0 %v209
  %v1217 = vpop.f32.mrb[0].mxu0
  %v1218 = vadd.f32 %v439, %v1217
  %v1219 = vpop.f32.mrb[0].mxu0
  %1220 = vmatprep.mubr.f32.mxu0 %v213
  %1221 = vmatmul.mubr.f32.gmra.mrb[0].mxu0 %v212
  %v1222 = vpop.f32.mrb[0].mxu0
  %v1223 = vadd.f32 %v439, %v1222
  %v1224 = vpop.f32.mrb[0].mxu0
  %1225 = vmatprep.mubr.f32.mxu0 %v216
  %1226 = vmatmul.mubr.f32.gmra.mrb[0].mxu0 %v215
  %v1227 = vpop.f32.mrb[0].mxu0
  %v1228 = vadd.f32 %v439, %v1227
  %v1229 = vpop.f32.mrb[0].mxu0
  %1230 = vmatprep.mubr.f32.mxu0 %v219
  %1231 = vmatmul.mubr.f32.gmra.mrb[0].mxu0 %v218
  %v1232 = vpop.f32.mrb[0].mxu0
  %v1233 = vadd.f32 %v439, %v1232
  %v1234 = vpop.f32.mrb[0].mxu0
  %1235 = vmatprep.mubr.f32.mxu0 %v222
  %1236 = vmatmul.mubr.f32.gmra.mrb[0].mxu0 %v221
  %v1237 = vpop.f32.mrb[0].mxu0
  %v1238 = vadd.f32 %v439, %v1237
  %v1239 = vpop.f32.mrb[0].mxu0
  %1240 = vmatprep.mubr.f32.mxu0 %v225
  %1241 = vmatmul.mubr.f32.gmra.mrb[0].mxu0 %v224
  %v1242 = vpop.f32.mrb[0].mxu0
  %v1243 = vadd.f32 %v439, %v1242
  %v1244 = vpop.f32.mrb[0].mxu0
  %1245 = vmatprep.mubr.f32.mxu0 %v228
  %1246 = vmatmul.mubr.f32.gmra.mrb[0].mxu0 %v227
  %v1247 = vpop.f32.mrb[0].mxu0
  %v1248 = vadd.f32 %v439, %v1247
  %v1249 = vpop.f32.mrb[0].mxu0
  %1250 = vmatprep.mubr.f32.mxu0 %v231
  %1251 = vmatmul.mubr.f32.gmra.mrb[0].mxu0 %v230
  %v1252 = vpop.f32.mrb[0].mxu0
  %v1253 = vadd.f32 %v439, %v1252
  %v1254 = vpop.f32.mrb[0].mxu0
  %1255 = vmatprep.mubr.f32.mxu0 %v234
  %1256 = vmatmul.mubr.f32.gmra.mrb[0].mxu0 %v233
  %v1257 = vpop.f32.mrb[0].mxu0
  %v1258 = vadd.f32 %v439, %v1257
  %v1259 = vpop.f32.mrb[0].mxu0
  %1260 = vmatprep.mubr.f32.mxu0 %v237
  %1261 = vmatmul.mubr.f32.gmra.mrb[0].mxu0 %v236
  %v1262 = vpop.f32.mrb[0].mxu0
  %v1263 = vadd.f32 %v439, %v1262
  %v1264 = vpop.f32.mrb[0].mxu0
  %1265 = vmatprep.mubr.f32.mxu0 %v240
  %1266 = vmatmul.mubr.f32.gmra.mrb[0].mxu0 %v239
  %v1267 = vpop.f32.mrb[0].mxu0
  %v1268 = vadd.f32 %v439, %v1267
  %v1269 = vpop.f32.mrb[0].mxu0
  %1270 = vmatprep.mubr.f32.mxu0 %v243
  %1271 = vmatmul.mubr.f32.gmra.mrb[0].mxu0 %v242
  %v1272 = vpop.f32.mrb[0].mxu0
  %v1273 = vadd.f32 %v439, %v1272
  %v1274 = vpop.f32.mrb[0].mxu0
  %1275 = vmatprep.mubr.f32.mxu0 %v246
  %1276 = vmatmul.mubr.f32.gmra.mrb[0].mxu0 %v245
  %v1277 = vpop.f32.mrb[0].mxu0
  %v1278 = vadd.f32 %v439, %v1277
  %v1279 = vpop.f32.mrb[0].mxu0
  %1280 = vmatprep.mubr.f32.mxu0 %v249
  %1281 = vmatmul.mubr.f32.gmra.mrb[0].mxu0 %v248
  %v1282 = vpop.f32.mrb[0].mxu0
  %v1283 = vadd.f32 %v439, %v1282
  %v1284 = vpop.f32.mrb[0].mxu0
  %1285 = vmatprep.mubr.f32.mxu0 %v252
  %1286 = vmatmul.mubr.f32.gmra.mrb[0].mxu0 %v251
  %v1287 = vpop.f32.mrb[0].mxu0
  %v1288 = vadd.f32 %v439, %v1287
  %v1289 = vpop.f32.mrb[0].mxu0
  %1290 = vmatprep.mubr.f32.mxu0 %v255
  %1291 = vmatmul.mubr.f32.gmra.mrb[0].mxu0 %v254
  %v1292 = vpop.f32.mrb[0].mxu0
  %v1293 = vadd.f32 %v439, %v1292
  %v1294 = vpop.f32.mrb[0].mxu0
  %1295 = vmatprep.mubr.f32.mxu0 %v258
  %1296 = vmatmul.mubr.f32.gmra.mrb[0].mxu0 %v257
  %v1297 = vpop.f32.mrb[0].mxu0
  %v1298 = vadd.f32 %v439, %v1297
  %v1299 = vpop.f32.mrb[0].mxu0
  %1300 = vmatprep.mubr.f32.mxu0 %v261
  %1301 = vmatmul.mubr.f32.gmra.mrb[0].mxu0 %v260
  %v1302 = vpop.f32.mrb[0].mxu0
  %v1303 = vadd.f32 %v439, %v1302
  %v1304 = vpop.f32.mrb[0].mxu0
  %1305 = vmatprep.mubr.f32.mxu0 %v264
  %1306 = vmatmul.mubr.f32.gmra.mrb[0].mxu0 %v263
  %v1307 = vpop.f32.mrb[0].mxu0
  %v1308 = vadd.f32 %v439, %v1307
  %v1309 = vpop.f32.mrb[0].mxu0
  %1310 = vmatprep.mubr.f32.mxu0 %v267
  %1311 = vmatmul.mubr.f32.gmra.mrb[0].mxu0 %v266
  %v1312 = vpop.f32.mrb[0].mxu0
  %v1313 = vadd.f32 %v439, %v1312
  %v1314 = vpop.f32.mrb[0].mxu0
  %1315 = vmatprep.mubr.f32.mxu0 %v270
  %1316 = vmatmul.mubr.f32.gmra.mrb[0].mxu0 %v269
  %v1317 = vpop.f32.mrb[0].mxu0
  %v1318 = vadd.f32 %v439, %v1317
  %v1319 = vpop.f32.mrb[0].mxu0
  %1320 = vmatprep.mubr.f32.mxu0 %v273
  %1321 = vmatmul.mubr.f32.gmra.mrb[0].mxu0 %v272
  %v1322 = vpop.f32.mrb[0].mxu0
  %v1323 = vadd.f32 %v439, %v1322
  %v1324 = vpop.f32.mrb[0].mxu0
  %1325 = vmatprep.mubr.f32.mxu0 %v276
  %1326 = vmatmul.mubr.f32.gmra.mrb[0].mxu0 %v275
  %v1327 = vpop.f32.mrb[0].mxu0
  %v1328 = vadd.f32 %v439, %v1327
  %v1329 = vpop.f32.mrb[0].mxu0
  %1330 = vmatprep.mubr.f32.mxu0 %v279
  %1331 = vmatmul.mubr.f32.gmra.mrb[0].mxu0 %v278
  %v1332 = vpop.f32.mrb[0].mxu0
  %v1333 = vadd.f32 %v439, %v1332
  %v1334 = vpop.f32.mrb[0].mxu0
  %1335 = vmatprep.mubr.f32.mxu0 %v282
  %1336 = vmatmul.mubr.f32.gmra.mrb[0].mxu0 %v281
  %v1337 = vpop.f32.mrb[0].mxu0
  %v1338 = vadd.f32 %v439, %v1337
  %v1339 = vpop.f32.mrb[0].mxu0
  %1340 = vmatprep.mubr.f32.mxu0 %v285
  %1341 = vmatmul.mubr.f32.gmra.mrb[0].mxu0 %v284
  %v1342 = vpop.f32.mrb[0].mxu0
  %v1343 = vadd.f32 %v439, %v1342
  %v1344 = vpop.f32.mrb[0].mxu0
  %1345 = vmatprep.mubr.f32.mxu0 %v288
  %1346 = vmatmul.mubr.f32.gmra.mrb[0].mxu0 %v287
  %v1347 = vpop.f32.mrb[0].mxu0
  %v1348 = vadd.f32 %v439, %v1347
  %v1349 = vpop.f32.mrb[0].mxu0
  %1350 = vmatprep.mubr.f32.mxu0 %v291
  %1351 = vmatmul.mubr.f32.gmra.mrb[0].mxu0 %v290
  %v1352 = vpop.f32.mrb[0].mxu0
  %v1353 = vadd.f32 %v439, %v1352
  %v1354 = vpop.f32.mrb[0].mxu0
  %1355 = vmatprep.mubr.f32.mxu0 %v294
  %1356 = vmatmul.mubr.f32.gmra.mrb[0].mxu0 %v293
  %v1357 = vpop.f32.mrb[0].mxu0
  %v1358 = vadd.f32 %v439, %v1357
  %v1359 = vpop.f32.mrb[0].mxu0
  %1360 = vmatprep.mubr.f32.mxu0 %v297
  %1361 = vmatmul.mubr.f32.gmra.mrb[0].mxu0 %v296
  %v1362 = vpop.f32.mrb[0].mxu0
  %v1363 = vadd.f32 %v439, %v1362
  %v1364 = vpop.f32.mrb[0].mxu0
  %1365 = vmatprep.mubr.f32.mxu0 %v300
  %1366 = vmatmul.mubr.f32.gmra.mrb[0].mxu0 %v299
  %v1367 = vpop.f32.mrb[0].mxu0
  %v1368 = vadd.f32 %v439, %v1367
  %v1369 = vpop.f32.mrb[0].mxu0
  %1370 = vmatprep.mubr.f32.mxu0 %v303
  %1371 = vmatmul.mubr.f32.gmra.mrb[0].mxu0 %v302
  %v1372 = vpop.f32.mrb[0].mxu0
  %v1373 = vadd.f32 %v439, %v1372
  %v1374 = vpop.f32.mrb[0].mxu0
  %1375 = vmatprep.mubr.f32.mxu0 %v306
  %1376 = vmatmul.mubr.f32.gmra.mrb[0].mxu0 %v305
  %v1377 = vpop.f32.mrb[0].mxu0
  %v1378 = vadd.f32 %v439, %v1377
  %v1379 = vpop.f32.mrb[0].mxu0
  %1380 = vmatprep.mubr.f32.mxu0 %v309
  %1381 = vmatmul.mubr.f32.gmra.mrb[0].mxu0 %v308
  %v1382 = vpop.f32.mrb[0].mxu0
  %v1383 = vadd.f32 %v439, %v1382
  %v1384 = vpop.f32.mrb[0].mxu0
  %1385 = vmatprep.mubr.f32.mxu0 %v312
  %1386 = vmatmul.mubr.f32.gmra.mrb[0].mxu0 %v311
  %v1387 = vpop.f32.mrb[0].mxu0
  %v1388 = vadd.f32 %v439, %v1387
  %v1389 = vpop.f32.mrb[0].mxu0
  %1390 = vmatprep.mubr.f32.mxu0 %v315
  %1391 = vmatmul.mubr.f32.gmra.mrb[0].mxu0 %v314
  %v1392 = vpop.f32.mrb[0].mxu0
  %v1393 = vadd.f32 %v439, %v1392
  %v1394 = vpop.f32.mrb[0].mxu0
  %1395 = vmatprep.mubr.f32.mxu0 %v318
  %1396 = vmatmul.mubr.f32.gmra.mrb[0].mxu0 %v317
  %v1397 = vpop.f32.mrb[0].mxu0
  %v1398 = vadd.f32 %v439, %v1397
  %v1399 = vpop.f32.mrb[0].mxu0
  %1400 = vmatprep.mubr.f32.mxu0 %v321
  %1401 = vmatmul.mubr.f32.gmra.mrb[0].mxu0 %v320
  %v1402 = vpop.f32.mrb[0].mxu0
  %v1403 = vadd.f32 %v439, %v1402
  %v1404 = vpop.f32.mrb[0].mxu0
  %1405 = vmatprep.mubr.f32.mxu0 %v324
  %1406 = vmatmul.mubr.f32.gmra.mrb[0].mxu0 %v323
  %v1407 = vpop.f32.mrb[0].mxu0
  %v1408 = vadd.f32 %v439, %v1407
  %v1409 = vpop.f32.mrb[0].mxu0
  %1410 = vmatprep.mubr.f32.mxu0 %v327
  %1411 = vmatmul.mubr.f32.gmra.mrb[0].mxu0 %v326
  %v1412 = vpop.f32.mrb[0].mxu0
  %v1413 = vadd.f32 %v439, %v1412
  %v1414 = vpop.f32.mrb[0].mxu0
  %1415 = vmatprep.mubr.f32.mxu0 %v330
  %1416 = vmatmul.mubr.f32.gmra.mrb[0].mxu0 %v329
  %v1417 = vpop.f32.mrb[0].mxu0
  %v1418 = vadd.f32 %v439, %v1417
  %v1419 = vpop.f32.mrb[0].mxu0
  %1420 = vmatprep.mubr.f32.mxu0 %v333
  %1421 = vmatmul.mubr.f32.gmra.mrb[0].mxu0 %v332
  %v1422 = vpop.f32.mrb[0].mxu0
  %v1423 = vadd.f32 %v439, %v1422
  %v1424 = vpop.f32.mrb[0].mxu0
  %1425 = vmatprep.mubr.f32.mxu0 %v336
  %1426 = vmatmul.mubr.f32.gmra.mrb[0].mxu0 %v335
  %v1427 = vpop.f32.mrb[0].mxu0
  %v1428 = vadd.f32 %v439, %v1427
  %v1429 = vpop.f32.mrb[0].mxu0
  %1430 = vmatprep.mubr.f32.mxu0 %v339
  %1431 = vmatmul.mubr.f32.gmra.mrb[0].mxu0 %v338
  %v1432 = vpop.f32.mrb[0].mxu0
  %v1433 = vadd.f32 %v439, %v1432
  %v1434 = vpop.f32.mrb[0].mxu0
  %1435 = vmatprep.mubr.f32.mxu0 %v342
  %1436 = vmatmul.mubr.f32.gmra.mrb[0].mxu0 %v341
  %v1437 = vpop.f32.mrb[0].mxu0
  %v1438 = vadd.f32 %v439, %v1437
  %v1439 = vpop.f32.mrb[0].mxu0
  %1440 = vmatprep.mubr.f32.mxu0 %v345
  %1441 = vmatmul.mubr.f32.gmra.mrb[0].mxu0 %v344
  %v1442 = vpop.f32.mrb[0].mxu0
  %v1443 = vadd.f32 %v439, %v1442
  %v1444 = vpop.f32.mrb[0].mxu0
  %1445 = vmatprep.mubr.f32.mxu0 %v348
  %1446 = vmatmul.mubr.f32.gmra.mrb[0].mxu0 %v347
  %v1447 = vpop.f32.mrb[0].mxu0
  %v1448 = vadd.f32 %v439, %v1447
  %v1449 = vpop.f32.mrb[0].mxu0
  %1450 = vmatprep.mubr.f32.mxu0 %v351
  %1451 = vmatmul.mubr.f32.gmra.mrb[0].mxu0 %v350
  %v1452 = vpop.f32.mrb[0].mxu0
  %v1453 = vadd.f32 %v439, %v1452
  %v1454 = vpop.f32.mrb[0].mxu0
  %1455 = vmatprep.mubr.f32.mxu0 %v354
  %1456 = vmatmul.mubr.f32.gmra.mrb[0].mxu0 %v353
  %v1457 = vpop.f32.mrb[0].mxu0
  %v1458 = vadd.f32 %v439, %v1457
  %v1459 = vpop.f32.mrb[0].mxu0
  %1460 = vmatprep.mubr.f32.mxu0 %v357
  %1461 = vmatmul.mubr.f32.gmra.mrb[0].mxu0 %v356
  %v1462 = vpop.f32.mrb[0].mxu0
  %v1463 = vadd.f32 %v439, %v1462
  %v1464 = vpop.f32.mrb[0].mxu0
  %1465 = vmatprep.mubr.f32.mxu0 %v360
  %1466 = vmatmul.mubr.f32.gmra.mrb[0].mxu0 %v359
  %v1467 = vpop.f32.mrb[0].mxu0
  %v1468 = vadd.f32 %v439, %v1467
  %v1469 = vpop.f32.mrb[0].mxu0
  %1470 = vmatprep.mubr.f32.mxu0 %v363
  %1471 = vmatmul.mubr.f32.gmra.mrb[0].mxu0 %v362
  %v1472 = vpop.f32.mrb[0].mxu0
  %v1473 = vadd.f32 %v439, %v1472
  %v1474 = vpop.f32.mrb[0].mxu0
  %1475 = vmatprep.mubr.f32.mxu0 %v366
  %1476 = vmatmul.mubr.f32.gmra.mrb[0].mxu0 %v365
  %v1477 = vpop.f32.mrb[0].mxu0
  %v1478 = vadd.f32 %v439, %v1477
  %v1479 = vpop.f32.mrb[0].mxu0
  %1480 = vmatprep.mubr.f32.mxu0 %v369
  %1481 = vmatmul.mubr.f32.gmra.mrb[0].mxu0 %v368
  %v1482 = vpop.f32.mrb[0].mxu0
  %v1483 = vadd.f32 %v439, %v1482
  %v1484 = vpop.f32.mrb[0].mxu0
  %1485 = vmatprep.mubr.f32.mxu0 %v372
  %1486 = vmatmul.mubr.f32.gmra.mrb[0].mxu0 %v371
  %v1487 = vpop.f32.mrb[0].mxu0
  %v1488 = vadd.f32 %v439, %v1487
  %v1489 = vpop.f32.mrb[0].mxu0
  %1490 = vmatprep.mubr.f32.mxu0 %v375
  %1491 = vmatmul.mubr.f32.gmra.mrb[0].mxu0 %v374
  %v1492 = vpop.f32.mrb[0].mxu0
  %v1493 = vadd.f32 %v439, %v1492
  %v1494 = vpop.f32.mrb[0].mxu0
  %1495 = vmatprep.mubr.f32.mxu0 %v378
  %1496 = vmatmul.mubr.f32.gmra.mrb[0].mxu0 %v377
  %v1497 = vpop.f32.mrb[0].mxu0
  %v1498 = vadd.f32 %v439, %v1497
  %v1499 = vpop.f32.mrb[0].mxu0
  %1500 = vmatprep.mubr.f32.mxu0 %v381
  %1501 = vmatmul.mubr.f32.gmra.mrb[0].mxu0 %v380
  %v1502 = vpop.f32.mrb[0].mxu0
  %v1503 = vadd.f32 %v439, %v1502
  %v1504 = vpop.f32.mrb[0].mxu0
  %1505 = vmatprep.mubr.f32.mxu0 %v384
  %1506 = vmatmul.mubr.f32.gmra.mrb[0].mxu0 %v383
  %v1507 = vpop.f32.mrb[0].mxu0
  %v1508 = vadd.f32 %v439, %v1507
  %v1509 = vpop.f32.mrb[0].mxu0
  %1510 = vmatprep.mubr.f32.mxu0 %v387
  %1511 = vmatmul.mubr.f32.gmra.mrb[0].mxu0 %v386
  %v1512 = vpop.f32.mrb[0].mxu0
  %v1513 = vadd.f32 %v439, %v1512
  %v1514 = vpop.f32.mrb[0].mxu0
  %1515 = vmatprep.mubr.f32.mxu0 %v390
  %1516 = vmatmul.mubr.f32.gmra.mrb[0].mxu0 %v389
  %v1517 = vpop.f32.mrb[0].mxu0
  %v1518 = vadd.f32 %v439, %v1517
  %v1519 = vpop.f32.mrb[0].mxu0
  %1520 = vmatprep.mubr.f32.mxu0 %v393
  %1521 = vmatmul.mubr.f32.gmra.mrb[0].mxu0 %v392
  %v1522 = vpop.f32.mrb[0].mxu0
  %v1523 = vadd.f32 %v439, %v1522
  %v1524 = vpop.f32.mrb[0].mxu0
  %1525 = vmatprep.mubr.f32.mxu0 %v396
  %1526 = vmatmul.mubr.f32.gmra.mrb[0].mxu0 %v395
  %v1527 = vpop.f32.mrb[0].mxu0
  %v1528 = vadd.f32 %v439, %v1527
  %v1529 = vpop.f32.mrb[0].mxu0
  %1530 = vdwg.mxu0
  %1531 = vmatprep.subr.mxu0 0.0
  %1532 = vmatpush1.msra.mxu0 %v430
  %1533 = vmatprep.subr.mxu0 0.0
  %1534 = vmatpush1.msra.mxu0 %v431
  %1535 = vmatprep.subr.mxu0 0.0
  %1536 = vmatpush1.msra.mxu0 %v432
  %1537 = vmatprep.subr.mxu0 0.0
  %1538 = vmatpush1.msra.mxu0 %v433
  %1539 = vmatprep.subr.mxu0 0.0
  %1540 = vmatpush1.msra.mxu0 0.0
  %1541 = vmatprep.subr.mxu0 0.0
  %1542 = vmatpush1.msra.mxu0 0.0
  %1543 = vmatprep.subr.mxu0 0.0
  %1544 = vmatpush1.msra.mxu0 0.0
  %1545 = vmatprep.subr.mxu0 0.0
  %1546 = vmatpush1.msra.mxu0 0.0
  %1547 = vmatprep.subr.mxu0 0.0
  %1548 = vmatpush1.msra.mxu0 0.0
  %1549 = vmatprep.subr.mxu0 0.0
  %1550 = vmatpush1.msra.mxu0 0.0
  %1551 = vmatprep.subr.mxu0 0.0
  %1552 = vmatpush1.msra.mxu0 0.0
  %1553 = vmatprep.subr.mxu0 0.0
  %1554 = vmatpush1.msra.mxu0 0.0
  %1555 = vmatprep.subr.mxu0 0.0
  %1556 = vmatpush1.msra.mxu0 0.0
  %1557 = vmatprep.subr.mxu0 0.0
  %1558 = vmatpush1.msra.mxu0 0.0
  %1559 = vmatprep.subr.mxu0 0.0
  %1560 = vmatpush1.msra.mxu0 0.0
  %1561 = vmatprep.subr.mxu0 0.0
  %1562 = vmatpush1.msra.mxu0 0.0
  %1563 = vmatprep.subr.mxu0 0.0
  %1564 = vmatpush1.msra.mxu0 0.0
  %1565 = vmatprep.subr.mxu0 0.0
  %1566 = vmatpush1.msra.mxu0 0.0
  %1567 = vmatprep.subr.mxu0 0.0
  %1568 = vmatpush1.msra.mxu0 0.0
  %1569 = vmatprep.subr.mxu0 0.0
  %1570 = vmatpush1.msra.mxu0 0.0
  %1571 = vmatprep.subr.mxu0 0.0
  %1572 = vmatpush1.msra.mxu0 0.0
  %1573 = vmatprep.subr.mxu0 0.0
  %1574 = vmatpush1.msra.mxu0 0.0
  %1575 = vmatprep.subr.mxu0 0.0
  %1576 = vmatpush1.msra.mxu0 0.0
  %1577 = vmatprep.subr.mxu0 0.0
  %1578 = vmatpush1.msra.mxu0 0.0
  %1579 = vmatprep.subr.mxu0 0.0
  %1580 = vmatpush1.msra.mxu0 0.0
  %1581 = vmatprep.subr.mxu0 0.0
  %1582 = vmatpush1.msra.mxu0 0.0
  %1583 = vmatprep.subr.mxu0 0.0
  %1584 = vmatpush1.msra.mxu0 0.0
  %1585 = vmatprep.subr.mxu0 0.0
  %1586 = vmatpush1.msra.mxu0 0.0
  %1587 = vmatprep.subr.mxu0 0.0
  %1588 = vmatpush1.msra.mxu0 0.0
  %1589 = vmatprep.subr.mxu0 0.0
  %1590 = vmatpush1.msra.mxu0 0.0
  %1591 = vmatprep.subr.mxu0 0.0
  %1592 = vmatpush1.msra.mxu0 0.0
  %1593 = vmatprep.subr.mxu0 0.0
  %1594 = vmatpush1.msra.mxu0 0.0
  %1595 = vmatprep.mubr.f32.mxu0 0.0
  %1596 = vmatmul.mubr.f32.gmra.mrb[0].mxu0 %v443
  %v1597 = vpop.f32.mrb[0].mxu0
  %v1598 = vadd.f32 %v893, %v1597
  %v1599 = vpop.f32.mrb[0].mxu0
  %1600 = vmatprep.mubr.f32.mxu0 0.0
  %1601 = vmatmul.mubr.f32.gmra.mrb[0].mxu0 %v446
  %v1602 = vpop.f32.mrb[0].mxu0
  %v1603 = vadd.f32 %v898, %v1602
  %v1604 = vpop.f32.mrb[0].mxu0
  %1605 = vmatprep.mubr.f32.mxu0 0.0
  %1606 = vmatmul.mubr.f32.gmra.mrb[0].mxu0 %v449
  %v1607 = vpop.f32.mrb[0].mxu0
  %v1608 = vadd.f32 %v903, %v1607
  %v1609 = vpop.f32.mrb[0].mxu0
  %1610 = vmatprep.mubr.f32.mxu0 0.0
  %1611 = vmatmul.mubr.f32.gmra.mrb[0].mxu0 %v452
  %v1612 = vpop.f32.mrb[0].mxu0
  %v1613 = vadd.f32 %v908, %v1612
  %v1614 = vpop.f32.mrb[0].mxu0
  %1615 = vmatprep.mubr.f32.mxu0 0.0
  %1616 = vmatmul.mubr.f32.gmra.mrb[0].mxu0 %v455
  %v1617 = vpop.f32.mrb[0].mxu0
  %v1618 = vadd.f32 %v913, %v1617
  %v1619 = vpop.f32.mrb[0].mxu0
  %1620 = vmatprep.mubr.f32.mxu0 0.0
  %1621 = vmatmul.mubr.f32.gmra.mrb[0].mxu0 %v458
  %v1622 = vpop.f32.mrb[0].mxu0
  %v1623 = vadd.f32 %v918, %v1622
  %v1624 = vpop.f32.mrb[0].mxu0
  %1625 = vmatprep.mubr.f32.mxu0 0.0
  %1626 = vmatmul.mubr.f32.gmra.mrb[0].mxu0 %v461
  %v1627 = vpop.f32.mrb[0].mxu0
  %v1628 = vadd.f32 %v923, %v1627
  %v1629 = vpop.f32.mrb[0].mxu0
  %1630 = vmatprep.mubr.f32.mxu0 0.0
  %1631 = vmatmul.mubr.f32.gmra.mrb[0].mxu0 %v464
  %v1632 = vpop.f32.mrb[0].mxu0
  %v1633 = vadd.f32 %v928, %v1632
  %v1634 = vpop.f32.mrb[0].mxu0
  %1635 = vmatprep.mubr.f32.mxu0 0.0
  %1636 = vmatmul.mubr.f32.gmra.mrb[0].mxu0 %v467
  %v1637 = vpop.f32.mrb[0].mxu0
  %v1638 = vadd.f32 %v933, %v1637
  %v1639 = vpop.f32.mrb[0].mxu0
  %1640 = vmatprep.mubr.f32.mxu0 0.0
  %1641 = vmatmul.mubr.f32.gmra.mrb[0].mxu0 %v470
  %v1642 = vpop.f32.mrb[0].mxu0
  %v1643 = vadd.f32 %v938, %v1642
  %v1644 = vpop.f32.mrb[0].mxu0
  %1645 = vmatprep.mubr.f32.mxu0 0.0
  %1646 = vmatmul.mubr.f32.gmra.mrb[0].mxu0 %v473
  %v1647 = vpop.f32.mrb[0].mxu0
  %v1648 = vadd.f32 %v943, %v1647
  %v1649 = vpop.f32.mrb[0].mxu0
  %1650 = vmatprep.mubr.f32.mxu0 0.0
  %1651 = vmatmul.mubr.f32.gmra.mrb[0].mxu0 %v476
  %v1652 = vpop.f32.mrb[0].mxu0
  %v1653 = vadd.f32 %v948, %v1652
  %v1654 = vpop.f32.mrb[0].mxu0
  %1655 = vmatprep.mubr.f32.mxu0 0.0
  %1656 = vmatmul.mubr.f32.gmra.mrb[0].mxu0 %v479
  %v1657 = vpop.f32.mrb[0].mxu0
  %v1658 = vadd.f32 %v953, %v1657
  %v1659 = vpop.f32.mrb[0].mxu0
  %1660 = vmatprep.mubr.f32.mxu0 0.0
  %1661 = vmatmul.mubr.f32.gmra.mrb[0].mxu0 %v482
  %v1662 = vpop.f32.mrb[0].mxu0
  %v1663 = vadd.f32 %v958, %v1662
  %v1664 = vpop.f32.mrb[0].mxu0
  %1665 = vmatprep.mubr.f32.mxu0 0.0
  %1666 = vmatmul.mubr.f32.gmra.mrb[0].mxu0 %v485
  %v1667 = vpop.f32.mrb[0].mxu0
  %v1668 = vadd.f32 %v963, %v1667
  %v1669 = vpop.f32.mrb[0].mxu0
  %1670 = vmatprep.mubr.f32.mxu0 0.0
  %1671 = vmatmul.mubr.f32.gmra.mrb[0].mxu0 %v488
  %v1672 = vpop.f32.mrb[0].mxu0
  %v1673 = vadd.f32 %v968, %v1672
  %v1674 = vpop.f32.mrb[0].mxu0
  %1675 = vmatprep.mubr.f32.mxu0 0.0
  %1676 = vmatmul.mubr.f32.gmra.mrb[0].mxu0 %v491
  %v1677 = vpop.f32.mrb[0].mxu0
  %v1678 = vadd.f32 %v973, %v1677
  %v1679 = vpop.f32.mrb[0].mxu0
  %1680 = vmatprep.mubr.f32.mxu0 0.0
  %1681 = vmatmul.mubr.f32.gmra.mrb[0].mxu0 %v494
  %v1682 = vpop.f32.mrb[0].mxu0
  %v1683 = vadd.f32 %v978, %v1682
  %v1684 = vpop.f32.mrb[0].mxu0
  %1685 = vmatprep.mubr.f32.mxu0 0.0
  %1686 = vmatmul.mubr.f32.gmra.mrb[0].mxu0 %v497
  %v1687 = vpop.f32.mrb[0].mxu0
  %v1688 = vadd.f32 %v983, %v1687
  %v1689 = vpop.f32.mrb[0].mxu0
  %1690 = vmatprep.mubr.f32.mxu0 0.0
  %1691 = vmatmul.mubr.f32.gmra.mrb[0].mxu0 %v500
  %v1692 = vpop.f32.mrb[0].mxu0
  %v1693 = vadd.f32 %v988, %v1692
  %v1694 = vpop.f32.mrb[0].mxu0
  %1695 = vmatprep.mubr.f32.mxu0 0.0
  %1696 = vmatmul.mubr.f32.gmra.mrb[0].mxu0 %v503
  %v1697 = vpop.f32.mrb[0].mxu0
  %v1698 = vadd.f32 %v993, %v1697
  %v1699 = vpop.f32.mrb[0].mxu0
  %1700 = vmatprep.mubr.f32.mxu0 0.0
  %1701 = vmatmul.mubr.f32.gmra.mrb[0].mxu0 %v506
  %v1702 = vpop.f32.mrb[0].mxu0
  %v1703 = vadd.f32 %v998, %v1702
  %v1704 = vpop.f32.mrb[0].mxu0
  %1705 = vmatprep.mubr.f32.mxu0 0.0
  %1706 = vmatmul.mubr.f32.gmra.mrb[0].mxu0 %v509
  %v1707 = vpop.f32.mrb[0].mxu0
  %v1708 = vadd.f32 %v1003, %v1707
  %v1709 = vpop.f32.mrb[0].mxu0
  %1710 = vmatprep.mubr.f32.mxu0 0.0
  %1711 = vmatmul.mubr.f32.gmra.mrb[0].mxu0 %v512
  %v1712 = vpop.f32.mrb[0].mxu0
  %v1713 = vadd.f32 %v1008, %v1712
  %v1714 = vpop.f32.mrb[0].mxu0
  %1715 = vmatprep.mubr.f32.mxu0 0.0
  %1716 = vmatmul.mubr.f32.gmra.mrb[0].mxu0 %v515
  %v1717 = vpop.f32.mrb[0].mxu0
  %v1718 = vadd.f32 %v1013, %v1717
  %v1719 = vpop.f32.mrb[0].mxu0
  %1720 = vmatprep.mubr.f32.mxu0 0.0
  %1721 = vmatmul.mubr.f32.gmra.mrb[0].mxu0 %v518
  %v1722 = vpop.f32.mrb[0].mxu0
  %v1723 = vadd.f32 %v1018, %v1722
  %v1724 = vpop.f32.mrb[0].mxu0
  %1725 = vmatprep.mubr.f32.mxu0 0.0
  %1726 = vmatmul.mubr.f32.gmra.mrb[0].mxu0 %v521
  %v1727 = vpop.f32.mrb[0].mxu0
  %v1728 = vadd.f32 %v1023, %v1727
  %v1729 = vpop.f32.mrb[0].mxu0
  %1730 = vmatprep.mubr.f32.mxu0 0.0
  %1731 = vmatmul.mubr.f32.gmra.mrb[0].mxu0 %v524
  %v1732 = vpop.f32.mrb[0].mxu0
  %v1733 = vadd.f32 %v1028, %v1732
  %v1734 = vpop.f32.mrb[0].mxu0
  %1735 = vmatprep.mubr.f32.mxu0 0.0
  %1736 = vmatmul.mubr.f32.gmra.mrb[0].mxu0 %v527
  %v1737 = vpop.f32.mrb[0].mxu0
  %v1738 = vadd.f32 %v1033, %v1737
  %v1739 = vpop.f32.mrb[0].mxu0
  %1740 = vmatprep.mubr.f32.mxu0 0.0
  %1741 = vmatmul.mubr.f32.gmra.mrb[0].mxu0 %v530
  %v1742 = vpop.f32.mrb[0].mxu0
  %v1743 = vadd.f32 %v1038, %v1742
  %v1744 = vpop.f32.mrb[0].mxu0
  %1745 = vmatprep.mubr.f32.mxu0 0.0
  %1746 = vmatmul.mubr.f32.gmra.mrb[0].mxu0 %v533
  %v1747 = vpop.f32.mrb[0].mxu0
  %v1748 = vadd.f32 %v1043, %v1747
  %v1749 = vpop.f32.mrb[0].mxu0
  %1750 = vmatprep.mubr.f32.mxu0 0.0
  %1751 = vmatmul.mubr.f32.gmra.mrb[0].mxu0 %v536
  %v1752 = vpop.f32.mrb[0].mxu0
  %v1753 = vadd.f32 %v1048, %v1752
  %v1754 = vpop.f32.mrb[0].mxu0
  %1755 = vmatprep.mubr.f32.mxu0 0.0
  %1756 = vmatmul.mubr.f32.gmra.mrb[0].mxu0 %v539
  %v1757 = vpop.f32.mrb[0].mxu0
  %v1758 = vadd.f32 %v1053, %v1757
  %v1759 = vpop.f32.mrb[0].mxu0
  %1760 = vmatprep.mubr.f32.mxu0 0.0
  %1761 = vmatmul.mubr.f32.gmra.mrb[0].mxu0 %v542
  %v1762 = vpop.f32.mrb[0].mxu0
  %v1763 = vadd.f32 %v1058, %v1762
  %v1764 = vpop.f32.mrb[0].mxu0
  %1765 = vmatprep.mubr.f32.mxu0 0.0
  %1766 = vmatmul.mubr.f32.gmra.mrb[0].mxu0 %v545
  %v1767 = vpop.f32.mrb[0].mxu0
  %v1768 = vadd.f32 %v1063, %v1767
  %v1769 = vpop.f32.mrb[0].mxu0
  %1770 = vmatprep.mubr.f32.mxu0 0.0
  %1771 = vmatmul.mubr.f32.gmra.mrb[0].mxu0 %v548
  %v1772 = vpop.f32.mrb[0].mxu0
  %v1773 = vadd.f32 %v1068, %v1772
  %v1774 = vpop.f32.mrb[0].mxu0
  %1775 = vmatprep.mubr.f32.mxu0 0.0
  %1776 = vmatmul.mubr.f32.gmra.mrb[0].mxu0 %v551
  %v1777 = vpop.f32.mrb[0].mxu0
  %v1778 = vadd.f32 %v1073, %v1777
  %v1779 = vpop.f32.mrb[0].mxu0
  %1780 = vmatprep.mubr.f32.mxu0 0.0
  %1781 = vmatmul.mubr.f32.gmra.mrb[0].mxu0 %v554
  %v1782 = vpop.f32.mrb[0].mxu0
  %v1783 = vadd.f32 %v1078, %v1782
  %v1784 = vpop.f32.mrb[0].mxu0
  %1785 = vmatprep.mubr.f32.mxu0 0.0
  %1786 = vmatmul.mubr.f32.gmra.mrb[0].mxu0 %v557
  %v1787 = vpop.f32.mrb[0].mxu0
  %v1788 = vadd.f32 %v1083, %v1787
  %v1789 = vpop.f32.mrb[0].mxu0
  %1790 = vmatprep.mubr.f32.mxu0 0.0
  %1791 = vmatmul.mubr.f32.gmra.mrb[0].mxu0 %v560
  %v1792 = vpop.f32.mrb[0].mxu0
  %v1793 = vadd.f32 %v1088, %v1792
  %v1794 = vpop.f32.mrb[0].mxu0
  %1795 = vmatprep.mubr.f32.mxu0 0.0
  %1796 = vmatmul.mubr.f32.gmra.mrb[0].mxu0 %v563
  %v1797 = vpop.f32.mrb[0].mxu0
  %v1798 = vadd.f32 %v1093, %v1797
  %v1799 = vpop.f32.mrb[0].mxu0
  %1800 = vmatprep.mubr.f32.mxu0 0.0
  %1801 = vmatmul.mubr.f32.gmra.mrb[0].mxu0 %v566
  %v1802 = vpop.f32.mrb[0].mxu0
  %v1803 = vadd.f32 %v1098, %v1802
  %v1804 = vpop.f32.mrb[0].mxu0
  %1805 = vmatprep.mubr.f32.mxu0 0.0
  %1806 = vmatmul.mubr.f32.gmra.mrb[0].mxu0 %v569
  %v1807 = vpop.f32.mrb[0].mxu0
  %v1808 = vadd.f32 %v1103, %v1807
  %v1809 = vpop.f32.mrb[0].mxu0
  %1810 = vmatprep.mubr.f32.mxu0 0.0
  %1811 = vmatmul.mubr.f32.gmra.mrb[0].mxu0 %v572
  %v1812 = vpop.f32.mrb[0].mxu0
  %v1813 = vadd.f32 %v1108, %v1812
  %v1814 = vpop.f32.mrb[0].mxu0
  %1815 = vmatprep.mubr.f32.mxu0 0.0
  %1816 = vmatmul.mubr.f32.gmra.mrb[0].mxu0 %v575
  %v1817 = vpop.f32.mrb[0].mxu0
  %v1818 = vadd.f32 %v1113, %v1817
  %v1819 = vpop.f32.mrb[0].mxu0
  %1820 = vmatprep.mubr.f32.mxu0 0.0
  %1821 = vmatmul.mubr.f32.gmra.mrb[0].mxu0 %v578
  %v1822 = vpop.f32.mrb[0].mxu0
  %v1823 = vadd.f32 %v1118, %v1822
  %v1824 = vpop.f32.mrb[0].mxu0
  %1825 = vmatprep.mubr.f32.mxu0 0.0
  %1826 = vmatmul.mubr.f32.gmra.mrb[0].mxu0 %v581
  %v1827 = vpop.f32.mrb[0].mxu0
  %v1828 = vadd.f32 %v1123, %v1827
  %v1829 = vpop.f32.mrb[0].mxu0
  %1830 = vmatprep.mubr.f32.mxu0 0.0
  %1831 = vmatmul.mubr.f32.gmra.mrb[0].mxu0 %v584
  %v1832 = vpop.f32.mrb[0].mxu0
  %v1833 = vadd.f32 %v1128, %v1832
  %v1834 = vpop.f32.mrb[0].mxu0
  %1835 = vmatprep.mubr.f32.mxu0 0.0
  %1836 = vmatmul.mubr.f32.gmra.mrb[0].mxu0 %v587
  %v1837 = vpop.f32.mrb[0].mxu0
  %v1838 = vadd.f32 %v1133, %v1837
  %v1839 = vpop.f32.mrb[0].mxu0
  %1840 = vmatprep.mubr.f32.mxu0 0.0
  %1841 = vmatmul.mubr.f32.gmra.mrb[0].mxu0 %v590
  %v1842 = vpop.f32.mrb[0].mxu0
  %v1843 = vadd.f32 %v1138, %v1842
  %v1844 = vpop.f32.mrb[0].mxu0
  %1845 = vmatprep.mubr.f32.mxu0 0.0
  %1846 = vmatmul.mubr.f32.gmra.mrb[0].mxu0 %v593
  %v1847 = vpop.f32.mrb[0].mxu0
  %v1848 = vadd.f32 %v1143, %v1847
  %v1849 = vpop.f32.mrb[0].mxu0
  %1850 = vmatprep.mubr.f32.mxu0 0.0
  %1851 = vmatmul.mubr.f32.gmra.mrb[0].mxu0 %v596
  %v1852 = vpop.f32.mrb[0].mxu0
  %v1853 = vadd.f32 %v1148, %v1852
  %v1854 = vpop.f32.mrb[0].mxu0
  %1855 = vmatprep.mubr.f32.mxu0 0.0
  %1856 = vmatmul.mubr.f32.gmra.mrb[0].mxu0 %v599
  %v1857 = vpop.f32.mrb[0].mxu0
  %v1858 = vadd.f32 %v1153, %v1857
  %v1859 = vpop.f32.mrb[0].mxu0
  %1860 = vmatprep.mubr.f32.mxu0 0.0
  %1861 = vmatmul.mubr.f32.gmra.mrb[0].mxu0 %v602
  %v1862 = vpop.f32.mrb[0].mxu0
  %v1863 = vadd.f32 %v1158, %v1862
  %v1864 = vpop.f32.mrb[0].mxu0
  %1865 = vmatprep.mubr.f32.mxu0 0.0
  %1866 = vmatmul.mubr.f32.gmra.mrb[0].mxu0 %v605
  %v1867 = vpop.f32.mrb[0].mxu0
  %v1868 = vadd.f32 %v1163, %v1867
  %v1869 = vpop.f32.mrb[0].mxu0
  %1870 = vmatprep.mubr.f32.mxu0 0.0
  %1871 = vmatmul.mubr.f32.gmra.mrb[0].mxu0 %v608
  %v1872 = vpop.f32.mrb[0].mxu0
  %v1873 = vadd.f32 %v1168, %v1872
  %v1874 = vpop.f32.mrb[0].mxu0
  %1875 = vmatprep.mubr.f32.mxu0 0.0
  %1876 = vmatmul.mubr.f32.gmra.mrb[0].mxu0 %v611
  %v1877 = vpop.f32.mrb[0].mxu0
  %v1878 = vadd.f32 %v1173, %v1877
  %v1879 = vpop.f32.mrb[0].mxu0
  %1880 = vmatprep.mubr.f32.mxu0 0.0
  %1881 = vmatmul.mubr.f32.gmra.mrb[0].mxu0 %v614
  %v1882 = vpop.f32.mrb[0].mxu0
  %v1883 = vadd.f32 %v1178, %v1882
  %v1884 = vpop.f32.mrb[0].mxu0
  %1885 = vmatprep.mubr.f32.mxu0 0.0
  %1886 = vmatmul.mubr.f32.gmra.mrb[0].mxu0 %v617
  %v1887 = vpop.f32.mrb[0].mxu0
  %v1888 = vadd.f32 %v1183, %v1887
  %v1889 = vpop.f32.mrb[0].mxu0
  %1890 = vmatprep.mubr.f32.mxu0 0.0
  %1891 = vmatmul.mubr.f32.gmra.mrb[0].mxu0 %v620
  %v1892 = vpop.f32.mrb[0].mxu0
  %v1893 = vadd.f32 %v1188, %v1892
  %v1894 = vpop.f32.mrb[0].mxu0
  %1895 = vmatprep.mubr.f32.mxu0 0.0
  %1896 = vmatmul.mubr.f32.gmra.mrb[0].mxu0 %v623
  %v1897 = vpop.f32.mrb[0].mxu0
  %v1898 = vadd.f32 %v1193, %v1897
  %v1899 = vpop.f32.mrb[0].mxu0
  %1900 = vmatprep.mubr.f32.mxu0 0.0
  %1901 = vmatmul.mubr.f32.gmra.mrb[0].mxu0 %v626
  %v1902 = vpop.f32.mrb[0].mxu0
  %v1903 = vadd.f32 %v1198, %v1902
  %v1904 = vpop.f32.mrb[0].mxu0
  %1905 = vmatprep.mubr.f32.mxu0 0.0
  %1906 = vmatmul.mubr.f32.gmra.mrb[0].mxu0 %v629
  %v1907 = vpop.f32.mrb[0].mxu0
  %v1908 = vadd.f32 %v1203, %v1907
  %v1909 = vpop.f32.mrb[0].mxu0
  %1910 = vmatprep.mubr.f32.mxu0 0.0
  %1911 = vmatmul.mubr.f32.gmra.mrb[0].mxu0 %v632
  %v1912 = vpop.f32.mrb[0].mxu0
  %v1913 = vadd.f32 %v1208, %v1912
  %v1914 = vpop.f32.mrb[0].mxu0
  %1915 = vmatprep.mubr.f32.mxu0 0.0
  %1916 = vmatmul.mubr.f32.gmra.mrb[0].mxu0 %v635
  %v1917 = vpop.f32.mrb[0].mxu0
  %v1918 = vadd.f32 %v1213, %v1917
  %v1919 = vpop.f32.mrb[0].mxu0
  %1920 = vmatprep.mubr.f32.mxu0 0.0
  %1921 = vmatmul.mubr.f32.gmra.mrb[0].mxu0 %v638
  %v1922 = vpop.f32.mrb[0].mxu0
  %v1923 = vadd.f32 %v1218, %v1922
  %v1924 = vpop.f32.mrb[0].mxu0
  %1925 = vmatprep.mubr.f32.mxu0 0.0
  %1926 = vmatmul.mubr.f32.gmra.mrb[0].mxu0 %v641
  %v1927 = vpop.f32.mrb[0].mxu0
  %v1928 = vadd.f32 %v1223, %v1927
  %v1929 = vpop.f32.mrb[0].mxu0
  %1930 = vmatprep.mubr.f32.mxu0 0.0
  %1931 = vmatmul.mubr.f32.gmra.mrb[0].mxu0 %v644
  %v1932 = vpop.f32.mrb[0].mxu0
  %v1933 = vadd.f32 %v1228, %v1932
  %v1934 = vpop.f32.mrb[0].mxu0
  %1935 = vmatprep.mubr.f32.mxu0 0.0
  %1936 = vmatmul.mubr.f32.gmra.mrb[0].mxu0 %v647
  %v1937 = vpop.f32.mrb[0].mxu0
  %v1938 = vadd.f32 %v1233, %v1937
  %v1939 = vpop.f32.mrb[0].mxu0
  %1940 = vmatprep.mubr.f32.mxu0 0.0
  %1941 = vmatmul.mubr.f32.gmra.mrb[0].mxu0 %v650
  %v1942 = vpop.f32.mrb[0].mxu0
  %v1943 = vadd.f32 %v1238, %v1942
  %v1944 = vpop.f32.mrb[0].mxu0
  %1945 = vmatprep.mubr.f32.mxu0 0.0
  %1946 = vmatmul.mubr.f32.gmra.mrb[0].mxu0 %v653
  %v1947 = vpop.f32.mrb[0].mxu0
  %v1948 = vadd.f32 %v1243, %v1947
  %v1949 = vpop.f32.mrb[0].mxu0
  %1950 = vmatprep.mubr.f32.mxu0 0.0
  %1951 = vmatmul.mubr.f32.gmra.mrb[0].mxu0 %v656
  %v1952 = vpop.f32.mrb[0].mxu0
  %v1953 = vadd.f32 %v1248, %v1952
  %v1954 = vpop.f32.mrb[0].mxu0
  %1955 = vmatprep.mubr.f32.mxu0 0.0
  %1956 = vmatmul.mubr.f32.gmra.mrb[0].mxu0 %v659
  %v1957 = vpop.f32.mrb[0].mxu0
  %v1958 = vadd.f32 %v1253, %v1957
  %v1959 = vpop.f32.mrb[0].mxu0
  %1960 = vmatprep.mubr.f32.mxu0 0.0
  %1961 = vmatmul.mubr.f32.gmra.mrb[0].mxu0 %v662
  %v1962 = vpop.f32.mrb[0].mxu0
  %v1963 = vadd.f32 %v1258, %v1962
  %v1964 = vpop.f32.mrb[0].mxu0
  %1965 = vmatprep.mubr.f32.mxu0 0.0
  %1966 = vmatmul.mubr.f32.gmra.mrb[0].mxu0 %v665
  %v1967 = vpop.f32.mrb[0].mxu0
  %v1968 = vadd.f32 %v1263, %v1967
  %v1969 = vpop.f32.mrb[0].mxu0
  %1970 = vmatprep.mubr.f32.mxu0 0.0
  %1971 = vmatmul.mubr.f32.gmra.mrb[0].mxu0 %v668
  %v1972 = vpop.f32.mrb[0].mxu0
  %v1973 = vadd.f32 %v1268, %v1972
  %v1974 = vpop.f32.mrb[0].mxu0
  %1975 = vmatprep.mubr.f32.mxu0 0.0
  %1976 = vmatmul.mubr.f32.gmra.mrb[0].mxu0 %v671
  %v1977 = vpop.f32.mrb[0].mxu0
  %v1978 = vadd.f32 %v1273, %v1977
  %v1979 = vpop.f32.mrb[0].mxu0
  %1980 = vmatprep.mubr.f32.mxu0 0.0
  %1981 = vmatmul.mubr.f32.gmra.mrb[0].mxu0 %v674
  %v1982 = vpop.f32.mrb[0].mxu0
  %v1983 = vadd.f32 %v1278, %v1982
  %v1984 = vpop.f32.mrb[0].mxu0
  %1985 = vmatprep.mubr.f32.mxu0 0.0
  %1986 = vmatmul.mubr.f32.gmra.mrb[0].mxu0 %v677
  %v1987 = vpop.f32.mrb[0].mxu0
  %v1988 = vadd.f32 %v1283, %v1987
  %v1989 = vpop.f32.mrb[0].mxu0
  %1990 = vmatprep.mubr.f32.mxu0 0.0
  %1991 = vmatmul.mubr.f32.gmra.mrb[0].mxu0 %v680
  %v1992 = vpop.f32.mrb[0].mxu0
  %v1993 = vadd.f32 %v1288, %v1992
  %v1994 = vpop.f32.mrb[0].mxu0
  %1995 = vmatprep.mubr.f32.mxu0 0.0
  %1996 = vmatmul.mubr.f32.gmra.mrb[0].mxu0 %v683
  %v1997 = vpop.f32.mrb[0].mxu0
  %v1998 = vadd.f32 %v1293, %v1997
  %v1999 = vpop.f32.mrb[0].mxu0
  %2000 = vmatprep.mubr.f32.mxu0 0.0
  %2001 = vmatmul.mubr.f32.gmra.mrb[0].mxu0 %v686
  %v2002 = vpop.f32.mrb[0].mxu0
  %v2003 = vadd.f32 %v1298, %v2002
  %v2004 = vpop.f32.mrb[0].mxu0
  %2005 = vmatprep.mubr.f32.mxu0 0.0
  %2006 = vmatmul.mubr.f32.gmra.mrb[0].mxu0 %v689
  %v2007 = vpop.f32.mrb[0].mxu0
  %v2008 = vadd.f32 %v1303, %v2007
  %v2009 = vpop.f32.mrb[0].mxu0
  %2010 = vmatprep.mubr.f32.mxu0 0.0
  %2011 = vmatmul.mubr.f32.gmra.mrb[0].mxu0 %v692
  %v2012 = vpop.f32.mrb[0].mxu0
  %v2013 = vadd.f32 %v1308, %v2012
  %v2014 = vpop.f32.mrb[0].mxu0
  %2015 = vmatprep.mubr.f32.mxu0 0.0
  %2016 = vmatmul.mubr.f32.gmra.mrb[0].mxu0 %v695
  %v2017 = vpop.f32.mrb[0].mxu0
  %v2018 = vadd.f32 %v1313, %v2017
  %v2019 = vpop.f32.mrb[0].mxu0
  %2020 = vmatprep.mubr.f32.mxu0 0.0
  %2021 = vmatmul.mubr.f32.gmra.mrb[0].mxu0 %v698
  %v2022 = vpop.f32.mrb[0].mxu0
  %v2023 = vadd.f32 %v1318, %v2022
  %v2024 = vpop.f32.mrb[0].mxu0
  %2025 = vmatprep.mubr.f32.mxu0 0.0
  %2026 = vmatmul.mubr.f32.gmra.mrb[0].mxu0 %v701
  %v2027 = vpop.f32.mrb[0].mxu0
  %v2028 = vadd.f32 %v1323, %v2027
  %v2029 = vpop.f32.mrb[0].mxu0
  %2030 = vmatprep.mubr.f32.mxu0 0.0
  %2031 = vmatmul.mubr.f32.gmra.mrb[0].mxu0 %v704
  %v2032 = vpop.f32.mrb[0].mxu0
  %v2033 = vadd.f32 %v1328, %v2032
  %v2034 = vpop.f32.mrb[0].mxu0
  %2035 = vmatprep.mubr.f32.mxu0 0.0
  %2036 = vmatmul.mubr.f32.gmra.mrb[0].mxu0 %v707
  %v2037 = vpop.f32.mrb[0].mxu0
  %v2038 = vadd.f32 %v1333, %v2037
  %v2039 = vpop.f32.mrb[0].mxu0
  %2040 = vmatprep.mubr.f32.mxu0 0.0
  %2041 = vmatmul.mubr.f32.gmra.mrb[0].mxu0 %v710
  %v2042 = vpop.f32.mrb[0].mxu0
  %v2043 = vadd.f32 %v1338, %v2042
  %v2044 = vpop.f32.mrb[0].mxu0
  %2045 = vmatprep.mubr.f32.mxu0 0.0
  %2046 = vmatmul.mubr.f32.gmra.mrb[0].mxu0 %v713
  %v2047 = vpop.f32.mrb[0].mxu0
  %v2048 = vadd.f32 %v1343, %v2047
  %v2049 = vpop.f32.mrb[0].mxu0
  %2050 = vmatprep.mubr.f32.mxu0 0.0
  %2051 = vmatmul.mubr.f32.gmra.mrb[0].mxu0 %v716
  %v2052 = vpop.f32.mrb[0].mxu0
  %v2053 = vadd.f32 %v1348, %v2052
  %v2054 = vpop.f32.mrb[0].mxu0
  %2055 = vmatprep.mubr.f32.mxu0 0.0
  %2056 = vmatmul.mubr.f32.gmra.mrb[0].mxu0 %v719
  %v2057 = vpop.f32.mrb[0].mxu0
  %v2058 = vadd.f32 %v1353, %v2057
  %v2059 = vpop.f32.mrb[0].mxu0
  %2060 = vmatprep.mubr.f32.mxu0 0.0
  %2061 = vmatmul.mubr.f32.gmra.mrb[0].mxu0 %v722
  %v2062 = vpop.f32.mrb[0].mxu0
  %v2063 = vadd.f32 %v1358, %v2062
  %v2064 = vpop.f32.mrb[0].mxu0
  %2065 = vmatprep.mubr.f32.mxu0 0.0
  %2066 = vmatmul.mubr.f32.gmra.mrb[0].mxu0 %v725
  %v2067 = vpop.f32.mrb[0].mxu0
  %v2068 = vadd.f32 %v1363, %v2067
  %v2069 = vpop.f32.mrb[0].mxu0
  %2070 = vmatprep.mubr.f32.mxu0 0.0
  %2071 = vmatmul.mubr.f32.gmra.mrb[0].mxu0 %v728
  %v2072 = vpop.f32.mrb[0].mxu0
  %v2073 = vadd.f32 %v1368, %v2072
  %v2074 = vpop.f32.mrb[0].mxu0
  %2075 = vmatprep.mubr.f32.mxu0 0.0
  %2076 = vmatmul.mubr.f32.gmra.mrb[0].mxu0 %v731
  %v2077 = vpop.f32.mrb[0].mxu0
  %v2078 = vadd.f32 %v1373, %v2077
  %v2079 = vpop.f32.mrb[0].mxu0
  %2080 = vmatprep.mubr.f32.mxu0 0.0
  %2081 = vmatmul.mubr.f32.gmra.mrb[0].mxu0 %v734
  %v2082 = vpop.f32.mrb[0].mxu0
  %v2083 = vadd.f32 %v1378, %v2082
  %v2084 = vpop.f32.mrb[0].mxu0
  %2085 = vmatprep.mubr.f32.mxu0 0.0
  %2086 = vmatmul.mubr.f32.gmra.mrb[0].mxu0 %v737
  %v2087 = vpop.f32.mrb[0].mxu0
  %v2088 = vadd.f32 %v1383, %v2087
  %v2089 = vpop.f32.mrb[0].mxu0
  %2090 = vmatprep.mubr.f32.mxu0 0.0
  %2091 = vmatmul.mubr.f32.gmra.mrb[0].mxu0 %v740
  %v2092 = vpop.f32.mrb[0].mxu0
  %v2093 = vadd.f32 %v1388, %v2092
  %v2094 = vpop.f32.mrb[0].mxu0
  %2095 = vmatprep.mubr.f32.mxu0 0.0
  %2096 = vmatmul.mubr.f32.gmra.mrb[0].mxu0 %v743
  %v2097 = vpop.f32.mrb[0].mxu0
  %v2098 = vadd.f32 %v1393, %v2097
  %v2099 = vpop.f32.mrb[0].mxu0
  %2100 = vmatprep.mubr.f32.mxu0 0.0
  %2101 = vmatmul.mubr.f32.gmra.mrb[0].mxu0 %v746
  %v2102 = vpop.f32.mrb[0].mxu0
  %v2103 = vadd.f32 %v1398, %v2102
  %v2104 = vpop.f32.mrb[0].mxu0
  %2105 = vmatprep.mubr.f32.mxu0 0.0
  %2106 = vmatmul.mubr.f32.gmra.mrb[0].mxu0 %v749
  %v2107 = vpop.f32.mrb[0].mxu0
  %v2108 = vadd.f32 %v1403, %v2107
  %v2109 = vpop.f32.mrb[0].mxu0
  %2110 = vmatprep.mubr.f32.mxu0 0.0
  %2111 = vmatmul.mubr.f32.gmra.mrb[0].mxu0 %v752
  %v2112 = vpop.f32.mrb[0].mxu0
  %v2113 = vadd.f32 %v1408, %v2112
  %v2114 = vpop.f32.mrb[0].mxu0
  %2115 = vmatprep.mubr.f32.mxu0 0.0
  %2116 = vmatmul.mubr.f32.gmra.mrb[0].mxu0 %v755
  %v2117 = vpop.f32.mrb[0].mxu0
  %v2118 = vadd.f32 %v1413, %v2117
  %v2119 = vpop.f32.mrb[0].mxu0
  %2120 = vmatprep.mubr.f32.mxu0 0.0
  %2121 = vmatmul.mubr.f32.gmra.mrb[0].mxu0 %v758
  %v2122 = vpop.f32.mrb[0].mxu0
  %v2123 = vadd.f32 %v1418, %v2122
  %v2124 = vpop.f32.mrb[0].mxu0
  %2125 = vmatprep.mubr.f32.mxu0 0.0
  %2126 = vmatmul.mubr.f32.gmra.mrb[0].mxu0 %v761
  %v2127 = vpop.f32.mrb[0].mxu0
  %v2128 = vadd.f32 %v1423, %v2127
  %v2129 = vpop.f32.mrb[0].mxu0
  %2130 = vmatprep.mubr.f32.mxu0 0.0
  %2131 = vmatmul.mubr.f32.gmra.mrb[0].mxu0 %v764
  %v2132 = vpop.f32.mrb[0].mxu0
  %v2133 = vadd.f32 %v1428, %v2132
  %v2134 = vpop.f32.mrb[0].mxu0
  %2135 = vmatprep.mubr.f32.mxu0 0.0
  %2136 = vmatmul.mubr.f32.gmra.mrb[0].mxu0 %v767
  %v2137 = vpop.f32.mrb[0].mxu0
  %v2138 = vadd.f32 %v1433, %v2137
  %v2139 = vpop.f32.mrb[0].mxu0
  %2140 = vmatprep.mubr.f32.mxu0 0.0
  %2141 = vmatmul.mubr.f32.gmra.mrb[0].mxu0 %v770
  %v2142 = vpop.f32.mrb[0].mxu0
  %v2143 = vadd.f32 %v1438, %v2142
  %v2144 = vpop.f32.mrb[0].mxu0
  %2145 = vmatprep.mubr.f32.mxu0 0.0
  %2146 = vmatmul.mubr.f32.gmra.mrb[0].mxu0 %v773
  %v2147 = vpop.f32.mrb[0].mxu0
  %v2148 = vadd.f32 %v1443, %v2147
  %v2149 = vpop.f32.mrb[0].mxu0
  %2150 = vmatprep.mubr.f32.mxu0 0.0
  %2151 = vmatmul.mubr.f32.gmra.mrb[0].mxu0 %v776
  %v2152 = vpop.f32.mrb[0].mxu0
  %v2153 = vadd.f32 %v1448, %v2152
  %v2154 = vpop.f32.mrb[0].mxu0
  %2155 = vmatprep.mubr.f32.mxu0 0.0
  %2156 = vmatmul.mubr.f32.gmra.mrb[0].mxu0 %v779
  %v2157 = vpop.f32.mrb[0].mxu0
  %v2158 = vadd.f32 %v1453, %v2157
  %v2159 = vpop.f32.mrb[0].mxu0
  %2160 = vmatprep.mubr.f32.mxu0 0.0
  %2161 = vmatmul.mubr.f32.gmra.mrb[0].mxu0 %v782
  %v2162 = vpop.f32.mrb[0].mxu0
  %v2163 = vadd.f32 %v1458, %v2162
  %v2164 = vpop.f32.mrb[0].mxu0
  %2165 = vmatprep.mubr.f32.mxu0 0.0
  %2166 = vmatmul.mubr.f32.gmra.mrb[0].mxu0 %v785
  %v2167 = vpop.f32.mrb[0].mxu0
  %v2168 = vadd.f32 %v1463, %v2167
  %v2169 = vpop.f32.mrb[0].mxu0
  %2170 = vmatprep.mubr.f32.mxu0 0.0
  %2171 = vmatmul.mubr.f32.gmra.mrb[0].mxu0 %v788
  %v2172 = vpop.f32.mrb[0].mxu0
  %v2173 = vadd.f32 %v1468, %v2172
  %v2174 = vpop.f32.mrb[0].mxu0
  %2175 = vmatprep.mubr.f32.mxu0 0.0
  %2176 = vmatmul.mubr.f32.gmra.mrb[0].mxu0 %v791
  %v2177 = vpop.f32.mrb[0].mxu0
  %v2178 = vadd.f32 %v1473, %v2177
  %v2179 = vpop.f32.mrb[0].mxu0
  %2180 = vmatprep.mubr.f32.mxu0 0.0
  %2181 = vmatmul.mubr.f32.gmra.mrb[0].mxu0 %v794
  %v2182 = vpop.f32.mrb[0].mxu0
  %v2183 = vadd.f32 %v1478, %v2182
  %v2184 = vpop.f32.mrb[0].mxu0
  %2185 = vmatprep.mubr.f32.mxu0 0.0
  %2186 = vmatmul.mubr.f32.gmra.mrb[0].mxu0 %v797
  %v2187 = vpop.f32.mrb[0].mxu0
  %v2188 = vadd.f32 %v1483, %v2187
  %v2189 = vpop.f32.mrb[0].mxu0
  %2190 = vmatprep.mubr.f32.mxu0 0.0
  %2191 = vmatmul.mubr.f32.gmra.mrb[0].mxu0 %v800
  %v2192 = vpop.f32.mrb[0].mxu0
  %v2193 = vadd.f32 %v1488, %v2192
  %v2194 = vpop.f32.mrb[0].mxu0
  %2195 = vmatprep.mubr.f32.mxu0 0.0
  %2196 = vmatmul.mubr.f32.gmra.mrb[0].mxu0 %v803
  %v2197 = vpop.f32.mrb[0].mxu0
  %v2198 = vadd.f32 %v1493, %v2197
  %v2199 = vpop.f32.mrb[0].mxu0
  %2200 = vmatprep.mubr.f32.mxu0 0.0
  %2201 = vmatmul.mubr.f32.gmra.mrb[0].mxu0 %v806
  %v2202 = vpop.f32.mrb[0].mxu0
  %v2203 = vadd.f32 %v1498, %v2202
  %v2204 = vpop.f32.mrb[0].mxu0
  %2205 = vmatprep.mubr.f32.mxu0 0.0
  %2206 = vmatmul.mubr.f32.gmra.mrb[0].mxu0 %v809
  %v2207 = vpop.f32.mrb[0].mxu0
  %v2208 = vadd.f32 %v1503, %v2207
  %v2209 = vpop.f32.mrb[0].mxu0
  %2210 = vmatprep.mubr.f32.mxu0 0.0
  %2211 = vmatmul.mubr.f32.gmra.mrb[0].mxu0 %v812
  %v2212 = vpop.f32.mrb[0].mxu0
  %v2213 = vadd.f32 %v1508, %v2212
  %v2214 = vpop.f32.mrb[0].mxu0
  %2215 = vmatprep.mubr.f32.mxu0 0.0
  %2216 = vmatmul.mubr.f32.gmra.mrb[0].mxu0 %v815
  %v2217 = vpop.f32.mrb[0].mxu0
  %v2218 = vadd.f32 %v1513, %v2217
  %v2219 = vpop.f32.mrb[0].mxu0
  %2220 = vmatprep.mubr.f32.mxu0 0.0
  %2221 = vmatmul.mubr.f32.gmra.mrb[0].mxu0 %v818
  %v2222 = vpop.f32.mrb[0].mxu0
  %v2223 = vadd.f32 %v1518, %v2222
  %v2224 = vpop.f32.mrb[0].mxu0
  %2225 = vmatprep.mubr.f32.mxu0 0.0
  %2226 = vmatmul.mubr.f32.gmra.mrb[0].mxu0 %v821
  %v2227 = vpop.f32.mrb[0].mxu0
  %v2228 = vadd.f32 %v1523, %v2227
  %v2229 = vpop.f32.mrb[0].mxu0
  %2230 = vmatprep.mubr.f32.mxu0 0.0
  %2231 = vmatmul.mubr.f32.gmra.mrb[0].mxu0 %v824
  %v2232 = vpop.f32.mrb[0].mxu0
  %v2233 = vadd.f32 %v1528, %v2232
  %v2234 = vpop.f32.mrb[0].mxu0
  %2235 = vdwg.mxu0
  %v2236 = vmax.f32 %v1598, 0.0
  %v2237 = vmax.f32 %v1603, 0.0
  %v2238 = vmax.f32 %v1608, 0.0
  %v2239 = vmax.f32 %v1613, 0.0
  %v2240 = vmax.f32 %v1618, 0.0
  %v2241 = vmax.f32 %v1623, 0.0
  %v2242 = vmax.f32 %v1628, 0.0
  %v2243 = vmax.f32 %v1633, 0.0
  %v2244 = vmax.f32 %v1638, 0.0
  %v2245 = vmax.f32 %v1643, 0.0
  %v2246 = vmax.f32 %v1648, 0.0
  %v2247 = vmax.f32 %v1653, 0.0
  %v2248 = vmax.f32 %v1658, 0.0
  %v2249 = vmax.f32 %v1663, 0.0
  %v2250 = vmax.f32 %v1668, 0.0
  %v2251 = vmax.f32 %v1673, 0.0
  %v2252 = vmax.f32 %v1678, 0.0
  %v2253 = vmax.f32 %v1683, 0.0
  %v2254 = vmax.f32 %v1688, 0.0
  %v2255 = vmax.f32 %v1693, 0.0
  %v2256 = vmax.f32 %v1698, 0.0
  %v2257 = vmax.f32 %v1703, 0.0
  %v2258 = vmax.f32 %v1708, 0.0
  %v2259 = vmax.f32 %v1713, 0.0
  %v2260 = vmax.f32 %v1718, 0.0
  %v2261 = vmax.f32 %v1723, 0.0
  %v2262 = vmax.f32 %v1728, 0.0
  %v2263 = vmax.f32 %v1733, 0.0
  %v2264 = vmax.f32 %v1738, 0.0
  %v2265 = vmax.f32 %v1743, 0.0
  %v2266 = vmax.f32 %v1748, 0.0
  %v2267 = vmax.f32 %v1753, 0.0
  %v2268 = vmax.f32 %v1758, 0.0
  %v2269 = vmax.f32 %v1763, 0.0
  %v2270 = vmax.f32 %v1768, 0.0
  %v2271 = vmax.f32 %v1773, 0.0
  %v2272 = vmax.f32 %v1778, 0.0
  %v2273 = vmax.f32 %v1783, 0.0
  %v2274 = vmax.f32 %v1788, 0.0
  %v2275 = vmax.f32 %v1793, 0.0
  %v2276 = vmax.f32 %v1798, 0.0
  %v2277 = vmax.f32 %v1803, 0.0
  %v2278 = vmax.f32 %v1808, 0.0
  %v2279 = vmax.f32 %v1813, 0.0
  %v2280 = vmax.f32 %v1818, 0.0
  %v2281 = vmax.f32 %v1823, 0.0
  %v2282 = vmax.f32 %v1828, 0.0
  %v2283 = vmax.f32 %v1833, 0.0
  %v2284 = vmax.f32 %v1838, 0.0
  %v2285 = vmax.f32 %v1843, 0.0
  %v2286 = vmax.f32 %v1848, 0.0
  %v2287 = vmax.f32 %v1853, 0.0
  %v2288 = vmax.f32 %v1858, 0.0
  %v2289 = vmax.f32 %v1863, 0.0
  %v2290 = vmax.f32 %v1868, 0.0
  %v2291 = vmax.f32 %v1873, 0.0
  %v2292 = vmax.f32 %v1878, 0.0
  %v2293 = vmax.f32 %v1883, 0.0
  %v2294 = vmax.f32 %v1888, 0.0
  %v2295 = vmax.f32 %v1893, 0.0
  %v2296 = vmax.f32 %v1898, 0.0
  %v2297 = vmax.f32 %v1903, 0.0
  %v2298 = vmax.f32 %v1908, 0.0
  %v2299 = vmax.f32 %v1913, 0.0
  %v2300 = vmax.f32 %v1918, 0.0
  %v2301 = vmax.f32 %v1923, 0.0
  %v2302 = vmax.f32 %v1928, 0.0
  %v2303 = vmax.f32 %v1933, 0.0
  %v2304 = vmax.f32 %v1938, 0.0
  %v2305 = vmax.f32 %v1943, 0.0
  %v2306 = vmax.f32 %v1948, 0.0
  %v2307 = vmax.f32 %v1953, 0.0
  %v2308 = vmax.f32 %v1958, 0.0
  %v2309 = vmax.f32 %v1963, 0.0
  %v2310 = vmax.f32 %v1968, 0.0
  %v2311 = vmax.f32 %v1973, 0.0
  %v2312 = vmax.f32 %v1978, 0.0
  %v2313 = vmax.f32 %v1983, 0.0
  %v2314 = vmax.f32 %v1988, 0.0
  %v2315 = vmax.f32 %v1993, 0.0
  %v2316 = vmax.f32 %v1998, 0.0
  %v2317 = vmax.f32 %v2003, 0.0
  %v2318 = vmax.f32 %v2008, 0.0
  %v2319 = vmax.f32 %v2013, 0.0
  %v2320 = vmax.f32 %v2018, 0.0
  %v2321 = vmax.f32 %v2023, 0.0
  %v2322 = vmax.f32 %v2028, 0.0
  %v2323 = vmax.f32 %v2033, 0.0
  %v2324 = vmax.f32 %v2038, 0.0
  %v2325 = vmax.f32 %v2043, 0.0
  %v2326 = vmax.f32 %v2048, 0.0
  %v2327 = vmax.f32 %v2053, 0.0
  %v2328 = vmax.f32 %v2058, 0.0
  %v2329 = vmax.f32 %v2063, 0.0
  %v2330 = vmax.f32 %v2068, 0.0
  %v2331 = vmax.f32 %v2073, 0.0
  %v2332 = vmax.f32 %v2078, 0.0
  %v2333 = vmax.f32 %v2083, 0.0
  %v2334 = vmax.f32 %v2088, 0.0
  %v2335 = vmax.f32 %v2093, 0.0
  %v2336 = vmax.f32 %v2098, 0.0
  %v2337 = vmax.f32 %v2103, 0.0
  %v2338 = vmax.f32 %v2108, 0.0
  %v2339 = vmax.f32 %v2113, 0.0
  %v2340 = vmax.f32 %v2118, 0.0
  %v2341 = vmax.f32 %v2123, 0.0
  %v2342 = vmax.f32 %v2128, 0.0
  %v2343 = vmax.f32 %v2133, 0.0
  %v2344 = vmax.f32 %v2138, 0.0
  %v2345 = vmax.f32 %v2143, 0.0
  %v2346 = vmax.f32 %v2148, 0.0
  %v2347 = vmax.f32 %v2153, 0.0
  %v2348 = vmax.f32 %v2158, 0.0
  %v2349 = vmax.f32 %v2163, 0.0
  %v2350 = vmax.f32 %v2168, 0.0
  %v2351 = vmax.f32 %v2173, 0.0
  %v2352 = vmax.f32 %v2178, 0.0
  %v2353 = vmax.f32 %v2183, 0.0
  %v2354 = vmax.f32 %v2188, 0.0
  %v2355 = vmax.f32 %v2193, 0.0
  %v2356 = vmax.f32 %v2198, 0.0
  %v2357 = vmax.f32 %v2203, 0.0
  %v2358 = vmax.f32 %v2208, 0.0
  %v2359 = vmax.f32 %v2213, 0.0
  %v2360 = vmax.f32 %v2218, 0.0
  %v2361 = vmax.f32 %v2223, 0.0
  %v2362 = vmax.f32 %v2228, 0.0
  %v2363 = vmax.f32 %v2233, 0.0
  %vm2364 = vcmask 523264
  %2365 = vst.msk [vmem:[%s3] sm:$0xff] %vm2364, %v2236
  %2366 = vst.msk [vmem:[%s3 + $0x8] sm:$0xff] %vm2364, %v2237
  %2367 = vst.msk [vmem:[%s3 + $0x10] sm:$0xff] %vm2364, %v2238
  %2368 = vst.msk [vmem:[%s3 + $0x18] sm:$0xff] %vm2364, %v2239
  %2369 = vst.msk [vmem:[%s3 + $0x20] sm:$0xff] %vm2364, %v2240
  %2370 = vst.msk [vmem:[%s3 + $0x28] sm:$0xff] %vm2364, %v2241
  %2371 = vst.msk [vmem:[%s3 + $0x30] sm:$0xff] %vm2364, %v2242
  %2372 = vst.msk [vmem:[%s3 + $0x38] sm:$0xff] %vm2364, %v2243
  %2373 = vst.msk [vmem:[%s3 + $0x40] sm:$0xff] %vm2364, %v2244
  %2374 = vst.msk [vmem:[%s3 + $0x48] sm:$0xff] %vm2364, %v2245
  %2375 = vst.msk [vmem:[%s3 + $0x50] sm:$0xff] %vm2364, %v2246
  %2376 = vst.msk [vmem:[%s3 + $0x58] sm:$0xff] %vm2364, %v2247
  %2377 = vst.msk [vmem:[%s3 + $0x60] sm:$0xff] %vm2364, %v2248
  %2378 = vst.msk [vmem:[%s3 + $0x68] sm:$0xff] %vm2364, %v2249
  %2379 = vst.msk [vmem:[%s3 + $0x70] sm:$0xff] %vm2364, %v2250
  %2380 = vst.msk [vmem:[%s3 + $0x78] sm:$0xff] %vm2364, %v2251
  %2381 = vst.msk [vmem:[%s3 + $0x80] sm:$0xff] %vm2364, %v2252
  %2382 = vst.msk [vmem:[%s3 + $0x88] sm:$0xff] %vm2364, %v2253
  %2383 = vst.msk [vmem:[%s3 + $0x90] sm:$0xff] %vm2364, %v2254
  %2384 = vst.msk [vmem:[%s3 + $0x98] sm:$0xff] %vm2364, %v2255
  %2385 = vst.msk [vmem:[%s3 + $0xa0] sm:$0xff] %vm2364, %v2256
  %2386 = vst.msk [vmem:[%s3 + $0xa8] sm:$0xff] %vm2364, %v2257
  %2387 = vst.msk [vmem:[%s3 + $0xb0] sm:$0xff] %vm2364, %v2258
  %2388 = vst.msk [vmem:[%s3 + $0xb8] sm:$0xff] %vm2364, %v2259
  %2389 = vst.msk [vmem:[%s3 + $0xc0] sm:$0xff] %vm2364, %v2260
  %2390 = vst.msk [vmem:[%s3 + $0xc8] sm:$0xff] %vm2364, %v2261
  %2391 = vst.msk [vmem:[%s3 + $0xd0] sm:$0xff] %vm2364, %v2262
  %2392 = vst.msk [vmem:[%s3 + $0xd8] sm:$0xff] %vm2364, %v2263
  %2393 = vst.msk [vmem:[%s3 + $0xe0] sm:$0xff] %vm2364, %v2264
  %2394 = vst.msk [vmem:[%s3 + $0xe8] sm:$0xff] %vm2364, %v2265
  %2395 = vst.msk [vmem:[%s3 + $0xf0] sm:$0xff] %vm2364, %v2266
  %2396 = vst.msk [vmem:[%s3 + $0xf8] sm:$0xff] %vm2364, %v2267
  %2397 = vst.msk [vmem:[%s3 + $0x100] sm:$0xff] %vm2364, %v2268
  %2398 = vst.msk [vmem:[%s3 + $0x108] sm:$0xff] %vm2364, %v2269
  %2399 = vst.msk [vmem:[%s3 + $0x110] sm:$0xff] %vm2364, %v2270
  %2400 = vst.msk [vmem:[%s3 + $0x118] sm:$0xff] %vm2364, %v2271
  %2401 = vst.msk [vmem:[%s3 + $0x120] sm:$0xff] %vm2364, %v2272
  %2402 = vst.msk [vmem:[%s3 + $0x128] sm:$0xff] %vm2364, %v2273
  %2403 = vst.msk [vmem:[%s3 + $0x130] sm:$0xff] %vm2364, %v2274
  %2404 = vst.msk [vmem:[%s3 + $0x138] sm:$0xff] %vm2364, %v2275
  %2405 = vst.msk [vmem:[%s3 + $0x140] sm:$0xff] %vm2364, %v2276
  %2406 = vst.msk [vmem:[%s3 + $0x148] sm:$0xff] %vm2364, %v2277
  %2407 = vst.msk [vmem:[%s3 + $0x150] sm:$0xff] %vm2364, %v2278
  %2408 = vst.msk [vmem:[%s3 + $0x158] sm:$0xff] %vm2364, %v2279
  %2409 = vst.msk [vmem:[%s3 + $0x160] sm:$0xff] %vm2364, %v2280
  %2410 = vst.msk [vmem:[%s3 + $0x168] sm:$0xff] %vm2364, %v2281
  %2411 = vst.msk [vmem:[%s3 + $0x170] sm:$0xff] %vm2364, %v2282
  %2412 = vst.msk [vmem:[%s3 + $0x178] sm:$0xff] %vm2364, %v2283
  %2413 = vst.msk [vmem:[%s3 + $0x180] sm:$0xff] %vm2364, %v2284
  %2414 = vst.msk [vmem:[%s3 + $0x188] sm:$0xff] %vm2364, %v2285
  %2415 = vst.msk [vmem:[%s3 + $0x190] sm:$0xff] %vm2364, %v2286
  %2416 = vst.msk [vmem:[%s3 + $0x198] sm:$0xff] %vm2364, %v2287
  %2417 = vst.msk [vmem:[%s3 + $0x1a0] sm:$0xff] %vm2364, %v2288
  %2418 = vst.msk [vmem:[%s3 + $0x1a8] sm:$0xff] %vm2364, %v2289
  %2419 = vst.msk [vmem:[%s3 + $0x1b0] sm:$0xff] %vm2364, %v2290
  %2420 = vst.msk [vmem:[%s3 + $0x1b8] sm:$0xff] %vm2364, %v2291
  %2421 = vst.msk [vmem:[%s3 + $0x1c0] sm:$0xff] %vm2364, %v2292
  %2422 = vst.msk [vmem:[%s3 + $0x1c8] sm:$0xff] %vm2364, %v2293
  %2423 = vst.msk [vmem:[%s3 + $0x1d0] sm:$0xff] %vm2364, %v2294
  %2424 = vst.msk [vmem:[%s3 + $0x1d8] sm:$0xff] %vm2364, %v2295
  %2425 = vst.msk [vmem:[%s3 + $0x1e0] sm:$0xff] %vm2364, %v2296
  %2426 = vst.msk [vmem:[%s3 + $0x1e8] sm:$0xff] %vm2364, %v2297
  %2427 = vst.msk [vmem:[%s3 + $0x1f0] sm:$0xff] %vm2364, %v2298
  %2428 = vst.msk [vmem:[%s3 + $0x1f8] sm:$0xff] %vm2364, %v2299
  %2429 = vst.msk [vmem:[%s3 + $0x200] sm:$0xff] %vm2364, %v2300
  %2430 = vst.msk [vmem:[%s3 + $0x208] sm:$0xff] %vm2364, %v2301
  %2431 = vst.msk [vmem:[%s3 + $0x210] sm:$0xff] %vm2364, %v2302
  %2432 = vst.msk [vmem:[%s3 + $0x218] sm:$0xff] %vm2364, %v2303
  %2433 = vst.msk [vmem:[%s3 + $0x220] sm:$0xff] %vm2364, %v2304
  %2434 = vst.msk [vmem:[%s3 + $0x228] sm:$0xff] %vm2364, %v2305
  %2435 = vst.msk [vmem:[%s3 + $0x230] sm:$0xff] %vm2364, %v2306
  %2436 = vst.msk [vmem:[%s3 + $0x238] sm:$0xff] %vm2364, %v2307
  %2437 = vst.msk [vmem:[%s3 + $0x240] sm:$0xff] %vm2364, %v2308
  %2438 = vst.msk [vmem:[%s3 + $0x248] sm:$0xff] %vm2364, %v2309
  %2439 = vst.msk [vmem:[%s3 + $0x250] sm:$0xff] %vm2364, %v2310
  %2440 = vst.msk [vmem:[%s3 + $0x258] sm:$0xff] %vm2364, %v2311
  %2441 = vst.msk [vmem:[%s3 + $0x260] sm:$0xff] %vm2364, %v2312
  %2442 = vst.msk [vmem:[%s3 + $0x268] sm:$0xff] %vm2364, %v2313
  %2443 = vst.msk [vmem:[%s3 + $0x270] sm:$0xff] %vm2364, %v2314
  %2444 = vst.msk [vmem:[%s3 + $0x278] sm:$0xff] %vm2364, %v2315
  %2445 = vst.msk [vmem:[%s3 + $0x280] sm:$0xff] %vm2364, %v2316
  %2446 = vst.msk [vmem:[%s3 + $0x288] sm:$0xff] %vm2364, %v2317
  %2447 = vst.msk [vmem:[%s3 + $0x290] sm:$0xff] %vm2364, %v2318
  %2448 = vst.msk [vmem:[%s3 + $0x298] sm:$0xff] %vm2364, %v2319
  %2449 = vst.msk [vmem:[%s3 + $0x2a0] sm:$0xff] %vm2364, %v2320
  %2450 = vst.msk [vmem:[%s3 + $0x2a8] sm:$0xff] %vm2364, %v2321
  %2451 = vst.msk [vmem:[%s3 + $0x2b0] sm:$0xff] %vm2364, %v2322
  %2452 = vst.msk [vmem:[%s3 + $0x2b8] sm:$0xff] %vm2364, %v2323
  %2453 = vst.msk [vmem:[%s3 + $0x2c0] sm:$0xff] %vm2364, %v2324
  %2454 = vst.msk [vmem:[%s3 + $0x2c8] sm:$0xff] %vm2364, %v2325
  %2455 = vst.msk [vmem:[%s3 + $0x2d0] sm:$0xff] %vm2364, %v2326
  %2456 = vst.msk [vmem:[%s3 + $0x2d8] sm:$0xff] %vm2364, %v2327
  %2457 = vst.msk [vmem:[%s3 + $0x2e0] sm:$0xff] %vm2364, %v2328
  %2458 = vst.msk [vmem:[%s3 + $0x2e8] sm:$0xff] %vm2364, %v2329
  %2459 = vst.msk [vmem:[%s3 + $0x2f0] sm:$0xff] %vm2364, %v2330
  %2460 = vst.msk [vmem:[%s3 + $0x2f8] sm:$0xff] %vm2364, %v2331
  %2461 = vst.msk [vmem:[%s3 + $0x300] sm:$0xff] %vm2364, %v2332
  %2462 = vst.msk [vmem:[%s3 + $0x308] sm:$0xff] %vm2364, %v2333
  %2463 = vst.msk [vmem:[%s3 + $0x310] sm:$0xff] %vm2364, %v2334
  %2464 = vst.msk [vmem:[%s3 + $0x318] sm:$0xff] %vm2364, %v2335
  %2465 = vst.msk [vmem:[%s3 + $0x320] sm:$0xff] %vm2364, %v2336
  %2466 = vst.msk [vmem:[%s3 + $0x328] sm:$0xff] %vm2364, %v2337
  %2467 = vst.msk [vmem:[%s3 + $0x330] sm:$0xff] %vm2364, %v2338
  %2468 = vst.msk [vmem:[%s3 + $0x338] sm:$0xff] %vm2364, %v2339
  %2469 = vst.msk [vmem:[%s3 + $0x340] sm:$0xff] %vm2364, %v2340
  %2470 = vst.msk [vmem:[%s3 + $0x348] sm:$0xff] %vm2364, %v2341
  %2471 = vst.msk [vmem:[%s3 + $0x350] sm:$0xff] %vm2364, %v2342
  %2472 = vst.msk [vmem:[%s3 + $0x358] sm:$0xff] %vm2364, %v2343
  %2473 = vst.msk [vmem:[%s3 + $0x360] sm:$0xff] %vm2364, %v2344
  %2474 = vst.msk [vmem:[%s3 + $0x368] sm:$0xff] %vm2364, %v2345
  %2475 = vst.msk [vmem:[%s3 + $0x370] sm:$0xff] %vm2364, %v2346
  %2476 = vst.msk [vmem:[%s3 + $0x378] sm:$0xff] %vm2364, %v2347
  %2477 = vst.msk [vmem:[%s3 + $0x380] sm:$0xff] %vm2364, %v2348
  %2478 = vst.msk [vmem:[%s3 + $0x388] sm:$0xff] %vm2364, %v2349
  %2479 = vst.msk [vmem:[%s3 + $0x390] sm:$0xff] %vm2364, %v2350
  %2480 = vst.msk [vmem:[%s3 + $0x398] sm:$0xff] %vm2364, %v2351
  %2481 = vst.msk [vmem:[%s3 + $0x3a0] sm:$0xff] %vm2364, %v2352
  %2482 = vst.msk [vmem:[%s3 + $0x3a8] sm:$0xff] %vm2364, %v2353
  %2483 = vst.msk [vmem:[%s3 + $0x3b0] sm:$0xff] %vm2364, %v2354
  %2484 = vst.msk [vmem:[%s3 + $0x3b8] sm:$0xff] %vm2364, %v2355
  %2485 = vst.msk [vmem:[%s3 + $0x3c0] sm:$0xff] %vm2364, %v2356
  %2486 = vst.msk [vmem:[%s3 + $0x3c8] sm:$0xff] %vm2364, %v2357
  %2487 = vst.msk [vmem:[%s3 + $0x3d0] sm:$0xff] %vm2364, %v2358
  %2488 = vst.msk [vmem:[%s3 + $0x3d8] sm:$0xff] %vm2364, %v2359
  %2489 = vst.msk [vmem:[%s3 + $0x3e0] sm:$0xff] %vm2364, %v2360
  %2490 = vst.msk [vmem:[%s3 + $0x3e8] sm:$0xff] %vm2364, %v2361
  %2491 = vst.msk [vmem:[%s3 + $0x3f0] sm:$0xff] %vm2364, %v2362
  %2492 = vst.msk [vmem:[%s3 + $0x3f8] sm:$0xff] %vm2364, %v2363
  // Predicated region
  $region14: #{siamese_forward.4} parent=0 // pred_check
    _
  $region15: #{siamese_forward.4} parent=0 // pred_check_branch
    %2494 = sbr.rel (0) target = $region17
  $region16: #{siamese_forward.4} parent=0 // pred_region
    _
  $region17: #{siamese_forward.4} parent=0 // pred_fallthru
    _
  // Predicated region
  $region18: #{siamese_forward.4} parent=0 // pred_check
    _
  $region19: #{siamese_forward.4} parent=0 // pred_check_branch
    %2496 = sbr.rel (0) target = $region21
  $region20: #{siamese_forward.4} parent=0 // pred_region
    _
  $region21: #{siamese_forward.4} parent=0 // pred_fallthru
    _

// kernel: siamese_forward.5
$region0: #{siamese_forward.5}
  #allocation0 [shape = 'u32[]', space=smem, size = 0x4, offset = 0x4, fixed_abs, tag = 'smem constant byte address 0x4 - core index']
  #allocation1 [shape = 'u32[144,128]{1,0:T(1,128)}', space=vmem, size = 0x12000, scoped, tag = 'internal scratch']
  %s0 = inlined_call_operand.vmem [shape: f32[4,5184], index: 0, kind: input, shape index: {}]
  %s1 = inlined_call_operand.vmem [shape: f32[4,5184], index: 1, kind: input, shape index: {}]
  %s2 = inlined_call_operand.vmem [shape: f32[4,5184], index: 2, kind: input, shape index: {}]
  %s3 = inlined_call_operand.vmem [shape: f32[4,5184], index: 3, kind: input, shape index: {}]
  %s4 = inlined_call_operand.vmem [shape: f32[5184,256], index: 4, kind: input, shape index: {}]
  %s5 = inlined_call_operand.vmem [shape: f32[1,256], index: 5, kind: input, shape index: {}]
  %s6 = inlined_call_operand.vmem [shape: f32[256,128], index: 6, kind: input, shape index: {}]
  %s7 = inlined_call_operand.vmem [shape: f32[1,128], index: 7, kind: input, shape index: {}]
  %s8 = inlined_call_operand.vmem [shape: f32[128,64], index: 8, kind: input, shape index: {}]
  %s9 = inlined_call_operand.vmem [shape: f32[1,64], index: 9, kind: input, shape index: {}]
  %s10 = inlined_call_operand.vmem [shape: f32[64,128], index: 10, kind: input, shape index: {}]
  %s11 = inlined_call_operand.vmem [shape: f32[1,128], index: 11, kind: input, shape index: {}]
  %s12 = inlined_call_operand.vmem [shape: f32[128,42], index: 12, kind: input, shape index: {}]
  %s13 = inlined_call_operand.vmem [shape: f32[1,42], index: 13, kind: input, shape index: {}]
  %s14 = inlined_call_operand.vmem [shape: f32[42,10], index: 14, kind: input, shape index: {}]
  %s15 = inlined_call_operand.vmem [shape: f32[1,10], index: 15, kind: input, shape index: {}]
  %s16 = inlined_call_operand.vmem [shape: f32[4,128], index: 16, kind: output, shape index: {0}]
  %s17 = inlined_call_operand.vmem [shape: f32[4,10], index: 17, kind: output, shape index: {1}]
  %18 = xla_tuple %s16, %s17
  %s19 = sld [smem:[#allocation0]]
  $region82: #{siamese_forward.5} parent=0
    _
  %s21 = ssub.s32 1, %s19
  %s22 = scalar_select 0, %s21, %s19
  // Predicated region
  $region2: #{siamese_forward.5} parent=0 // pred_check
    _
  $region3: #{siamese_forward.5} parent=0 // pred_check_branch
    %24 = sbr.rel (0) target = $region5
  $region4: #{siamese_forward.5} parent=0 // pred_region
    _
  $region5: #{siamese_forward.5} parent=0 // pred_fallthru
    _
  // Predicated region
  $region6: #{siamese_forward.5} parent=0 // pred_check
    _
  $region7: #{siamese_forward.5} parent=0 // pred_check_branch
    %26 = sbr.rel (0) target = $region9
  $region8: #{siamese_forward.5} parent=0 // pred_region
    _
  $region9: #{siamese_forward.5} parent=0 // pred_fallthru
    _
  // Predicated region
  $region10: #{siamese_forward.5} parent=0 // pred_check
    _
  $region11: #{siamese_forward.5} parent=0 // pred_check_branch
    %28 = sbr.rel (0) target = $region13
  $region12: #{siamese_forward.5} parent=0 // pred_region
    _
  $region13: #{siamese_forward.5} parent=0 // pred_fallthru
    _
  // Predicated region
  $region14: #{siamese_forward.5} parent=0 // pred_check
    _
  $region15: #{siamese_forward.5} parent=0 // pred_check_branch
    %30 = sbr.rel (0) target = $region17
  $region16: #{siamese_forward.5} parent=0 // pred_region
    _
  $region17: #{siamese_forward.5} parent=0 // pred_fallthru
    _
  // Predicated region
  $region18: #{siamese_forward.5} parent=0 // pred_check
    _
  $region19: #{siamese_forward.5} parent=0 // pred_check_branch
    %32 = sbr.rel (0) target = $region21
  $region20: #{siamese_forward.5} parent=0 // pred_region
    _
  $region21: #{siamese_forward.5} parent=0 // pred_fallthru
    _
  // Predicated region
  $region22: #{siamese_forward.5} parent=0 // pred_check
    _
  $region23: #{siamese_forward.5} parent=0 // pred_check_branch
    %34 = sbr.rel (0) target = $region25
  $region24: #{siamese_forward.5} parent=0 // pred_region
    _
  $region25: #{siamese_forward.5} parent=0 // pred_fallthru
    _
  // Predicated region
  $region26: #{siamese_forward.5} parent=0 // pred_check
    _
  $region27: #{siamese_forward.5} parent=0 // pred_check_branch
    %36 = sbr.rel (0) target = $region29
  $region28: #{siamese_forward.5} parent=0 // pred_region
    _
  $region29: #{siamese_forward.5} parent=0 // pred_fallthru
    _
  // Predicated region
  $region30: #{siamese_forward.5} parent=0 // pred_check
    _
  $region31: #{siamese_forward.5} parent=0 // pred_check_branch
    %38 = sbr.rel (0) target = $region33
  $region32: #{siamese_forward.5} parent=0 // pred_region
    _
  $region33: #{siamese_forward.5} parent=0 // pred_fallthru
    _
  // Predicated region
  $region34: #{siamese_forward.5} parent=0 // pred_check
    _
  $region35: #{siamese_forward.5} parent=0 // pred_check_branch
    %40 = sbr.rel (0) target = $region37
  $region36: #{siamese_forward.5} parent=0 // pred_region
    _
  $region37: #{siamese_forward.5} parent=0 // pred_fallthru
    _
  // Predicated region
  $region38: #{siamese_forward.5} parent=0 // pred_check
    _
  $region39: #{siamese_forward.5} parent=0 // pred_check_branch
    %42 = sbr.rel (0) target = $region41
  $region40: #{siamese_forward.5} parent=0 // pred_region
    _
  $region41: #{siamese_forward.5} parent=0 // pred_fallthru
    _
  // Predicated region
  $region42: #{siamese_forward.5} parent=0 // pred_check
    _
  $region43: #{siamese_forward.5} parent=0 // pred_check_branch
    %44 = sbr.rel (0) target = $region45
  $region44: #{siamese_forward.5} parent=0 // pred_region
    _
  $region45: #{siamese_forward.5} parent=0 // pred_fallthru
    _
  // Predicated region
  $region46: #{siamese_forward.5} parent=0 // pred_check
    _
  $region47: #{siamese_forward.5} parent=0 // pred_check_branch
    %46 = sbr.rel (0) target = $region49
  $region48: #{siamese_forward.5} parent=0 // pred_region
    _
  $region49: #{siamese_forward.5} parent=0 // pred_fallthru
    _
  // Predicated region
  $region50: #{siamese_forward.5} parent=0 // pred_check
    _
  $region51: #{siamese_forward.5} parent=0 // pred_check_branch
    %48 = sbr.rel (0) target = $region53
  $region52: #{siamese_forward.5} parent=0 // pred_region
    _
  $region53: #{siamese_forward.5} parent=0 // pred_fallthru
    _
  // Predicated region
  $region54: #{siamese_forward.5} parent=0 // pred_check
    _
  $region55: #{siamese_forward.5} parent=0 // pred_check_branch
    %50 = sbr.rel (0) target = $region57
  $region56: #{siamese_forward.5} parent=0 // pred_region
    _
  $region57: #{siamese_forward.5} parent=0 // pred_fallthru
    _
  // Predicated region
  $region58: #{siamese_forward.5} parent=0 // pred_check
    _
  $region59: #{siamese_forward.5} parent=0 // pred_check_branch
    %52 = sbr.rel (0) target = $region61
  $region60: #{siamese_forward.5} parent=0 // pred_region
    _
  $region61: #{siamese_forward.5} parent=0 // pred_fallthru
    _
  // Predicated region
  $region62: #{siamese_forward.5} parent=0 // pred_check
    _
  $region63: #{siamese_forward.5} parent=0 // pred_check_branch
    %54 = sbr.rel (0) target = $region65
  $region64: #{siamese_forward.5} parent=0 // pred_region
    _
  $region65: #{siamese_forward.5} parent=0 // pred_fallthru
    _
  %v55 = vld [vmem:[%s0] sm:$0xff]
  %v56 = vld [vmem:[%s0 + $0x8] sm:$0xff]
  %v57 = vld [vmem:[%s0 + $0x10] sm:$0xff]
  %v58 = vld [vmem:[%s0 + $0x18] sm:$0xff]
  %v59 = vld [vmem:[%s0 + $0x20] sm:$0xff]
  %v60 = vld [vmem:[%s0 + $0x28] sm:$0xff]
  %v61 = vld [vmem:[%s0 + $0x30] sm:$0xff]
  %v62 = vld [vmem:[%s0 + $0x38] sm:$0xff]
  %v63 = vld [vmem:[%s0 + $0x40] sm:$0xff]
  %v64 = vld [vmem:[%s0 + $0x48] sm:$0xff]
  %v65 = vld [vmem:[%s0 + $0x50] sm:$0xff]
  %v66 = vld [vmem:[%s0 + $0x58] sm:$0xff]
  %v67 = vld [vmem:[%s0 + $0x60] sm:$0xff]
  %v68 = vld [vmem:[%s0 + $0x68] sm:$0xff]
  %v69 = vld [vmem:[%s0 + $0x70] sm:$0xff]
  %v70 = vld [vmem:[%s0 + $0x78] sm:$0xff]
  %v71 = vld [vmem:[%s0 + $0x80] sm:$0xff]
  %v72 = vld [vmem:[%s0 + $0x88] sm:$0xff]
  %v73 = vld [vmem:[%s0 + $0x90] sm:$0xff]
  %v74 = vld [vmem:[%s0 + $0x98] sm:$0xff]
  %v75 = vld [vmem:[%s0 + $0xa0] sm:$0xf]
  %v76 = vld [vmem:[%s1] sm:$0xff]
  %v77 = vld [vmem:[%s1 + $0x8] sm:$0xff]
  %v78 = vld [vmem:[%s1 + $0x10] sm:$0xff]
  %v79 = vld [vmem:[%s1 + $0x18] sm:$0xff]
  %v80 = vld [vmem:[%s1 + $0x20] sm:$0xff]
  %v81 = vld [vmem:[%s1 + $0x28] sm:$0xff]
  %v82 = vld [vmem:[%s1 + $0x30] sm:$0xff]
  %v83 = vld [vmem:[%s1 + $0x38] sm:$0xff]
  %v84 = vld [vmem:[%s1 + $0x40] sm:$0xff]
  %v85 = vld [vmem:[%s1 + $0x48] sm:$0xff]
  %v86 = vld [vmem:[%s1 + $0x50] sm:$0xff]
  %v87 = vld [vmem:[%s1 + $0x58] sm:$0xff]
  %v88 = vld [vmem:[%s1 + $0x60] sm:$0xff]
  %v89 = vld [vmem:[%s1 + $0x68] sm:$0xff]
  %v90 = vld [vmem:[%s1 + $0x70] sm:$0xff]
  %v91 = vld [vmem:[%s1 + $0x78] sm:$0xff]
  %v92 = vld [vmem:[%s1 + $0x80] sm:$0xff]
  %v93 = vld [vmem:[%s1 + $0x88] sm:$0xff]
  %v94 = vld [vmem:[%s1 + $0x90] sm:$0xff]
  %v95 = vld [vmem:[%s1 + $0x98] sm:$0xff]
  %v96 = vld [vmem:[%s1 + $0xa0] sm:$0xf]
  %v97 = vmax.f32 %v55, %v76
  %v98 = vmax.f32 %v56, %v77
  %v99 = vmax.f32 %v57, %v78
  %v100 = vmax.f32 %v58, %v79
  %v101 = vmax.f32 %v59, %v80
  %v102 = vmax.f32 %v60, %v81
  %v103 = vmax.f32 %v61, %v82
  %v104 = vmax.f32 %v62, %v83
  %v105 = vmax.f32 %v63, %v84
  %v106 = vmax.f32 %v64, %v85
  %v107 = vmax.f32 %v65, %v86
  %v108 = vmax.f32 %v66, %v87
  %v109 = vmax.f32 %v67, %v88
  %v110 = vmax.f32 %v68, %v89
  %v111 = vmax.f32 %v69, %v90
  %v112 = vmax.f32 %v70, %v91
  %v113 = vmax.f32 %v71, %v92
  %v114 = vmax.f32 %v72, %v93
  %v115 = vmax.f32 %v73, %v94
  %v116 = vmax.f32 %v74, %v95
  %v117 = vmax.f32 %v75, %v96
  %v118 = vld [vmem:[%s2] sm:$0xff]
  %v119 = vld [vmem:[%s2 + $0x8] sm:$0xff]
  %v120 = vld [vmem:[%s2 + $0x10] sm:$0xff]
  %v121 = vld [vmem:[%s2 + $0x18] sm:$0xff]
  %v122 = vld [vmem:[%s2 + $0x20] sm:$0xff]
  %v123 = vld [vmem:[%s2 + $0x28] sm:$0xff]
  %v124 = vld [vmem:[%s2 + $0x30] sm:$0xff]
  %v125 = vld [vmem:[%s2 + $0x38] sm:$0xff]
  %v126 = vld [vmem:[%s2 + $0x40] sm:$0xff]
  %v127 = vld [vmem:[%s2 + $0x48] sm:$0xff]
  %v128 = vld [vmem:[%s2 + $0x50] sm:$0xff]
  %v129 = vld [vmem:[%s2 + $0x58] sm:$0xff]
  %v130 = vld [vmem:[%s2 + $0x60] sm:$0xff]
  %v131 = vld [vmem:[%s2 + $0x68] sm:$0xff]
  %v132 = vld [vmem:[%s2 + $0x70] sm:$0xff]
  %v133 = vld [vmem:[%s2 + $0x78] sm:$0xff]
  %v134 = vld [vmem:[%s2 + $0x80] sm:$0xff]
  %v135 = vld [vmem:[%s2 + $0x88] sm:$0xff]
  %v136 = vld [vmem:[%s2 + $0x90] sm:$0xff]
  %v137 = vld [vmem:[%s2 + $0x98] sm:$0xff]
  %v138 = vld [vmem:[%s2 + $0xa0] sm:$0xf]
  %v139 = vld [vmem:[%s3] sm:$0xff]
  %v140 = vld [vmem:[%s3 + $0x8] sm:$0xff]
  %v141 = vld [vmem:[%s3 + $0x10] sm:$0xff]
  %v142 = vld [vmem:[%s3 + $0x18] sm:$0xff]
  %v143 = vld [vmem:[%s3 + $0x20] sm:$0xff]
  %v144 = vld [vmem:[%s3 + $0x28] sm:$0xff]
  %v145 = vld [vmem:[%s3 + $0x30] sm:$0xff]
  %v146 = vld [vmem:[%s3 + $0x38] sm:$0xff]
  %v147 = vld [vmem:[%s3 + $0x40] sm:$0xff]
  %v148 = vld [vmem:[%s3 + $0x48] sm:$0xff]
  %v149 = vld [vmem:[%s3 + $0x50] sm:$0xff]
  %v150 = vld [vmem:[%s3 + $0x58] sm:$0xff]
  %v151 = vld [vmem:[%s3 + $0x60] sm:$0xff]
  %v152 = vld [vmem:[%s3 + $0x68] sm:$0xff]
  %v153 = vld [vmem:[%s3 + $0x70] sm:$0xff]
  %v154 = vld [vmem:[%s3 + $0x78] sm:$0xff]
  %v155 = vld [vmem:[%s3 + $0x80] sm:$0xff]
  %v156 = vld [vmem:[%s3 + $0x88] sm:$0xff]
  %v157 = vld [vmem:[%s3 + $0x90] sm:$0xff]
  %v158 = vld [vmem:[%s3 + $0x98] sm:$0xff]
  %v159 = vld [vmem:[%s3 + $0xa0] sm:$0xf]
  %v160 = vmax.f32 %v118, %v139
  %v161 = vmax.f32 %v119, %v140
  %v162 = vmax.f32 %v120, %v141
  %v163 = vmax.f32 %v121, %v142
  %v164 = vmax.f32 %v122, %v143
  %v165 = vmax.f32 %v123, %v144
  %v166 = vmax.f32 %v124, %v145
  %v167 = vmax.f32 %v125, %v146
  %v168 = vmax.f32 %v126, %v147
  %v169 = vmax.f32 %v127, %v148
  %v170 = vmax.f32 %v128, %v149
  %v171 = vmax.f32 %v129, %v150
  %v172 = vmax.f32 %v130, %v151
  %v173 = vmax.f32 %v131, %v152
  %v174 = vmax.f32 %v132, %v153
  %v175 = vmax.f32 %v133, %v154
  %v176 = vmax.f32 %v134, %v155
  %v177 = vmax.f32 %v135, %v156
  %v178 = vmax.f32 %v136, %v157
  %v179 = vmax.f32 %v137, %v158
  %v180 = vmax.f32 %v138, %v159
  %v181 = vmax.f32 %v97, %v160
  %v182 = vmax.f32 %v98, %v161
  %v183 = vmax.f32 %v99, %v162
  %v184 = vmax.f32 %v100, %v163
  %v185 = vmax.f32 %v101, %v164
  %v186 = vmax.f32 %v102, %v165
  %v187 = vmax.f32 %v103, %v166
  %v188 = vmax.f32 %v104, %v167
  %v189 = vmax.f32 %v105, %v168
  %v190 = vmax.f32 %v106, %v169
  %v191 = vmax.f32 %v107, %v170
  %v192 = vmax.f32 %v108, %v171
  %v193 = vmax.f32 %v109, %v172
  %v194 = vmax.f32 %v110, %v173
  %v195 = vmax.f32 %v111, %v174
  %v196 = vmax.f32 %v112, %v175
  %v197 = vmax.f32 %v113, %v176
  %v198 = vmax.f32 %v114, %v177
  %v199 = vmax.f32 %v115, %v178
  %v200 = vmax.f32 %v116, %v179
  %v201 = vmax.f32 %v117, %v180
  %v202 = vld [vmem:[%s4] sm:$0xff]
  %v203 = vld [vmem:[%s4 + $0x8] sm:$0xff]
  %v204 = vld [vmem:[%s4 + $0x10] sm:$0xff]
  %v205 = vld [vmem:[%s4 + $0x18] sm:$0xff]
  %v206 = vld [vmem:[%s4 + $0x20] sm:$0xff]
  %v207 = vld [vmem:[%s4 + $0x28] sm:$0xff]
  %v208 = vld [vmem:[%s4 + $0x30] sm:$0xff]
  %v209 = vld [vmem:[%s4 + $0x38] sm:$0xff]
  %v210 = vld [vmem:[%s4 + $0x40] sm:$0xff]
  %v211 = vld [vmem:[%s4 + $0x48] sm:$0xff]
  %v212 = vld [vmem:[%s4 + $0x50] sm:$0xff]
  %v213 = vld [vmem:[%s4 + $0x58] sm:$0xff]
  %v214 = vld [vmem:[%s4 + $0x60] sm:$0xff]
  %v215 = vld [vmem:[%s4 + $0x68] sm:$0xff]
  %v216 = vld [vmem:[%s4 + $0x70] sm:$0xff]
  %v217 = vld [vmem:[%s4 + $0x78] sm:$0xff]
  %v218 = vld [vmem:[%s4 + $0x80] sm:$0xff]
  %v219 = vld [vmem:[%s4 + $0x88] sm:$0xff]
  %v220 = vld [vmem:[%s4 + $0x90] sm:$0xff]
  %v221 = vld [vmem:[%s4 + $0x98] sm:$0xff]
  %v222 = vld [vmem:[%s4 + $0xa0] sm:$0xff]
  %v223 = vld [vmem:[%s4 + $0xa8] sm:$0xff]
  %v224 = vld [vmem:[%s4 + $0xb0] sm:$0xff]
  %v225 = vld [vmem:[%s4 + $0xb8] sm:$0xff]
  %v226 = vld [vmem:[%s4 + $0xc0] sm:$0xff]
  %v227 = vld [vmem:[%s4 + $0xc8] sm:$0xff]
  %v228 = vld [vmem:[%s4 + $0xd0] sm:$0xff]
  %v229 = vld [vmem:[%s4 + $0xd8] sm:$0xff]
  %v230 = vld [vmem:[%s4 + $0xe0] sm:$0xff]
  %v231 = vld [vmem:[%s4 + $0xe8] sm:$0xff]
  %v232 = vld [vmem:[%s4 + $0xf0] sm:$0xff]
  %v233 = vld [vmem:[%s4 + $0xf8] sm:$0xff]
  %v234 = vld [vmem:[%s4 + $0x100] sm:$0xff]
  %v235 = vld [vmem:[%s4 + $0x108] sm:$0xff]
  %v236 = vld [vmem:[%s4 + $0x110] sm:$0xff]
  %v237 = vld [vmem:[%s4 + $0x118] sm:$0xff]
  %v238 = vld [vmem:[%s4 + $0x120] sm:$0xff]
  %v239 = vld [vmem:[%s4 + $0x128] sm:$0xff]
  %v240 = vld [vmem:[%s4 + $0x130] sm:$0xff]
  %v241 = vld [vmem:[%s4 + $0x138] sm:$0xff]
  %v242 = vld [vmem:[%s4 + $0x140] sm:$0xff]
  %v243 = vld [vmem:[%s4 + $0x148] sm:$0xff]
  %v244 = vld [vmem:[%s4 + $0x150] sm:$0xff]
  %v245 = vld [vmem:[%s4 + $0x158] sm:$0xff]
  %v246 = vld [vmem:[%s4 + $0x160] sm:$0xff]
  %v247 = vld [vmem:[%s4 + $0x168] sm:$0xff]
  %v248 = vld [vmem:[%s4 + $0x170] sm:$0xff]
  %v249 = vld [vmem:[%s4 + $0x178] sm:$0xff]
  %v250 = vld [vmem:[%s4 + $0x180] sm:$0xff]
  %v251 = vld [vmem:[%s4 + $0x188] sm:$0xff]
  %v252 = vld [vmem:[%s4 + $0x190] sm:$0xff]
  %v253 = vld [vmem:[%s4 + $0x198] sm:$0xff]
  %v254 = vld [vmem:[%s4 + $0x1a0] sm:$0xff]
  %v255 = vld [vmem:[%s4 + $0x1a8] sm:$0xff]
  %v256 = vld [vmem:[%s4 + $0x1b0] sm:$0xff]
  %v257 = vld [vmem:[%s4 + $0x1b8] sm:$0xff]
  %v258 = vld [vmem:[%s4 + $0x1c0] sm:$0xff]
  %v259 = vld [vmem:[%s4 + $0x1c8] sm:$0xff]
  %v260 = vld [vmem:[%s4 + $0x1d0] sm:$0xff]
  %v261 = vld [vmem:[%s4 + $0x1d8] sm:$0xff]
  %v262 = vld [vmem:[%s4 + $0x1e0] sm:$0xff]
  %v263 = vld [vmem:[%s4 + $0x1e8] sm:$0xff]
  %v264 = vld [vmem:[%s4 + $0x1f0] sm:$0xff]
  %v265 = vld [vmem:[%s4 + $0x1f8] sm:$0xff]
  %v266 = vld [vmem:[%s4 + $0x200] sm:$0xff]
  %v267 = vld [vmem:[%s4 + $0x208] sm:$0xff]
  %v268 = vld [vmem:[%s4 + $0x210] sm:$0xff]
  %v269 = vld [vmem:[%s4 + $0x218] sm:$0xff]
  %v270 = vld [vmem:[%s4 + $0x220] sm:$0xff]
  %v271 = vld [vmem:[%s4 + $0x228] sm:$0xff]
  %v272 = vld [vmem:[%s4 + $0x230] sm:$0xff]
  %v273 = vld [vmem:[%s4 + $0x238] sm:$0xff]
  %v274 = vld [vmem:[%s4 + $0x240] sm:$0xff]
  %v275 = vld [vmem:[%s4 + $0x248] sm:$0xff]
  %v276 = vld [vmem:[%s4 + $0x250] sm:$0xff]
  %v277 = vld [vmem:[%s4 + $0x258] sm:$0xff]
  %v278 = vld [vmem:[%s4 + $0x260] sm:$0xff]
  %v279 = vld [vmem:[%s4 + $0x268] sm:$0xff]
  %v280 = vld [vmem:[%s4 + $0x270] sm:$0xff]
  %v281 = vld [vmem:[%s4 + $0x278] sm:$0xff]
  %v282 = vld [vmem:[%s4 + $0x280] sm:$0xff]
  %v283 = vld [vmem:[%s4 + $0x288] sm:$0xff]
  %v284 = vld [vmem:[%s4 + $0x290] sm:$0xff]
  %v285 = vld [vmem:[%s4 + $0x298] sm:$0xff]
  %v286 = vld [vmem:[%s4 + $0x2a0] sm:$0xff]
  %v287 = vld [vmem:[%s4 + $0x2a8] sm:$0xff]
  %v288 = vld [vmem:[%s4 + $0x2b0] sm:$0xff]
  %v289 = vld [vmem:[%s4 + $0x2b8] sm:$0xff]
  %v290 = vld [vmem:[%s4 + $0x2c0] sm:$0xff]
  %v291 = vld [vmem:[%s4 + $0x2c8] sm:$0xff]
  %v292 = vld [vmem:[%s4 + $0x2d0] sm:$0xff]
  %v293 = vld [vmem:[%s4 + $0x2d8] sm:$0xff]
  %v294 = vld [vmem:[%s4 + $0x2e0] sm:$0xff]
  %v295 = vld [vmem:[%s4 + $0x2e8] sm:$0xff]
  %v296 = vld [vmem:[%s4 + $0x2f0] sm:$0xff]
  %v297 = vld [vmem:[%s4 + $0x2f8] sm:$0xff]
  %v298 = vld [vmem:[%s4 + $0x300] sm:$0xff]
  %v299 = vld [vmem:[%s4 + $0x308] sm:$0xff]
  %v300 = vld [vmem:[%s4 + $0x310] sm:$0xff]
  %v301 = vld [vmem:[%s4 + $0x318] sm:$0xff]
  %v302 = vld [vmem:[%s4 + $0x320] sm:$0xff]
  %v303 = vld [vmem:[%s4 + $0x328] sm:$0xff]
  %v304 = vld [vmem:[%s4 + $0x330] sm:$0xff]
  %v305 = vld [vmem:[%s4 + $0x338] sm:$0xff]
  %v306 = vld [vmem:[%s4 + $0x340] sm:$0xff]
  %v307 = vld [vmem:[%s4 + $0x348] sm:$0xff]
  %v308 = vld [vmem:[%s4 + $0x350] sm:$0xff]
  %v309 = vld [vmem:[%s4 + $0x358] sm:$0xff]
  %v310 = vld [vmem:[%s4 + $0x360] sm:$0xff]
  %v311 = vld [vmem:[%s4 + $0x368] sm:$0xff]
  %v312 = vld [vmem:[%s4 + $0x370] sm:$0xff]
  %v313 = vld [vmem:[%s4 + $0x378] sm:$0xff]
  %v314 = vld [vmem:[%s4 + $0x380] sm:$0xff]
  %v315 = vld [vmem:[%s4 + $0x388] sm:$0xff]
  %v316 = vld [vmem:[%s4 + $0x390] sm:$0xff]
  %v317 = vld [vmem:[%s4 + $0x398] sm:$0xff]
  %v318 = vld [vmem:[%s4 + $0x3a0] sm:$0xff]
  %v319 = vld [vmem:[%s4 + $0x3a8] sm:$0xff]
  %v320 = vld [vmem:[%s4 + $0x3b0] sm:$0xff]
  %v321 = vld [vmem:[%s4 + $0x3b8] sm:$0xff]
  %v322 = vld [vmem:[%s4 + $0x3c0] sm:$0xff]
  %v323 = vld [vmem:[%s4 + $0x3c8] sm:$0xff]
  %v324 = vld [vmem:[%s4 + $0x3d0] sm:$0xff]
  %v325 = vld [vmem:[%s4 + $0x3d8] sm:$0xff]
  %v326 = vld [vmem:[%s4 + $0x3e0] sm:$0xff]
  %v327 = vld [vmem:[%s4 + $0x3e8] sm:$0xff]
  %v328 = vld [vmem:[%s4 + $0x3f0] sm:$0xff]
  %v329 = vld [vmem:[%s4 + $0x3f8] sm:$0xff]
  %v330 = vld [vmem:[%s4 + $0x400] sm:$0xff]
  %v331 = vld [vmem:[%s4 + $0x408] sm:$0xff]
  %v332 = vld [vmem:[%s4 + $0x410] sm:$0xff]
  %v333 = vld [vmem:[%s4 + $0x418] sm:$0xff]
  %v334 = vld [vmem:[%s4 + $0x420] sm:$0xff]
  %v335 = vld [vmem:[%s4 + $0x428] sm:$0xff]
  %v336 = vld [vmem:[%s4 + $0x430] sm:$0xff]
  %v337 = vld [vmem:[%s4 + $0x438] sm:$0xff]
  %v338 = vld [vmem:[%s4 + $0x440] sm:$0xff]
  %v339 = vld [vmem:[%s4 + $0x448] sm:$0xff]
  %v340 = vld [vmem:[%s4 + $0x450] sm:$0xff]
  %v341 = vld [vmem:[%s4 + $0x458] sm:$0xff]
  %v342 = vld [vmem:[%s4 + $0x460] sm:$0xff]
  %v343 = vld [vmem:[%s4 + $0x468] sm:$0xff]
  %v344 = vld [vmem:[%s4 + $0x470] sm:$0xff]
  %v345 = vld [vmem:[%s4 + $0x478] sm:$0xff]
  %v346 = vld [vmem:[%s4 + $0x480] sm:$0xff]
  %v347 = vld [vmem:[%s4 + $0x488] sm:$0xff]
  %v348 = vld [vmem:[%s4 + $0x490] sm:$0xff]
  %v349 = vld [vmem:[%s4 + $0x498] sm:$0xff]
  %v350 = vld [vmem:[%s4 + $0x4a0] sm:$0xff]
  %v351 = vld [vmem:[%s4 + $0x4a8] sm:$0xff]
  %v352 = vld [vmem:[%s4 + $0x4b0] sm:$0xff]
  %v353 = vld [vmem:[%s4 + $0x4b8] sm:$0xff]
  %v354 = vld [vmem:[%s4 + $0x4c0] sm:$0xff]
  %v355 = vld [vmem:[%s4 + $0x4c8] sm:$0xff]
  %v356 = vld [vmem:[%s4 + $0x4d0] sm:$0xff]
  %v357 = vld [vmem:[%s4 + $0x4d8] sm:$0xff]
  %v358 = vld [vmem:[%s4 + $0x4e0] sm:$0xff]
  %v359 = vld [vmem:[%s4 + $0x4e8] sm:$0xff]
  %v360 = vld [vmem:[%s4 + $0x4f0] sm:$0xff]
  %v361 = vld [vmem:[%s4 + $0x4f8] sm:$0xff]
  %v362 = vld [vmem:[%s4 + $0x500] sm:$0xff]
  %v363 = vld [vmem:[%s4 + $0x508] sm:$0xff]
  %v364 = vld [vmem:[%s4 + $0x510] sm:$0xff]
  %v365 = vld [vmem:[%s4 + $0x518] sm:$0xff]
  %v366 = vld [vmem:[%s4 + $0x520] sm:$0xff]
  %v367 = vld [vmem:[%s4 + $0x528] sm:$0xff]
  %v368 = vld [vmem:[%s4 + $0x530] sm:$0xff]
  %v369 = vld [vmem:[%s4 + $0x538] sm:$0xff]
  %v370 = vld [vmem:[%s4 + $0x540] sm:$0xff]
  %v371 = vld [vmem:[%s4 + $0x548] sm:$0xff]
  %v372 = vld [vmem:[%s4 + $0x550] sm:$0xff]
  %v373 = vld [vmem:[%s4 + $0x558] sm:$0xff]
  %v374 = vld [vmem:[%s4 + $0x560] sm:$0xff]
  %v375 = vld [vmem:[%s4 + $0x568] sm:$0xff]
  %v376 = vld [vmem:[%s4 + $0x570] sm:$0xff]
  %v377 = vld [vmem:[%s4 + $0x578] sm:$0xff]
  %v378 = vld [vmem:[%s4 + $0x580] sm:$0xff]
  %v379 = vld [vmem:[%s4 + $0x588] sm:$0xff]
  %v380 = vld [vmem:[%s4 + $0x590] sm:$0xff]
  %v381 = vld [vmem:[%s4 + $0x598] sm:$0xff]
  %v382 = vld [vmem:[%s4 + $0x5a0] sm:$0xff]
  %v383 = vld [vmem:[%s4 + $0x5a8] sm:$0xff]
  %v384 = vld [vmem:[%s4 + $0x5b0] sm:$0xff]
  %v385 = vld [vmem:[%s4 + $0x5b8] sm:$0xff]
  %v386 = vld [vmem:[%s4 + $0x5c0] sm:$0xff]
  %v387 = vld [vmem:[%s4 + $0x5c8] sm:$0xff]
  %v388 = vld [vmem:[%s4 + $0x5d0] sm:$0xff]
  %v389 = vld [vmem:[%s4 + $0x5d8] sm:$0xff]
  %v390 = vld [vmem:[%s4 + $0x5e0] sm:$0xff]
  %v391 = vld [vmem:[%s4 + $0x5e8] sm:$0xff]
  %v392 = vld [vmem:[%s4 + $0x5f0] sm:$0xff]
  %v393 = vld [vmem:[%s4 + $0x5f8] sm:$0xff]
  %v394 = vld [vmem:[%s4 + $0x600] sm:$0xff]
  %v395 = vld [vmem:[%s4 + $0x608] sm:$0xff]
  %v396 = vld [vmem:[%s4 + $0x610] sm:$0xff]
  %v397 = vld [vmem:[%s4 + $0x618] sm:$0xff]
  %v398 = vld [vmem:[%s4 + $0x620] sm:$0xff]
  %v399 = vld [vmem:[%s4 + $0x628] sm:$0xff]
  %v400 = vld [vmem:[%s4 + $0x630] sm:$0xff]
  %v401 = vld [vmem:[%s4 + $0x638] sm:$0xff]
  %v402 = vld [vmem:[%s4 + $0x640] sm:$0xff]
  %v403 = vld [vmem:[%s4 + $0x648] sm:$0xff]
  %v404 = vld [vmem:[%s4 + $0x650] sm:$0xff]
  %v405 = vld [vmem:[%s4 + $0x658] sm:$0xff]
  %v406 = vld [vmem:[%s4 + $0x660] sm:$0xff]
  %v407 = vld [vmem:[%s4 + $0x668] sm:$0xff]
  %v408 = vld [vmem:[%s4 + $0x670] sm:$0xff]
  %v409 = vld [vmem:[%s4 + $0x678] sm:$0xff]
  %v410 = vld [vmem:[%s4 + $0x680] sm:$0xff]
  %v411 = vld [vmem:[%s4 + $0x688] sm:$0xff]
  %v412 = vld [vmem:[%s4 + $0x690] sm:$0xff]
  %v413 = vld [vmem:[%s4 + $0x698] sm:$0xff]
  %v414 = vld [vmem:[%s4 + $0x6a0] sm:$0xff]
  %v415 = vld [vmem:[%s4 + $0x6a8] sm:$0xff]
  %v416 = vld [vmem:[%s4 + $0x6b0] sm:$0xff]
  %v417 = vld [vmem:[%s4 + $0x6b8] sm:$0xff]
  %v418 = vld [vmem:[%s4 + $0x6c0] sm:$0xff]
  %v419 = vld [vmem:[%s4 + $0x6c8] sm:$0xff]
  %v420 = vld [vmem:[%s4 + $0x6d0] sm:$0xff]
  %v421 = vld [vmem:[%s4 + $0x6d8] sm:$0xff]
  %v422 = vld [vmem:[%s4 + $0x6e0] sm:$0xff]
  %v423 = vld [vmem:[%s4 + $0x6e8] sm:$0xff]
  %v424 = vld [vmem:[%s4 + $0x6f0] sm:$0xff]
  %v425 = vld [vmem:[%s4 + $0x6f8] sm:$0xff]
  %v426 = vld [vmem:[%s4 + $0x700] sm:$0xff]
  %v427 = vld [vmem:[%s4 + $0x708] sm:$0xff]
  %v428 = vld [vmem:[%s4 + $0x710] sm:$0xff]
  %v429 = vld [vmem:[%s4 + $0x718] sm:$0xff]
  %v430 = vld [vmem:[%s4 + $0x720] sm:$0xff]
  %v431 = vld [vmem:[%s4 + $0x728] sm:$0xff]
  %v432 = vld [vmem:[%s4 + $0x730] sm:$0xff]
  %v433 = vld [vmem:[%s4 + $0x738] sm:$0xff]
  %v434 = vld [vmem:[%s4 + $0x740] sm:$0xff]
  %v435 = vld [vmem:[%s4 + $0x748] sm:$0xff]
  %v436 = vld [vmem:[%s4 + $0x750] sm:$0xff]
  %v437 = vld [vmem:[%s4 + $0x758] sm:$0xff]
  %v438 = vld [vmem:[%s4 + $0x760] sm:$0xff]
  %v439 = vld [vmem:[%s4 + $0x768] sm:$0xff]
  %v440 = vld [vmem:[%s4 + $0x770] sm:$0xff]
  %v441 = vld [vmem:[%s4 + $0x778] sm:$0xff]
  %v442 = vld [vmem:[%s4 + $0x780] sm:$0xff]
  %v443 = vld [vmem:[%s4 + $0x788] sm:$0xff]
  %v444 = vld [vmem:[%s4 + $0x790] sm:$0xff]
  %v445 = vld [vmem:[%s4 + $0x798] sm:$0xff]
  %v446 = vld [vmem:[%s4 + $0x7a0] sm:$0xff]
  %v447 = vld [vmem:[%s4 + $0x7a8] sm:$0xff]
  %v448 = vld [vmem:[%s4 + $0x7b0] sm:$0xff]
  %v449 = vld [vmem:[%s4 + $0x7b8] sm:$0xff]
  %v450 = vld [vmem:[%s4 + $0x7c0] sm:$0xff]
  %v451 = vld [vmem:[%s4 + $0x7c8] sm:$0xff]
  %v452 = vld [vmem:[%s4 + $0x7d0] sm:$0xff]
  %v453 = vld [vmem:[%s4 + $0x7d8] sm:$0xff]
  %v454 = vld [vmem:[%s4 + $0x7e0] sm:$0xff]
  %v455 = vld [vmem:[%s4 + $0x7e8] sm:$0xff]
  %v456 = vld [vmem:[%s4 + $0x7f0] sm:$0xff]
  %v457 = vld [vmem:[%s4 + $0x7f8] sm:$0xff]
  %v458 = vld [vmem:[%s4 + $0x800] sm:$0xff]
  %v459 = vld [vmem:[%s4 + $0x808] sm:$0xff]
  %v460 = vld [vmem:[%s4 + $0x810] sm:$0xff]
  %v461 = vld [vmem:[%s4 + $0x818] sm:$0xff]
  %v462 = vld [vmem:[%s4 + $0x820] sm:$0xff]
  %v463 = vld [vmem:[%s4 + $0x828] sm:$0xff]
  %v464 = vld [vmem:[%s4 + $0x830] sm:$0xff]
  %v465 = vld [vmem:[%s4 + $0x838] sm:$0xff]
  %v466 = vld [vmem:[%s4 + $0x840] sm:$0xff]
  %v467 = vld [vmem:[%s4 + $0x848] sm:$0xff]
  %v468 = vld [vmem:[%s4 + $0x850] sm:$0xff]
  %v469 = vld [vmem:[%s4 + $0x858] sm:$0xff]
  %v470 = vld [vmem:[%s4 + $0x860] sm:$0xff]
  %v471 = vld [vmem:[%s4 + $0x868] sm:$0xff]
  %v472 = vld [vmem:[%s4 + $0x870] sm:$0xff]
  %v473 = vld [vmem:[%s4 + $0x878] sm:$0xff]
  %v474 = vld [vmem:[%s4 + $0x880] sm:$0xff]
  %v475 = vld [vmem:[%s4 + $0x888] sm:$0xff]
  %v476 = vld [vmem:[%s4 + $0x890] sm:$0xff]
  %v477 = vld [vmem:[%s4 + $0x898] sm:$0xff]
  %v478 = vld [vmem:[%s4 + $0x8a0] sm:$0xff]
  %v479 = vld [vmem:[%s4 + $0x8a8] sm:$0xff]
  %v480 = vld [vmem:[%s4 + $0x8b0] sm:$0xff]
  %v481 = vld [vmem:[%s4 + $0x8b8] sm:$0xff]
  %v482 = vld [vmem:[%s4 + $0x8c0] sm:$0xff]
  %v483 = vld [vmem:[%s4 + $0x8c8] sm:$0xff]
  %v484 = vld [vmem:[%s4 + $0x8d0] sm:$0xff]
  %v485 = vld [vmem:[%s4 + $0x8d8] sm:$0xff]
  %v486 = vld [vmem:[%s4 + $0x8e0] sm:$0xff]
  %v487 = vld [vmem:[%s4 + $0x8e8] sm:$0xff]
  %v488 = vld [vmem:[%s4 + $0x8f0] sm:$0xff]
  %v489 = vld [vmem:[%s4 + $0x8f8] sm:$0xff]
  %v490 = vld [vmem:[%s4 + $0x900] sm:$0xff]
  %v491 = vld [vmem:[%s4 + $0x908] sm:$0xff]
  %v492 = vld [vmem:[%s4 + $0x910] sm:$0xff]
  %v493 = vld [vmem:[%s4 + $0x918] sm:$0xff]
  %v494 = vld [vmem:[%s4 + $0x920] sm:$0xff]
  %v495 = vld [vmem:[%s4 + $0x928] sm:$0xff]
  %v496 = vld [vmem:[%s4 + $0x930] sm:$0xff]
  %v497 = vld [vmem:[%s4 + $0x938] sm:$0xff]
  %v498 = vld [vmem:[%s4 + $0x940] sm:$0xff]
  %v499 = vld [vmem:[%s4 + $0x948] sm:$0xff]
  %v500 = vld [vmem:[%s4 + $0x950] sm:$0xff]
  %v501 = vld [vmem:[%s4 + $0x958] sm:$0xff]
  %v502 = vld [vmem:[%s4 + $0x960] sm:$0xff]
  %v503 = vld [vmem:[%s4 + $0x968] sm:$0xff]
  %v504 = vld [vmem:[%s4 + $0x970] sm:$0xff]
  %v505 = vld [vmem:[%s4 + $0x978] sm:$0xff]
  %v506 = vld [vmem:[%s4 + $0x980] sm:$0xff]
  %v507 = vld [vmem:[%s4 + $0x988] sm:$0xff]
  %v508 = vld [vmem:[%s4 + $0x990] sm:$0xff]
  %v509 = vld [vmem:[%s4 + $0x998] sm:$0xff]
  %v510 = vld [vmem:[%s4 + $0x9a0] sm:$0xff]
  %v511 = vld [vmem:[%s4 + $0x9a8] sm:$0xff]
  %v512 = vld [vmem:[%s4 + $0x9b0] sm:$0xff]
  %v513 = vld [vmem:[%s4 + $0x9b8] sm:$0xff]
  %v514 = vld [vmem:[%s4 + $0x9c0] sm:$0xff]
  %v515 = vld [vmem:[%s4 + $0x9c8] sm:$0xff]
  %v516 = vld [vmem:[%s4 + $0x9d0] sm:$0xff]
  %v517 = vld [vmem:[%s4 + $0x9d8] sm:$0xff]
  %v518 = vld [vmem:[%s4 + $0x9e0] sm:$0xff]
  %v519 = vld [vmem:[%s4 + $0x9e8] sm:$0xff]
  %v520 = vld [vmem:[%s4 + $0x9f0] sm:$0xff]
  %v521 = vld [vmem:[%s4 + $0x9f8] sm:$0xff]
  %v522 = vld [vmem:[%s4 + $0xa00] sm:$0xff]
  %v523 = vld [vmem:[%s4 + $0xa08] sm:$0xff]
  %v524 = vld [vmem:[%s4 + $0xa10] sm:$0xff]
  %v525 = vld [vmem:[%s4 + $0xa18] sm:$0xff]
  %v526 = vld [vmem:[%s4 + $0xa20] sm:$0xff]
  %v527 = vld [vmem:[%s4 + $0xa28] sm:$0xff]
  %v528 = vld [vmem:[%s4 + $0xa30] sm:$0xff]
  %v529 = vld [vmem:[%s4 + $0xa38] sm:$0xff]
  %v530 = vld [vmem:[%s4 + $0xa40] sm:$0xff]
  %v531 = vld [vmem:[%s4 + $0xa48] sm:$0xff]
  %v532 = vld [vmem:[%s4 + $0xa50] sm:$0xff]
  %v533 = vld [vmem:[%s4 + $0xa58] sm:$0xff]
  %v534 = vld [vmem:[%s4 + $0xa60] sm:$0xff]
  %v535 = vld [vmem:[%s4 + $0xa68] sm:$0xff]
  %v536 = vld [vmem:[%s4 + $0xa70] sm:$0xff]
  %v537 = vld [vmem:[%s4 + $0xa78] sm:$0xff]
  %v538 = vld [vmem:[%s4 + $0xa80] sm:$0xff]
  %v539 = vld [vmem:[%s4 + $0xa88] sm:$0xff]
  %v540 = vld [vmem:[%s4 + $0xa90] sm:$0xff]
  %v541 = vld [vmem:[%s4 + $0xa98] sm:$0xff]
  %v542 = vld [vmem:[%s4 + $0xaa0] sm:$0xff]
  %v543 = vld [vmem:[%s4 + $0xaa8] sm:$0xff]
  %v544 = vld [vmem:[%s4 + $0xab0] sm:$0xff]
  %v545 = vld [vmem:[%s4 + $0xab8] sm:$0xff]
  %v546 = vld [vmem:[%s4 + $0xac0] sm:$0xff]
  %v547 = vld [vmem:[%s4 + $0xac8] sm:$0xff]
  %v548 = vld [vmem:[%s4 + $0xad0] sm:$0xff]
  %v549 = vld [vmem:[%s4 + $0xad8] sm:$0xff]
  %v550 = vld [vmem:[%s4 + $0xae0] sm:$0xff]
  %v551 = vld [vmem:[%s4 + $0xae8] sm:$0xff]
  %v552 = vld [vmem:[%s4 + $0xaf0] sm:$0xff]
  %v553 = vld [vmem:[%s4 + $0xaf8] sm:$0xff]
  %v554 = vld [vmem:[%s4 + $0xb00] sm:$0xff]
  %v555 = vld [vmem:[%s4 + $0xb08] sm:$0xff]
  %v556 = vld [vmem:[%s4 + $0xb10] sm:$0xff]
  %v557 = vld [vmem:[%s4 + $0xb18] sm:$0xff]
  %v558 = vld [vmem:[%s4 + $0xb20] sm:$0xff]
  %v559 = vld [vmem:[%s4 + $0xb28] sm:$0xff]
  %v560 = vld [vmem:[%s4 + $0xb30] sm:$0xff]
  %v561 = vld [vmem:[%s4 + $0xb38] sm:$0xff]
  %v562 = vld [vmem:[%s4 + $0xb40] sm:$0xff]
  %v563 = vld [vmem:[%s4 + $0xb48] sm:$0xff]
  %v564 = vld [vmem:[%s4 + $0xb50] sm:$0xff]
  %v565 = vld [vmem:[%s4 + $0xb58] sm:$0xff]
  %v566 = vld [vmem:[%s4 + $0xb60] sm:$0xff]
  %v567 = vld [vmem:[%s4 + $0xb68] sm:$0xff]
  %v568 = vld [vmem:[%s4 + $0xb70] sm:$0xff]
  %v569 = vld [vmem:[%s4 + $0xb78] sm:$0xff]
  %v570 = vld [vmem:[%s4 + $0xb80] sm:$0xff]
  %v571 = vld [vmem:[%s4 + $0xb88] sm:$0xff]
  %v572 = vld [vmem:[%s4 + $0xb90] sm:$0xff]
  %v573 = vld [vmem:[%s4 + $0xb98] sm:$0xff]
  %v574 = vld [vmem:[%s4 + $0xba0] sm:$0xff]
  %v575 = vld [vmem:[%s4 + $0xba8] sm:$0xff]
  %v576 = vld [vmem:[%s4 + $0xbb0] sm:$0xff]
  %v577 = vld [vmem:[%s4 + $0xbb8] sm:$0xff]
  %v578 = vld [vmem:[%s4 + $0xbc0] sm:$0xff]
  %v579 = vld [vmem:[%s4 + $0xbc8] sm:$0xff]
  %v580 = vld [vmem:[%s4 + $0xbd0] sm:$0xff]
  %v581 = vld [vmem:[%s4 + $0xbd8] sm:$0xff]
  %v582 = vld [vmem:[%s4 + $0xbe0] sm:$0xff]
  %v583 = vld [vmem:[%s4 + $0xbe8] sm:$0xff]
  %v584 = vld [vmem:[%s4 + $0xbf0] sm:$0xff]
  %v585 = vld [vmem:[%s4 + $0xbf8] sm:$0xff]
  %v586 = vld [vmem:[%s4 + $0xc00] sm:$0xff]
  %v587 = vld [vmem:[%s4 + $0xc08] sm:$0xff]
  %v588 = vld [vmem:[%s4 + $0xc10] sm:$0xff]
  %v589 = vld [vmem:[%s4 + $0xc18] sm:$0xff]
  %v590 = vld [vmem:[%s4 + $0xc20] sm:$0xff]
  %v591 = vld [vmem:[%s4 + $0xc28] sm:$0xff]
  %v592 = vld [vmem:[%s4 + $0xc30] sm:$0xff]
  %v593 = vld [vmem:[%s4 + $0xc38] sm:$0xff]
  %v594 = vld [vmem:[%s4 + $0xc40] sm:$0xff]
  %v595 = vld [vmem:[%s4 + $0xc48] sm:$0xff]
  %v596 = vld [vmem:[%s4 + $0xc50] sm:$0xff]
  %v597 = vld [vmem:[%s4 + $0xc58] sm:$0xff]
  %v598 = vld [vmem:[%s4 + $0xc60] sm:$0xff]
  %v599 = vld [vmem:[%s4 + $0xc68] sm:$0xff]
  %v600 = vld [vmem:[%s4 + $0xc70] sm:$0xff]
  %v601 = vld [vmem:[%s4 + $0xc78] sm:$0xff]
  %v602 = vld [vmem:[%s4 + $0xc80] sm:$0xff]
  %v603 = vld [vmem:[%s4 + $0xc88] sm:$0xff]
  %v604 = vld [vmem:[%s4 + $0xc90] sm:$0xff]
  %v605 = vld [vmem:[%s4 + $0xc98] sm:$0xff]
  %v606 = vld [vmem:[%s4 + $0xca0] sm:$0xff]
  %v607 = vld [vmem:[%s4 + $0xca8] sm:$0xff]
  %v608 = vld [vmem:[%s4 + $0xcb0] sm:$0xff]
  %v609 = vld [vmem:[%s4 + $0xcb8] sm:$0xff]
  %v610 = vld [vmem:[%s4 + $0xcc0] sm:$0xff]
  %v611 = vld [vmem:[%s4 + $0xcc8] sm:$0xff]
  %v612 = vld [vmem:[%s4 + $0xcd0] sm:$0xff]
  %v613 = vld [vmem:[%s4 + $0xcd8] sm:$0xff]
  %v614 = vld [vmem:[%s4 + $0xce0] sm:$0xff]
  %v615 = vld [vmem:[%s4 + $0xce8] sm:$0xff]
  %v616 = vld [vmem:[%s4 + $0xcf0] sm:$0xff]
  %v617 = vld [vmem:[%s4 + $0xcf8] sm:$0xff]
  %v618 = vld [vmem:[%s4 + $0xd00] sm:$0xff]
  %v619 = vld [vmem:[%s4 + $0xd08] sm:$0xff]
  %v620 = vld [vmem:[%s4 + $0xd10] sm:$0xff]
  %v621 = vld [vmem:[%s4 + $0xd18] sm:$0xff]
  %v622 = vld [vmem:[%s4 + $0xd20] sm:$0xff]
  %v623 = vld [vmem:[%s4 + $0xd28] sm:$0xff]
  %v624 = vld [vmem:[%s4 + $0xd30] sm:$0xff]
  %v625 = vld [vmem:[%s4 + $0xd38] sm:$0xff]
  %v626 = vld [vmem:[%s4 + $0xd40] sm:$0xff]
  %v627 = vld [vmem:[%s4 + $0xd48] sm:$0xff]
  %v628 = vld [vmem:[%s4 + $0xd50] sm:$0xff]
  %v629 = vld [vmem:[%s4 + $0xd58] sm:$0xff]
  %v630 = vld [vmem:[%s4 + $0xd60] sm:$0xff]
  %v631 = vld [vmem:[%s4 + $0xd68] sm:$0xff]
  %v632 = vld [vmem:[%s4 + $0xd70] sm:$0xff]
  %v633 = vld [vmem:[%s4 + $0xd78] sm:$0xff]
  %v634 = vld [vmem:[%s4 + $0xd80] sm:$0xff]
  %v635 = vld [vmem:[%s4 + $0xd88] sm:$0xff]
  %v636 = vld [vmem:[%s4 + $0xd90] sm:$0xff]
  %v637 = vld [vmem:[%s4 + $0xd98] sm:$0xff]
  %v638 = vld [vmem:[%s4 + $0xda0] sm:$0xff]
  %v639 = vld [vmem:[%s4 + $0xda8] sm:$0xff]
  %v640 = vld [vmem:[%s4 + $0xdb0] sm:$0xff]
  %v641 = vld [vmem:[%s4 + $0xdb8] sm:$0xff]
  %v642 = vld [vmem:[%s4 + $0xdc0] sm:$0xff]
  %v643 = vld [vmem:[%s4 + $0xdc8] sm:$0xff]
  %v644 = vld [vmem:[%s4 + $0xdd0] sm:$0xff]
  %v645 = vld [vmem:[%s4 + $0xdd8] sm:$0xff]
  %v646 = vld [vmem:[%s4 + $0xde0] sm:$0xff]
  %v647 = vld [vmem:[%s4 + $0xde8] sm:$0xff]
  %v648 = vld [vmem:[%s4 + $0xdf0] sm:$0xff]
  %v649 = vld [vmem:[%s4 + $0xdf8] sm:$0xff]
  %v650 = vld [vmem:[%s4 + $0xe00] sm:$0xff]
  %v651 = vld [vmem:[%s4 + $0xe08] sm:$0xff]
  %v652 = vld [vmem:[%s4 + $0xe10] sm:$0xff]
  %v653 = vld [vmem:[%s4 + $0xe18] sm:$0xff]
  %v654 = vld [vmem:[%s4 + $0xe20] sm:$0xff]
  %v655 = vld [vmem:[%s4 + $0xe28] sm:$0xff]
  %v656 = vld [vmem:[%s4 + $0xe30] sm:$0xff]
  %v657 = vld [vmem:[%s4 + $0xe38] sm:$0xff]
  %v658 = vld [vmem:[%s4 + $0xe40] sm:$0xff]
  %v659 = vld [vmem:[%s4 + $0xe48] sm:$0xff]
  %v660 = vld [vmem:[%s4 + $0xe50] sm:$0xff]
  %v661 = vld [vmem:[%s4 + $0xe58] sm:$0xff]
  %v662 = vld [vmem:[%s4 + $0xe60] sm:$0xff]
  %v663 = vld [vmem:[%s4 + $0xe68] sm:$0xff]
  %v664 = vld [vmem:[%s4 + $0xe70] sm:$0xff]
  %v665 = vld [vmem:[%s4 + $0xe78] sm:$0xff]
  %v666 = vld [vmem:[%s4 + $0xe80] sm:$0xff]
  %v667 = vld [vmem:[%s4 + $0xe88] sm:$0xff]
  %v668 = vld [vmem:[%s4 + $0xe90] sm:$0xff]
  %v669 = vld [vmem:[%s4 + $0xe98] sm:$0xff]
  %v670 = vld [vmem:[%s4 + $0xea0] sm:$0xff]
  %v671 = vld [vmem:[%s4 + $0xea8] sm:$0xff]
  %v672 = vld [vmem:[%s4 + $0xeb0] sm:$0xff]
  %v673 = vld [vmem:[%s4 + $0xeb8] sm:$0xff]
  %v674 = vld [vmem:[%s4 + $0xec0] sm:$0xff]
  %v675 = vld [vmem:[%s4 + $0xec8] sm:$0xff]
  %v676 = vld [vmem:[%s4 + $0xed0] sm:$0xff]
  %v677 = vld [vmem:[%s4 + $0xed8] sm:$0xff]
  %v678 = vld [vmem:[%s4 + $0xee0] sm:$0xff]
  %v679 = vld [vmem:[%s4 + $0xee8] sm:$0xff]
  %v680 = vld [vmem:[%s4 + $0xef0] sm:$0xff]
  %v681 = vld [vmem:[%s4 + $0xef8] sm:$0xff]
  %v682 = vld [vmem:[%s4 + $0xf00] sm:$0xff]
  %v683 = vld [vmem:[%s4 + $0xf08] sm:$0xff]
  %v684 = vld [vmem:[%s4 + $0xf10] sm:$0xff]
  %v685 = vld [vmem:[%s4 + $0xf18] sm:$0xff]
  %v686 = vld [vmem:[%s4 + $0xf20] sm:$0xff]
  %v687 = vld [vmem:[%s4 + $0xf28] sm:$0xff]
  %v688 = vld [vmem:[%s4 + $0xf30] sm:$0xff]
  %v689 = vld [vmem:[%s4 + $0xf38] sm:$0xff]
  %v690 = vld [vmem:[%s4 + $0xf40] sm:$0xff]
  %v691 = vld [vmem:[%s4 + $0xf48] sm:$0xff]
  %v692 = vld [vmem:[%s4 + $0xf50] sm:$0xff]
  %v693 = vld [vmem:[%s4 + $0xf58] sm:$0xff]
  %v694 = vld [vmem:[%s4 + $0xf60] sm:$0xff]
  %v695 = vld [vmem:[%s4 + $0xf68] sm:$0xff]
  %v696 = vld [vmem:[%s4 + $0xf70] sm:$0xff]
  %v697 = vld [vmem:[%s4 + $0xf78] sm:$0xff]
  %v698 = vld [vmem:[%s4 + $0xf80] sm:$0xff]
  %v699 = vld [vmem:[%s4 + $0xf88] sm:$0xff]
  %v700 = vld [vmem:[%s4 + $0xf90] sm:$0xff]
  %v701 = vld [vmem:[%s4 + $0xf98] sm:$0xff]
  %v702 = vld [vmem:[%s4 + $0xfa0] sm:$0xff]
  %v703 = vld [vmem:[%s4 + $0xfa8] sm:$0xff]
  %v704 = vld [vmem:[%s4 + $0xfb0] sm:$0xff]
  %v705 = vld [vmem:[%s4 + $0xfb8] sm:$0xff]
  %v706 = vld [vmem:[%s4 + $0xfc0] sm:$0xff]
  %v707 = vld [vmem:[%s4 + $0xfc8] sm:$0xff]
  %v708 = vld [vmem:[%s4 + $0xfd0] sm:$0xff]
  %v709 = vld [vmem:[%s4 + $0xfd8] sm:$0xff]
  %v710 = vld [vmem:[%s4 + $0xfe0] sm:$0xff]
  %v711 = vld [vmem:[%s4 + $0xfe8] sm:$0xff]
  %v712 = vld [vmem:[%s4 + $0xff0] sm:$0xff]
  %v713 = vld [vmem:[%s4 + $0xff8] sm:$0xff]
  %v714 = vld [vmem:[%s4 + $0x1000] sm:$0xff]
  %v715 = vld [vmem:[%s4 + $0x1008] sm:$0xff]
  %v716 = vld [vmem:[%s4 + $0x1010] sm:$0xff]
  %v717 = vld [vmem:[%s4 + $0x1018] sm:$0xff]
  %v718 = vld [vmem:[%s4 + $0x1020] sm:$0xff]
  %v719 = vld [vmem:[%s4 + $0x1028] sm:$0xff]
  %v720 = vld [vmem:[%s4 + $0x1030] sm:$0xff]
  %v721 = vld [vmem:[%s4 + $0x1038] sm:$0xff]
  %v722 = vld [vmem:[%s4 + $0x1040] sm:$0xff]
  %v723 = vld [vmem:[%s4 + $0x1048] sm:$0xff]
  %v724 = vld [vmem:[%s4 + $0x1050] sm:$0xff]
  %v725 = vld [vmem:[%s4 + $0x1058] sm:$0xff]
  %v726 = vld [vmem:[%s4 + $0x1060] sm:$0xff]
  %v727 = vld [vmem:[%s4 + $0x1068] sm:$0xff]
  %v728 = vld [vmem:[%s4 + $0x1070] sm:$0xff]
  %v729 = vld [vmem:[%s4 + $0x1078] sm:$0xff]
  %v730 = vld [vmem:[%s4 + $0x1080] sm:$0xff]
  %v731 = vld [vmem:[%s4 + $0x1088] sm:$0xff]
  %v732 = vld [vmem:[%s4 + $0x1090] sm:$0xff]
  %v733 = vld [vmem:[%s4 + $0x1098] sm:$0xff]
  %v734 = vld [vmem:[%s4 + $0x10a0] sm:$0xff]
  %v735 = vld [vmem:[%s4 + $0x10a8] sm:$0xff]
  %v736 = vld [vmem:[%s4 + $0x10b0] sm:$0xff]
  %v737 = vld [vmem:[%s4 + $0x10b8] sm:$0xff]
  %v738 = vld [vmem:[%s4 + $0x10c0] sm:$0xff]
  %v739 = vld [vmem:[%s4 + $0x10c8] sm:$0xff]
  %v740 = vld [vmem:[%s4 + $0x10d0] sm:$0xff]
  %v741 = vld [vmem:[%s4 + $0x10d8] sm:$0xff]
  %v742 = vld [vmem:[%s4 + $0x10e0] sm:$0xff]
  %v743 = vld [vmem:[%s4 + $0x10e8] sm:$0xff]
  %v744 = vld [vmem:[%s4 + $0x10f0] sm:$0xff]
  %v745 = vld [vmem:[%s4 + $0x10f8] sm:$0xff]
  %v746 = vld [vmem:[%s4 + $0x1100] sm:$0xff]
  %v747 = vld [vmem:[%s4 + $0x1108] sm:$0xff]
  %v748 = vld [vmem:[%s4 + $0x1110] sm:$0xff]
  %v749 = vld [vmem:[%s4 + $0x1118] sm:$0xff]
  %v750 = vld [vmem:[%s4 + $0x1120] sm:$0xff]
  %v751 = vld [vmem:[%s4 + $0x1128] sm:$0xff]
  %v752 = vld [vmem:[%s4 + $0x1130] sm:$0xff]
  %v753 = vld [vmem:[%s4 + $0x1138] sm:$0xff]
  %v754 = vld [vmem:[%s4 + $0x1140] sm:$0xff]
  %v755 = vld [vmem:[%s4 + $0x1148] sm:$0xff]
  %v756 = vld [vmem:[%s4 + $0x1150] sm:$0xff]
  %v757 = vld [vmem:[%s4 + $0x1158] sm:$0xff]
  %v758 = vld [vmem:[%s4 + $0x1160] sm:$0xff]
  %v759 = vld [vmem:[%s4 + $0x1168] sm:$0xff]
  %v760 = vld [vmem:[%s4 + $0x1170] sm:$0xff]
  %v761 = vld [vmem:[%s4 + $0x1178] sm:$0xff]
  %v762 = vld [vmem:[%s4 + $0x1180] sm:$0xff]
  %v763 = vld [vmem:[%s4 + $0x1188] sm:$0xff]
  %v764 = vld [vmem:[%s4 + $0x1190] sm:$0xff]
  %v765 = vld [vmem:[%s4 + $0x1198] sm:$0xff]
  %v766 = vld [vmem:[%s4 + $0x11a0] sm:$0xff]
  %v767 = vld [vmem:[%s4 + $0x11a8] sm:$0xff]
  %v768 = vld [vmem:[%s4 + $0x11b0] sm:$0xff]
  %v769 = vld [vmem:[%s4 + $0x11b8] sm:$0xff]
  %v770 = vld [vmem:[%s4 + $0x11c0] sm:$0xff]
  %v771 = vld [vmem:[%s4 + $0x11c8] sm:$0xff]
  %v772 = vld [vmem:[%s4 + $0x11d0] sm:$0xff]
  %v773 = vld [vmem:[%s4 + $0x11d8] sm:$0xff]
  %v774 = vld [vmem:[%s4 + $0x11e0] sm:$0xff]
  %v775 = vld [vmem:[%s4 + $0x11e8] sm:$0xff]
  %v776 = vld [vmem:[%s4 + $0x11f0] sm:$0xff]
  %v777 = vld [vmem:[%s4 + $0x11f8] sm:$0xff]
  %v778 = vld [vmem:[%s4 + $0x1200] sm:$0xff]
  %v779 = vld [vmem:[%s4 + $0x1208] sm:$0xff]
  %v780 = vld [vmem:[%s4 + $0x1210] sm:$0xff]
  %v781 = vld [vmem:[%s4 + $0x1218] sm:$0xff]
  %v782 = vld [vmem:[%s4 + $0x1220] sm:$0xff]
  %v783 = vld [vmem:[%s4 + $0x1228] sm:$0xff]
  %v784 = vld [vmem:[%s4 + $0x1230] sm:$0xff]
  %v785 = vld [vmem:[%s4 + $0x1238] sm:$0xff]
  %v786 = vld [vmem:[%s4 + $0x1240] sm:$0xff]
  %v787 = vld [vmem:[%s4 + $0x1248] sm:$0xff]
  %v788 = vld [vmem:[%s4 + $0x1250] sm:$0xff]
  %v789 = vld [vmem:[%s4 + $0x1258] sm:$0xff]
  %v790 = vld [vmem:[%s4 + $0x1260] sm:$0xff]
  %v791 = vld [vmem:[%s4 + $0x1268] sm:$0xff]
  %v792 = vld [vmem:[%s4 + $0x1270] sm:$0xff]
  %v793 = vld [vmem:[%s4 + $0x1278] sm:$0xff]
  %v794 = vld [vmem:[%s4 + $0x1280] sm:$0xff]
  %v795 = vld [vmem:[%s4 + $0x1288] sm:$0xff]
  %v796 = vld [vmem:[%s4 + $0x1290] sm:$0xff]
  %v797 = vld [vmem:[%s4 + $0x1298] sm:$0xff]
  %v798 = vld [vmem:[%s4 + $0x12a0] sm:$0xff]
  %v799 = vld [vmem:[%s4 + $0x12a8] sm:$0xff]
  %v800 = vld [vmem:[%s4 + $0x12b0] sm:$0xff]
  %v801 = vld [vmem:[%s4 + $0x12b8] sm:$0xff]
  %v802 = vld [vmem:[%s4 + $0x12c0] sm:$0xff]
  %v803 = vld [vmem:[%s4 + $0x12c8] sm:$0xff]
  %v804 = vld [vmem:[%s4 + $0x12d0] sm:$0xff]
  %v805 = vld [vmem:[%s4 + $0x12d8] sm:$0xff]
  %v806 = vld [vmem:[%s4 + $0x12e0] sm:$0xff]
  %v807 = vld [vmem:[%s4 + $0x12e8] sm:$0xff]
  %v808 = vld [vmem:[%s4 + $0x12f0] sm:$0xff]
  %v809 = vld [vmem:[%s4 + $0x12f8] sm:$0xff]
  %v810 = vld [vmem:[%s4 + $0x1300] sm:$0xff]
  %v811 = vld [vmem:[%s4 + $0x1308] sm:$0xff]
  %v812 = vld [vmem:[%s4 + $0x1310] sm:$0xff]
  %v813 = vld [vmem:[%s4 + $0x1318] sm:$0xff]
  %v814 = vld [vmem:[%s4 + $0x1320] sm:$0xff]
  %v815 = vld [vmem:[%s4 + $0x1328] sm:$0xff]
  %v816 = vld [vmem:[%s4 + $0x1330] sm:$0xff]
  %v817 = vld [vmem:[%s4 + $0x1338] sm:$0xff]
  %v818 = vld [vmem:[%s4 + $0x1340] sm:$0xff]
  %v819 = vld [vmem:[%s4 + $0x1348] sm:$0xff]
  %v820 = vld [vmem:[%s4 + $0x1350] sm:$0xff]
  %v821 = vld [vmem:[%s4 + $0x1358] sm:$0xff]
  %v822 = vld [vmem:[%s4 + $0x1360] sm:$0xff]
  %v823 = vld [vmem:[%s4 + $0x1368] sm:$0xff]
  %v824 = vld [vmem:[%s4 + $0x1370] sm:$0xff]
  %v825 = vld [vmem:[%s4 + $0x1378] sm:$0xff]
  %v826 = vld [vmem:[%s4 + $0x1380] sm:$0xff]
  %v827 = vld [vmem:[%s4 + $0x1388] sm:$0xff]
  %v828 = vld [vmem:[%s4 + $0x1390] sm:$0xff]
  %v829 = vld [vmem:[%s4 + $0x1398] sm:$0xff]
  %v830 = vld [vmem:[%s4 + $0x13a0] sm:$0xff]
  %v831 = vld [vmem:[%s4 + $0x13a8] sm:$0xff]
  %v832 = vld [vmem:[%s4 + $0x13b0] sm:$0xff]
  %v833 = vld [vmem:[%s4 + $0x13b8] sm:$0xff]
  %v834 = vld [vmem:[%s4 + $0x13c0] sm:$0xff]
  %v835 = vld [vmem:[%s4 + $0x13c8] sm:$0xff]
  %v836 = vld [vmem:[%s4 + $0x13d0] sm:$0xff]
  %v837 = vld [vmem:[%s4 + $0x13d8] sm:$0xff]
  %v838 = vld [vmem:[%s4 + $0x13e0] sm:$0xff]
  %v839 = vld [vmem:[%s4 + $0x13e8] sm:$0xff]
  %v840 = vld [vmem:[%s4 + $0x13f0] sm:$0xff]
  %v841 = vld [vmem:[%s4 + $0x13f8] sm:$0xff]
  %v842 = vld [vmem:[%s4 + $0x1400] sm:$0xff]
  %v843 = vld [vmem:[%s4 + $0x1408] sm:$0xff]
  %v844 = vld [vmem:[%s4 + $0x1410] sm:$0xff]
  %v845 = vld [vmem:[%s4 + $0x1418] sm:$0xff]
  %v846 = vld [vmem:[%s4 + $0x1420] sm:$0xff]
  %v847 = vld [vmem:[%s4 + $0x1428] sm:$0xff]
  %v848 = vld [vmem:[%s4 + $0x1430] sm:$0xff]
  %v849 = vld [vmem:[%s4 + $0x1438] sm:$0xff]
  %v850 = vld [vmem:[%s4 + $0x1440] sm:$0xff]
  %v851 = vld [vmem:[%s4 + $0x1448] sm:$0xff]
  %v852 = vld [vmem:[%s4 + $0x1450] sm:$0xff]
  %v853 = vld [vmem:[%s4 + $0x1458] sm:$0xff]
  %v854 = vld [vmem:[%s4 + $0x1460] sm:$0xff]
  %v855 = vld [vmem:[%s4 + $0x1468] sm:$0xff]
  %v856 = vld [vmem:[%s4 + $0x1470] sm:$0xff]
  %v857 = vld [vmem:[%s4 + $0x1478] sm:$0xff]
  %v858 = vld [vmem:[%s4 + $0x1480] sm:$0xff]
  %v859 = vld [vmem:[%s4 + $0x1488] sm:$0xff]
  %v860 = vld [vmem:[%s4 + $0x1490] sm:$0xff]
  %v861 = vld [vmem:[%s4 + $0x1498] sm:$0xff]
  %v862 = vld [vmem:[%s4 + $0x14a0] sm:$0xff]
  %v863 = vld [vmem:[%s4 + $0x14a8] sm:$0xff]
  %v864 = vld [vmem:[%s4 + $0x14b0] sm:$0xff]
  %v865 = vld [vmem:[%s4 + $0x14b8] sm:$0xff]
  %v866 = vld [vmem:[%s4 + $0x14c0] sm:$0xff]
  %v867 = vld [vmem:[%s4 + $0x14c8] sm:$0xff]
  %v868 = vld [vmem:[%s4 + $0x14d0] sm:$0xff]
  %v869 = vld [vmem:[%s4 + $0x14d8] sm:$0xff]
  %v870 = vld [vmem:[%s4 + $0x14e0] sm:$0xff]
  %v871 = vld [vmem:[%s4 + $0x14e8] sm:$0xff]
  %v872 = vld [vmem:[%s4 + $0x14f0] sm:$0xff]
  %v873 = vld [vmem:[%s4 + $0x14f8] sm:$0xff]
  %v874 = vld [vmem:[%s4 + $0x1500] sm:$0xff]
  %v875 = vld [vmem:[%s4 + $0x1508] sm:$0xff]
  %v876 = vld [vmem:[%s4 + $0x1510] sm:$0xff]
  %v877 = vld [vmem:[%s4 + $0x1518] sm:$0xff]
  %v878 = vld [vmem:[%s4 + $0x1520] sm:$0xff]
  %v879 = vld [vmem:[%s4 + $0x1528] sm:$0xff]
  %v880 = vld [vmem:[%s4 + $0x1530] sm:$0xff]
  %v881 = vld [vmem:[%s4 + $0x1538] sm:$0xff]
  %v882 = vld [vmem:[%s4 + $0x1540] sm:$0xff]
  %v883 = vld [vmem:[%s4 + $0x1548] sm:$0xff]
  %v884 = vld [vmem:[%s4 + $0x1550] sm:$0xff]
  %v885 = vld [vmem:[%s4 + $0x1558] sm:$0xff]
  %v886 = vld [vmem:[%s4 + $0x1560] sm:$0xff]
  %v887 = vld [vmem:[%s4 + $0x1568] sm:$0xff]
  %v888 = vld [vmem:[%s4 + $0x1570] sm:$0xff]
  %v889 = vld [vmem:[%s4 + $0x1578] sm:$0xff]
  %v890 = vld [vmem:[%s4 + $0x1580] sm:$0xff]
  %v891 = vld [vmem:[%s4 + $0x1588] sm:$0xff]
  %v892 = vld [vmem:[%s4 + $0x1590] sm:$0xff]
  %v893 = vld [vmem:[%s4 + $0x1598] sm:$0xff]
  %v894 = vld [vmem:[%s4 + $0x15a0] sm:$0xff]
  %v895 = vld [vmem:[%s4 + $0x15a8] sm:$0xff]
  %v896 = vld [vmem:[%s4 + $0x15b0] sm:$0xff]
  %v897 = vld [vmem:[%s4 + $0x15b8] sm:$0xff]
  %v898 = vld [vmem:[%s4 + $0x15c0] sm:$0xff]
  %v899 = vld [vmem:[%s4 + $0x15c8] sm:$0xff]
  %v900 = vld [vmem:[%s4 + $0x15d0] sm:$0xff]
  %v901 = vld [vmem:[%s4 + $0x15d8] sm:$0xff]
  %v902 = vld [vmem:[%s4 + $0x15e0] sm:$0xff]
  %v903 = vld [vmem:[%s4 + $0x15e8] sm:$0xff]
  %v904 = vld [vmem:[%s4 + $0x15f0] sm:$0xff]
  %v905 = vld [vmem:[%s4 + $0x15f8] sm:$0xff]
  %v906 = vld [vmem:[%s4 + $0x1600] sm:$0xff]
  %v907 = vld [vmem:[%s4 + $0x1608] sm:$0xff]
  %v908 = vld [vmem:[%s4 + $0x1610] sm:$0xff]
  %v909 = vld [vmem:[%s4 + $0x1618] sm:$0xff]
  %v910 = vld [vmem:[%s4 + $0x1620] sm:$0xff]
  %v911 = vld [vmem:[%s4 + $0x1628] sm:$0xff]
  %v912 = vld [vmem:[%s4 + $0x1630] sm:$0xff]
  %v913 = vld [vmem:[%s4 + $0x1638] sm:$0xff]
  %v914 = vld [vmem:[%s4 + $0x1640] sm:$0xff]
  %v915 = vld [vmem:[%s4 + $0x1648] sm:$0xff]
  %v916 = vld [vmem:[%s4 + $0x1650] sm:$0xff]
  %v917 = vld [vmem:[%s4 + $0x1658] sm:$0xff]
  %v918 = vld [vmem:[%s4 + $0x1660] sm:$0xff]
  %v919 = vld [vmem:[%s4 + $0x1668] sm:$0xff]
  %v920 = vld [vmem:[%s4 + $0x1670] sm:$0xff]
  %v921 = vld [vmem:[%s4 + $0x1678] sm:$0xff]
  %v922 = vld [vmem:[%s4 + $0x1680] sm:$0xff]
  %v923 = vld [vmem:[%s4 + $0x1688] sm:$0xff]
  %v924 = vld [vmem:[%s4 + $0x1690] sm:$0xff]
  %v925 = vld [vmem:[%s4 + $0x1698] sm:$0xff]
  %v926 = vld [vmem:[%s4 + $0x16a0] sm:$0xff]
  %v927 = vld [vmem:[%s4 + $0x16a8] sm:$0xff]
  %v928 = vld [vmem:[%s4 + $0x16b0] sm:$0xff]
  %v929 = vld [vmem:[%s4 + $0x16b8] sm:$0xff]
  %v930 = vld [vmem:[%s4 + $0x16c0] sm:$0xff]
  %v931 = vld [vmem:[%s4 + $0x16c8] sm:$0xff]
  %v932 = vld [vmem:[%s4 + $0x16d0] sm:$0xff]
  %v933 = vld [vmem:[%s4 + $0x16d8] sm:$0xff]
  %v934 = vld [vmem:[%s4 + $0x16e0] sm:$0xff]
  %v935 = vld [vmem:[%s4 + $0x16e8] sm:$0xff]
  %v936 = vld [vmem:[%s4 + $0x16f0] sm:$0xff]
  %v937 = vld [vmem:[%s4 + $0x16f8] sm:$0xff]
  %v938 = vld [vmem:[%s4 + $0x1700] sm:$0xff]
  %v939 = vld [vmem:[%s4 + $0x1708] sm:$0xff]
  %v940 = vld [vmem:[%s4 + $0x1710] sm:$0xff]
  %v941 = vld [vmem:[%s4 + $0x1718] sm:$0xff]
  %v942 = vld [vmem:[%s4 + $0x1720] sm:$0xff]
  %v943 = vld [vmem:[%s4 + $0x1728] sm:$0xff]
  %v944 = vld [vmem:[%s4 + $0x1730] sm:$0xff]
  %v945 = vld [vmem:[%s4 + $0x1738] sm:$0xff]
  %v946 = vld [vmem:[%s4 + $0x1740] sm:$0xff]
  %v947 = vld [vmem:[%s4 + $0x1748] sm:$0xff]
  %v948 = vld [vmem:[%s4 + $0x1750] sm:$0xff]
  %v949 = vld [vmem:[%s4 + $0x1758] sm:$0xff]
  %v950 = vld [vmem:[%s4 + $0x1760] sm:$0xff]
  %v951 = vld [vmem:[%s4 + $0x1768] sm:$0xff]
  %v952 = vld [vmem:[%s4 + $0x1770] sm:$0xff]
  %v953 = vld [vmem:[%s4 + $0x1778] sm:$0xff]
  %v954 = vld [vmem:[%s4 + $0x1780] sm:$0xff]
  %v955 = vld [vmem:[%s4 + $0x1788] sm:$0xff]
  %v956 = vld [vmem:[%s4 + $0x1790] sm:$0xff]
  %v957 = vld [vmem:[%s4 + $0x1798] sm:$0xff]
  %v958 = vld [vmem:[%s4 + $0x17a0] sm:$0xff]
  %v959 = vld [vmem:[%s4 + $0x17a8] sm:$0xff]
  %v960 = vld [vmem:[%s4 + $0x17b0] sm:$0xff]
  %v961 = vld [vmem:[%s4 + $0x17b8] sm:$0xff]
  %v962 = vld [vmem:[%s4 + $0x17c0] sm:$0xff]
  %v963 = vld [vmem:[%s4 + $0x17c8] sm:$0xff]
  %v964 = vld [vmem:[%s4 + $0x17d0] sm:$0xff]
  %v965 = vld [vmem:[%s4 + $0x17d8] sm:$0xff]
  %v966 = vld [vmem:[%s4 + $0x17e0] sm:$0xff]
  %v967 = vld [vmem:[%s4 + $0x17e8] sm:$0xff]
  %v968 = vld [vmem:[%s4 + $0x17f0] sm:$0xff]
  %v969 = vld [vmem:[%s4 + $0x17f8] sm:$0xff]
  %v970 = vld [vmem:[%s4 + $0x1800] sm:$0xff]
  %v971 = vld [vmem:[%s4 + $0x1808] sm:$0xff]
  %v972 = vld [vmem:[%s4 + $0x1810] sm:$0xff]
  %v973 = vld [vmem:[%s4 + $0x1818] sm:$0xff]
  %v974 = vld [vmem:[%s4 + $0x1820] sm:$0xff]
  %v975 = vld [vmem:[%s4 + $0x1828] sm:$0xff]
  %v976 = vld [vmem:[%s4 + $0x1830] sm:$0xff]
  %v977 = vld [vmem:[%s4 + $0x1838] sm:$0xff]
  %v978 = vld [vmem:[%s4 + $0x1840] sm:$0xff]
  %v979 = vld [vmem:[%s4 + $0x1848] sm:$0xff]
  %v980 = vld [vmem:[%s4 + $0x1850] sm:$0xff]
  %v981 = vld [vmem:[%s4 + $0x1858] sm:$0xff]
  %v982 = vld [vmem:[%s4 + $0x1860] sm:$0xff]
  %v983 = vld [vmem:[%s4 + $0x1868] sm:$0xff]
  %v984 = vld [vmem:[%s4 + $0x1870] sm:$0xff]
  %v985 = vld [vmem:[%s4 + $0x1878] sm:$0xff]
  %v986 = vld [vmem:[%s4 + $0x1880] sm:$0xff]
  %v987 = vld [vmem:[%s4 + $0x1888] sm:$0xff]
  %v988 = vld [vmem:[%s4 + $0x1890] sm:$0xff]
  %v989 = vld [vmem:[%s4 + $0x1898] sm:$0xff]
  %v990 = vld [vmem:[%s4 + $0x18a0] sm:$0xff]
  %v991 = vld [vmem:[%s4 + $0x18a8] sm:$0xff]
  %v992 = vld [vmem:[%s4 + $0x18b0] sm:$0xff]
  %v993 = vld [vmem:[%s4 + $0x18b8] sm:$0xff]
  %v994 = vld [vmem:[%s4 + $0x18c0] sm:$0xff]
  %v995 = vld [vmem:[%s4 + $0x18c8] sm:$0xff]
  %v996 = vld [vmem:[%s4 + $0x18d0] sm:$0xff]
  %v997 = vld [vmem:[%s4 + $0x18d8] sm:$0xff]
  %v998 = vld [vmem:[%s4 + $0x18e0] sm:$0xff]
  %v999 = vld [vmem:[%s4 + $0x18e8] sm:$0xff]
  %v1000 = vld [vmem:[%s4 + $0x18f0] sm:$0xff]
  %v1001 = vld [vmem:[%s4 + $0x18f8] sm:$0xff]
  %v1002 = vld [vmem:[%s4 + $0x1900] sm:$0xff]
  %v1003 = vld [vmem:[%s4 + $0x1908] sm:$0xff]
  %v1004 = vld [vmem:[%s4 + $0x1910] sm:$0xff]
  %v1005 = vld [vmem:[%s4 + $0x1918] sm:$0xff]
  %v1006 = vld [vmem:[%s4 + $0x1920] sm:$0xff]
  %v1007 = vld [vmem:[%s4 + $0x1928] sm:$0xff]
  %v1008 = vld [vmem:[%s4 + $0x1930] sm:$0xff]
  %v1009 = vld [vmem:[%s4 + $0x1938] sm:$0xff]
  %v1010 = vld [vmem:[%s4 + $0x1940] sm:$0xff]
  %v1011 = vld [vmem:[%s4 + $0x1948] sm:$0xff]
  %v1012 = vld [vmem:[%s4 + $0x1950] sm:$0xff]
  %v1013 = vld [vmem:[%s4 + $0x1958] sm:$0xff]
  %v1014 = vld [vmem:[%s4 + $0x1960] sm:$0xff]
  %v1015 = vld [vmem:[%s4 + $0x1968] sm:$0xff]
  %v1016 = vld [vmem:[%s4 + $0x1970] sm:$0xff]
  %v1017 = vld [vmem:[%s4 + $0x1978] sm:$0xff]
  %v1018 = vld [vmem:[%s4 + $0x1980] sm:$0xff]
  %v1019 = vld [vmem:[%s4 + $0x1988] sm:$0xff]
  %v1020 = vld [vmem:[%s4 + $0x1990] sm:$0xff]
  %v1021 = vld [vmem:[%s4 + $0x1998] sm:$0xff]
  %v1022 = vld [vmem:[%s4 + $0x19a0] sm:$0xff]
  %v1023 = vld [vmem:[%s4 + $0x19a8] sm:$0xff]
  %v1024 = vld [vmem:[%s4 + $0x19b0] sm:$0xff]
  %v1025 = vld [vmem:[%s4 + $0x19b8] sm:$0xff]
  %v1026 = vld [vmem:[%s4 + $0x19c0] sm:$0xff]
  %v1027 = vld [vmem:[%s4 + $0x19c8] sm:$0xff]
  %v1028 = vld [vmem:[%s4 + $0x19d0] sm:$0xff]
  %v1029 = vld [vmem:[%s4 + $0x19d8] sm:$0xff]
  %v1030 = vld [vmem:[%s4 + $0x19e0] sm:$0xff]
  %v1031 = vld [vmem:[%s4 + $0x19e8] sm:$0xff]
  %v1032 = vld [vmem:[%s4 + $0x19f0] sm:$0xff]
  %v1033 = vld [vmem:[%s4 + $0x19f8] sm:$0xff]
  %v1034 = vld [vmem:[%s4 + $0x1a00] sm:$0xff]
  %v1035 = vld [vmem:[%s4 + $0x1a08] sm:$0xff]
  %v1036 = vld [vmem:[%s4 + $0x1a10] sm:$0xff]
  %v1037 = vld [vmem:[%s4 + $0x1a18] sm:$0xff]
  %v1038 = vld [vmem:[%s4 + $0x1a20] sm:$0xff]
  %v1039 = vld [vmem:[%s4 + $0x1a28] sm:$0xff]
  %v1040 = vld [vmem:[%s4 + $0x1a30] sm:$0xff]
  %v1041 = vld [vmem:[%s4 + $0x1a38] sm:$0xff]
  %v1042 = vld [vmem:[%s4 + $0x1a40] sm:$0xff]
  %v1043 = vld [vmem:[%s4 + $0x1a48] sm:$0xff]
  %v1044 = vld [vmem:[%s4 + $0x1a50] sm:$0xff]
  %v1045 = vld [vmem:[%s4 + $0x1a58] sm:$0xff]
  %v1046 = vld [vmem:[%s4 + $0x1a60] sm:$0xff]
  %v1047 = vld [vmem:[%s4 + $0x1a68] sm:$0xff]
  %v1048 = vld [vmem:[%s4 + $0x1a70] sm:$0xff]
  %v1049 = vld [vmem:[%s4 + $0x1a78] sm:$0xff]
  %v1050 = vld [vmem:[%s4 + $0x1a80] sm:$0xff]
  %v1051 = vld [vmem:[%s4 + $0x1a88] sm:$0xff]
  %v1052 = vld [vmem:[%s4 + $0x1a90] sm:$0xff]
  %v1053 = vld [vmem:[%s4 + $0x1a98] sm:$0xff]
  %v1054 = vld [vmem:[%s4 + $0x1aa0] sm:$0xff]
  %v1055 = vld [vmem:[%s4 + $0x1aa8] sm:$0xff]
  %v1056 = vld [vmem:[%s4 + $0x1ab0] sm:$0xff]
  %v1057 = vld [vmem:[%s4 + $0x1ab8] sm:$0xff]
  %v1058 = vld [vmem:[%s4 + $0x1ac0] sm:$0xff]
  %v1059 = vld [vmem:[%s4 + $0x1ac8] sm:$0xff]
  %v1060 = vld [vmem:[%s4 + $0x1ad0] sm:$0xff]
  %v1061 = vld [vmem:[%s4 + $0x1ad8] sm:$0xff]
  %v1062 = vld [vmem:[%s4 + $0x1ae0] sm:$0xff]
  %v1063 = vld [vmem:[%s4 + $0x1ae8] sm:$0xff]
  %v1064 = vld [vmem:[%s4 + $0x1af0] sm:$0xff]
  %v1065 = vld [vmem:[%s4 + $0x1af8] sm:$0xff]
  %v1066 = vld [vmem:[%s4 + $0x1b00] sm:$0xff]
  %v1067 = vld [vmem:[%s4 + $0x1b08] sm:$0xff]
  %v1068 = vld [vmem:[%s4 + $0x1b10] sm:$0xff]
  %v1069 = vld [vmem:[%s4 + $0x1b18] sm:$0xff]
  %v1070 = vld [vmem:[%s4 + $0x1b20] sm:$0xff]
  %v1071 = vld [vmem:[%s4 + $0x1b28] sm:$0xff]
  %v1072 = vld [vmem:[%s4 + $0x1b30] sm:$0xff]
  %v1073 = vld [vmem:[%s4 + $0x1b38] sm:$0xff]
  %v1074 = vld [vmem:[%s4 + $0x1b40] sm:$0xff]
  %v1075 = vld [vmem:[%s4 + $0x1b48] sm:$0xff]
  %v1076 = vld [vmem:[%s4 + $0x1b50] sm:$0xff]
  %v1077 = vld [vmem:[%s4 + $0x1b58] sm:$0xff]
  %v1078 = vld [vmem:[%s4 + $0x1b60] sm:$0xff]
  %v1079 = vld [vmem:[%s4 + $0x1b68] sm:$0xff]
  %v1080 = vld [vmem:[%s4 + $0x1b70] sm:$0xff]
  %v1081 = vld [vmem:[%s4 + $0x1b78] sm:$0xff]
  %v1082 = vld [vmem:[%s4 + $0x1b80] sm:$0xff]
  %v1083 = vld [vmem:[%s4 + $0x1b88] sm:$0xff]
  %v1084 = vld [vmem:[%s4 + $0x1b90] sm:$0xff]
  %v1085 = vld [vmem:[%s4 + $0x1b98] sm:$0xff]
  %v1086 = vld [vmem:[%s4 + $0x1ba0] sm:$0xff]
  %v1087 = vld [vmem:[%s4 + $0x1ba8] sm:$0xff]
  %v1088 = vld [vmem:[%s4 + $0x1bb0] sm:$0xff]
  %v1089 = vld [vmem:[%s4 + $0x1bb8] sm:$0xff]
  %v1090 = vld [vmem:[%s4 + $0x1bc0] sm:$0xff]
  %v1091 = vld [vmem:[%s4 + $0x1bc8] sm:$0xff]
  %v1092 = vld [vmem:[%s4 + $0x1bd0] sm:$0xff]
  %v1093 = vld [vmem:[%s4 + $0x1bd8] sm:$0xff]
  %v1094 = vld [vmem:[%s4 + $0x1be0] sm:$0xff]
  %v1095 = vld [vmem:[%s4 + $0x1be8] sm:$0xff]
  %v1096 = vld [vmem:[%s4 + $0x1bf0] sm:$0xff]
  %v1097 = vld [vmem:[%s4 + $0x1bf8] sm:$0xff]
  %v1098 = vld [vmem:[%s4 + $0x1c00] sm:$0xff]
  %v1099 = vld [vmem:[%s4 + $0x1c08] sm:$0xff]
  %v1100 = vld [vmem:[%s4 + $0x1c10] sm:$0xff]
  %v1101 = vld [vmem:[%s4 + $0x1c18] sm:$0xff]
  %v1102 = vld [vmem:[%s4 + $0x1c20] sm:$0xff]
  %v1103 = vld [vmem:[%s4 + $0x1c28] sm:$0xff]
  %v1104 = vld [vmem:[%s4 + $0x1c30] sm:$0xff]
  %v1105 = vld [vmem:[%s4 + $0x1c38] sm:$0xff]
  %v1106 = vld [vmem:[%s4 + $0x1c40] sm:$0xff]
  %v1107 = vld [vmem:[%s4 + $0x1c48] sm:$0xff]
  %v1108 = vld [vmem:[%s4 + $0x1c50] sm:$0xff]
  %v1109 = vld [vmem:[%s4 + $0x1c58] sm:$0xff]
  %v1110 = vld [vmem:[%s4 + $0x1c60] sm:$0xff]
  %v1111 = vld [vmem:[%s4 + $0x1c68] sm:$0xff]
  %v1112 = vld [vmem:[%s4 + $0x1c70] sm:$0xff]
  %v1113 = vld [vmem:[%s4 + $0x1c78] sm:$0xff]
  %v1114 = vld [vmem:[%s4 + $0x1c80] sm:$0xff]
  %v1115 = vld [vmem:[%s4 + $0x1c88] sm:$0xff]
  %v1116 = vld [vmem:[%s4 + $0x1c90] sm:$0xff]
  %v1117 = vld [vmem:[%s4 + $0x1c98] sm:$0xff]
  %v1118 = vld [vmem:[%s4 + $0x1ca0] sm:$0xff]
  %v1119 = vld [vmem:[%s4 + $0x1ca8] sm:$0xff]
  %v1120 = vld [vmem:[%s4 + $0x1cb0] sm:$0xff]
  %v1121 = vld [vmem:[%s4 + $0x1cb8] sm:$0xff]
  %v1122 = vld [vmem:[%s4 + $0x1cc0] sm:$0xff]
  %v1123 = vld [vmem:[%s4 + $0x1cc8] sm:$0xff]
  %v1124 = vld [vmem:[%s4 + $0x1cd0] sm:$0xff]
  %v1125 = vld [vmem:[%s4 + $0x1cd8] sm:$0xff]
  %v1126 = vld [vmem:[%s4 + $0x1ce0] sm:$0xff]
  %v1127 = vld [vmem:[%s4 + $0x1ce8] sm:$0xff]
  %v1128 = vld [vmem:[%s4 + $0x1cf0] sm:$0xff]
  %v1129 = vld [vmem:[%s4 + $0x1cf8] sm:$0xff]
  %v1130 = vld [vmem:[%s4 + $0x1d00] sm:$0xff]
  %v1131 = vld [vmem:[%s4 + $0x1d08] sm:$0xff]
  %v1132 = vld [vmem:[%s4 + $0x1d10] sm:$0xff]
  %v1133 = vld [vmem:[%s4 + $0x1d18] sm:$0xff]
  %v1134 = vld [vmem:[%s4 + $0x1d20] sm:$0xff]
  %v1135 = vld [vmem:[%s4 + $0x1d28] sm:$0xff]
  %v1136 = vld [vmem:[%s4 + $0x1d30] sm:$0xff]
  %v1137 = vld [vmem:[%s4 + $0x1d38] sm:$0xff]
  %v1138 = vld [vmem:[%s4 + $0x1d40] sm:$0xff]
  %v1139 = vld [vmem:[%s4 + $0x1d48] sm:$0xff]
  %v1140 = vld [vmem:[%s4 + $0x1d50] sm:$0xff]
  %v1141 = vld [vmem:[%s4 + $0x1d58] sm:$0xff]
  %v1142 = vld [vmem:[%s4 + $0x1d60] sm:$0xff]
  %v1143 = vld [vmem:[%s4 + $0x1d68] sm:$0xff]
  %v1144 = vld [vmem:[%s4 + $0x1d70] sm:$0xff]
  %v1145 = vld [vmem:[%s4 + $0x1d78] sm:$0xff]
  %v1146 = vld [vmem:[%s4 + $0x1d80] sm:$0xff]
  %v1147 = vld [vmem:[%s4 + $0x1d88] sm:$0xff]
  %v1148 = vld [vmem:[%s4 + $0x1d90] sm:$0xff]
  %v1149 = vld [vmem:[%s4 + $0x1d98] sm:$0xff]
  %v1150 = vld [vmem:[%s4 + $0x1da0] sm:$0xff]
  %v1151 = vld [vmem:[%s4 + $0x1da8] sm:$0xff]
  %v1152 = vld [vmem:[%s4 + $0x1db0] sm:$0xff]
  %v1153 = vld [vmem:[%s4 + $0x1db8] sm:$0xff]
  %v1154 = vld [vmem:[%s4 + $0x1dc0] sm:$0xff]
  %v1155 = vld [vmem:[%s4 + $0x1dc8] sm:$0xff]
  %v1156 = vld [vmem:[%s4 + $0x1dd0] sm:$0xff]
  %v1157 = vld [vmem:[%s4 + $0x1dd8] sm:$0xff]
  %v1158 = vld [vmem:[%s4 + $0x1de0] sm:$0xff]
  %v1159 = vld [vmem:[%s4 + $0x1de8] sm:$0xff]
  %v1160 = vld [vmem:[%s4 + $0x1df0] sm:$0xff]
  %v1161 = vld [vmem:[%s4 + $0x1df8] sm:$0xff]
  %v1162 = vld [vmem:[%s4 + $0x1e00] sm:$0xff]
  %v1163 = vld [vmem:[%s4 + $0x1e08] sm:$0xff]
  %v1164 = vld [vmem:[%s4 + $0x1e10] sm:$0xff]
  %v1165 = vld [vmem:[%s4 + $0x1e18] sm:$0xff]
  %v1166 = vld [vmem:[%s4 + $0x1e20] sm:$0xff]
  %v1167 = vld [vmem:[%s4 + $0x1e28] sm:$0xff]
  %v1168 = vld [vmem:[%s4 + $0x1e30] sm:$0xff]
  %v1169 = vld [vmem:[%s4 + $0x1e38] sm:$0xff]
  %v1170 = vld [vmem:[%s4 + $0x1e40] sm:$0xff]
  %v1171 = vld [vmem:[%s4 + $0x1e48] sm:$0xff]
  %v1172 = vld [vmem:[%s4 + $0x1e50] sm:$0xff]
  %v1173 = vld [vmem:[%s4 + $0x1e58] sm:$0xff]
  %v1174 = vld [vmem:[%s4 + $0x1e60] sm:$0xff]
  %v1175 = vld [vmem:[%s4 + $0x1e68] sm:$0xff]
  %v1176 = vld [vmem:[%s4 + $0x1e70] sm:$0xff]
  %v1177 = vld [vmem:[%s4 + $0x1e78] sm:$0xff]
  %v1178 = vld [vmem:[%s4 + $0x1e80] sm:$0xff]
  %v1179 = vld [vmem:[%s4 + $0x1e88] sm:$0xff]
  %v1180 = vld [vmem:[%s4 + $0x1e90] sm:$0xff]
  %v1181 = vld [vmem:[%s4 + $0x1e98] sm:$0xff]
  %v1182 = vld [vmem:[%s4 + $0x1ea0] sm:$0xff]
  %v1183 = vld [vmem:[%s4 + $0x1ea8] sm:$0xff]
  %v1184 = vld [vmem:[%s4 + $0x1eb0] sm:$0xff]
  %v1185 = vld [vmem:[%s4 + $0x1eb8] sm:$0xff]
  %v1186 = vld [vmem:[%s4 + $0x1ec0] sm:$0xff]
  %v1187 = vld [vmem:[%s4 + $0x1ec8] sm:$0xff]
  %v1188 = vld [vmem:[%s4 + $0x1ed0] sm:$0xff]
  %v1189 = vld [vmem:[%s4 + $0x1ed8] sm:$0xff]
  %v1190 = vld [vmem:[%s4 + $0x1ee0] sm:$0xff]
  %v1191 = vld [vmem:[%s4 + $0x1ee8] sm:$0xff]
  %v1192 = vld [vmem:[%s4 + $0x1ef0] sm:$0xff]
  %v1193 = vld [vmem:[%s4 + $0x1ef8] sm:$0xff]
  %v1194 = vld [vmem:[%s4 + $0x1f00] sm:$0xff]
  %v1195 = vld [vmem:[%s4 + $0x1f08] sm:$0xff]
  %v1196 = vld [vmem:[%s4 + $0x1f10] sm:$0xff]
  %v1197 = vld [vmem:[%s4 + $0x1f18] sm:$0xff]
  %v1198 = vld [vmem:[%s4 + $0x1f20] sm:$0xff]
  %v1199 = vld [vmem:[%s4 + $0x1f28] sm:$0xff]
  %v1200 = vld [vmem:[%s4 + $0x1f30] sm:$0xff]
  %v1201 = vld [vmem:[%s4 + $0x1f38] sm:$0xff]
  %v1202 = vld [vmem:[%s4 + $0x1f40] sm:$0xff]
  %v1203 = vld [vmem:[%s4 + $0x1f48] sm:$0xff]
  %v1204 = vld [vmem:[%s4 + $0x1f50] sm:$0xff]
  %v1205 = vld [vmem:[%s4 + $0x1f58] sm:$0xff]
  %v1206 = vld [vmem:[%s4 + $0x1f60] sm:$0xff]
  %v1207 = vld [vmem:[%s4 + $0x1f68] sm:$0xff]
  %v1208 = vld [vmem:[%s4 + $0x1f70] sm:$0xff]
  %v1209 = vld [vmem:[%s4 + $0x1f78] sm:$0xff]
  %v1210 = vld [vmem:[%s4 + $0x1f80] sm:$0xff]
  %v1211 = vld [vmem:[%s4 + $0x1f88] sm:$0xff]
  %v1212 = vld [vmem:[%s4 + $0x1f90] sm:$0xff]
  %v1213 = vld [vmem:[%s4 + $0x1f98] sm:$0xff]
  %v1214 = vld [vmem:[%s4 + $0x1fa0] sm:$0xff]
  %v1215 = vld [vmem:[%s4 + $0x1fa8] sm:$0xff]
  %v1216 = vld [vmem:[%s4 + $0x1fb0] sm:$0xff]
  %v1217 = vld [vmem:[%s4 + $0x1fb8] sm:$0xff]
  %v1218 = vld [vmem:[%s4 + $0x1fc0] sm:$0xff]
  %v1219 = vld [vmem:[%s4 + $0x1fc8] sm:$0xff]
  %v1220 = vld [vmem:[%s4 + $0x1fd0] sm:$0xff]
  %v1221 = vld [vmem:[%s4 + $0x1fd8] sm:$0xff]
  %v1222 = vld [vmem:[%s4 + $0x1fe0] sm:$0xff]
  %v1223 = vld [vmem:[%s4 + $0x1fe8] sm:$0xff]
  %v1224 = vld [vmem:[%s4 + $0x1ff0] sm:$0xff]
  %v1225 = vld [vmem:[%s4 + $0x1ff8] sm:$0xff]
  %v1226 = vld [vmem:[%s4 + $0x2000] sm:$0xff]
  %v1227 = vld [vmem:[%s4 + $0x2008] sm:$0xff]
  %v1228 = vld [vmem:[%s4 + $0x2010] sm:$0xff]
  %v1229 = vld [vmem:[%s4 + $0x2018] sm:$0xff]
  %v1230 = vld [vmem:[%s4 + $0x2020] sm:$0xff]
  %v1231 = vld [vmem:[%s4 + $0x2028] sm:$0xff]
  %v1232 = vld [vmem:[%s4 + $0x2030] sm:$0xff]
  %v1233 = vld [vmem:[%s4 + $0x2038] sm:$0xff]
  %v1234 = vld [vmem:[%s4 + $0x2040] sm:$0xff]
  %v1235 = vld [vmem:[%s4 + $0x2048] sm:$0xff]
  %v1236 = vld [vmem:[%s4 + $0x2050] sm:$0xff]
  %v1237 = vld [vmem:[%s4 + $0x2058] sm:$0xff]
  %v1238 = vld [vmem:[%s4 + $0x2060] sm:$0xff]
  %v1239 = vld [vmem:[%s4 + $0x2068] sm:$0xff]
  %v1240 = vld [vmem:[%s4 + $0x2070] sm:$0xff]
  %v1241 = vld [vmem:[%s4 + $0x2078] sm:$0xff]
  %v1242 = vld [vmem:[%s4 + $0x2080] sm:$0xff]
  %v1243 = vld [vmem:[%s4 + $0x2088] sm:$0xff]
  %v1244 = vld [vmem:[%s4 + $0x2090] sm:$0xff]
  %v1245 = vld [vmem:[%s4 + $0x2098] sm:$0xff]
  %v1246 = vld [vmem:[%s4 + $0x20a0] sm:$0xff]
  %v1247 = vld [vmem:[%s4 + $0x20a8] sm:$0xff]
  %v1248 = vld [vmem:[%s4 + $0x20b0] sm:$0xff]
  %v1249 = vld [vmem:[%s4 + $0x20b8] sm:$0xff]
  %v1250 = vld [vmem:[%s4 + $0x20c0] sm:$0xff]
  %v1251 = vld [vmem:[%s4 + $0x20c8] sm:$0xff]
  %v1252 = vld [vmem:[%s4 + $0x20d0] sm:$0xff]
  %v1253 = vld [vmem:[%s4 + $0x20d8] sm:$0xff]
  %v1254 = vld [vmem:[%s4 + $0x20e0] sm:$0xff]
  %v1255 = vld [vmem:[%s4 + $0x20e8] sm:$0xff]
  %v1256 = vld [vmem:[%s4 + $0x20f0] sm:$0xff]
  %v1257 = vld [vmem:[%s4 + $0x20f8] sm:$0xff]
  %v1258 = vld [vmem:[%s4 + $0x2100] sm:$0xff]
  %v1259 = vld [vmem:[%s4 + $0x2108] sm:$0xff]
  %v1260 = vld [vmem:[%s4 + $0x2110] sm:$0xff]
  %v1261 = vld [vmem:[%s4 + $0x2118] sm:$0xff]
  %v1262 = vld [vmem:[%s4 + $0x2120] sm:$0xff]
  %v1263 = vld [vmem:[%s4 + $0x2128] sm:$0xff]
  %v1264 = vld [vmem:[%s4 + $0x2130] sm:$0xff]
  %v1265 = vld [vmem:[%s4 + $0x2138] sm:$0xff]
  %v1266 = vld [vmem:[%s4 + $0x2140] sm:$0xff]
  %v1267 = vld [vmem:[%s4 + $0x2148] sm:$0xff]
  %v1268 = vld [vmem:[%s4 + $0x2150] sm:$0xff]
  %v1269 = vld [vmem:[%s4 + $0x2158] sm:$0xff]
  %v1270 = vld [vmem:[%s4 + $0x2160] sm:$0xff]
  %v1271 = vld [vmem:[%s4 + $0x2168] sm:$0xff]
  %v1272 = vld [vmem:[%s4 + $0x2170] sm:$0xff]
  %v1273 = vld [vmem:[%s4 + $0x2178] sm:$0xff]
  %v1274 = vld [vmem:[%s4 + $0x2180] sm:$0xff]
  %v1275 = vld [vmem:[%s4 + $0x2188] sm:$0xff]
  %v1276 = vld [vmem:[%s4 + $0x2190] sm:$0xff]
  %v1277 = vld [vmem:[%s4 + $0x2198] sm:$0xff]
  %v1278 = vld [vmem:[%s4 + $0x21a0] sm:$0xff]
  %v1279 = vld [vmem:[%s4 + $0x21a8] sm:$0xff]
  %v1280 = vld [vmem:[%s4 + $0x21b0] sm:$0xff]
  %v1281 = vld [vmem:[%s4 + $0x21b8] sm:$0xff]
  %v1282 = vld [vmem:[%s4 + $0x21c0] sm:$0xff]
  %v1283 = vld [vmem:[%s4 + $0x21c8] sm:$0xff]
  %v1284 = vld [vmem:[%s4 + $0x21d0] sm:$0xff]
  %v1285 = vld [vmem:[%s4 + $0x21d8] sm:$0xff]
  %v1286 = vld [vmem:[%s4 + $0x21e0] sm:$0xff]
  %v1287 = vld [vmem:[%s4 + $0x21e8] sm:$0xff]
  %v1288 = vld [vmem:[%s4 + $0x21f0] sm:$0xff]
  %v1289 = vld [vmem:[%s4 + $0x21f8] sm:$0xff]
  %v1290 = vld [vmem:[%s4 + $0x2200] sm:$0xff]
  %v1291 = vld [vmem:[%s4 + $0x2208] sm:$0xff]
  %v1292 = vld [vmem:[%s4 + $0x2210] sm:$0xff]
  %v1293 = vld [vmem:[%s4 + $0x2218] sm:$0xff]
  %v1294 = vld [vmem:[%s4 + $0x2220] sm:$0xff]
  %v1295 = vld [vmem:[%s4 + $0x2228] sm:$0xff]
  %v1296 = vld [vmem:[%s4 + $0x2230] sm:$0xff]
  %v1297 = vld [vmem:[%s4 + $0x2238] sm:$0xff]
  %v1298 = vld [vmem:[%s4 + $0x2240] sm:$0xff]
  %v1299 = vld [vmem:[%s4 + $0x2248] sm:$0xff]
  %v1300 = vld [vmem:[%s4 + $0x2250] sm:$0xff]
  %v1301 = vld [vmem:[%s4 + $0x2258] sm:$0xff]
  %v1302 = vld [vmem:[%s4 + $0x2260] sm:$0xff]
  %v1303 = vld [vmem:[%s4 + $0x2268] sm:$0xff]
  %v1304 = vld [vmem:[%s4 + $0x2270] sm:$0xff]
  %v1305 = vld [vmem:[%s4 + $0x2278] sm:$0xff]
  %v1306 = vld [vmem:[%s4 + $0x2280] sm:$0xff]
  %v1307 = vld [vmem:[%s4 + $0x2288] sm:$0xff]
  %v1308 = vld [vmem:[%s4 + $0x2290] sm:$0xff]
  %v1309 = vld [vmem:[%s4 + $0x2298] sm:$0xff]
  %v1310 = vld [vmem:[%s4 + $0x22a0] sm:$0xff]
  %v1311 = vld [vmem:[%s4 + $0x22a8] sm:$0xff]
  %v1312 = vld [vmem:[%s4 + $0x22b0] sm:$0xff]
  %v1313 = vld [vmem:[%s4 + $0x22b8] sm:$0xff]
  %v1314 = vld [vmem:[%s4 + $0x22c0] sm:$0xff]
  %v1315 = vld [vmem:[%s4 + $0x22c8] sm:$0xff]
  %v1316 = vld [vmem:[%s4 + $0x22d0] sm:$0xff]
  %v1317 = vld [vmem:[%s4 + $0x22d8] sm:$0xff]
  %v1318 = vld [vmem:[%s4 + $0x22e0] sm:$0xff]
  %v1319 = vld [vmem:[%s4 + $0x22e8] sm:$0xff]
  %v1320 = vld [vmem:[%s4 + $0x22f0] sm:$0xff]
  %v1321 = vld [vmem:[%s4 + $0x22f8] sm:$0xff]
  %v1322 = vld [vmem:[%s4 + $0x2300] sm:$0xff]
  %v1323 = vld [vmem:[%s4 + $0x2308] sm:$0xff]
  %v1324 = vld [vmem:[%s4 + $0x2310] sm:$0xff]
  %v1325 = vld [vmem:[%s4 + $0x2318] sm:$0xff]
  %v1326 = vld [vmem:[%s4 + $0x2320] sm:$0xff]
  %v1327 = vld [vmem:[%s4 + $0x2328] sm:$0xff]
  %v1328 = vld [vmem:[%s4 + $0x2330] sm:$0xff]
  %v1329 = vld [vmem:[%s4 + $0x2338] sm:$0xff]
  %v1330 = vld [vmem:[%s4 + $0x2340] sm:$0xff]
  %v1331 = vld [vmem:[%s4 + $0x2348] sm:$0xff]
  %v1332 = vld [vmem:[%s4 + $0x2350] sm:$0xff]
  %v1333 = vld [vmem:[%s4 + $0x2358] sm:$0xff]
  %v1334 = vld [vmem:[%s4 + $0x2360] sm:$0xff]
  %v1335 = vld [vmem:[%s4 + $0x2368] sm:$0xff]
  %v1336 = vld [vmem:[%s4 + $0x2370] sm:$0xff]
  %v1337 = vld [vmem:[%s4 + $0x2378] sm:$0xff]
  %v1338 = vld [vmem:[%s4 + $0x2380] sm:$0xff]
  %v1339 = vld [vmem:[%s4 + $0x2388] sm:$0xff]
  %v1340 = vld [vmem:[%s4 + $0x2390] sm:$0xff]
  %v1341 = vld [vmem:[%s4 + $0x2398] sm:$0xff]
  %v1342 = vld [vmem:[%s4 + $0x23a0] sm:$0xff]
  %v1343 = vld [vmem:[%s4 + $0x23a8] sm:$0xff]
  %v1344 = vld [vmem:[%s4 + $0x23b0] sm:$0xff]
  %v1345 = vld [vmem:[%s4 + $0x23b8] sm:$0xff]
  %v1346 = vld [vmem:[%s4 + $0x23c0] sm:$0xff]
  %v1347 = vld [vmem:[%s4 + $0x23c8] sm:$0xff]
  %v1348 = vld [vmem:[%s4 + $0x23d0] sm:$0xff]
  %v1349 = vld [vmem:[%s4 + $0x23d8] sm:$0xff]
  %v1350 = vld [vmem:[%s4 + $0x23e0] sm:$0xff]
  %v1351 = vld [vmem:[%s4 + $0x23e8] sm:$0xff]
  %v1352 = vld [vmem:[%s4 + $0x23f0] sm:$0xff]
  %v1353 = vld [vmem:[%s4 + $0x23f8] sm:$0xff]
  %v1354 = vld [vmem:[%s4 + $0x2400] sm:$0xff]
  %v1355 = vld [vmem:[%s4 + $0x2408] sm:$0xff]
  %v1356 = vld [vmem:[%s4 + $0x2410] sm:$0xff]
  %v1357 = vld [vmem:[%s4 + $0x2418] sm:$0xff]
  %v1358 = vld [vmem:[%s4 + $0x2420] sm:$0xff]
  %v1359 = vld [vmem:[%s4 + $0x2428] sm:$0xff]
  %v1360 = vld [vmem:[%s4 + $0x2430] sm:$0xff]
  %v1361 = vld [vmem:[%s4 + $0x2438] sm:$0xff]
  %v1362 = vld [vmem:[%s4 + $0x2440] sm:$0xff]
  %v1363 = vld [vmem:[%s4 + $0x2448] sm:$0xff]
  %v1364 = vld [vmem:[%s4 + $0x2450] sm:$0xff]
  %v1365 = vld [vmem:[%s4 + $0x2458] sm:$0xff]
  %v1366 = vld [vmem:[%s4 + $0x2460] sm:$0xff]
  %v1367 = vld [vmem:[%s4 + $0x2468] sm:$0xff]
  %v1368 = vld [vmem:[%s4 + $0x2470] sm:$0xff]
  %v1369 = vld [vmem:[%s4 + $0x2478] sm:$0xff]
  %v1370 = vld [vmem:[%s4 + $0x2480] sm:$0xff]
  %v1371 = vld [vmem:[%s4 + $0x2488] sm:$0xff]
  %v1372 = vld [vmem:[%s4 + $0x2490] sm:$0xff]
  %v1373 = vld [vmem:[%s4 + $0x2498] sm:$0xff]
  %v1374 = vld [vmem:[%s4 + $0x24a0] sm:$0xff]
  %v1375 = vld [vmem:[%s4 + $0x24a8] sm:$0xff]
  %v1376 = vld [vmem:[%s4 + $0x24b0] sm:$0xff]
  %v1377 = vld [vmem:[%s4 + $0x24b8] sm:$0xff]
  %v1378 = vld [vmem:[%s4 + $0x24c0] sm:$0xff]
  %v1379 = vld [vmem:[%s4 + $0x24c8] sm:$0xff]
  %v1380 = vld [vmem:[%s4 + $0x24d0] sm:$0xff]
  %v1381 = vld [vmem:[%s4 + $0x24d8] sm:$0xff]
  %v1382 = vld [vmem:[%s4 + $0x24e0] sm:$0xff]
  %v1383 = vld [vmem:[%s4 + $0x24e8] sm:$0xff]
  %v1384 = vld [vmem:[%s4 + $0x24f0] sm:$0xff]
  %v1385 = vld [vmem:[%s4 + $0x24f8] sm:$0xff]
  %v1386 = vld [vmem:[%s4 + $0x2500] sm:$0xff]
  %v1387 = vld [vmem:[%s4 + $0x2508] sm:$0xff]
  %v1388 = vld [vmem:[%s4 + $0x2510] sm:$0xff]
  %v1389 = vld [vmem:[%s4 + $0x2518] sm:$0xff]
  %v1390 = vld [vmem:[%s4 + $0x2520] sm:$0xff]
  %v1391 = vld [vmem:[%s4 + $0x2528] sm:$0xff]
  %v1392 = vld [vmem:[%s4 + $0x2530] sm:$0xff]
  %v1393 = vld [vmem:[%s4 + $0x2538] sm:$0xff]
  %v1394 = vld [vmem:[%s4 + $0x2540] sm:$0xff]
  %v1395 = vld [vmem:[%s4 + $0x2548] sm:$0xff]
  %v1396 = vld [vmem:[%s4 + $0x2550] sm:$0xff]
  %v1397 = vld [vmem:[%s4 + $0x2558] sm:$0xff]
  %v1398 = vld [vmem:[%s4 + $0x2560] sm:$0xff]
  %v1399 = vld [vmem:[%s4 + $0x2568] sm:$0xff]
  %v1400 = vld [vmem:[%s4 + $0x2570] sm:$0xff]
  %v1401 = vld [vmem:[%s4 + $0x2578] sm:$0xff]
  %v1402 = vld [vmem:[%s4 + $0x2580] sm:$0xff]
  %v1403 = vld [vmem:[%s4 + $0x2588] sm:$0xff]
  %v1404 = vld [vmem:[%s4 + $0x2590] sm:$0xff]
  %v1405 = vld [vmem:[%s4 + $0x2598] sm:$0xff]
  %v1406 = vld [vmem:[%s4 + $0x25a0] sm:$0xff]
  %v1407 = vld [vmem:[%s4 + $0x25a8] sm:$0xff]
  %v1408 = vld [vmem:[%s4 + $0x25b0] sm:$0xff]
  %v1409 = vld [vmem:[%s4 + $0x25b8] sm:$0xff]
  %v1410 = vld [vmem:[%s4 + $0x25c0] sm:$0xff]
  %v1411 = vld [vmem:[%s4 + $0x25c8] sm:$0xff]
  %v1412 = vld [vmem:[%s4 + $0x25d0] sm:$0xff]
  %v1413 = vld [vmem:[%s4 + $0x25d8] sm:$0xff]
  %v1414 = vld [vmem:[%s4 + $0x25e0] sm:$0xff]
  %v1415 = vld [vmem:[%s4 + $0x25e8] sm:$0xff]
  %v1416 = vld [vmem:[%s4 + $0x25f0] sm:$0xff]
  %v1417 = vld [vmem:[%s4 + $0x25f8] sm:$0xff]
  %v1418 = vld [vmem:[%s4 + $0x2600] sm:$0xff]
  %v1419 = vld [vmem:[%s4 + $0x2608] sm:$0xff]
  %v1420 = vld [vmem:[%s4 + $0x2610] sm:$0xff]
  %v1421 = vld [vmem:[%s4 + $0x2618] sm:$0xff]
  %v1422 = vld [vmem:[%s4 + $0x2620] sm:$0xff]
  %v1423 = vld [vmem:[%s4 + $0x2628] sm:$0xff]
  %v1424 = vld [vmem:[%s4 + $0x2630] sm:$0xff]
  %v1425 = vld [vmem:[%s4 + $0x2638] sm:$0xff]
  %v1426 = vld [vmem:[%s4 + $0x2640] sm:$0xff]
  %v1427 = vld [vmem:[%s4 + $0x2648] sm:$0xff]
  %v1428 = vld [vmem:[%s4 + $0x2650] sm:$0xff]
  %v1429 = vld [vmem:[%s4 + $0x2658] sm:$0xff]
  %v1430 = vld [vmem:[%s4 + $0x2660] sm:$0xff]
  %v1431 = vld [vmem:[%s4 + $0x2668] sm:$0xff]
  %v1432 = vld [vmem:[%s4 + $0x2670] sm:$0xff]
  %v1433 = vld [vmem:[%s4 + $0x2678] sm:$0xff]
  %v1434 = vld [vmem:[%s4 + $0x2680] sm:$0xff]
  %v1435 = vld [vmem:[%s4 + $0x2688] sm:$0xff]
  %v1436 = vld [vmem:[%s4 + $0x2690] sm:$0xff]
  %v1437 = vld [vmem:[%s4 + $0x2698] sm:$0xff]
  %v1438 = vld [vmem:[%s4 + $0x26a0] sm:$0xff]
  %v1439 = vld [vmem:[%s4 + $0x26a8] sm:$0xff]
  %v1440 = vld [vmem:[%s4 + $0x26b0] sm:$0xff]
  %v1441 = vld [vmem:[%s4 + $0x26b8] sm:$0xff]
  %v1442 = vld [vmem:[%s4 + $0x26c0] sm:$0xff]
  %v1443 = vld [vmem:[%s4 + $0x26c8] sm:$0xff]
  %v1444 = vld [vmem:[%s4 + $0x26d0] sm:$0xff]
  %v1445 = vld [vmem:[%s4 + $0x26d8] sm:$0xff]
  %v1446 = vld [vmem:[%s4 + $0x26e0] sm:$0xff]
  %v1447 = vld [vmem:[%s4 + $0x26e8] sm:$0xff]
  %v1448 = vld [vmem:[%s4 + $0x26f0] sm:$0xff]
  %v1449 = vld [vmem:[%s4 + $0x26f8] sm:$0xff]
  %v1450 = vld [vmem:[%s4 + $0x2700] sm:$0xff]
  %v1451 = vld [vmem:[%s4 + $0x2708] sm:$0xff]
  %v1452 = vld [vmem:[%s4 + $0x2710] sm:$0xff]
  %v1453 = vld [vmem:[%s4 + $0x2718] sm:$0xff]
  %v1454 = vld [vmem:[%s4 + $0x2720] sm:$0xff]
  %v1455 = vld [vmem:[%s4 + $0x2728] sm:$0xff]
  %v1456 = vld [vmem:[%s4 + $0x2730] sm:$0xff]
  %v1457 = vld [vmem:[%s4 + $0x2738] sm:$0xff]
  %v1458 = vld [vmem:[%s4 + $0x2740] sm:$0xff]
  %v1459 = vld [vmem:[%s4 + $0x2748] sm:$0xff]
  %v1460 = vld [vmem:[%s4 + $0x2750] sm:$0xff]
  %v1461 = vld [vmem:[%s4 + $0x2758] sm:$0xff]
  %v1462 = vld [vmem:[%s4 + $0x2760] sm:$0xff]
  %v1463 = vld [vmem:[%s4 + $0x2768] sm:$0xff]
  %v1464 = vld [vmem:[%s4 + $0x2770] sm:$0xff]
  %v1465 = vld [vmem:[%s4 + $0x2778] sm:$0xff]
  %v1466 = vld [vmem:[%s4 + $0x2780] sm:$0xff]
  %v1467 = vld [vmem:[%s4 + $0x2788] sm:$0xff]
  %v1468 = vld [vmem:[%s4 + $0x2790] sm:$0xff]
  %v1469 = vld [vmem:[%s4 + $0x2798] sm:$0xff]
  %v1470 = vld [vmem:[%s4 + $0x27a0] sm:$0xff]
  %v1471 = vld [vmem:[%s4 + $0x27a8] sm:$0xff]
  %v1472 = vld [vmem:[%s4 + $0x27b0] sm:$0xff]
  %v1473 = vld [vmem:[%s4 + $0x27b8] sm:$0xff]
  %v1474 = vld [vmem:[%s4 + $0x27c0] sm:$0xff]
  %v1475 = vld [vmem:[%s4 + $0x27c8] sm:$0xff]
  %v1476 = vld [vmem:[%s4 + $0x27d0] sm:$0xff]
  %v1477 = vld [vmem:[%s4 + $0x27d8] sm:$0xff]
  %v1478 = vld [vmem:[%s4 + $0x27e0] sm:$0xff]
  %v1479 = vld [vmem:[%s4 + $0x27e8] sm:$0xff]
  %v1480 = vld [vmem:[%s4 + $0x27f0] sm:$0xff]
  %v1481 = vld [vmem:[%s4 + $0x27f8] sm:$0xff]
  %v1482 = vld [vmem:[%s4 + $0x2800] sm:$0xff]
  %v1483 = vld [vmem:[%s4 + $0x2808] sm:$0xff]
  %v1484 = vld [vmem:[%s4 + $0x2810] sm:$0xff]
  %v1485 = vld [vmem:[%s4 + $0x2818] sm:$0xff]
  %v1486 = vld [vmem:[%s4 + $0x2820] sm:$0xff]
  %v1487 = vld [vmem:[%s4 + $0x2828] sm:$0xff]
  %v1488 = vld [vmem:[%s4 + $0x2830] sm:$0xff]
  %v1489 = vld [vmem:[%s4 + $0x2838] sm:$0xff]
  %v1490 = vld [vmem:[%s4 + $0x2840] sm:$0xff]
  %v1491 = vld [vmem:[%s4 + $0x2848] sm:$0xff]
  %v1492 = vld [vmem:[%s4 + $0x2850] sm:$0xff]
  %v1493 = vld [vmem:[%s4 + $0x2858] sm:$0xff]
  %v1494 = vld [vmem:[%s4 + $0x2860] sm:$0xff]
  %v1495 = vld [vmem:[%s4 + $0x2868] sm:$0xff]
  %v1496 = vld [vmem:[%s4 + $0x2870] sm:$0xff]
  %v1497 = vld [vmem:[%s4 + $0x2878] sm:$0xff]
  %v1498 = vld [vmem:[%s5] sm:$0x3]
  %v1500 = vlaneseq
  %v1501 = vshrl.u32 %v1500, 7
  %v1502 = vsub.s32 0, %v1501
  %v1503 = vrot.slane %v1498, %v1502
  %v1504 = vlaneseq
  %v1505 = vshrl.u32 %v1504, 7
  %v1506 = vsub.s32 1, %v1505
  %v1507 = vrot.slane %v1498, %v1506
  %v1531 = vcombine.high %v181, %v181
  %v1532 = vcombine.high %v182, %v182
  %v1533 = vcombine.high %v183, %v183
  %v1534 = vcombine.high %v184, %v184
  %v1535 = vcombine.high %v185, %v185
  %v1536 = vcombine.high %v186, %v186
  %v1537 = vcombine.high %v187, %v187
  %v1538 = vcombine.high %v188, %v188
  %v1539 = vcombine.high %v189, %v189
  %v1540 = vcombine.high %v190, %v190
  %v1541 = vcombine.high %v191, %v191
  %v1542 = vcombine.high %v192, %v192
  %v1543 = vcombine.high %v193, %v193
  %v1544 = vcombine.high %v194, %v194
  %v1545 = vcombine.high %v195, %v195
  %v1546 = vcombine.high %v196, %v196
  %v1547 = vcombine.high %v197, %v197
  %v1548 = vcombine.high %v198, %v198
  %v1549 = vcombine.high %v199, %v199
  %v1550 = vcombine.high %v200, %v200
  %vm1571 = vcmask 523264
  %v1572 = vsel %vm1571, %v201, 0
  %1574 = vmatprep.subr.mxu0 %v203
  %1575 = vmatpush1.msra.mxu0 %v202
  %1576 = vmatprep.subr.mxu0 %v205
  %1577 = vmatpush1.msra.mxu0 %v204
  %1578 = vmatprep.subr.mxu0 %v207
  %1579 = vmatpush1.msra.mxu0 %v206
  %1580 = vmatprep.subr.mxu0 %v209
  %1581 = vmatpush1.msra.mxu0 %v208
  %1582 = vmatprep.subr.mxu0 %v211
  %1583 = vmatpush1.msra.mxu0 %v210
  %1584 = vmatprep.subr.mxu0 %v213
  %1585 = vmatpush1.msra.mxu0 %v212
  %1586 = vmatprep.subr.mxu0 %v215
  %1587 = vmatpush1.msra.mxu0 %v214
  %1588 = vmatprep.subr.mxu0 %v217
  %1589 = vmatpush1.msra.mxu0 %v216
  %1590 = vmatprep.subr.mxu0 %v219
  %1591 = vmatpush1.msra.mxu0 %v218
  %1592 = vmatprep.subr.mxu0 %v221
  %1593 = vmatpush1.msra.mxu0 %v220
  %1594 = vmatprep.subr.mxu0 %v223
  %1595 = vmatpush1.msra.mxu0 %v222
  %1596 = vmatprep.subr.mxu0 %v225
  %1597 = vmatpush1.msra.mxu0 %v224
  %1598 = vmatprep.subr.mxu0 %v227
  %1599 = vmatpush1.msra.mxu0 %v226
  %1600 = vmatprep.subr.mxu0 %v229
  %1601 = vmatpush1.msra.mxu0 %v228
  %1602 = vmatprep.subr.mxu0 %v231
  %1603 = vmatpush1.msra.mxu0 %v230
  %1604 = vmatprep.subr.mxu0 %v233
  %1605 = vmatpush1.msra.mxu0 %v232
  %1606 = vmatprep.subr.mxu0 %v235
  %1607 = vmatpush1.msra.mxu0 %v234
  %1608 = vmatprep.subr.mxu0 %v237
  %1609 = vmatpush1.msra.mxu0 %v236
  %1610 = vmatprep.subr.mxu0 %v239
  %1611 = vmatpush1.msra.mxu0 %v238
  %1612 = vmatprep.subr.mxu0 %v241
  %1613 = vmatpush1.msra.mxu0 %v240
  %1614 = vmatprep.subr.mxu0 %v243
  %1615 = vmatpush1.msra.mxu0 %v242
  %1616 = vmatprep.subr.mxu0 %v245
  %1617 = vmatpush1.msra.mxu0 %v244
  %1618 = vmatprep.subr.mxu0 %v247
  %1619 = vmatpush1.msra.mxu0 %v246
  %1620 = vmatprep.subr.mxu0 %v249
  %1621 = vmatpush1.msra.mxu0 %v248
  %1622 = vmatprep.subr.mxu0 %v251
  %1623 = vmatpush1.msra.mxu0 %v250
  %1624 = vmatprep.subr.mxu0 %v253
  %1625 = vmatpush1.msra.mxu0 %v252
  %1626 = vmatprep.subr.mxu0 %v255
  %1627 = vmatpush1.msra.mxu0 %v254
  %1628 = vmatprep.subr.mxu0 %v257
  %1629 = vmatpush1.msra.mxu0 %v256
  %1630 = vmatprep.subr.mxu0 %v259
  %1631 = vmatpush1.msra.mxu0 %v258
  %1632 = vmatprep.subr.mxu0 %v261
  %1633 = vmatpush1.msra.mxu0 %v260
  %1634 = vmatprep.subr.mxu0 %v263
  %1635 = vmatpush1.msra.mxu0 %v262
  %1636 = vmatprep.subr.mxu0 %v265
  %1637 = vmatpush1.msra.mxu0 %v264
  %1638 = vmatprep.mubr.f32.mxu0 %v1531
  %1639 = vmatmul.mubr.f32.gmra.mrb[0].mxu0 %v181
  %v1640 = vpop.f32.mrb[0].mxu0
  %v1641 = vadd.f32 %v1503, %v1640
  %v1642 = vpop.f32.mrb[0].mxu0
  %v1643 = vadd.f32 %v1507, %v1642
  %1644 = vdwg.mxu0
  %1645 = vmatprep.subr.mxu0 %v267
  %1646 = vmatpush1.msra.mxu0 %v266
  %1647 = vmatprep.subr.mxu0 %v269
  %1648 = vmatpush1.msra.mxu0 %v268
  %1649 = vmatprep.subr.mxu0 %v271
  %1650 = vmatpush1.msra.mxu0 %v270
  %1651 = vmatprep.subr.mxu0 %v273
  %1652 = vmatpush1.msra.mxu0 %v272
  %1653 = vmatprep.subr.mxu0 %v275
  %1654 = vmatpush1.msra.mxu0 %v274
  %1655 = vmatprep.subr.mxu0 %v277
  %1656 = vmatpush1.msra.mxu0 %v276
  %1657 = vmatprep.subr.mxu0 %v279
  %1658 = vmatpush1.msra.mxu0 %v278
  %1659 = vmatprep.subr.mxu0 %v281
  %1660 = vmatpush1.msra.mxu0 %v280
  %1661 = vmatprep.subr.mxu0 %v283
  %1662 = vmatpush1.msra.mxu0 %v282
  %1663 = vmatprep.subr.mxu0 %v285
  %1664 = vmatpush1.msra.mxu0 %v284
  %1665 = vmatprep.subr.mxu0 %v287
  %1666 = vmatpush1.msra.mxu0 %v286
  %1667 = vmatprep.subr.mxu0 %v289
  %1668 = vmatpush1.msra.mxu0 %v288
  %1669 = vmatprep.subr.mxu0 %v291
  %1670 = vmatpush1.msra.mxu0 %v290
  %1671 = vmatprep.subr.mxu0 %v293
  %1672 = vmatpush1.msra.mxu0 %v292
  %1673 = vmatprep.subr.mxu0 %v295
  %1674 = vmatpush1.msra.mxu0 %v294
  %1675 = vmatprep.subr.mxu0 %v297
  %1676 = vmatpush1.msra.mxu0 %v296
  %1677 = vmatprep.subr.mxu0 %v299
  %1678 = vmatpush1.msra.mxu0 %v298
  %1679 = vmatprep.subr.mxu0 %v301
  %1680 = vmatpush1.msra.mxu0 %v300
  %1681 = vmatprep.subr.mxu0 %v303
  %1682 = vmatpush1.msra.mxu0 %v302
  %1683 = vmatprep.subr.mxu0 %v305
  %1684 = vmatpush1.msra.mxu0 %v304
  %1685 = vmatprep.subr.mxu0 %v307
  %1686 = vmatpush1.msra.mxu0 %v306
  %1687 = vmatprep.subr.mxu0 %v309
  %1688 = vmatpush1.msra.mxu0 %v308
  %1689 = vmatprep.subr.mxu0 %v311
  %1690 = vmatpush1.msra.mxu0 %v310
  %1691 = vmatprep.subr.mxu0 %v313
  %1692 = vmatpush1.msra.mxu0 %v312
  %1693 = vmatprep.subr.mxu0 %v315
  %1694 = vmatpush1.msra.mxu0 %v314
  %1695 = vmatprep.subr.mxu0 %v317
  %1696 = vmatpush1.msra.mxu0 %v316
  %1697 = vmatprep.subr.mxu0 %v319
  %1698 = vmatpush1.msra.mxu0 %v318
  %1699 = vmatprep.subr.mxu0 %v321
  %1700 = vmatpush1.msra.mxu0 %v320
  %1701 = vmatprep.subr.mxu0 %v323
  %1702 = vmatpush1.msra.mxu0 %v322
  %1703 = vmatprep.subr.mxu0 %v325
  %1704 = vmatpush1.msra.mxu0 %v324
  %1705 = vmatprep.subr.mxu0 %v327
  %1706 = vmatpush1.msra.mxu0 %v326
  %1707 = vmatprep.subr.mxu0 %v329
  %1708 = vmatpush1.msra.mxu0 %v328
  %1709 = vmatprep.mubr.f32.mxu0 %v1532
  %1710 = vmatmul.mubr.f32.gmra.mrb[0].mxu0 %v182
  %v1711 = vpop.f32.mrb[0].mxu0
  %v1712 = vadd.f32 %v1641, %v1711
  %v1713 = vpop.f32.mrb[0].mxu0
  %v1714 = vadd.f32 %v1643, %v1713
  %1715 = vdwg.mxu0
  %1716 = vmatprep.subr.mxu0 %v331
  %1717 = vmatpush1.msra.mxu0 %v330
  %1718 = vmatprep.subr.mxu0 %v333
  %1719 = vmatpush1.msra.mxu0 %v332
  %1720 = vmatprep.subr.mxu0 %v335
  %1721 = vmatpush1.msra.mxu0 %v334
  %1722 = vmatprep.subr.mxu0 %v337
  %1723 = vmatpush1.msra.mxu0 %v336
  %1724 = vmatprep.subr.mxu0 %v339
  %1725 = vmatpush1.msra.mxu0 %v338
  %1726 = vmatprep.subr.mxu0 %v341
  %1727 = vmatpush1.msra.mxu0 %v340
  %1728 = vmatprep.subr.mxu0 %v343
  %1729 = vmatpush1.msra.mxu0 %v342
  %1730 = vmatprep.subr.mxu0 %v345
  %1731 = vmatpush1.msra.mxu0 %v344
  %1732 = vmatprep.subr.mxu0 %v347
  %1733 = vmatpush1.msra.mxu0 %v346
  %1734 = vmatprep.subr.mxu0 %v349
  %1735 = vmatpush1.msra.mxu0 %v348
  %1736 = vmatprep.subr.mxu0 %v351
  %1737 = vmatpush1.msra.mxu0 %v350
  %1738 = vmatprep.subr.mxu0 %v353
  %1739 = vmatpush1.msra.mxu0 %v352
  %1740 = vmatprep.subr.mxu0 %v355
  %1741 = vmatpush1.msra.mxu0 %v354
  %1742 = vmatprep.subr.mxu0 %v357
  %1743 = vmatpush1.msra.mxu0 %v356
  %1744 = vmatprep.subr.mxu0 %v359
  %1745 = vmatpush1.msra.mxu0 %v358
  %1746 = vmatprep.subr.mxu0 %v361
  %1747 = vmatpush1.msra.mxu0 %v360
  %1748 = vmatprep.subr.mxu0 %v363
  %1749 = vmatpush1.msra.mxu0 %v362
  %1750 = vmatprep.subr.mxu0 %v365
  %1751 = vmatpush1.msra.mxu0 %v364
  %1752 = vmatprep.subr.mxu0 %v367
  %1753 = vmatpush1.msra.mxu0 %v366
  %1754 = vmatprep.subr.mxu0 %v369
  %1755 = vmatpush1.msra.mxu0 %v368
  %1756 = vmatprep.subr.mxu0 %v371
  %1757 = vmatpush1.msra.mxu0 %v370
  %1758 = vmatprep.subr.mxu0 %v373
  %1759 = vmatpush1.msra.mxu0 %v372
  %1760 = vmatprep.subr.mxu0 %v375
  %1761 = vmatpush1.msra.mxu0 %v374
  %1762 = vmatprep.subr.mxu0 %v377
  %1763 = vmatpush1.msra.mxu0 %v376
  %1764 = vmatprep.subr.mxu0 %v379
  %1765 = vmatpush1.msra.mxu0 %v378
  %1766 = vmatprep.subr.mxu0 %v381
  %1767 = vmatpush1.msra.mxu0 %v380
  %1768 = vmatprep.subr.mxu0 %v383
  %1769 = vmatpush1.msra.mxu0 %v382
  %1770 = vmatprep.subr.mxu0 %v385
  %1771 = vmatpush1.msra.mxu0 %v384
  %1772 = vmatprep.subr.mxu0 %v387
  %1773 = vmatpush1.msra.mxu0 %v386
  %1774 = vmatprep.subr.mxu0 %v389
  %1775 = vmatpush1.msra.mxu0 %v388
  %1776 = vmatprep.subr.mxu0 %v391
  %1777 = vmatpush1.msra.mxu0 %v390
  %1778 = vmatprep.subr.mxu0 %v393
  %1779 = vmatpush1.msra.mxu0 %v392
  %1780 = vmatprep.mubr.f32.mxu0 %v1533
  %1781 = vmatmul.mubr.f32.gmra.mrb[0].mxu0 %v183
  %v1782 = vpop.f32.mrb[0].mxu0
  %v1783 = vadd.f32 %v1712, %v1782
  %v1784 = vpop.f32.mrb[0].mxu0
  %v1785 = vadd.f32 %v1714, %v1784
  %1786 = vdwg.mxu0
  %1787 = vmatprep.subr.mxu0 %v395
  %1788 = vmatpush1.msra.mxu0 %v394
  %1789 = vmatprep.subr.mxu0 %v397
  %1790 = vmatpush1.msra.mxu0 %v396
  %1791 = vmatprep.subr.mxu0 %v399
  %1792 = vmatpush1.msra.mxu0 %v398
  %1793 = vmatprep.subr.mxu0 %v401
  %1794 = vmatpush1.msra.mxu0 %v400
  %1795 = vmatprep.subr.mxu0 %v403
  %1796 = vmatpush1.msra.mxu0 %v402
  %1797 = vmatprep.subr.mxu0 %v405
  %1798 = vmatpush1.msra.mxu0 %v404
  %1799 = vmatprep.subr.mxu0 %v407
  %1800 = vmatpush1.msra.mxu0 %v406
  %1801 = vmatprep.subr.mxu0 %v409
  %1802 = vmatpush1.msra.mxu0 %v408
  %1803 = vmatprep.subr.mxu0 %v411
  %1804 = vmatpush1.msra.mxu0 %v410
  %1805 = vmatprep.subr.mxu0 %v413
  %1806 = vmatpush1.msra.mxu0 %v412
  %1807 = vmatprep.subr.mxu0 %v415
  %1808 = vmatpush1.msra.mxu0 %v414
  %1809 = vmatprep.subr.mxu0 %v417
  %1810 = vmatpush1.msra.mxu0 %v416
  %1811 = vmatprep.subr.mxu0 %v419
  %1812 = vmatpush1.msra.mxu0 %v418
  %1813 = vmatprep.subr.mxu0 %v421
  %1814 = vmatpush1.msra.mxu0 %v420
  %1815 = vmatprep.subr.mxu0 %v423
  %1816 = vmatpush1.msra.mxu0 %v422
  %1817 = vmatprep.subr.mxu0 %v425
  %1818 = vmatpush1.msra.mxu0 %v424
  %1819 = vmatprep.subr.mxu0 %v427
  %1820 = vmatpush1.msra.mxu0 %v426
  %1821 = vmatprep.subr.mxu0 %v429
  %1822 = vmatpush1.msra.mxu0 %v428
  %1823 = vmatprep.subr.mxu0 %v431
  %1824 = vmatpush1.msra.mxu0 %v430
  %1825 = vmatprep.subr.mxu0 %v433
  %1826 = vmatpush1.msra.mxu0 %v432
  %1827 = vmatprep.subr.mxu0 %v435
  %1828 = vmatpush1.msra.mxu0 %v434
  %1829 = vmatprep.subr.mxu0 %v437
  %1830 = vmatpush1.msra.mxu0 %v436
  %1831 = vmatprep.subr.mxu0 %v439
  %1832 = vmatpush1.msra.mxu0 %v438
  %1833 = vmatprep.subr.mxu0 %v441
  %1834 = vmatpush1.msra.mxu0 %v440
  %1835 = vmatprep.subr.mxu0 %v443
  %1836 = vmatpush1.msra.mxu0 %v442
  %1837 = vmatprep.subr.mxu0 %v445
  %1838 = vmatpush1.msra.mxu0 %v444
  %1839 = vmatprep.subr.mxu0 %v447
  %1840 = vmatpush1.msra.mxu0 %v446
  %1841 = vmatprep.subr.mxu0 %v449
  %1842 = vmatpush1.msra.mxu0 %v448
  %1843 = vmatprep.subr.mxu0 %v451
  %1844 = vmatpush1.msra.mxu0 %v450
  %1845 = vmatprep.subr.mxu0 %v453
  %1846 = vmatpush1.msra.mxu0 %v452
  %1847 = vmatprep.subr.mxu0 %v455
  %1848 = vmatpush1.msra.mxu0 %v454
  %1849 = vmatprep.subr.mxu0 %v457
  %1850 = vmatpush1.msra.mxu0 %v456
  %1851 = vmatprep.mubr.f32.mxu0 %v1534
  %1852 = vmatmul.mubr.f32.gmra.mrb[0].mxu0 %v184
  %v1853 = vpop.f32.mrb[0].mxu0
  %v1854 = vadd.f32 %v1783, %v1853
  %v1855 = vpop.f32.mrb[0].mxu0
  %v1856 = vadd.f32 %v1785, %v1855
  %1857 = vdwg.mxu0
  %1858 = vmatprep.subr.mxu0 %v459
  %1859 = vmatpush1.msra.mxu0 %v458
  %1860 = vmatprep.subr.mxu0 %v461
  %1861 = vmatpush1.msra.mxu0 %v460
  %1862 = vmatprep.subr.mxu0 %v463
  %1863 = vmatpush1.msra.mxu0 %v462
  %1864 = vmatprep.subr.mxu0 %v465
  %1865 = vmatpush1.msra.mxu0 %v464
  %1866 = vmatprep.subr.mxu0 %v467
  %1867 = vmatpush1.msra.mxu0 %v466
  %1868 = vmatprep.subr.mxu0 %v469
  %1869 = vmatpush1.msra.mxu0 %v468
  %1870 = vmatprep.subr.mxu0 %v471
  %1871 = vmatpush1.msra.mxu0 %v470
  %1872 = vmatprep.subr.mxu0 %v473
  %1873 = vmatpush1.msra.mxu0 %v472
  %1874 = vmatprep.subr.mxu0 %v475
  %1875 = vmatpush1.msra.mxu0 %v474
  %1876 = vmatprep.subr.mxu0 %v477
  %1877 = vmatpush1.msra.mxu0 %v476
  %1878 = vmatprep.subr.mxu0 %v479
  %1879 = vmatpush1.msra.mxu0 %v478
  %1880 = vmatprep.subr.mxu0 %v481
  %1881 = vmatpush1.msra.mxu0 %v480
  %1882 = vmatprep.subr.mxu0 %v483
  %1883 = vmatpush1.msra.mxu0 %v482
  %1884 = vmatprep.subr.mxu0 %v485
  %1885 = vmatpush1.msra.mxu0 %v484
  %1886 = vmatprep.subr.mxu0 %v487
  %1887 = vmatpush1.msra.mxu0 %v486
  %1888 = vmatprep.subr.mxu0 %v489
  %1889 = vmatpush1.msra.mxu0 %v488
  %1890 = vmatprep.subr.mxu0 %v491
  %1891 = vmatpush1.msra.mxu0 %v490
  %1892 = vmatprep.subr.mxu0 %v493
  %1893 = vmatpush1.msra.mxu0 %v492
  %1894 = vmatprep.subr.mxu0 %v495
  %1895 = vmatpush1.msra.mxu0 %v494
  %1896 = vmatprep.subr.mxu0 %v497
  %1897 = vmatpush1.msra.mxu0 %v496
  %1898 = vmatprep.subr.mxu0 %v499
  %1899 = vmatpush1.msra.mxu0 %v498
  %1900 = vmatprep.subr.mxu0 %v501
  %1901 = vmatpush1.msra.mxu0 %v500
  %1902 = vmatprep.subr.mxu0 %v503
  %1903 = vmatpush1.msra.mxu0 %v502
  %1904 = vmatprep.subr.mxu0 %v505
  %1905 = vmatpush1.msra.mxu0 %v504
  %1906 = vmatprep.subr.mxu0 %v507
  %1907 = vmatpush1.msra.mxu0 %v506
  %1908 = vmatprep.subr.mxu0 %v509
  %1909 = vmatpush1.msra.mxu0 %v508
  %1910 = vmatprep.subr.mxu0 %v511
  %1911 = vmatpush1.msra.mxu0 %v510
  %1912 = vmatprep.subr.mxu0 %v513
  %1913 = vmatpush1.msra.mxu0 %v512
  %1914 = vmatprep.subr.mxu0 %v515
  %1915 = vmatpush1.msra.mxu0 %v514
  %1916 = vmatprep.subr.mxu0 %v517
  %1917 = vmatpush1.msra.mxu0 %v516
  %1918 = vmatprep.subr.mxu0 %v519
  %1919 = vmatpush1.msra.mxu0 %v518
  %1920 = vmatprep.subr.mxu0 %v521
  %1921 = vmatpush1.msra.mxu0 %v520
  %1922 = vmatprep.mubr.f32.mxu0 %v1535
  %1923 = vmatmul.mubr.f32.gmra.mrb[0].mxu0 %v185
  %v1924 = vpop.f32.mrb[0].mxu0
  %v1925 = vadd.f32 %v1854, %v1924
  %v1926 = vpop.f32.mrb[0].mxu0
  %v1927 = vadd.f32 %v1856, %v1926
  %1928 = vdwg.mxu0
  %1929 = vmatprep.subr.mxu0 %v523
  %1930 = vmatpush1.msra.mxu0 %v522
  %1931 = vmatprep.subr.mxu0 %v525
  %1932 = vmatpush1.msra.mxu0 %v524
  %1933 = vmatprep.subr.mxu0 %v527
  %1934 = vmatpush1.msra.mxu0 %v526
  %1935 = vmatprep.subr.mxu0 %v529
  %1936 = vmatpush1.msra.mxu0 %v528
  %1937 = vmatprep.subr.mxu0 %v531
  %1938 = vmatpush1.msra.mxu0 %v530
  %1939 = vmatprep.subr.mxu0 %v533
  %1940 = vmatpush1.msra.mxu0 %v532
  %1941 = vmatprep.subr.mxu0 %v535
  %1942 = vmatpush1.msra.mxu0 %v534
  %1943 = vmatprep.subr.mxu0 %v537
  %1944 = vmatpush1.msra.mxu0 %v536
  %1945 = vmatprep.subr.mxu0 %v539
  %1946 = vmatpush1.msra.mxu0 %v538
  %1947 = vmatprep.subr.mxu0 %v541
  %1948 = vmatpush1.msra.mxu0 %v540
  %1949 = vmatprep.subr.mxu0 %v543
  %1950 = vmatpush1.msra.mxu0 %v542
  %1951 = vmatprep.subr.mxu0 %v545
  %1952 = vmatpush1.msra.mxu0 %v544
  %1953 = vmatprep.subr.mxu0 %v547
  %1954 = vmatpush1.msra.mxu0 %v546
  %1955 = vmatprep.subr.mxu0 %v549
  %1956 = vmatpush1.msra.mxu0 %v548
  %1957 = vmatprep.subr.mxu0 %v551
  %1958 = vmatpush1.msra.mxu0 %v550
  %1959 = vmatprep.subr.mxu0 %v553
  %1960 = vmatpush1.msra.mxu0 %v552
  %1961 = vmatprep.subr.mxu0 %v555
  %1962 = vmatpush1.msra.mxu0 %v554
  %1963 = vmatprep.subr.mxu0 %v557
  %1964 = vmatpush1.msra.mxu0 %v556
  %1965 = vmatprep.subr.mxu0 %v559
  %1966 = vmatpush1.msra.mxu0 %v558
  %1967 = vmatprep.subr.mxu0 %v561
  %1968 = vmatpush1.msra.mxu0 %v560
  %1969 = vmatprep.subr.mxu0 %v563
  %1970 = vmatpush1.msra.mxu0 %v562
  %1971 = vmatprep.subr.mxu0 %v565
  %1972 = vmatpush1.msra.mxu0 %v564
  %1973 = vmatprep.subr.mxu0 %v567
  %1974 = vmatpush1.msra.mxu0 %v566
  %1975 = vmatprep.subr.mxu0 %v569
  %1976 = vmatpush1.msra.mxu0 %v568
  %1977 = vmatprep.subr.mxu0 %v571
  %1978 = vmatpush1.msra.mxu0 %v570
  %1979 = vmatprep.subr.mxu0 %v573
  %1980 = vmatpush1.msra.mxu0 %v572
  %1981 = vmatprep.subr.mxu0 %v575
  %1982 = vmatpush1.msra.mxu0 %v574
  %1983 = vmatprep.subr.mxu0 %v577
  %1984 = vmatpush1.msra.mxu0 %v576
  %1985 = vmatprep.subr.mxu0 %v579
  %1986 = vmatpush1.msra.mxu0 %v578
  %1987 = vmatprep.subr.mxu0 %v581
  %1988 = vmatpush1.msra.mxu0 %v580
  %1989 = vmatprep.subr.mxu0 %v583
  %1990 = vmatpush1.msra.mxu0 %v582
  %1991 = vmatprep.subr.mxu0 %v585
  %1992 = vmatpush1.msra.mxu0 %v584
  %1993 = vmatprep.mubr.f32.mxu0 %v1536
  %1994 = vmatmul.mubr.f32.gmra.mrb[0].mxu0 %v186
  %v1995 = vpop.f32.mrb[0].mxu0
  %v1996 = vadd.f32 %v1925, %v1995
  %v1997 = vpop.f32.mrb[0].mxu0
  %v1998 = vadd.f32 %v1927, %v1997
  %1999 = vdwg.mxu0
  %2000 = vmatprep.subr.mxu0 %v587
  %2001 = vmatpush1.msra.mxu0 %v586
  %2002 = vmatprep.subr.mxu0 %v589
  %2003 = vmatpush1.msra.mxu0 %v588
  %2004 = vmatprep.subr.mxu0 %v591
  %2005 = vmatpush1.msra.mxu0 %v590
  %2006 = vmatprep.subr.mxu0 %v593
  %2007 = vmatpush1.msra.mxu0 %v592
  %2008 = vmatprep.subr.mxu0 %v595
  %2009 = vmatpush1.msra.mxu0 %v594
  %2010 = vmatprep.subr.mxu0 %v597
  %2011 = vmatpush1.msra.mxu0 %v596
  %2012 = vmatprep.subr.mxu0 %v599
  %2013 = vmatpush1.msra.mxu0 %v598
  %2014 = vmatprep.subr.mxu0 %v601
  %2015 = vmatpush1.msra.mxu0 %v600
  %2016 = vmatprep.subr.mxu0 %v603
  %2017 = vmatpush1.msra.mxu0 %v602
  %2018 = vmatprep.subr.mxu0 %v605
  %2019 = vmatpush1.msra.mxu0 %v604
  %2020 = vmatprep.subr.mxu0 %v607
  %2021 = vmatpush1.msra.mxu0 %v606
  %2022 = vmatprep.subr.mxu0 %v609
  %2023 = vmatpush1.msra.mxu0 %v608
  %2024 = vmatprep.subr.mxu0 %v611
  %2025 = vmatpush1.msra.mxu0 %v610
  %2026 = vmatprep.subr.mxu0 %v613
  %2027 = vmatpush1.msra.mxu0 %v612
  %2028 = vmatprep.subr.mxu0 %v615
  %2029 = vmatpush1.msra.mxu0 %v614
  %2030 = vmatprep.subr.mxu0 %v617
  %2031 = vmatpush1.msra.mxu0 %v616
  %2032 = vmatprep.subr.mxu0 %v619
  %2033 = vmatpush1.msra.mxu0 %v618
  %2034 = vmatprep.subr.mxu0 %v621
  %2035 = vmatpush1.msra.mxu0 %v620
  %2036 = vmatprep.subr.mxu0 %v623
  %2037 = vmatpush1.msra.mxu0 %v622
  %2038 = vmatprep.subr.mxu0 %v625
  %2039 = vmatpush1.msra.mxu0 %v624
  %2040 = vmatprep.subr.mxu0 %v627
  %2041 = vmatpush1.msra.mxu0 %v626
  %2042 = vmatprep.subr.mxu0 %v629
  %2043 = vmatpush1.msra.mxu0 %v628
  %2044 = vmatprep.subr.mxu0 %v631
  %2045 = vmatpush1.msra.mxu0 %v630
  %2046 = vmatprep.subr.mxu0 %v633
  %2047 = vmatpush1.msra.mxu0 %v632
  %2048 = vmatprep.subr.mxu0 %v635
  %2049 = vmatpush1.msra.mxu0 %v634
  %2050 = vmatprep.subr.mxu0 %v637
  %2051 = vmatpush1.msra.mxu0 %v636
  %2052 = vmatprep.subr.mxu0 %v639
  %2053 = vmatpush1.msra.mxu0 %v638
  %2054 = vmatprep.subr.mxu0 %v641
  %2055 = vmatpush1.msra.mxu0 %v640
  %2056 = vmatprep.subr.mxu0 %v643
  %2057 = vmatpush1.msra.mxu0 %v642
  %2058 = vmatprep.subr.mxu0 %v645
  %2059 = vmatpush1.msra.mxu0 %v644
  %2060 = vmatprep.subr.mxu0 %v647
  %2061 = vmatpush1.msra.mxu0 %v646
  %2062 = vmatprep.subr.mxu0 %v649
  %2063 = vmatpush1.msra.mxu0 %v648
  %2064 = vmatprep.mubr.f32.mxu0 %v1537
  %2065 = vmatmul.mubr.f32.gmra.mrb[0].mxu0 %v187
  %v2066 = vpop.f32.mrb[0].mxu0
  %v2067 = vadd.f32 %v1996, %v2066
  %v2068 = vpop.f32.mrb[0].mxu0
  %v2069 = vadd.f32 %v1998, %v2068
  %2070 = vdwg.mxu0
  %2071 = vmatprep.subr.mxu0 %v651
  %2072 = vmatpush1.msra.mxu0 %v650
  %2073 = vmatprep.subr.mxu0 %v653
  %2074 = vmatpush1.msra.mxu0 %v652
  %2075 = vmatprep.subr.mxu0 %v655
  %2076 = vmatpush1.msra.mxu0 %v654
  %2077 = vmatprep.subr.mxu0 %v657
  %2078 = vmatpush1.msra.mxu0 %v656
  %2079 = vmatprep.subr.mxu0 %v659
  %2080 = vmatpush1.msra.mxu0 %v658
  %2081 = vmatprep.subr.mxu0 %v661
  %2082 = vmatpush1.msra.mxu0 %v660
  %2083 = vmatprep.subr.mxu0 %v663
  %2084 = vmatpush1.msra.mxu0 %v662
  %2085 = vmatprep.subr.mxu0 %v665
  %2086 = vmatpush1.msra.mxu0 %v664
  %2087 = vmatprep.subr.mxu0 %v667
  %2088 = vmatpush1.msra.mxu0 %v666
  %2089 = vmatprep.subr.mxu0 %v669
  %2090 = vmatpush1.msra.mxu0 %v668
  %2091 = vmatprep.subr.mxu0 %v671
  %2092 = vmatpush1.msra.mxu0 %v670
  %2093 = vmatprep.subr.mxu0 %v673
  %2094 = vmatpush1.msra.mxu0 %v672
  %2095 = vmatprep.subr.mxu0 %v675
  %2096 = vmatpush1.msra.mxu0 %v674
  %2097 = vmatprep.subr.mxu0 %v677
  %2098 = vmatpush1.msra.mxu0 %v676
  %2099 = vmatprep.subr.mxu0 %v679
  %2100 = vmatpush1.msra.mxu0 %v678
  %2101 = vmatprep.subr.mxu0 %v681
  %2102 = vmatpush1.msra.mxu0 %v680
  %2103 = vmatprep.subr.mxu0 %v683
  %2104 = vmatpush1.msra.mxu0 %v682
  %2105 = vmatprep.subr.mxu0 %v685
  %2106 = vmatpush1.msra.mxu0 %v684
  %2107 = vmatprep.subr.mxu0 %v687
  %2108 = vmatpush1.msra.mxu0 %v686
  %2109 = vmatprep.subr.mxu0 %v689
  %2110 = vmatpush1.msra.mxu0 %v688
  %2111 = vmatprep.subr.mxu0 %v691
  %2112 = vmatpush1.msra.mxu0 %v690
  %2113 = vmatprep.subr.mxu0 %v693
  %2114 = vmatpush1.msra.mxu0 %v692
  %2115 = vmatprep.subr.mxu0 %v695
  %2116 = vmatpush1.msra.mxu0 %v694
  %2117 = vmatprep.subr.mxu0 %v697
  %2118 = vmatpush1.msra.mxu0 %v696
  %2119 = vmatprep.subr.mxu0 %v699
  %2120 = vmatpush1.msra.mxu0 %v698
  %2121 = vmatprep.subr.mxu0 %v701
  %2122 = vmatpush1.msra.mxu0 %v700
  %2123 = vmatprep.subr.mxu0 %v703
  %2124 = vmatpush1.msra.mxu0 %v702
  %2125 = vmatprep.subr.mxu0 %v705
  %2126 = vmatpush1.msra.mxu0 %v704
  %2127 = vmatprep.subr.mxu0 %v707
  %2128 = vmatpush1.msra.mxu0 %v706
  %2129 = vmatprep.subr.mxu0 %v709
  %2130 = vmatpush1.msra.mxu0 %v708
  %2131 = vmatprep.subr.mxu0 %v711
  %2132 = vmatpush1.msra.mxu0 %v710
  %2133 = vmatprep.subr.mxu0 %v713
  %2134 = vmatpush1.msra.mxu0 %v712
  %2135 = vmatprep.mubr.f32.mxu0 %v1538
  %2136 = vmatmul.mubr.f32.gmra.mrb[0].mxu0 %v188
  %v2137 = vpop.f32.mrb[0].mxu0
  %v2138 = vadd.f32 %v2067, %v2137
  %v2139 = vpop.f32.mrb[0].mxu0
  %v2140 = vadd.f32 %v2069, %v2139
  %2141 = vdwg.mxu0
  %2142 = vmatprep.subr.mxu0 %v715
  %2143 = vmatpush1.msra.mxu0 %v714
  %2144 = vmatprep.subr.mxu0 %v717
  %2145 = vmatpush1.msra.mxu0 %v716
  %2146 = vmatprep.subr.mxu0 %v719
  %2147 = vmatpush1.msra.mxu0 %v718
  %2148 = vmatprep.subr.mxu0 %v721
  %2149 = vmatpush1.msra.mxu0 %v720
  %2150 = vmatprep.subr.mxu0 %v723
  %2151 = vmatpush1.msra.mxu0 %v722
  %2152 = vmatprep.subr.mxu0 %v725
  %2153 = vmatpush1.msra.mxu0 %v724
  %2154 = vmatprep.subr.mxu0 %v727
  %2155 = vmatpush1.msra.mxu0 %v726
  %2156 = vmatprep.subr.mxu0 %v729
  %2157 = vmatpush1.msra.mxu0 %v728
  %2158 = vmatprep.subr.mxu0 %v731
  %2159 = vmatpush1.msra.mxu0 %v730
  %2160 = vmatprep.subr.mxu0 %v733
  %2161 = vmatpush1.msra.mxu0 %v732
  %2162 = vmatprep.subr.mxu0 %v735
  %2163 = vmatpush1.msra.mxu0 %v734
  %2164 = vmatprep.subr.mxu0 %v737
  %2165 = vmatpush1.msra.mxu0 %v736
  %2166 = vmatprep.subr.mxu0 %v739
  %2167 = vmatpush1.msra.mxu0 %v738
  %2168 = vmatprep.subr.mxu0 %v741
  %2169 = vmatpush1.msra.mxu0 %v740
  %2170 = vmatprep.subr.mxu0 %v743
  %2171 = vmatpush1.msra.mxu0 %v742
  %2172 = vmatprep.subr.mxu0 %v745
  %2173 = vmatpush1.msra.mxu0 %v744
  %2174 = vmatprep.subr.mxu0 %v747
  %2175 = vmatpush1.msra.mxu0 %v746
  %2176 = vmatprep.subr.mxu0 %v749
  %2177 = vmatpush1.msra.mxu0 %v748
  %2178 = vmatprep.subr.mxu0 %v751
  %2179 = vmatpush1.msra.mxu0 %v750
  %2180 = vmatprep.subr.mxu0 %v753
  %2181 = vmatpush1.msra.mxu0 %v752
  %2182 = vmatprep.subr.mxu0 %v755
  %2183 = vmatpush1.msra.mxu0 %v754
  %2184 = vmatprep.subr.mxu0 %v757
  %2185 = vmatpush1.msra.mxu0 %v756
  %2186 = vmatprep.subr.mxu0 %v759
  %2187 = vmatpush1.msra.mxu0 %v758
  %2188 = vmatprep.subr.mxu0 %v761
  %2189 = vmatpush1.msra.mxu0 %v760
  %2190 = vmatprep.subr.mxu0 %v763
  %2191 = vmatpush1.msra.mxu0 %v762
  %2192 = vmatprep.subr.mxu0 %v765
  %2193 = vmatpush1.msra.mxu0 %v764
  %2194 = vmatprep.subr.mxu0 %v767
  %2195 = vmatpush1.msra.mxu0 %v766
  %2196 = vmatprep.subr.mxu0 %v769
  %2197 = vmatpush1.msra.mxu0 %v768
  %2198 = vmatprep.subr.mxu0 %v771
  %2199 = vmatpush1.msra.mxu0 %v770
  %2200 = vmatprep.subr.mxu0 %v773
  %2201 = vmatpush1.msra.mxu0 %v772
  %2202 = vmatprep.subr.mxu0 %v775
  %2203 = vmatpush1.msra.mxu0 %v774
  %2204 = vmatprep.subr.mxu0 %v777
  %2205 = vmatpush1.msra.mxu0 %v776
  %2206 = vmatprep.mubr.f32.mxu0 %v1539
  %2207 = vmatmul.mubr.f32.gmra.mrb[0].mxu0 %v189
  %v2208 = vpop.f32.mrb[0].mxu0
  %v2209 = vadd.f32 %v2138, %v2208
  %v2210 = vpop.f32.mrb[0].mxu0
  %v2211 = vadd.f32 %v2140, %v2210
  %2212 = vdwg.mxu0
  %2213 = vmatprep.subr.mxu0 %v779
  %2214 = vmatpush1.msra.mxu0 %v778
  %2215 = vmatprep.subr.mxu0 %v781
  %2216 = vmatpush1.msra.mxu0 %v780
  %2217 = vmatprep.subr.mxu0 %v783
  %2218 = vmatpush1.msra.mxu0 %v782
  %2219 = vmatprep.subr.mxu0 %v785
  %2220 = vmatpush1.msra.mxu0 %v784
  %2221 = vmatprep.subr.mxu0 %v787
  %2222 = vmatpush1.msra.mxu0 %v786
  %2223 = vmatprep.subr.mxu0 %v789
  %2224 = vmatpush1.msra.mxu0 %v788
  %2225 = vmatprep.subr.mxu0 %v791
  %2226 = vmatpush1.msra.mxu0 %v790
  %2227 = vmatprep.subr.mxu0 %v793
  %2228 = vmatpush1.msra.mxu0 %v792
  %2229 = vmatprep.subr.mxu0 %v795
  %2230 = vmatpush1.msra.mxu0 %v794
  %2231 = vmatprep.subr.mxu0 %v797
  %2232 = vmatpush1.msra.mxu0 %v796
  %2233 = vmatprep.subr.mxu0 %v799
  %2234 = vmatpush1.msra.mxu0 %v798
  %2235 = vmatprep.subr.mxu0 %v801
  %2236 = vmatpush1.msra.mxu0 %v800
  %2237 = vmatprep.subr.mxu0 %v803
  %2238 = vmatpush1.msra.mxu0 %v802
  %2239 = vmatprep.subr.mxu0 %v805
  %2240 = vmatpush1.msra.mxu0 %v804
  %2241 = vmatprep.subr.mxu0 %v807
  %2242 = vmatpush1.msra.mxu0 %v806
  %2243 = vmatprep.subr.mxu0 %v809
  %2244 = vmatpush1.msra.mxu0 %v808
  %2245 = vmatprep.subr.mxu0 %v811
  %2246 = vmatpush1.msra.mxu0 %v810
  %2247 = vmatprep.subr.mxu0 %v813
  %2248 = vmatpush1.msra.mxu0 %v812
  %2249 = vmatprep.subr.mxu0 %v815
  %2250 = vmatpush1.msra.mxu0 %v814
  %2251 = vmatprep.subr.mxu0 %v817
  %2252 = vmatpush1.msra.mxu0 %v816
  %2253 = vmatprep.subr.mxu0 %v819
  %2254 = vmatpush1.msra.mxu0 %v818
  %2255 = vmatprep.subr.mxu0 %v821
  %2256 = vmatpush1.msra.mxu0 %v820
  %2257 = vmatprep.subr.mxu0 %v823
  %2258 = vmatpush1.msra.mxu0 %v822
  %2259 = vmatprep.subr.mxu0 %v825
  %2260 = vmatpush1.msra.mxu0 %v824
  %2261 = vmatprep.subr.mxu0 %v827
  %2262 = vmatpush1.msra.mxu0 %v826
  %2263 = vmatprep.subr.mxu0 %v829
  %2264 = vmatpush1.msra.mxu0 %v828
  %2265 = vmatprep.subr.mxu0 %v831
  %2266 = vmatpush1.msra.mxu0 %v830
  %2267 = vmatprep.subr.mxu0 %v833
  %2268 = vmatpush1.msra.mxu0 %v832
  %2269 = vmatprep.subr.mxu0 %v835
  %2270 = vmatpush1.msra.mxu0 %v834
  %2271 = vmatprep.subr.mxu0 %v837
  %2272 = vmatpush1.msra.mxu0 %v836
  %2273 = vmatprep.subr.mxu0 %v839
  %2274 = vmatpush1.msra.mxu0 %v838
  %2275 = vmatprep.subr.mxu0 %v841
  %2276 = vmatpush1.msra.mxu0 %v840
  %2277 = vmatprep.mubr.f32.mxu0 %v1540
  %2278 = vmatmul.mubr.f32.gmra.mrb[0].mxu0 %v190
  %v2279 = vpop.f32.mrb[0].mxu0
  %v2280 = vadd.f32 %v2209, %v2279
  %v2281 = vpop.f32.mrb[0].mxu0
  %v2282 = vadd.f32 %v2211, %v2281
  %2283 = vdwg.mxu0
  %2284 = vmatprep.subr.mxu0 %v843
  %2285 = vmatpush1.msra.mxu0 %v842
  %2286 = vmatprep.subr.mxu0 %v845
  %2287 = vmatpush1.msra.mxu0 %v844
  %2288 = vmatprep.subr.mxu0 %v847
  %2289 = vmatpush1.msra.mxu0 %v846
  %2290 = vmatprep.subr.mxu0 %v849
  %2291 = vmatpush1.msra.mxu0 %v848
  %2292 = vmatprep.subr.mxu0 %v851
  %2293 = vmatpush1.msra.mxu0 %v850
  %2294 = vmatprep.subr.mxu0 %v853
  %2295 = vmatpush1.msra.mxu0 %v852
  %2296 = vmatprep.subr.mxu0 %v855
  %2297 = vmatpush1.msra.mxu0 %v854
  %2298 = vmatprep.subr.mxu0 %v857
  %2299 = vmatpush1.msra.mxu0 %v856
  %2300 = vmatprep.subr.mxu0 %v859
  %2301 = vmatpush1.msra.mxu0 %v858
  %2302 = vmatprep.subr.mxu0 %v861
  %2303 = vmatpush1.msra.mxu0 %v860
  %2304 = vmatprep.subr.mxu0 %v863
  %2305 = vmatpush1.msra.mxu0 %v862
  %2306 = vmatprep.subr.mxu0 %v865
  %2307 = vmatpush1.msra.mxu0 %v864
  %2308 = vmatprep.subr.mxu0 %v867
  %2309 = vmatpush1.msra.mxu0 %v866
  %2310 = vmatprep.subr.mxu0 %v869
  %2311 = vmatpush1.msra.mxu0 %v868
  %2312 = vmatprep.subr.mxu0 %v871
  %2313 = vmatpush1.msra.mxu0 %v870
  %2314 = vmatprep.subr.mxu0 %v873
  %2315 = vmatpush1.msra.mxu0 %v872
  %2316 = vmatprep.subr.mxu0 %v875
  %2317 = vmatpush1.msra.mxu0 %v874
  %2318 = vmatprep.subr.mxu0 %v877
  %2319 = vmatpush1.msra.mxu0 %v876
  %2320 = vmatprep.subr.mxu0 %v879
  %2321 = vmatpush1.msra.mxu0 %v878
  %2322 = vmatprep.subr.mxu0 %v881
  %2323 = vmatpush1.msra.mxu0 %v880
  %2324 = vmatprep.subr.mxu0 %v883
  %2325 = vmatpush1.msra.mxu0 %v882
  %2326 = vmatprep.subr.mxu0 %v885
  %2327 = vmatpush1.msra.mxu0 %v884
  %2328 = vmatprep.subr.mxu0 %v887
  %2329 = vmatpush1.msra.mxu0 %v886
  %2330 = vmatprep.subr.mxu0 %v889
  %2331 = vmatpush1.msra.mxu0 %v888
  %2332 = vmatprep.subr.mxu0 %v891
  %2333 = vmatpush1.msra.mxu0 %v890
  %2334 = vmatprep.subr.mxu0 %v893
  %2335 = vmatpush1.msra.mxu0 %v892
  %2336 = vmatprep.subr.mxu0 %v895
  %2337 = vmatpush1.msra.mxu0 %v894
  %2338 = vmatprep.subr.mxu0 %v897
  %2339 = vmatpush1.msra.mxu0 %v896
  %2340 = vmatprep.subr.mxu0 %v899
  %2341 = vmatpush1.msra.mxu0 %v898
  %2342 = vmatprep.subr.mxu0 %v901
  %2343 = vmatpush1.msra.mxu0 %v900
  %2344 = vmatprep.subr.mxu0 %v903
  %2345 = vmatpush1.msra.mxu0 %v902
  %2346 = vmatprep.subr.mxu0 %v905
  %2347 = vmatpush1.msra.mxu0 %v904
  %2348 = vmatprep.mubr.f32.mxu0 %v1541
  %2349 = vmatmul.mubr.f32.gmra.mrb[0].mxu0 %v191
  %v2350 = vpop.f32.mrb[0].mxu0
  %v2351 = vadd.f32 %v2280, %v2350
  %v2352 = vpop.f32.mrb[0].mxu0
  %v2353 = vadd.f32 %v2282, %v2352
  %2354 = vdwg.mxu0
  %2355 = vmatprep.subr.mxu0 %v907
  %2356 = vmatpush1.msra.mxu0 %v906
  %2357 = vmatprep.subr.mxu0 %v909
  %2358 = vmatpush1.msra.mxu0 %v908
  %2359 = vmatprep.subr.mxu0 %v911
  %2360 = vmatpush1.msra.mxu0 %v910
  %2361 = vmatprep.subr.mxu0 %v913
  %2362 = vmatpush1.msra.mxu0 %v912
  %2363 = vmatprep.subr.mxu0 %v915
  %2364 = vmatpush1.msra.mxu0 %v914
  %2365 = vmatprep.subr.mxu0 %v917
  %2366 = vmatpush1.msra.mxu0 %v916
  %2367 = vmatprep.subr.mxu0 %v919
  %2368 = vmatpush1.msra.mxu0 %v918
  %2369 = vmatprep.subr.mxu0 %v921
  %2370 = vmatpush1.msra.mxu0 %v920
  %2371 = vmatprep.subr.mxu0 %v923
  %2372 = vmatpush1.msra.mxu0 %v922
  %2373 = vmatprep.subr.mxu0 %v925
  %2374 = vmatpush1.msra.mxu0 %v924
  %2375 = vmatprep.subr.mxu0 %v927
  %2376 = vmatpush1.msra.mxu0 %v926
  %2377 = vmatprep.subr.mxu0 %v929
  %2378 = vmatpush1.msra.mxu0 %v928
  %2379 = vmatprep.subr.mxu0 %v931
  %2380 = vmatpush1.msra.mxu0 %v930
  %2381 = vmatprep.subr.mxu0 %v933
  %2382 = vmatpush1.msra.mxu0 %v932
  %2383 = vmatprep.subr.mxu0 %v935
  %2384 = vmatpush1.msra.mxu0 %v934
  %2385 = vmatprep.subr.mxu0 %v937
  %2386 = vmatpush1.msra.mxu0 %v936
  %2387 = vmatprep.subr.mxu0 %v939
  %2388 = vmatpush1.msra.mxu0 %v938
  %2389 = vmatprep.subr.mxu0 %v941
  %2390 = vmatpush1.msra.mxu0 %v940
  %2391 = vmatprep.subr.mxu0 %v943
  %2392 = vmatpush1.msra.mxu0 %v942
  %2393 = vmatprep.subr.mxu0 %v945
  %2394 = vmatpush1.msra.mxu0 %v944
  %2395 = vmatprep.subr.mxu0 %v947
  %2396 = vmatpush1.msra.mxu0 %v946
  %2397 = vmatprep.subr.mxu0 %v949
  %2398 = vmatpush1.msra.mxu0 %v948
  %2399 = vmatprep.subr.mxu0 %v951
  %2400 = vmatpush1.msra.mxu0 %v950
  %2401 = vmatprep.subr.mxu0 %v953
  %2402 = vmatpush1.msra.mxu0 %v952
  %2403 = vmatprep.subr.mxu0 %v955
  %2404 = vmatpush1.msra.mxu0 %v954
  %2405 = vmatprep.subr.mxu0 %v957
  %2406 = vmatpush1.msra.mxu0 %v956
  %2407 = vmatprep.subr.mxu0 %v959
  %2408 = vmatpush1.msra.mxu0 %v958
  %2409 = vmatprep.subr.mxu0 %v961
  %2410 = vmatpush1.msra.mxu0 %v960
  %2411 = vmatprep.subr.mxu0 %v963
  %2412 = vmatpush1.msra.mxu0 %v962
  %2413 = vmatprep.subr.mxu0 %v965
  %2414 = vmatpush1.msra.mxu0 %v964
  %2415 = vmatprep.subr.mxu0 %v967
  %2416 = vmatpush1.msra.mxu0 %v966
  %2417 = vmatprep.subr.mxu0 %v969
  %2418 = vmatpush1.msra.mxu0 %v968
  %2419 = vmatprep.mubr.f32.mxu0 %v1542
  %2420 = vmatmul.mubr.f32.gmra.mrb[0].mxu0 %v192
  %v2421 = vpop.f32.mrb[0].mxu0
  %v2422 = vadd.f32 %v2351, %v2421
  %v2423 = vpop.f32.mrb[0].mxu0
  %v2424 = vadd.f32 %v2353, %v2423
  %2425 = vdwg.mxu0
  %2426 = vmatprep.subr.mxu0 %v971
  %2427 = vmatpush1.msra.mxu0 %v970
  %2428 = vmatprep.subr.mxu0 %v973
  %2429 = vmatpush1.msra.mxu0 %v972
  %2430 = vmatprep.subr.mxu0 %v975
  %2431 = vmatpush1.msra.mxu0 %v974
  %2432 = vmatprep.subr.mxu0 %v977
  %2433 = vmatpush1.msra.mxu0 %v976
  %2434 = vmatprep.subr.mxu0 %v979
  %2435 = vmatpush1.msra.mxu0 %v978
  %2436 = vmatprep.subr.mxu0 %v981
  %2437 = vmatpush1.msra.mxu0 %v980
  %2438 = vmatprep.subr.mxu0 %v983
  %2439 = vmatpush1.msra.mxu0 %v982
  %2440 = vmatprep.subr.mxu0 %v985
  %2441 = vmatpush1.msra.mxu0 %v984
  %2442 = vmatprep.subr.mxu0 %v987
  %2443 = vmatpush1.msra.mxu0 %v986
  %2444 = vmatprep.subr.mxu0 %v989
  %2445 = vmatpush1.msra.mxu0 %v988
  %2446 = vmatprep.subr.mxu0 %v991
  %2447 = vmatpush1.msra.mxu0 %v990
  %2448 = vmatprep.subr.mxu0 %v993
  %2449 = vmatpush1.msra.mxu0 %v992
  %2450 = vmatprep.subr.mxu0 %v995
  %2451 = vmatpush1.msra.mxu0 %v994
  %2452 = vmatprep.subr.mxu0 %v997
  %2453 = vmatpush1.msra.mxu0 %v996
  %2454 = vmatprep.subr.mxu0 %v999
  %2455 = vmatpush1.msra.mxu0 %v998
  %2456 = vmatprep.subr.mxu0 %v1001
  %2457 = vmatpush1.msra.mxu0 %v1000
  %2458 = vmatprep.subr.mxu0 %v1003
  %2459 = vmatpush1.msra.mxu0 %v1002
  %2460 = vmatprep.subr.mxu0 %v1005
  %2461 = vmatpush1.msra.mxu0 %v1004
  %2462 = vmatprep.subr.mxu0 %v1007
  %2463 = vmatpush1.msra.mxu0 %v1006
  %2464 = vmatprep.subr.mxu0 %v1009
  %2465 = vmatpush1.msra.mxu0 %v1008
  %2466 = vmatprep.subr.mxu0 %v1011
  %2467 = vmatpush1.msra.mxu0 %v1010
  %2468 = vmatprep.subr.mxu0 %v1013
  %2469 = vmatpush1.msra.mxu0 %v1012
  %2470 = vmatprep.subr.mxu0 %v1015
  %2471 = vmatpush1.msra.mxu0 %v1014
  %2472 = vmatprep.subr.mxu0 %v1017
  %2473 = vmatpush1.msra.mxu0 %v1016
  %2474 = vmatprep.subr.mxu0 %v1019
  %2475 = vmatpush1.msra.mxu0 %v1018
  %2476 = vmatprep.subr.mxu0 %v1021
  %2477 = vmatpush1.msra.mxu0 %v1020
  %2478 = vmatprep.subr.mxu0 %v1023
  %2479 = vmatpush1.msra.mxu0 %v1022
  %2480 = vmatprep.subr.mxu0 %v1025
  %2481 = vmatpush1.msra.mxu0 %v1024
  %2482 = vmatprep.subr.mxu0 %v1027
  %2483 = vmatpush1.msra.mxu0 %v1026
  %2484 = vmatprep.subr.mxu0 %v1029
  %2485 = vmatpush1.msra.mxu0 %v1028
  %2486 = vmatprep.subr.mxu0 %v1031
  %2487 = vmatpush1.msra.mxu0 %v1030
  %2488 = vmatprep.subr.mxu0 %v1033
  %2489 = vmatpush1.msra.mxu0 %v1032
  %2490 = vmatprep.mubr.f32.mxu0 %v1543
  %2491 = vmatmul.mubr.f32.gmra.mrb[0].mxu0 %v193
  %v2492 = vpop.f32.mrb[0].mxu0
  %v2493 = vadd.f32 %v2422, %v2492
  %v2494 = vpop.f32.mrb[0].mxu0
  %v2495 = vadd.f32 %v2424, %v2494
  %2496 = vdwg.mxu0
  %2497 = vmatprep.subr.mxu0 %v1035
  %2498 = vmatpush1.msra.mxu0 %v1034
  %2499 = vmatprep.subr.mxu0 %v1037
  %2500 = vmatpush1.msra.mxu0 %v1036
  %2501 = vmatprep.subr.mxu0 %v1039
  %2502 = vmatpush1.msra.mxu0 %v1038
  %2503 = vmatprep.subr.mxu0 %v1041
  %2504 = vmatpush1.msra.mxu0 %v1040
  %2505 = vmatprep.subr.mxu0 %v1043
  %2506 = vmatpush1.msra.mxu0 %v1042
  %2507 = vmatprep.subr.mxu0 %v1045
  %2508 = vmatpush1.msra.mxu0 %v1044
  %2509 = vmatprep.subr.mxu0 %v1047
  %2510 = vmatpush1.msra.mxu0 %v1046
  %2511 = vmatprep.subr.mxu0 %v1049
  %2512 = vmatpush1.msra.mxu0 %v1048
  %2513 = vmatprep.subr.mxu0 %v1051
  %2514 = vmatpush1.msra.mxu0 %v1050
  %2515 = vmatprep.subr.mxu0 %v1053
  %2516 = vmatpush1.msra.mxu0 %v1052
  %2517 = vmatprep.subr.mxu0 %v1055
  %2518 = vmatpush1.msra.mxu0 %v1054
  %2519 = vmatprep.subr.mxu0 %v1057
  %2520 = vmatpush1.msra.mxu0 %v1056
  %2521 = vmatprep.subr.mxu0 %v1059
  %2522 = vmatpush1.msra.mxu0 %v1058
  %2523 = vmatprep.subr.mxu0 %v1061
  %2524 = vmatpush1.msra.mxu0 %v1060
  %2525 = vmatprep.subr.mxu0 %v1063
  %2526 = vmatpush1.msra.mxu0 %v1062
  %2527 = vmatprep.subr.mxu0 %v1065
  %2528 = vmatpush1.msra.mxu0 %v1064
  %2529 = vmatprep.subr.mxu0 %v1067
  %2530 = vmatpush1.msra.mxu0 %v1066
  %2531 = vmatprep.subr.mxu0 %v1069
  %2532 = vmatpush1.msra.mxu0 %v1068
  %2533 = vmatprep.subr.mxu0 %v1071
  %2534 = vmatpush1.msra.mxu0 %v1070
  %2535 = vmatprep.subr.mxu0 %v1073
  %2536 = vmatpush1.msra.mxu0 %v1072
  %2537 = vmatprep.subr.mxu0 %v1075
  %2538 = vmatpush1.msra.mxu0 %v1074
  %2539 = vmatprep.subr.mxu0 %v1077
  %2540 = vmatpush1.msra.mxu0 %v1076
  %2541 = vmatprep.subr.mxu0 %v1079
  %2542 = vmatpush1.msra.mxu0 %v1078
  %2543 = vmatprep.subr.mxu0 %v1081
  %2544 = vmatpush1.msra.mxu0 %v1080
  %2545 = vmatprep.subr.mxu0 %v1083
  %2546 = vmatpush1.msra.mxu0 %v1082
  %2547 = vmatprep.subr.mxu0 %v1085
  %2548 = vmatpush1.msra.mxu0 %v1084
  %2549 = vmatprep.subr.mxu0 %v1087
  %2550 = vmatpush1.msra.mxu0 %v1086
  %2551 = vmatprep.subr.mxu0 %v1089
  %2552 = vmatpush1.msra.mxu0 %v1088
  %2553 = vmatprep.subr.mxu0 %v1091
  %2554 = vmatpush1.msra.mxu0 %v1090
  %2555 = vmatprep.subr.mxu0 %v1093
  %2556 = vmatpush1.msra.mxu0 %v1092
  %2557 = vmatprep.subr.mxu0 %v1095
  %2558 = vmatpush1.msra.mxu0 %v1094
  %2559 = vmatprep.subr.mxu0 %v1097
  %2560 = vmatpush1.msra.mxu0 %v1096
  %2561 = vmatprep.mubr.f32.mxu0 %v1544
  %2562 = vmatmul.mubr.f32.gmra.mrb[0].mxu0 %v194
  %v2563 = vpop.f32.mrb[0].mxu0
  %v2564 = vadd.f32 %v2493, %v2563
  %v2565 = vpop.f32.mrb[0].mxu0
  %v2566 = vadd.f32 %v2495, %v2565
  %2567 = vdwg.mxu0
  %2568 = vmatprep.subr.mxu0 %v1099
  %2569 = vmatpush1.msra.mxu0 %v1098
  %2570 = vmatprep.subr.mxu0 %v1101
  %2571 = vmatpush1.msra.mxu0 %v1100
  %2572 = vmatprep.subr.mxu0 %v1103
  %2573 = vmatpush1.msra.mxu0 %v1102
  %2574 = vmatprep.subr.mxu0 %v1105
  %2575 = vmatpush1.msra.mxu0 %v1104
  %2576 = vmatprep.subr.mxu0 %v1107
  %2577 = vmatpush1.msra.mxu0 %v1106
  %2578 = vmatprep.subr.mxu0 %v1109
  %2579 = vmatpush1.msra.mxu0 %v1108
  %2580 = vmatprep.subr.mxu0 %v1111
  %2581 = vmatpush1.msra.mxu0 %v1110
  %2582 = vmatprep.subr.mxu0 %v1113
  %2583 = vmatpush1.msra.mxu0 %v1112
  %2584 = vmatprep.subr.mxu0 %v1115
  %2585 = vmatpush1.msra.mxu0 %v1114
  %2586 = vmatprep.subr.mxu0 %v1117
  %2587 = vmatpush1.msra.mxu0 %v1116
  %2588 = vmatprep.subr.mxu0 %v1119
  %2589 = vmatpush1.msra.mxu0 %v1118
  %2590 = vmatprep.subr.mxu0 %v1121
  %2591 = vmatpush1.msra.mxu0 %v1120
  %2592 = vmatprep.subr.mxu0 %v1123
  %2593 = vmatpush1.msra.mxu0 %v1122
  %2594 = vmatprep.subr.mxu0 %v1125
  %2595 = vmatpush1.msra.mxu0 %v1124
  %2596 = vmatprep.subr.mxu0 %v1127
  %2597 = vmatpush1.msra.mxu0 %v1126
  %2598 = vmatprep.subr.mxu0 %v1129
  %2599 = vmatpush1.msra.mxu0 %v1128
  %2600 = vmatprep.subr.mxu0 %v1131
  %2601 = vmatpush1.msra.mxu0 %v1130
  %2602 = vmatprep.subr.mxu0 %v1133
  %2603 = vmatpush1.msra.mxu0 %v1132
  %2604 = vmatprep.subr.mxu0 %v1135
  %2605 = vmatpush1.msra.mxu0 %v1134
  %2606 = vmatprep.subr.mxu0 %v1137
  %2607 = vmatpush1.msra.mxu0 %v1136
  %2608 = vmatprep.subr.mxu0 %v1139
  %2609 = vmatpush1.msra.mxu0 %v1138
  %2610 = vmatprep.subr.mxu0 %v1141
  %2611 = vmatpush1.msra.mxu0 %v1140
  %2612 = vmatprep.subr.mxu0 %v1143
  %2613 = vmatpush1.msra.mxu0 %v1142
  %2614 = vmatprep.subr.mxu0 %v1145
  %2615 = vmatpush1.msra.mxu0 %v1144
  %2616 = vmatprep.subr.mxu0 %v1147
  %2617 = vmatpush1.msra.mxu0 %v1146
  %2618 = vmatprep.subr.mxu0 %v1149
  %2619 = vmatpush1.msra.mxu0 %v1148
  %2620 = vmatprep.subr.mxu0 %v1151
  %2621 = vmatpush1.msra.mxu0 %v1150
  %2622 = vmatprep.subr.mxu0 %v1153
  %2623 = vmatpush1.msra.mxu0 %v1152
  %2624 = vmatprep.subr.mxu0 %v1155
  %2625 = vmatpush1.msra.mxu0 %v1154
  %2626 = vmatprep.subr.mxu0 %v1157
  %2627 = vmatpush1.msra.mxu0 %v1156
  %2628 = vmatprep.subr.mxu0 %v1159
  %2629 = vmatpush1.msra.mxu0 %v1158
  %2630 = vmatprep.subr.mxu0 %v1161
  %2631 = vmatpush1.msra.mxu0 %v1160
  %2632 = vmatprep.mubr.f32.mxu0 %v1545
  %2633 = vmatmul.mubr.f32.gmra.mrb[0].mxu0 %v195
  %v2634 = vpop.f32.mrb[0].mxu0
  %v2635 = vadd.f32 %v2564, %v2634
  %v2636 = vpop.f32.mrb[0].mxu0
  %v2637 = vadd.f32 %v2566, %v2636
  %2638 = vdwg.mxu0
  %2639 = vmatprep.subr.mxu0 %v1163
  %2640 = vmatpush1.msra.mxu0 %v1162
  %2641 = vmatprep.subr.mxu0 %v1165
  %2642 = vmatpush1.msra.mxu0 %v1164
  %2643 = vmatprep.subr.mxu0 %v1167
  %2644 = vmatpush1.msra.mxu0 %v1166
  %2645 = vmatprep.subr.mxu0 %v1169
  %2646 = vmatpush1.msra.mxu0 %v1168
  %2647 = vmatprep.subr.mxu0 %v1171
  %2648 = vmatpush1.msra.mxu0 %v1170
  %2649 = vmatprep.subr.mxu0 %v1173
  %2650 = vmatpush1.msra.mxu0 %v1172
  %2651 = vmatprep.subr.mxu0 %v1175
  %2652 = vmatpush1.msra.mxu0 %v1174
  %2653 = vmatprep.subr.mxu0 %v1177
  %2654 = vmatpush1.msra.mxu0 %v1176
  %2655 = vmatprep.subr.mxu0 %v1179
  %2656 = vmatpush1.msra.mxu0 %v1178
  %2657 = vmatprep.subr.mxu0 %v1181
  %2658 = vmatpush1.msra.mxu0 %v1180
  %2659 = vmatprep.subr.mxu0 %v1183
  %2660 = vmatpush1.msra.mxu0 %v1182
  %2661 = vmatprep.subr.mxu0 %v1185
  %2662 = vmatpush1.msra.mxu0 %v1184
  %2663 = vmatprep.subr.mxu0 %v1187
  %2664 = vmatpush1.msra.mxu0 %v1186
  %2665 = vmatprep.subr.mxu0 %v1189
  %2666 = vmatpush1.msra.mxu0 %v1188
  %2667 = vmatprep.subr.mxu0 %v1191
  %2668 = vmatpush1.msra.mxu0 %v1190
  %2669 = vmatprep.subr.mxu0 %v1193
  %2670 = vmatpush1.msra.mxu0 %v1192
  %2671 = vmatprep.subr.mxu0 %v1195
  %2672 = vmatpush1.msra.mxu0 %v1194
  %2673 = vmatprep.subr.mxu0 %v1197
  %2674 = vmatpush1.msra.mxu0 %v1196
  %2675 = vmatprep.subr.mxu0 %v1199
  %2676 = vmatpush1.msra.mxu0 %v1198
  %2677 = vmatprep.subr.mxu0 %v1201
  %2678 = vmatpush1.msra.mxu0 %v1200
  %2679 = vmatprep.subr.mxu0 %v1203
  %2680 = vmatpush1.msra.mxu0 %v1202
  %2681 = vmatprep.subr.mxu0 %v1205
  %2682 = vmatpush1.msra.mxu0 %v1204
  %2683 = vmatprep.subr.mxu0 %v1207
  %2684 = vmatpush1.msra.mxu0 %v1206
  %2685 = vmatprep.subr.mxu0 %v1209
  %2686 = vmatpush1.msra.mxu0 %v1208
  %2687 = vmatprep.subr.mxu0 %v1211
  %2688 = vmatpush1.msra.mxu0 %v1210
  %2689 = vmatprep.subr.mxu0 %v1213
  %2690 = vmatpush1.msra.mxu0 %v1212
  %2691 = vmatprep.subr.mxu0 %v1215
  %2692 = vmatpush1.msra.mxu0 %v1214
  %2693 = vmatprep.subr.mxu0 %v1217
  %2694 = vmatpush1.msra.mxu0 %v1216
  %2695 = vmatprep.subr.mxu0 %v1219
  %2696 = vmatpush1.msra.mxu0 %v1218
  %2697 = vmatprep.subr.mxu0 %v1221
  %2698 = vmatpush1.msra.mxu0 %v1220
  %2699 = vmatprep.subr.mxu0 %v1223
  %2700 = vmatpush1.msra.mxu0 %v1222
  %2701 = vmatprep.subr.mxu0 %v1225
  %2702 = vmatpush1.msra.mxu0 %v1224
  %2703 = vmatprep.mubr.f32.mxu0 %v1546
  %2704 = vmatmul.mubr.f32.gmra.mrb[0].mxu0 %v196
  %v2705 = vpop.f32.mrb[0].mxu0
  %v2706 = vadd.f32 %v2635, %v2705
  %v2707 = vpop.f32.mrb[0].mxu0
  %v2708 = vadd.f32 %v2637, %v2707
  %2709 = vdwg.mxu0
  %2710 = vmatprep.subr.mxu0 %v1227
  %2711 = vmatpush1.msra.mxu0 %v1226
  %2712 = vmatprep.subr.mxu0 %v1229
  %2713 = vmatpush1.msra.mxu0 %v1228
  %2714 = vmatprep.subr.mxu0 %v1231
  %2715 = vmatpush1.msra.mxu0 %v1230
  %2716 = vmatprep.subr.mxu0 %v1233
  %2717 = vmatpush1.msra.mxu0 %v1232
  %2718 = vmatprep.subr.mxu0 %v1235
  %2719 = vmatpush1.msra.mxu0 %v1234
  %2720 = vmatprep.subr.mxu0 %v1237
  %2721 = vmatpush1.msra.mxu0 %v1236
  %2722 = vmatprep.subr.mxu0 %v1239
  %2723 = vmatpush1.msra.mxu0 %v1238
  %2724 = vmatprep.subr.mxu0 %v1241
  %2725 = vmatpush1.msra.mxu0 %v1240
  %2726 = vmatprep.subr.mxu0 %v1243
  %2727 = vmatpush1.msra.mxu0 %v1242
  %2728 = vmatprep.subr.mxu0 %v1245
  %2729 = vmatpush1.msra.mxu0 %v1244
  %2730 = vmatprep.subr.mxu0 %v1247
  %2731 = vmatpush1.msra.mxu0 %v1246
  %2732 = vmatprep.subr.mxu0 %v1249
  %2733 = vmatpush1.msra.mxu0 %v1248
  %2734 = vmatprep.subr.mxu0 %v1251
  %2735 = vmatpush1.msra.mxu0 %v1250
  %2736 = vmatprep.subr.mxu0 %v1253
  %2737 = vmatpush1.msra.mxu0 %v1252
  %2738 = vmatprep.subr.mxu0 %v1255
  %2739 = vmatpush1.msra.mxu0 %v1254
  %2740 = vmatprep.subr.mxu0 %v1257
  %2741 = vmatpush1.msra.mxu0 %v1256
  %2742 = vmatprep.subr.mxu0 %v1259
  %2743 = vmatpush1.msra.mxu0 %v1258
  %2744 = vmatprep.subr.mxu0 %v1261
  %2745 = vmatpush1.msra.mxu0 %v1260
  %2746 = vmatprep.subr.mxu0 %v1263
  %2747 = vmatpush1.msra.mxu0 %v1262
  %2748 = vmatprep.subr.mxu0 %v1265
  %2749 = vmatpush1.msra.mxu0 %v1264
  %2750 = vmatprep.subr.mxu0 %v1267
  %2751 = vmatpush1.msra.mxu0 %v1266
  %2752 = vmatprep.subr.mxu0 %v1269
  %2753 = vmatpush1.msra.mxu0 %v1268
  %2754 = vmatprep.subr.mxu0 %v1271
  %2755 = vmatpush1.msra.mxu0 %v1270
  %2756 = vmatprep.subr.mxu0 %v1273
  %2757 = vmatpush1.msra.mxu0 %v1272
  %2758 = vmatprep.subr.mxu0 %v1275
  %2759 = vmatpush1.msra.mxu0 %v1274
  %2760 = vmatprep.subr.mxu0 %v1277
  %2761 = vmatpush1.msra.mxu0 %v1276
  %2762 = vmatprep.subr.mxu0 %v1279
  %2763 = vmatpush1.msra.mxu0 %v1278
  %2764 = vmatprep.subr.mxu0 %v1281
  %2765 = vmatpush1.msra.mxu0 %v1280
  %2766 = vmatprep.subr.mxu0 %v1283
  %2767 = vmatpush1.msra.mxu0 %v1282
  %2768 = vmatprep.subr.mxu0 %v1285
  %2769 = vmatpush1.msra.mxu0 %v1284
  %2770 = vmatprep.subr.mxu0 %v1287
  %2771 = vmatpush1.msra.mxu0 %v1286
  %2772 = vmatprep.subr.mxu0 %v1289
  %2773 = vmatpush1.msra.mxu0 %v1288
  %2774 = vmatprep.mubr.f32.mxu0 %v1547
  %2775 = vmatmul.mubr.f32.gmra.mrb[0].mxu0 %v197
  %v2776 = vpop.f32.mrb[0].mxu0
  %v2777 = vadd.f32 %v2706, %v2776
  %v2778 = vpop.f32.mrb[0].mxu0
  %v2779 = vadd.f32 %v2708, %v2778
  %2780 = vdwg.mxu0
  %2781 = vmatprep.subr.mxu0 %v1291
  %2782 = vmatpush1.msra.mxu0 %v1290
  %2783 = vmatprep.subr.mxu0 %v1293
  %2784 = vmatpush1.msra.mxu0 %v1292
  %2785 = vmatprep.subr.mxu0 %v1295
  %2786 = vmatpush1.msra.mxu0 %v1294
  %2787 = vmatprep.subr.mxu0 %v1297
  %2788 = vmatpush1.msra.mxu0 %v1296
  %2789 = vmatprep.subr.mxu0 %v1299
  %2790 = vmatpush1.msra.mxu0 %v1298
  %2791 = vmatprep.subr.mxu0 %v1301
  %2792 = vmatpush1.msra.mxu0 %v1300
  %2793 = vmatprep.subr.mxu0 %v1303
  %2794 = vmatpush1.msra.mxu0 %v1302
  %2795 = vmatprep.subr.mxu0 %v1305
  %2796 = vmatpush1.msra.mxu0 %v1304
  %2797 = vmatprep.subr.mxu0 %v1307
  %2798 = vmatpush1.msra.mxu0 %v1306
  %2799 = vmatprep.subr.mxu0 %v1309
  %2800 = vmatpush1.msra.mxu0 %v1308
  %2801 = vmatprep.subr.mxu0 %v1311
  %2802 = vmatpush1.msra.mxu0 %v1310
  %2803 = vmatprep.subr.mxu0 %v1313
  %2804 = vmatpush1.msra.mxu0 %v1312
  %2805 = vmatprep.subr.mxu0 %v1315
  %2806 = vmatpush1.msra.mxu0 %v1314
  %2807 = vmatprep.subr.mxu0 %v1317
  %2808 = vmatpush1.msra.mxu0 %v1316
  %2809 = vmatprep.subr.mxu0 %v1319
  %2810 = vmatpush1.msra.mxu0 %v1318
  %2811 = vmatprep.subr.mxu0 %v1321
  %2812 = vmatpush1.msra.mxu0 %v1320
  %2813 = vmatprep.subr.mxu0 %v1323
  %2814 = vmatpush1.msra.mxu0 %v1322
  %2815 = vmatprep.subr.mxu0 %v1325
  %2816 = vmatpush1.msra.mxu0 %v1324
  %2817 = vmatprep.subr.mxu0 %v1327
  %2818 = vmatpush1.msra.mxu0 %v1326
  %2819 = vmatprep.subr.mxu0 %v1329
  %2820 = vmatpush1.msra.mxu0 %v1328
  %2821 = vmatprep.subr.mxu0 %v1331
  %2822 = vmatpush1.msra.mxu0 %v1330
  %2823 = vmatprep.subr.mxu0 %v1333
  %2824 = vmatpush1.msra.mxu0 %v1332
  %2825 = vmatprep.subr.mxu0 %v1335
  %2826 = vmatpush1.msra.mxu0 %v1334
  %2827 = vmatprep.subr.mxu0 %v1337
  %2828 = vmatpush1.msra.mxu0 %v1336
  %2829 = vmatprep.subr.mxu0 %v1339
  %2830 = vmatpush1.msra.mxu0 %v1338
  %2831 = vmatprep.subr.mxu0 %v1341
  %2832 = vmatpush1.msra.mxu0 %v1340
  %2833 = vmatprep.subr.mxu0 %v1343
  %2834 = vmatpush1.msra.mxu0 %v1342
  %2835 = vmatprep.subr.mxu0 %v1345
  %2836 = vmatpush1.msra.mxu0 %v1344
  %2837 = vmatprep.subr.mxu0 %v1347
  %2838 = vmatpush1.msra.mxu0 %v1346
  %2839 = vmatprep.subr.mxu0 %v1349
  %2840 = vmatpush1.msra.mxu0 %v1348
  %2841 = vmatprep.subr.mxu0 %v1351
  %2842 = vmatpush1.msra.mxu0 %v1350
  %2843 = vmatprep.subr.mxu0 %v1353
  %2844 = vmatpush1.msra.mxu0 %v1352
  %2845 = vmatprep.mubr.f32.mxu0 %v1548
  %2846 = vmatmul.mubr.f32.gmra.mrb[0].mxu0 %v198
  %v2847 = vpop.f32.mrb[0].mxu0
  %v2848 = vadd.f32 %v2777, %v2847
  %v2849 = vpop.f32.mrb[0].mxu0
  %v2850 = vadd.f32 %v2779, %v2849
  %2851 = vdwg.mxu0
  %2852 = vmatprep.subr.mxu0 %v1355
  %2853 = vmatpush1.msra.mxu0 %v1354
  %2854 = vmatprep.subr.mxu0 %v1357
  %2855 = vmatpush1.msra.mxu0 %v1356
  %2856 = vmatprep.subr.mxu0 %v1359
  %2857 = vmatpush1.msra.mxu0 %v1358
  %2858 = vmatprep.subr.mxu0 %v1361
  %2859 = vmatpush1.msra.mxu0 %v1360
  %2860 = vmatprep.subr.mxu0 %v1363
  %2861 = vmatpush1.msra.mxu0 %v1362
  %2862 = vmatprep.subr.mxu0 %v1365
  %2863 = vmatpush1.msra.mxu0 %v1364
  %2864 = vmatprep.subr.mxu0 %v1367
  %2865 = vmatpush1.msra.mxu0 %v1366
  %2866 = vmatprep.subr.mxu0 %v1369
  %2867 = vmatpush1.msra.mxu0 %v1368
  %2868 = vmatprep.subr.mxu0 %v1371
  %2869 = vmatpush1.msra.mxu0 %v1370
  %2870 = vmatprep.subr.mxu0 %v1373
  %2871 = vmatpush1.msra.mxu0 %v1372
  %2872 = vmatprep.subr.mxu0 %v1375
  %2873 = vmatpush1.msra.mxu0 %v1374
  %2874 = vmatprep.subr.mxu0 %v1377
  %2875 = vmatpush1.msra.mxu0 %v1376
  %2876 = vmatprep.subr.mxu0 %v1379
  %2877 = vmatpush1.msra.mxu0 %v1378
  %2878 = vmatprep.subr.mxu0 %v1381
  %2879 = vmatpush1.msra.mxu0 %v1380
  %2880 = vmatprep.subr.mxu0 %v1383
  %2881 = vmatpush1.msra.mxu0 %v1382
  %2882 = vmatprep.subr.mxu0 %v1385
  %2883 = vmatpush1.msra.mxu0 %v1384
  %2884 = vmatprep.subr.mxu0 %v1387
  %2885 = vmatpush1.msra.mxu0 %v1386
  %2886 = vmatprep.subr.mxu0 %v1389
  %2887 = vmatpush1.msra.mxu0 %v1388
  %2888 = vmatprep.subr.mxu0 %v1391
  %2889 = vmatpush1.msra.mxu0 %v1390
  %2890 = vmatprep.subr.mxu0 %v1393
  %2891 = vmatpush1.msra.mxu0 %v1392
  %2892 = vmatprep.subr.mxu0 %v1395
  %2893 = vmatpush1.msra.mxu0 %v1394
  %2894 = vmatprep.subr.mxu0 %v1397
  %2895 = vmatpush1.msra.mxu0 %v1396
  %2896 = vmatprep.subr.mxu0 %v1399
  %2897 = vmatpush1.msra.mxu0 %v1398
  %2898 = vmatprep.subr.mxu0 %v1401
  %2899 = vmatpush1.msra.mxu0 %v1400
  %2900 = vmatprep.subr.mxu0 %v1403
  %2901 = vmatpush1.msra.mxu0 %v1402
  %2902 = vmatprep.subr.mxu0 %v1405
  %2903 = vmatpush1.msra.mxu0 %v1404
  %2904 = vmatprep.subr.mxu0 %v1407
  %2905 = vmatpush1.msra.mxu0 %v1406
  %2906 = vmatprep.subr.mxu0 %v1409
  %2907 = vmatpush1.msra.mxu0 %v1408
  %2908 = vmatprep.subr.mxu0 %v1411
  %2909 = vmatpush1.msra.mxu0 %v1410
  %2910 = vmatprep.subr.mxu0 %v1413
  %2911 = vmatpush1.msra.mxu0 %v1412
  %2912 = vmatprep.subr.mxu0 %v1415
  %2913 = vmatpush1.msra.mxu0 %v1414
  %2914 = vmatprep.subr.mxu0 %v1417
  %2915 = vmatpush1.msra.mxu0 %v1416
  %2916 = vmatprep.mubr.f32.mxu0 %v1549
  %2917 = vmatmul.mubr.f32.gmra.mrb[0].mxu0 %v199
  %v2918 = vpop.f32.mrb[0].mxu0
  %v2919 = vadd.f32 %v2848, %v2918
  %v2920 = vpop.f32.mrb[0].mxu0
  %v2921 = vadd.f32 %v2850, %v2920
  %2922 = vdwg.mxu0
  %2923 = vmatprep.subr.mxu0 %v1419
  %2924 = vmatpush1.msra.mxu0 %v1418
  %2925 = vmatprep.subr.mxu0 %v1421
  %2926 = vmatpush1.msra.mxu0 %v1420
  %2927 = vmatprep.subr.mxu0 %v1423
  %2928 = vmatpush1.msra.mxu0 %v1422
  %2929 = vmatprep.subr.mxu0 %v1425
  %2930 = vmatpush1.msra.mxu0 %v1424
  %2931 = vmatprep.subr.mxu0 %v1427
  %2932 = vmatpush1.msra.mxu0 %v1426
  %2933 = vmatprep.subr.mxu0 %v1429
  %2934 = vmatpush1.msra.mxu0 %v1428
  %2935 = vmatprep.subr.mxu0 %v1431
  %2936 = vmatpush1.msra.mxu0 %v1430
  %2937 = vmatprep.subr.mxu0 %v1433
  %2938 = vmatpush1.msra.mxu0 %v1432
  %2939 = vmatprep.subr.mxu0 %v1435
  %2940 = vmatpush1.msra.mxu0 %v1434
  %2941 = vmatprep.subr.mxu0 %v1437
  %2942 = vmatpush1.msra.mxu0 %v1436
  %2943 = vmatprep.subr.mxu0 %v1439
  %2944 = vmatpush1.msra.mxu0 %v1438
  %2945 = vmatprep.subr.mxu0 %v1441
  %2946 = vmatpush1.msra.mxu0 %v1440
  %2947 = vmatprep.subr.mxu0 %v1443
  %2948 = vmatpush1.msra.mxu0 %v1442
  %2949 = vmatprep.subr.mxu0 %v1445
  %2950 = vmatpush1.msra.mxu0 %v1444
  %2951 = vmatprep.subr.mxu0 %v1447
  %2952 = vmatpush1.msra.mxu0 %v1446
  %2953 = vmatprep.subr.mxu0 %v1449
  %2954 = vmatpush1.msra.mxu0 %v1448
  %2955 = vmatprep.subr.mxu0 %v1451
  %2956 = vmatpush1.msra.mxu0 %v1450
  %2957 = vmatprep.subr.mxu0 %v1453
  %2958 = vmatpush1.msra.mxu0 %v1452
  %2959 = vmatprep.subr.mxu0 %v1455
  %2960 = vmatpush1.msra.mxu0 %v1454
  %2961 = vmatprep.subr.mxu0 %v1457
  %2962 = vmatpush1.msra.mxu0 %v1456
  %2963 = vmatprep.subr.mxu0 %v1459
  %2964 = vmatpush1.msra.mxu0 %v1458
  %2965 = vmatprep.subr.mxu0 %v1461
  %2966 = vmatpush1.msra.mxu0 %v1460
  %2967 = vmatprep.subr.mxu0 %v1463
  %2968 = vmatpush1.msra.mxu0 %v1462
  %2969 = vmatprep.subr.mxu0 %v1465
  %2970 = vmatpush1.msra.mxu0 %v1464
  %2971 = vmatprep.subr.mxu0 %v1467
  %2972 = vmatpush1.msra.mxu0 %v1466
  %2973 = vmatprep.subr.mxu0 %v1469
  %2974 = vmatpush1.msra.mxu0 %v1468
  %2975 = vmatprep.subr.mxu0 %v1471
  %2976 = vmatpush1.msra.mxu0 %v1470
  %2977 = vmatprep.subr.mxu0 %v1473
  %2978 = vmatpush1.msra.mxu0 %v1472
  %2979 = vmatprep.subr.mxu0 %v1475
  %2980 = vmatpush1.msra.mxu0 %v1474
  %2981 = vmatprep.subr.mxu0 %v1477
  %2982 = vmatpush1.msra.mxu0 %v1476
  %2983 = vmatprep.subr.mxu0 %v1479
  %2984 = vmatpush1.msra.mxu0 %v1478
  %2985 = vmatprep.subr.mxu0 %v1481
  %2986 = vmatpush1.msra.mxu0 %v1480
  %2987 = vmatprep.mubr.f32.mxu0 %v1550
  %2988 = vmatmul.mubr.f32.gmra.mrb[0].mxu0 %v200
  %v2989 = vpop.f32.mrb[0].mxu0
  %v2990 = vadd.f32 %v2919, %v2989
  %v2991 = vpop.f32.mrb[0].mxu0
  %v2992 = vadd.f32 %v2921, %v2991
  %2993 = vdwg.mxu0
  %2994 = vmatprep.subr.mxu0 %v1483
  %2995 = vmatpush1.msra.mxu0 %v1482
  %2996 = vmatprep.subr.mxu0 %v1485
  %2997 = vmatpush1.msra.mxu0 %v1484
  %2998 = vmatprep.subr.mxu0 %v1487
  %2999 = vmatpush1.msra.mxu0 %v1486
  %3000 = vmatprep.subr.mxu0 %v1489
  %3001 = vmatpush1.msra.mxu0 %v1488
  %3002 = vmatprep.subr.mxu0 %v1491
  %3003 = vmatpush1.msra.mxu0 %v1490
  %3004 = vmatprep.subr.mxu0 %v1493
  %3005 = vmatpush1.msra.mxu0 %v1492
  %3006 = vmatprep.subr.mxu0 %v1495
  %3007 = vmatpush1.msra.mxu0 %v1494
  %3008 = vmatprep.subr.mxu0 %v1497
  %3009 = vmatpush1.msra.mxu0 %v1496
  %3010 = vmatprep.subr.mxu0 0.0
  %3011 = vmatpush1.msra.mxu0 0.0
  %3012 = vmatprep.subr.mxu0 0.0
  %3013 = vmatpush1.msra.mxu0 0.0
  %3014 = vmatprep.subr.mxu0 0.0
  %3015 = vmatpush1.msra.mxu0 0.0
  %3016 = vmatprep.subr.mxu0 0.0
  %3017 = vmatpush1.msra.mxu0 0.0
  %3018 = vmatprep.subr.mxu0 0.0
  %3019 = vmatpush1.msra.mxu0 0.0
  %3020 = vmatprep.subr.mxu0 0.0
  %3021 = vmatpush1.msra.mxu0 0.0
  %3022 = vmatprep.subr.mxu0 0.0
  %3023 = vmatpush1.msra.mxu0 0.0
  %3024 = vmatprep.subr.mxu0 0.0
  %3025 = vmatpush1.msra.mxu0 0.0
  %3026 = vmatprep.subr.mxu0 0.0
  %3027 = vmatpush1.msra.mxu0 0.0
  %3028 = vmatprep.subr.mxu0 0.0
  %3029 = vmatpush1.msra.mxu0 0.0
  %3030 = vmatprep.subr.mxu0 0.0
  %3031 = vmatpush1.msra.mxu0 0.0
  %3032 = vmatprep.subr.mxu0 0.0
  %3033 = vmatpush1.msra.mxu0 0.0
  %3034 = vmatprep.subr.mxu0 0.0
  %3035 = vmatpush1.msra.mxu0 0.0
  %3036 = vmatprep.subr.mxu0 0.0
  %3037 = vmatpush1.msra.mxu0 0.0
  %3038 = vmatprep.subr.mxu0 0.0
  %3039 = vmatpush1.msra.mxu0 0.0
  %3040 = vmatprep.subr.mxu0 0.0
  %3041 = vmatpush1.msra.mxu0 0.0
  %3042 = vmatprep.subr.mxu0 0.0
  %3043 = vmatpush1.msra.mxu0 0.0
  %3044 = vmatprep.subr.mxu0 0.0
  %3045 = vmatpush1.msra.mxu0 0.0
  %3046 = vmatprep.subr.mxu0 0.0
  %3047 = vmatpush1.msra.mxu0 0.0
  %3048 = vmatprep.subr.mxu0 0.0
  %3049 = vmatpush1.msra.mxu0 0.0
  %3050 = vmatprep.subr.mxu0 0.0
  %3051 = vmatpush1.msra.mxu0 0.0
  %3052 = vmatprep.subr.mxu0 0.0
  %3053 = vmatpush1.msra.mxu0 0.0
  %3054 = vmatprep.subr.mxu0 0.0
  %3055 = vmatpush1.msra.mxu0 0.0
  %3056 = vmatprep.subr.mxu0 0.0
  %3057 = vmatpush1.msra.mxu0 0.0
  %3058 = vmatprep.mubr.f32.mxu0 0.0
  %3059 = vmatmul.mubr.f32.gmra.mrb[0].mxu0 %v1572
  %v3060 = vpop.f32.mrb[0].mxu0
  %v3061 = vadd.f32 %v2990, %v3060
  %v3062 = vpop.f32.mrb[0].mxu0
  %v3063 = vadd.f32 %v2992, %v3062
  %3064 = vdwg.mxu0
  %v3065 = vmax.f32 %v3061, 0.0
  %v3066 = vmax.f32 %v3063, 0.0
  %v3067 = vld [vmem:[%s6] sm:$0xff]
  %v3068 = vld [vmem:[%s6 + $0x8] sm:$0xff]
  %v3069 = vld [vmem:[%s6 + $0x10] sm:$0xff]
  %v3070 = vld [vmem:[%s6 + $0x18] sm:$0xff]
  %v3071 = vld [vmem:[%s6 + $0x20] sm:$0xff]
  %v3072 = vld [vmem:[%s6 + $0x28] sm:$0xff]
  %v3073 = vld [vmem:[%s6 + $0x30] sm:$0xff]
  %v3074 = vld [vmem:[%s6 + $0x38] sm:$0xff]
  %v3075 = vld [vmem:[%s6 + $0x40] sm:$0xff]
  %v3076 = vld [vmem:[%s6 + $0x48] sm:$0xff]
  %v3077 = vld [vmem:[%s6 + $0x50] sm:$0xff]
  %v3078 = vld [vmem:[%s6 + $0x58] sm:$0xff]
  %v3079 = vld [vmem:[%s6 + $0x60] sm:$0xff]
  %v3080 = vld [vmem:[%s6 + $0x68] sm:$0xff]
  %v3081 = vld [vmem:[%s6 + $0x70] sm:$0xff]
  %v3082 = vld [vmem:[%s6 + $0x78] sm:$0xff]
  %v3083 = vld [vmem:[%s6 + $0x80] sm:$0xff]
  %v3084 = vld [vmem:[%s6 + $0x88] sm:$0xff]
  %v3085 = vld [vmem:[%s6 + $0x90] sm:$0xff]
  %v3086 = vld [vmem:[%s6 + $0x98] sm:$0xff]
  %v3087 = vld [vmem:[%s6 + $0xa0] sm:$0xff]
  %v3088 = vld [vmem:[%s6 + $0xa8] sm:$0xff]
  %v3089 = vld [vmem:[%s6 + $0xb0] sm:$0xff]
  %v3090 = vld [vmem:[%s6 + $0xb8] sm:$0xff]
  %v3091 = vld [vmem:[%s6 + $0xc0] sm:$0xff]
  %v3092 = vld [vmem:[%s6 + $0xc8] sm:$0xff]
  %v3093 = vld [vmem:[%s6 + $0xd0] sm:$0xff]
  %v3094 = vld [vmem:[%s6 + $0xd8] sm:$0xff]
  %v3095 = vld [vmem:[%s6 + $0xe0] sm:$0xff]
  %v3096 = vld [vmem:[%s6 + $0xe8] sm:$0xff]
  %v3097 = vld [vmem:[%s6 + $0xf0] sm:$0xff]
  %v3098 = vld [vmem:[%s6 + $0xf8] sm:$0xff]
  %v3099 = vld [vmem:[%s7] sm:$0x1]
  %v3101 = vlaneseq
  %v3102 = vshrl.u32 %v3101, 7
  %v3103 = vsub.s32 0, %v3102
  %v3104 = vrot.slane %v3099, %v3103
  %3106 = vmatprep.subr.mxu0 0.0
  %3107 = vmatpush1.msra.mxu0 %v3067
  %3108 = vmatprep.subr.mxu0 0.0
  %3109 = vmatpush1.msra.mxu0 %v3068
  %3110 = vmatprep.subr.mxu0 0.0
  %3111 = vmatpush1.msra.mxu0 %v3069
  %3112 = vmatprep.subr.mxu0 0.0
  %3113 = vmatpush1.msra.mxu0 %v3070
  %3114 = vmatprep.subr.mxu0 0.0
  %3115 = vmatpush1.msra.mxu0 %v3071
  %3116 = vmatprep.subr.mxu0 0.0
  %3117 = vmatpush1.msra.mxu0 %v3072
  %3118 = vmatprep.subr.mxu0 0.0
  %3119 = vmatpush1.msra.mxu0 %v3073
  %3120 = vmatprep.subr.mxu0 0.0
  %3121 = vmatpush1.msra.mxu0 %v3074
  %3122 = vmatprep.subr.mxu0 0.0
  %3123 = vmatpush1.msra.mxu0 %v3075
  %3124 = vmatprep.subr.mxu0 0.0
  %3125 = vmatpush1.msra.mxu0 %v3076
  %3126 = vmatprep.subr.mxu0 0.0
  %3127 = vmatpush1.msra.mxu0 %v3077
  %3128 = vmatprep.subr.mxu0 0.0
  %3129 = vmatpush1.msra.mxu0 %v3078
  %3130 = vmatprep.subr.mxu0 0.0
  %3131 = vmatpush1.msra.mxu0 %v3079
  %3132 = vmatprep.subr.mxu0 0.0
  %3133 = vmatpush1.msra.mxu0 %v3080
  %3134 = vmatprep.subr.mxu0 0.0
  %3135 = vmatpush1.msra.mxu0 %v3081
  %3136 = vmatprep.subr.mxu0 0.0
  %3137 = vmatpush1.msra.mxu0 %v3082
  %3138 = vmatprep.subr.mxu0 0.0
  %3139 = vmatpush1.msra.mxu0 %v3083
  %3140 = vmatprep.subr.mxu0 0.0
  %3141 = vmatpush1.msra.mxu0 %v3084
  %3142 = vmatprep.subr.mxu0 0.0
  %3143 = vmatpush1.msra.mxu0 %v3085
  %3144 = vmatprep.subr.mxu0 0.0
  %3145 = vmatpush1.msra.mxu0 %v3086
  %3146 = vmatprep.subr.mxu0 0.0
  %3147 = vmatpush1.msra.mxu0 %v3087
  %3148 = vmatprep.subr.mxu0 0.0
  %3149 = vmatpush1.msra.mxu0 %v3088
  %3150 = vmatprep.subr.mxu0 0.0
  %3151 = vmatpush1.msra.mxu0 %v3089
  %3152 = vmatprep.subr.mxu0 0.0
  %3153 = vmatpush1.msra.mxu0 %v3090
  %3154 = vmatprep.subr.mxu0 0.0
  %3155 = vmatpush1.msra.mxu0 %v3091
  %3156 = vmatprep.subr.mxu0 0.0
  %3157 = vmatpush1.msra.mxu0 %v3092
  %3158 = vmatprep.subr.mxu0 0.0
  %3159 = vmatpush1.msra.mxu0 %v3093
  %3160 = vmatprep.subr.mxu0 0.0
  %3161 = vmatpush1.msra.mxu0 %v3094
  %3162 = vmatprep.subr.mxu0 0.0
  %3163 = vmatpush1.msra.mxu0 %v3095
  %3164 = vmatprep.subr.mxu0 0.0
  %3165 = vmatpush1.msra.mxu0 %v3096
  %3166 = vmatprep.subr.mxu0 0.0
  %3167 = vmatpush1.msra.mxu0 %v3097
  %3168 = vmatprep.subr.mxu0 0.0
  %3169 = vmatpush1.msra.mxu0 %v3098
  %3170 = vmatprep.mubr.f32.mxu0 %v3066
  %3171 = vmatmul.mubr.f32.gmra.mrb[0].mxu0 %v3065
  %v3172 = vpop.f32.mrb[0].mxu0
  %v3173 = vadd.f32 %v3104, %v3172
  %v3174 = vpop.f32.mrb[0].mxu0
  %3175 = vdwg.mxu0
  %v3176 = vmax.f32 %v3173, 0.0
  %v3177 = vld [vmem:[%s8] sm:$0xff]
  %v3178 = vld [vmem:[%s8 + $0x8] sm:$0xff]
  %v3179 = vld [vmem:[%s8 + $0x10] sm:$0xff]
  %v3180 = vld [vmem:[%s8 + $0x18] sm:$0xff]
  %v3181 = vld [vmem:[%s8 + $0x20] sm:$0xff]
  %v3182 = vld [vmem:[%s8 + $0x28] sm:$0xff]
  %v3183 = vld [vmem:[%s8 + $0x30] sm:$0xff]
  %v3184 = vld [vmem:[%s8 + $0x38] sm:$0xff]
  %v3185 = vld [vmem:[%s8 + $0x40] sm:$0xff]
  %v3186 = vld [vmem:[%s8 + $0x48] sm:$0xff]
  %v3187 = vld [vmem:[%s8 + $0x50] sm:$0xff]
  %v3188 = vld [vmem:[%s8 + $0x58] sm:$0xff]
  %v3189 = vld [vmem:[%s8 + $0x60] sm:$0xff]
  %v3190 = vld [vmem:[%s8 + $0x68] sm:$0xff]
  %v3191 = vld [vmem:[%s8 + $0x70] sm:$0xff]
  %v3192 = vld [vmem:[%s8 + $0x78] sm:$0xff]
  %v3193 = vld [vmem:[%s9] sm:$0x1]
  %v3195 = vlaneseq
  %v3196 = vshrl.u32 %v3195, 7
  %v3197 = vsub.s32 0, %v3196
  %v3198 = vrot.slane %v3193, %v3197
  %3200 = vmatprep.subr.mxu0 0.0
  %3201 = vmatpush1.msra.mxu0 %v3177
  %3202 = vmatprep.subr.mxu0 0.0
  %3203 = vmatpush1.msra.mxu0 %v3178
  %3204 = vmatprep.subr.mxu0 0.0
  %3205 = vmatpush1.msra.mxu0 %v3179
  %3206 = vmatprep.subr.mxu0 0.0
  %3207 = vmatpush1.msra.mxu0 %v3180
  %3208 = vmatprep.subr.mxu0 0.0
  %3209 = vmatpush1.msra.mxu0 %v3181
  %3210 = vmatprep.subr.mxu0 0.0
  %3211 = vmatpush1.msra.mxu0 %v3182
  %3212 = vmatprep.subr.mxu0 0.0
  %3213 = vmatpush1.msra.mxu0 %v3183
  %3214 = vmatprep.subr.mxu0 0.0
  %3215 = vmatpush1.msra.mxu0 %v3184
  %3216 = vmatprep.subr.mxu0 0.0
  %3217 = vmatpush1.msra.mxu0 %v3185
  %3218 = vmatprep.subr.mxu0 0.0
  %3219 = vmatpush1.msra.mxu0 %v3186
  %3220 = vmatprep.subr.mxu0 0.0
  %3221 = vmatpush1.msra.mxu0 %v3187
  %3222 = vmatprep.subr.mxu0 0.0
  %3223 = vmatpush1.msra.mxu0 %v3188
  %3224 = vmatprep.subr.mxu0 0.0
  %3225 = vmatpush1.msra.mxu0 %v3189
  %3226 = vmatprep.subr.mxu0 0.0
  %3227 = vmatpush1.msra.mxu0 %v3190
  %3228 = vmatprep.subr.mxu0 0.0
  %3229 = vmatpush1.msra.mxu0 %v3191
  %3230 = vmatprep.subr.mxu0 0.0
  %3231 = vmatpush1.msra.mxu0 %v3192
  %3232 = vmatprep.subr.mxu0 0.0
  %3233 = vmatpush1.msra.mxu0 0.0
  %3234 = vmatprep.subr.mxu0 0.0
  %3235 = vmatpush1.msra.mxu0 0.0
  %3236 = vmatprep.subr.mxu0 0.0
  %3237 = vmatpush1.msra.mxu0 0.0
  %3238 = vmatprep.subr.mxu0 0.0
  %3239 = vmatpush1.msra.mxu0 0.0
  %3240 = vmatprep.subr.mxu0 0.0
  %3241 = vmatpush1.msra.mxu0 0.0
  %3242 = vmatprep.subr.mxu0 0.0
  %3243 = vmatpush1.msra.mxu0 0.0
  %3244 = vmatprep.subr.mxu0 0.0
  %3245 = vmatpush1.msra.mxu0 0.0
  %3246 = vmatprep.subr.mxu0 0.0
  %3247 = vmatpush1.msra.mxu0 0.0
  %3248 = vmatprep.subr.mxu0 0.0
  %3249 = vmatpush1.msra.mxu0 0.0
  %3250 = vmatprep.subr.mxu0 0.0
  %3251 = vmatpush1.msra.mxu0 0.0
  %3252 = vmatprep.subr.mxu0 0.0
  %3253 = vmatpush1.msra.mxu0 0.0
  %3254 = vmatprep.subr.mxu0 0.0
  %3255 = vmatpush1.msra.mxu0 0.0
  %3256 = vmatprep.subr.mxu0 0.0
  %3257 = vmatpush1.msra.mxu0 0.0
  %3258 = vmatprep.subr.mxu0 0.0
  %3259 = vmatpush1.msra.mxu0 0.0
  %3260 = vmatprep.subr.mxu0 0.0
  %3261 = vmatpush1.msra.mxu0 0.0
  %3262 = vmatprep.subr.mxu0 0.0
  %3263 = vmatpush1.msra.mxu0 0.0
  %3264 = vmatprep.mubr.f32.mxu0 0.0
  %3265 = vmatmul.mubr.f32.gmra.mrb[0].mxu0 %v3176
  %v3266 = vpop.f32.mrb[0].mxu0
  %v3267 = vadd.f32 %v3198, %v3266
  %v3268 = vpop.f32.mrb[0].mxu0
  %3269 = vdwg.mxu0
  %v3270 = vmax.f32 %v3267, 0.0
  %v3271 = vld [vmem:[%s10] sm:$0xff]
  %v3272 = vld [vmem:[%s10 + $0x8] sm:$0xff]
  %v3273 = vld [vmem:[%s10 + $0x10] sm:$0xff]
  %v3274 = vld [vmem:[%s10 + $0x18] sm:$0xff]
  %v3275 = vld [vmem:[%s10 + $0x20] sm:$0xff]
  %v3276 = vld [vmem:[%s10 + $0x28] sm:$0xff]
  %v3277 = vld [vmem:[%s10 + $0x30] sm:$0xff]
  %v3278 = vld [vmem:[%s10 + $0x38] sm:$0xff]
  %v3279 = vld [vmem:[%s11] sm:$0x1]
  %v3281 = vlaneseq
  %v3282 = vshrl.u32 %v3281, 7
  %v3283 = vsub.s32 0, %v3282
  %v3284 = vrot.slane %v3279, %v3283
  %v3287 = vsel %vm1571, %v3270, 0
  %3289 = vmatprep.subr.mxu0 0.0
  %3290 = vmatpush1.msra.mxu0 %v3271
  %3291 = vmatprep.subr.mxu0 0.0
  %3292 = vmatpush1.msra.mxu0 %v3272
  %3293 = vmatprep.subr.mxu0 0.0
  %3294 = vmatpush1.msra.mxu0 %v3273
  %3295 = vmatprep.subr.mxu0 0.0
  %3296 = vmatpush1.msra.mxu0 %v3274
  %3297 = vmatprep.subr.mxu0 0.0
  %3298 = vmatpush1.msra.mxu0 %v3275
  %3299 = vmatprep.subr.mxu0 0.0
  %3300 = vmatpush1.msra.mxu0 %v3276
  %3301 = vmatprep.subr.mxu0 0.0
  %3302 = vmatpush1.msra.mxu0 %v3277
  %3303 = vmatprep.subr.mxu0 0.0
  %3304 = vmatpush1.msra.mxu0 %v3278
  %3305 = vmatprep.subr.mxu0 0.0
  %3306 = vmatpush1.msra.mxu0 0.0
  %3307 = vmatprep.subr.mxu0 0.0
  %3308 = vmatpush1.msra.mxu0 0.0
  %3309 = vmatprep.subr.mxu0 0.0
  %3310 = vmatpush1.msra.mxu0 0.0
  %3311 = vmatprep.subr.mxu0 0.0
  %3312 = vmatpush1.msra.mxu0 0.0
  %3313 = vmatprep.subr.mxu0 0.0
  %3314 = vmatpush1.msra.mxu0 0.0
  %3315 = vmatprep.subr.mxu0 0.0
  %3316 = vmatpush1.msra.mxu0 0.0
  %3317 = vmatprep.subr.mxu0 0.0
  %3318 = vmatpush1.msra.mxu0 0.0
  %3319 = vmatprep.subr.mxu0 0.0
  %3320 = vmatpush1.msra.mxu0 0.0
  %3321 = vmatprep.subr.mxu0 0.0
  %3322 = vmatpush1.msra.mxu0 0.0
  %3323 = vmatprep.subr.mxu0 0.0
  %3324 = vmatpush1.msra.mxu0 0.0
  %3325 = vmatprep.subr.mxu0 0.0
  %3326 = vmatpush1.msra.mxu0 0.0
  %3327 = vmatprep.subr.mxu0 0.0
  %3328 = vmatpush1.msra.mxu0 0.0
  %3329 = vmatprep.subr.mxu0 0.0
  %3330 = vmatpush1.msra.mxu0 0.0
  %3331 = vmatprep.subr.mxu0 0.0
  %3332 = vmatpush1.msra.mxu0 0.0
  %3333 = vmatprep.subr.mxu0 0.0
  %3334 = vmatpush1.msra.mxu0 0.0
  %3335 = vmatprep.subr.mxu0 0.0
  %3336 = vmatpush1.msra.mxu0 0.0
  %3337 = vmatprep.subr.mxu0 0.0
  %3338 = vmatpush1.msra.mxu0 0.0
  %3339 = vmatprep.subr.mxu0 0.0
  %3340 = vmatpush1.msra.mxu0 0.0
  %3341 = vmatprep.subr.mxu0 0.0
  %3342 = vmatpush1.msra.mxu0 0.0
  %3343 = vmatprep.subr.mxu0 0.0
  %3344 = vmatpush1.msra.mxu0 0.0
  %3345 = vmatprep.subr.mxu0 0.0
  %3346 = vmatpush1.msra.mxu0 0.0
  %3347 = vmatprep.subr.mxu0 0.0
  %3348 = vmatpush1.msra.mxu0 0.0
  %3349 = vmatprep.subr.mxu0 0.0
  %3350 = vmatpush1.msra.mxu0 0.0
  %3351 = vmatprep.subr.mxu0 0.0
  %3352 = vmatpush1.msra.mxu0 0.0
  %3353 = vmatprep.mubr.f32.mxu0 0.0
  %3354 = vmatmul.mubr.f32.gmra.mrb[0].mxu0 %v3287
  %v3355 = vpop.f32.mrb[0].mxu0
  %v3356 = vadd.f32 %v3284, %v3355
  %v3357 = vpop.f32.mrb[0].mxu0
  %3358 = vdwg.mxu0
  %v3359 = vsub.f32 0.0, %v3356
  %v3360 = vmul.f32 %v3359, 1.442695
  %v3361 = vpow.pop %v3360
  %v3362 = vadd.f32 %v3361, 1.0
  %v3363 = vrcp.pop %v3362
  %v3364 = vld [vmem:[%s12] sm:$0xff]
  %v3365 = vld [vmem:[%s12 + $0x8] sm:$0xff]
  %v3366 = vld [vmem:[%s12 + $0x10] sm:$0xff]
  %v3367 = vld [vmem:[%s12 + $0x18] sm:$0xff]
  %v3368 = vld [vmem:[%s12 + $0x20] sm:$0xff]
  %v3369 = vld [vmem:[%s12 + $0x28] sm:$0xff]
  %v3370 = vld [vmem:[%s12 + $0x30] sm:$0xff]
  %v3371 = vld [vmem:[%s12 + $0x38] sm:$0xff]
  %v3372 = vld [vmem:[%s12 + $0x40] sm:$0xff]
  %v3373 = vld [vmem:[%s12 + $0x48] sm:$0xff]
  %v3374 = vld [vmem:[%s12 + $0x50] sm:$0xff]
  %v3375 = vld [vmem:[%s12 + $0x58] sm:$0xff]
  %v3376 = vld [vmem:[%s12 + $0x60] sm:$0xff]
  %v3377 = vld [vmem:[%s12 + $0x68] sm:$0xff]
  %v3378 = vld [vmem:[%s12 + $0x70] sm:$0xff]
  %v3379 = vld [vmem:[%s12 + $0x78] sm:$0xff]
  %v3380 = vld [vmem:[%s13] sm:$0x1]
  %v3382 = vlaneseq
  %v3383 = vshrl.u32 %v3382, 7
  %v3384 = vsub.s32 0, %v3383
  %v3385 = vrot.slane %v3380, %v3384
  %3387 = vmatprep.subr.mxu0 0.0
  %3388 = vmatpush1.msra.mxu0 %v3364
  %3389 = vmatprep.subr.mxu0 0.0
  %3390 = vmatpush1.msra.mxu0 %v3365
  %3391 = vmatprep.subr.mxu0 0.0
  %3392 = vmatpush1.msra.mxu0 %v3366
  %3393 = vmatprep.subr.mxu0 0.0
  %3394 = vmatpush1.msra.mxu0 %v3367
  %3395 = vmatprep.subr.mxu0 0.0
  %3396 = vmatpush1.msra.mxu0 %v3368
  %3397 = vmatprep.subr.mxu0 0.0
  %3398 = vmatpush1.msra.mxu0 %v3369
  %3399 = vmatprep.subr.mxu0 0.0
  %3400 = vmatpush1.msra.mxu0 %v3370
  %3401 = vmatprep.subr.mxu0 0.0
  %3402 = vmatpush1.msra.mxu0 %v3371
  %3403 = vmatprep.subr.mxu0 0.0
  %3404 = vmatpush1.msra.mxu0 %v3372
  %3405 = vmatprep.subr.mxu0 0.0
  %3406 = vmatpush1.msra.mxu0 %v3373
  %3407 = vmatprep.subr.mxu0 0.0
  %3408 = vmatpush1.msra.mxu0 %v3374
  %3409 = vmatprep.subr.mxu0 0.0
  %3410 = vmatpush1.msra.mxu0 %v3375
  %3411 = vmatprep.subr.mxu0 0.0
  %3412 = vmatpush1.msra.mxu0 %v3376
  %3413 = vmatprep.subr.mxu0 0.0
  %3414 = vmatpush1.msra.mxu0 %v3377
  %3415 = vmatprep.subr.mxu0 0.0
  %3416 = vmatpush1.msra.mxu0 %v3378
  %3417 = vmatprep.subr.mxu0 0.0
  %3418 = vmatpush1.msra.mxu0 %v3379
  %3419 = vmatprep.subr.mxu0 0.0
  %3420 = vmatpush1.msra.mxu0 0.0
  %3421 = vmatprep.subr.mxu0 0.0
  %3422 = vmatpush1.msra.mxu0 0.0
  %3423 = vmatprep.subr.mxu0 0.0
  %3424 = vmatpush1.msra.mxu0 0.0
  %3425 = vmatprep.subr.mxu0 0.0
  %3426 = vmatpush1.msra.mxu0 0.0
  %3427 = vmatprep.subr.mxu0 0.0
  %3428 = vmatpush1.msra.mxu0 0.0
  %3429 = vmatprep.subr.mxu0 0.0
  %3430 = vmatpush1.msra.mxu0 0.0
  %3431 = vmatprep.subr.mxu0 0.0
  %3432 = vmatpush1.msra.mxu0 0.0
  %3433 = vmatprep.subr.mxu0 0.0
  %3434 = vmatpush1.msra.mxu0 0.0
  %3435 = vmatprep.subr.mxu0 0.0
  %3436 = vmatpush1.msra.mxu0 0.0
  %3437 = vmatprep.subr.mxu0 0.0
  %3438 = vmatpush1.msra.mxu0 0.0
  %3439 = vmatprep.subr.mxu0 0.0
  %3440 = vmatpush1.msra.mxu0 0.0
  %3441 = vmatprep.subr.mxu0 0.0
  %3442 = vmatpush1.msra.mxu0 0.0
  %3443 = vmatprep.subr.mxu0 0.0
  %3444 = vmatpush1.msra.mxu0 0.0
  %3445 = vmatprep.subr.mxu0 0.0
  %3446 = vmatpush1.msra.mxu0 0.0
  %3447 = vmatprep.subr.mxu0 0.0
  %3448 = vmatpush1.msra.mxu0 0.0
  %3449 = vmatprep.subr.mxu0 0.0
  %3450 = vmatpush1.msra.mxu0 0.0
  %3451 = vmatprep.mubr.f32.mxu0 0.0
  %3452 = vmatmul.mubr.f32.gmra.mrb[0].mxu0 %v3363
  %v3453 = vpop.f32.mrb[0].mxu0
  %v3454 = vadd.f32 %v3385, %v3453
  %v3455 = vpop.f32.mrb[0].mxu0
  %3456 = vdwg.mxu0
  %v3457 = vmax.f32 %v3454, 0.0
  %v3458 = vld [vmem:[%s14] sm:$0xff]
  %v3459 = vld [vmem:[%s14 + $0x8] sm:$0xff]
  %v3460 = vld [vmem:[%s14 + $0x10] sm:$0xff]
  %v3461 = vld [vmem:[%s14 + $0x18] sm:$0xff]
  %v3462 = vld [vmem:[%s14 + $0x20] sm:$0xff]
  %v3463 = vld [vmem:[%s14 + $0x28] sm:$0x3]
  %v3464 = vld [vmem:[%s15] sm:$0x1]
  %v3466 = vlaneseq
  %v3467 = vshrl.u32 %v3466, 7
  %v3468 = vsub.s32 0, %v3467
  %v3469 = vrot.slane %v3464, %v3468
  %vm3471 = vcmask 343040
  %v3473 = vsel %vm3471, %v3457, 0
  %vm3475 = vcmask 1041408
  %v3477 = vsel %vm3475, %v3463, 0
  %3479 = vmatprep.subr.mxu0 0.0
  %3480 = vmatpush1.msra.mxu0 %v3458
  %3481 = vmatprep.subr.mxu0 0.0
  %3482 = vmatpush1.msra.mxu0 %v3459
  %3483 = vmatprep.subr.mxu0 0.0
  %3484 = vmatpush1.msra.mxu0 %v3460
  %3485 = vmatprep.subr.mxu0 0.0
  %3486 = vmatpush1.msra.mxu0 %v3461
  %3487 = vmatprep.subr.mxu0 0.0
  %3488 = vmatpush1.msra.mxu0 %v3462
  %3489 = vmatprep.subr.mxu0 0.0
  %3490 = vmatpush1.msra.mxu0 %v3477
  %3491 = vmatprep.subr.mxu0 0.0
  %3492 = vmatpush1.msra.mxu0 0.0
  %3493 = vmatprep.subr.mxu0 0.0
  %3494 = vmatpush1.msra.mxu0 0.0
  %3495 = vmatprep.subr.mxu0 0.0
  %3496 = vmatpush1.msra.mxu0 0.0
  %3497 = vmatprep.subr.mxu0 0.0
  %3498 = vmatpush1.msra.mxu0 0.0
  %3499 = vmatprep.subr.mxu0 0.0
  %3500 = vmatpush1.msra.mxu0 0.0
  %3501 = vmatprep.subr.mxu0 0.0
  %3502 = vmatpush1.msra.mxu0 0.0
  %3503 = vmatprep.subr.mxu0 0.0
  %3504 = vmatpush1.msra.mxu0 0.0
  %3505 = vmatprep.subr.mxu0 0.0
  %3506 = vmatpush1.msra.mxu0 0.0
  %3507 = vmatprep.subr.mxu0 0.0
  %3508 = vmatpush1.msra.mxu0 0.0
  %3509 = vmatprep.subr.mxu0 0.0
  %3510 = vmatpush1.msra.mxu0 0.0
  %3511 = vmatprep.subr.mxu0 0.0
  %3512 = vmatpush1.msra.mxu0 0.0
  %3513 = vmatprep.subr.mxu0 0.0
  %3514 = vmatpush1.msra.mxu0 0.0
  %3515 = vmatprep.subr.mxu0 0.0
  %3516 = vmatpush1.msra.mxu0 0.0
  %3517 = vmatprep.subr.mxu0 0.0
  %3518 = vmatpush1.msra.mxu0 0.0
  %3519 = vmatprep.subr.mxu0 0.0
  %3520 = vmatpush1.msra.mxu0 0.0
  %3521 = vmatprep.subr.mxu0 0.0
  %3522 = vmatpush1.msra.mxu0 0.0
  %3523 = vmatprep.subr.mxu0 0.0
  %3524 = vmatpush1.msra.mxu0 0.0
  %3525 = vmatprep.subr.mxu0 0.0
  %3526 = vmatpush1.msra.mxu0 0.0
  %3527 = vmatprep.subr.mxu0 0.0
  %3528 = vmatpush1.msra.mxu0 0.0
  %3529 = vmatprep.subr.mxu0 0.0
  %3530 = vmatpush1.msra.mxu0 0.0
  %3531 = vmatprep.subr.mxu0 0.0
  %3532 = vmatpush1.msra.mxu0 0.0
  %3533 = vmatprep.subr.mxu0 0.0
  %3534 = vmatpush1.msra.mxu0 0.0
  %3535 = vmatprep.subr.mxu0 0.0
  %3536 = vmatpush1.msra.mxu0 0.0
  %3537 = vmatprep.subr.mxu0 0.0
  %3538 = vmatpush1.msra.mxu0 0.0
  %3539 = vmatprep.subr.mxu0 0.0
  %3540 = vmatpush1.msra.mxu0 0.0
  %3541 = vmatprep.subr.mxu0 0.0
  %3542 = vmatpush1.msra.mxu0 0.0
  %3543 = vmatprep.mubr.f32.mxu0 0.0
  %3544 = vmatmul.mubr.f32.gmra.mrb[0].mxu0 %v3473
  %v3545 = vpop.f32.mrb[0].mxu0
  %v3546 = vadd.f32 %v3469, %v3545
  %v3547 = vpop.f32.mrb[0].mxu0
  %3548 = vdwg.mxu0
  %3549 = vst [vmem:[%s16] sm:$0xf] %v3363
  %vm3550 = vcmask 76800
  %3551 = vst.msk [vmem:[%s17] sm:$0xf] %vm3550, %v3546
  // Predicated region
  $region66: #{siamese_forward.5} parent=0 // pred_check
    _
  $region67: #{siamese_forward.5} parent=0 // pred_check_branch
    %3553 = sbr.rel (0) target = $region69
  $region68: #{siamese_forward.5} parent=0 // pred_region
    _
  $region69: #{siamese_forward.5} parent=0 // pred_fallthru
    _
  // Predicated region
  $region70: #{siamese_forward.5} parent=0 // pred_check
    _
  $region71: #{siamese_forward.5} parent=0 // pred_check_branch
    %3555 = sbr.rel (0) target = $region73
  $region72: #{siamese_forward.5} parent=0 // pred_region
    _
  $region73: #{siamese_forward.5} parent=0 // pred_fallthru
    _
  // Predicated region
  $region74: #{siamese_forward.5} parent=0 // pred_check
    _
  $region75: #{siamese_forward.5} parent=0 // pred_check_branch
    %3557 = sbr.rel (0) target = $region77
  $region76: #{siamese_forward.5} parent=0 // pred_region
    _
  $region77: #{siamese_forward.5} parent=0 // pred_fallthru
    _
  // Predicated region
  $region78: #{siamese_forward.5} parent=0 // pred_check
    _
  $region79: #{siamese_forward.5} parent=0 // pred_check_branch
    %3559 = sbr.rel (0) target = $region81
  $region80: #{siamese_forward.5} parent=0 // pred_region
    _
  $region81: #{siamese_forward.5} parent=0 // pred_fallthru
    _

</llo_original>
